<compile_context>
chip_gen: v6e
topology: v6e:2x2x1
jax: 0.10.0
libtpu: 0.0.40
codegen_flags: <defaults>
</compile_context>

<pallas_src>
import functools

import jax
import jax.numpy as jnp
from jax.experimental import pallas as pl
from jax.experimental.pallas import tpu as pltpu


# ----------------------------------------------------------------------------
# Single fused kernel: spatial block-diagonal matmul + fully unrolled 2-layer
# LSTM.  Everything fits in VMEM; one invocation, lane-dense spatial output.
# ----------------------------------------------------------------------------
def _encoder_kernel(x_ref, wbd_ref, bbd_ref, wih0_ref, whh0_ref, b0_ref,
                    wih1_ref, whh1_ref, b1_ref, sp_ref, tmp_ref,
                    *, B, S, T, H):
    x_flat = x_ref[...]                                   # (B, S*T), f32

    # ---------------- spatial embedding: one block-diagonal matmul -----------
    sp_ref[...] = (
        jnp.dot(x_flat, wbd_ref[...], preferred_element_type=jnp.float32)
        + bbd_ref[...]
    )                                                     # (B, S*Ep), lane-dense

    # ---------------- temporal embedding: 2-layer LSTM -----------------------
    wih0 = wih0_ref[...]      # (1, 4H)  layer-0 input weight (scalar input)
    whh0 = whh0_ref[...]      # (H, 4H)  layer-0 recurrent weight
    b0 = b0_ref[...]          # (1, 4H)  layer-0 combined bias (b_ih + b_hh)
    wih1 = wih1_ref[...]      # (H, 4H)  layer-1 input weight
    whh1 = whh1_ref[...]      # (H, 4H)  layer-1 recurrent weight
    b1 = b1_ref[...]          # (1, 4H)  layer-1 combined bias

    # Hoist the layer-0 input-gate contribution for ALL S*T cell steps out of
    # the recurrence.  These have no loop-carried dependencies, so they come
    # off every cell's critical path and fill VPU slack.
    g0_in = [x_flat[:, idx:idx + 1] * wih0 + b0 for idx in range(S * T)]

    def cell(gates, c):
        # Two full-vreg EUP pushes over the whole (B, 4H = 128 lane) gate tile,
        # then pick i/f/o lanes from sig and g lanes from th (PyTorch ifgo).
        sig = jax.nn.sigmoid(gates)
        th = jnp.tanh(gates)
        i = sig[:, 0 * H:1 * H]
        f = sig[:, 1 * H:2 * H]
        g = th[:, 2 * H:3 * H]
        o = sig[:, 3 * H:4 * H]
        c_new = f * c + i * g
        return o * jnp.tanh(c_new), c_new

    zeros = jnp.zeros((B, H), jnp.float32)
    h0, c0, h1, c1 = zeros, zeros, zeros, zeros

    # Static unroll: T*S = 32 cell steps at these sizes.
    for t in range(T):
        for s in range(S):
            idx = s * T + t                               # x[:, s, t]
            # Layer-1 recurrent half: depends only on the PREVIOUS h1, so it is
            # independent of this step's layer-0 chain and overlaps it.
            g1b = jnp.dot(h1, whh1, preferred_element_type=jnp.float32) + b1
            # Layer 0: only the recurrent matmul sits on the critical path.
            g0 = g0_in[idx] + jnp.dot(h0, whh0,
                                      preferred_element_type=jnp.float32)
            h0, c0 = cell(g0, c0)
            # Layer 1: only the wih1 half waits on the fresh h0 (no concat).
            g1 = jnp.dot(h0, wih1, preferred_element_type=jnp.float32) + g1b
            h1, c1 = cell(g1, c1)
        # Store this time step's top-layer hidden state directly: no epilogue
        # concat in the kernel and no transpose in the wrapper.
        tmp_ref[t, :, :] = h1                             # (B, H)


# ----------------------------------------------------------------------------
# Wrapper: one pallas_call, then a cheap slice to drop the lane padding.
# ----------------------------------------------------------------------------
def encoder_forward(x, packed, *, spatial_emb_size):
    """x: (B, S, T) float32.

    Returns:
      spatial_emb: (B, S, E)
      temp_emb:    (T, B, H)  (== stacked list of per-time-step hidden_emb[1])
    """
    B, S, T = x.shape
    H = packed["b0"].shape[-1] // 4
    Ep = packed["w_bd"].shape[-1] // S
    E = spatial_emb_size

    x_flat = x.reshape(B, S * T)                          # free row-major reshape

    kernel = functools.partial(_encoder_kernel, B=B, S=S, T=T, H=H)
    sp_flat, temp_emb = pl.pallas_call(
        kernel,
        out_shape=(
            jax.ShapeDtypeStruct((B, S * Ep), jnp.float32),
            jax.ShapeDtypeStruct((T, B, H), jnp.float32),
        ),
        grid=(1,),
        in_specs=[
            pl.BlockSpec((B, S * T), lambda i: (0, 0)),
            pl.BlockSpec((S * T, S * Ep), lambda i: (0, 0)),
            pl.BlockSpec((1, S * Ep), lambda i: (0, 0)),
            pl.BlockSpec((1, 4 * H), lambda i: (0, 0)),
            pl.BlockSpec((H, 4 * H), lambda i: (0, 0)),
            pl.BlockSpec((1, 4 * H), lambda i: (0, 0)),
            pl.BlockSpec((H, 4 * H), lambda i: (0, 0)),
            pl.BlockSpec((H, 4 * H), lambda i: (0, 0)),
            pl.BlockSpec((1, 4 * H), lambda i: (0, 0)),
        ],
        out_specs=(
            pl.BlockSpec((B, S * Ep), lambda i: (0, 0)),
            pl.BlockSpec((T, B, H), lambda i: (0, 0, 0)),
        ),
        compiler_params=pltpu.CompilerParams(
            dimension_semantics=("arbitrary",)),
    )(x_flat, packed["w_bd"], packed["b_bd"], packed["wih0"], packed["whh0"],
      packed["b0"], packed["wih1"], packed["whh1"], packed["b1"])

    spatial_emb = sp_flat.reshape(B, S, Ep)[:, :, :E]     # drop lane padding
    return spatial_emb, temp_emb


# ----------------------------------------------------------------------------
# Parameter init (natural PyTorch-style shapes) + one-time packing for the
# kernel (block-diagonal spatial weight; LSTM weights passed un-fused).
# ----------------------------------------------------------------------------
def init_params(key, input_size, time_length, hidden_size, spatial_emb_size):
    ks = jax.random.split(key, 9)
    H = hidden_size
    lin_bound = 1.0 / jnp.sqrt(time_length)
    lstm_bound = 1.0 / jnp.sqrt(H)

    def u(k, shape, bound):
        return jax.random.uniform(k, shape, jnp.float32, -bound, bound)

    return {
        # one Linear(time_length -> spatial_emb_size) per factor, stacked
        "sp_w": u(ks[0], (input_size, time_length, spatial_emb_size), lin_bound),
        "sp_b": u(ks[1], (input_size, spatial_emb_size), lin_bound),
        "lstm": {
            # layer 0: input dim 1 -> H ; layer 1: H -> H ; gate order i,f,g,o
            "wih0": u(ks[2], (1, 4 * H), lstm_bound),
            "whh0": u(ks[3], (H, 4 * H), lstm_bound),
            "b0":   u(ks[4], (1, 4 * H), lstm_bound),   # b_ih0 + b_hh0 combined
            "wih1": u(ks[5], (H, 4 * H), lstm_bound),
            "whh1": u(ks[6], (H, 4 * H), lstm_bound),
            "b1":   u(ks[7], (1, 4 * H), lstm_bound),   # b_ih1 + b_hh1 combined
        },
    }


def pack_params(params):
    """One-time host-side packing into kernel-friendly, lane-dense layouts."""
    sp_w = params["sp_w"]                                 # (S, T, E)
    sp_b = params["sp_b"]                                 # (S, E)
    S, T, E = sp_w.shape
    Ep = max(128, ((E + 127) // 128) * 128)               # lane-padded per-factor width

    w_bd = jnp.zeros((S * T, S * Ep), jnp.float32)
    b_bd = jnp.zeros((1, S * Ep), jnp.float32)
    for s in range(S):
        w_bd = w_bd.at[s * T:(s + 1) * T, s * Ep:s * Ep + E].set(sp_w[s])
        b_bd = b_bd.at[0, s * Ep:s * Ep + E].set(sp_b[s])

    lp = params["lstm"]
    return {
        "w_bd": w_bd,
        "b_bd": b_bd,
        "wih0": lp["wih0"],
        "whh0": lp["whh0"],
        "b0": lp["b0"],
        "wih1": lp["wih1"],
        "whh1": lp["whh1"],
        "b1": lp["b1"],
    }


# ----------------------------------------------------------------------------
# Pure-JAX reference (same math, natural parameter layout) for correctness.
# ----------------------------------------------------------------------------
def reference_forward(x, params):
    B, S, T = x.shape
    lp = params["lstm"]
    H = lp["whh0"].shape[0]
    spatial = jnp.einsum("bst,ste->bse", x, params["sp_w"]) + params["sp_b"][None]

    def cell(gates, c):
        i, f, g, o = jnp.split(gates, 4, axis=-1)
        c_new = jax.nn.sigmoid(f) * c + jax.nn.sigmoid(i) * jnp.tanh(g)
        return jax.nn.sigmoid(o) * jnp.tanh(c_new), c_new

    h0 = c0 = h1 = c1 = jnp.zeros((B, H), jnp.float32)
    outs = []
    for t in range(T):
        for s in range(S):
            xs = x[:, s, t:t + 1]
            g0 = xs * lp["wih0"] + h0 @ lp["whh0"] + lp["b0"]
            h0, c0 = cell(g0, c0)
            g1 = h0 @ lp["wih1"] + h1 @ lp["whh1"] + lp["b1"]
            h1, c1 = cell(g1, c1)
        outs.append(h1)
    return spatial, jnp.stack(outs)                       # (B,S,E), (T,B,H)


if __name__ == "__main__":
    B, S, T = 2, 4, 8            # batch, input_size (factors), time_length
    H, E = 32, 100               # hidden_size, spatial_emb_size

    key = jax.random.PRNGKey(0)
    k_x, k_p = jax.random.split(key)
    x = jax.random.normal(k_x, (B, S, T), jnp.float32)
    params = init_params(k_p, S, T, H, E)
    packed = pack_params(params)

    spatial_emb, temp_emb = encoder_forward(x, packed, spatial_emb_size=E)
    spatial_emb = jax.block_until_ready(spatial_emb)
    temp_emb = jax.block_until_ready(temp_emb)

    ref_spatial, ref_temp = reference_forward(x, params)
    assert spatial_emb.shape == (B, S, E)
    assert temp_emb.shape == (T, B, H)
    assert jnp.allclose(spatial_emb, ref_spatial, atol=1e-4, rtol=1e-4)
    assert jnp.allclose(temp_emb, ref_temp, atol=1e-4, rtol=1e-4)

    print("KERNEL_OK")
</pallas_src>

<mosaic_0001>
module attributes {stable_mosaic.version = 11 : i64} {
  func.func @_encoder_kernel(%arg0: i32, %arg1: memref<2x32xf32, #tpu.memory_space<vmem>>, %arg2: memref<32x512xf32, #tpu.memory_space<vmem>>, %arg3: memref<1x512xf32, #tpu.memory_space<vmem>>, %arg4: memref<1x128xf32, #tpu.memory_space<vmem>>, %arg5: memref<32x128xf32, #tpu.memory_space<vmem>>, %arg6: memref<1x128xf32, #tpu.memory_space<vmem>>, %arg7: memref<32x128xf32, #tpu.memory_space<vmem>>, %arg8: memref<32x128xf32, #tpu.memory_space<vmem>>, %arg9: memref<1x128xf32, #tpu.memory_space<vmem>>, %arg10: memref<2x512xf32, #tpu.memory_space<vmem>>, %arg11: memref<8x2x32xf32, #tpu.memory_space<vmem>>) attributes {dimension_semantics = [#tpu.dimension_semantics<arbitrary>], iteration_bounds = array<i64: 1>, scalar_prefetch = 0 : i64, scratch_operands = 0 : i64, tpu.core_type = #tpu.core_type<tc>, window_params = [{pipeline_mode = #tpu.pipeline_mode<synchronous>, transform_indices = @transform_0, window_bounds = array<i64: 2, 32>}, {pipeline_mode = #tpu.pipeline_mode<synchronous>, transform_indices = @transform_1, window_bounds = array<i64: 32, 512>}, {pipeline_mode = #tpu.pipeline_mode<synchronous>, transform_indices = @transform_2, window_bounds = array<i64: 1, 512>}, {pipeline_mode = #tpu.pipeline_mode<synchronous>, transform_indices = @transform_3, window_bounds = array<i64: 1, 128>}, {pipeline_mode = #tpu.pipeline_mode<synchronous>, transform_indices = @transform_4, window_bounds = array<i64: 32, 128>}, {pipeline_mode = #tpu.pipeline_mode<synchronous>, transform_indices = @transform_5, window_bounds = array<i64: 1, 128>}, {pipeline_mode = #tpu.pipeline_mode<synchronous>, transform_indices = @transform_6, window_bounds = array<i64: 32, 128>}, {pipeline_mode = #tpu.pipeline_mode<synchronous>, transform_indices = @transform_7, window_bounds = array<i64: 32, 128>}, {pipeline_mode = #tpu.pipeline_mode<synchronous>, transform_indices = @transform_8, window_bounds = array<i64: 1, 128>}, {pipeline_mode = #tpu.pipeline_mode<synchronous>, transform_indices = @transform_9, window_bounds = array<i64: 2, 512>}, {pipeline_mode = #tpu.pipeline_mode<synchronous>, transform_indices = @transform_10, window_bounds = array<i64: 8, 2, 32>}]} {
    %c0 = arith.constant 0 : index
    %c0_0 = arith.constant 0 : index
    %0 = vector.load %arg1[%c0, %c0_0] : memref<2x32xf32, #tpu.memory_space<vmem>>, vector<2x32xf32>
    %c0_1 = arith.constant 0 : index
    %c0_2 = arith.constant 0 : index
    %1 = vector.load %arg2[%c0_1, %c0_2] : memref<32x512xf32, #tpu.memory_space<vmem>>, vector<32x512xf32>
    %cst = arith.constant dense<0.000000e+00> : vector<2x512xf32>
    %2 = tpu.matmul %0, %1, %cst {dimension_numbers = #tpu.dot_dimension_numbers<[1], [0], [0], [1], [0, 0, 1, 1], [], []>} : vector<2x32xf32>, vector<32x512xf32>, vector<2x512xf32> -> vector<2x512xf32>
    %c0_3 = arith.constant 0 : index
    %c0_4 = arith.constant 0 : index
    %3 = vector.load %arg3[%c0_3, %c0_4] : memref<1x512xf32, #tpu.memory_space<vmem>>, vector<1x512xf32>
    %4 = vector.broadcast %3 : vector<1x512xf32> to vector<2x512xf32>
    %5 = arith.addf %2, %4 : vector<2x512xf32>
    %c0_5 = arith.constant 0 : index
    %c0_6 = arith.constant 0 : index
    %6 = vector.load %arg10[%c0_5, %c0_6] : memref<2x512xf32, #tpu.memory_space<vmem>>, vector<2x512xf32>
    tpu.vector_store %arg10[%c0_5, %c0_6], %5 {strides = array<i32>} : memref<2x512xf32, #tpu.memory_space<vmem>>, vector<2x512xf32>,
    %c0_7 = arith.constant 0 : index
    %c0_8 = arith.constant 0 : index
    %7 = vector.load %arg4[%c0_7, %c0_8] : memref<1x128xf32, #tpu.memory_space<vmem>>, vector<1x128xf32>
    %c0_9 = arith.constant 0 : index
    %c0_10 = arith.constant 0 : index
    %8 = vector.load %arg5[%c0_9, %c0_10] : memref<32x128xf32, #tpu.memory_space<vmem>>, vector<32x128xf32>
    %c0_11 = arith.constant 0 : index
    %c0_12 = arith.constant 0 : index
    %9 = vector.load %arg6[%c0_11, %c0_12] : memref<1x128xf32, #tpu.memory_space<vmem>>, vector<1x128xf32>
    %c0_13 = arith.constant 0 : index
    %c0_14 = arith.constant 0 : index
    %10 = vector.load %arg7[%c0_13, %c0_14] : memref<32x128xf32, #tpu.memory_space<vmem>>, vector<32x128xf32>
    %c0_15 = arith.constant 0 : index
    %c0_16 = arith.constant 0 : index
    %11 = vector.load %arg8[%c0_15, %c0_16] : memref<32x128xf32, #tpu.memory_space<vmem>>, vector<32x128xf32>
    %c0_17 = arith.constant 0 : index
    %c0_18 = arith.constant 0 : index
    %12 = vector.load %arg9[%c0_17, %c0_18] : memref<1x128xf32, #tpu.memory_space<vmem>>, vector<1x128xf32>
    %13 = vector.extract_strided_slice %0 {offsets = [0, 0], sizes = [2, 1], strides = [1, 1]} : vector<2x32xf32> to vector<2x1xf32>
    %14 = vector.broadcast %13 : vector<2x1xf32> to vector<2x128xf32>
    %15 = vector.broadcast %7 : vector<1x128xf32> to vector<2x128xf32>
    %16 = arith.mulf %14, %15 : vector<2x128xf32>
    %17 = vector.broadcast %9 : vector<1x128xf32> to vector<2x128xf32>
    %18 = arith.addf %16, %17 : vector<2x128xf32>
    %19 = vector.extract_strided_slice %0 {offsets = [0, 1], sizes = [2, 1], strides = [1, 1]} : vector<2x32xf32> to vector<2x1xf32>
    %20 = vector.broadcast %19 : vector<2x1xf32> to vector<2x128xf32>
    %21 = vector.broadcast %7 : vector<1x128xf32> to vector<2x128xf32>
    %22 = arith.mulf %20, %21 : vector<2x128xf32>
    %23 = vector.broadcast %9 : vector<1x128xf32> to vector<2x128xf32>
    %24 = arith.addf %22, %23 : vector<2x128xf32>
    %25 = vector.extract_strided_slice %0 {offsets = [0, 2], sizes = [2, 1], strides = [1, 1]} : vector<2x32xf32> to vector<2x1xf32>
    %26 = vector.broadcast %25 : vector<2x1xf32> to vector<2x128xf32>
    %27 = vector.broadcast %7 : vector<1x128xf32> to vector<2x128xf32>
    %28 = arith.mulf %26, %27 : vector<2x128xf32>
    %29 = vector.broadcast %9 : vector<1x128xf32> to vector<2x128xf32>
    %30 = arith.addf %28, %29 : vector<2x128xf32>
    %31 = vector.extract_strided_slice %0 {offsets = [0, 3], sizes = [2, 1], strides = [1, 1]} : vector<2x32xf32> to vector<2x1xf32>
    %32 = vector.broadcast %31 : vector<2x1xf32> to vector<2x128xf32>
    %33 = vector.broadcast %7 : vector<1x128xf32> to vector<2x128xf32>
    %34 = arith.mulf %32, %33 : vector<2x128xf32>
    %35 = vector.broadcast %9 : vector<1x128xf32> to vector<2x128xf32>
    %36 = arith.addf %34, %35 : vector<2x128xf32>
    %37 = vector.extract_strided_slice %0 {offsets = [0, 4], sizes = [2, 1], strides = [1, 1]} : vector<2x32xf32> to vector<2x1xf32>
    %38 = vector.broadcast %37 : vector<2x1xf32> to vector<2x128xf32>
    %39 = vector.broadcast %7 : vector<1x128xf32> to vector<2x128xf32>
    %40 = arith.mulf %38, %39 : vector<2x128xf32>
    %41 = vector.broadcast %9 : vector<1x128xf32> to vector<2x128xf32>
    %42 = arith.addf %40, %41 : vector<2x128xf32>
    %43 = vector.extract_strided_slice %0 {offsets = [0, 5], sizes = [2, 1], strides = [1, 1]} : vector<2x32xf32> to vector<2x1xf32>
    %44 = vector.broadcast %43 : vector<2x1xf32> to vector<2x128xf32>
    %45 = vector.broadcast %7 : vector<1x128xf32> to vector<2x128xf32>
    %46 = arith.mulf %44, %45 : vector<2x128xf32>
    %47 = vector.broadcast %9 : vector<1x128xf32> to vector<2x128xf32>
    %48 = arith.addf %46, %47 : vector<2x128xf32>
    %49 = vector.extract_strided_slice %0 {offsets = [0, 6], sizes = [2, 1], strides = [1, 1]} : vector<2x32xf32> to vector<2x1xf32>
    %50 = vector.broadcast %49 : vector<2x1xf32> to vector<2x128xf32>
    %51 = vector.broadcast %7 : vector<1x128xf32> to vector<2x128xf32>
    %52 = arith.mulf %50, %51 : vector<2x128xf32>
    %53 = vector.broadcast %9 : vector<1x128xf32> to vector<2x128xf32>
    %54 = arith.addf %52, %53 : vector<2x128xf32>
    %55 = vector.extract_strided_slice %0 {offsets = [0, 7], sizes = [2, 1], strides = [1, 1]} : vector<2x32xf32> to vector<2x1xf32>
    %56 = vector.broadcast %55 : vector<2x1xf32> to vector<2x128xf32>
    %57 = vector.broadcast %7 : vector<1x128xf32> to vector<2x128xf32>
    %58 = arith.mulf %56, %57 : vector<2x128xf32>
    %59 = vector.broadcast %9 : vector<1x128xf32> to vector<2x128xf32>
    %60 = arith.addf %58, %59 : vector<2x128xf32>
    %61 = vector.extract_strided_slice %0 {offsets = [0, 8], sizes = [2, 1], strides = [1, 1]} : vector<2x32xf32> to vector<2x1xf32>
    %62 = vector.broadcast %61 : vector<2x1xf32> to vector<2x128xf32>
    %63 = vector.broadcast %7 : vector<1x128xf32> to vector<2x128xf32>
    %64 = arith.mulf %62, %63 : vector<2x128xf32>
    %65 = vector.broadcast %9 : vector<1x128xf32> to vector<2x128xf32>
    %66 = arith.addf %64, %65 : vector<2x128xf32>
    %67 = vector.extract_strided_slice %0 {offsets = [0, 9], sizes = [2, 1], strides = [1, 1]} : vector<2x32xf32> to vector<2x1xf32>
    %68 = vector.broadcast %67 : vector<2x1xf32> to vector<2x128xf32>
    %69 = vector.broadcast %7 : vector<1x128xf32> to vector<2x128xf32>
    %70 = arith.mulf %68, %69 : vector<2x128xf32>
    %71 = vector.broadcast %9 : vector<1x128xf32> to vector<2x128xf32>
    %72 = arith.addf %70, %71 : vector<2x128xf32>
    %73 = vector.extract_strided_slice %0 {offsets = [0, 10], sizes = [2, 1], strides = [1, 1]} : vector<2x32xf32> to vector<2x1xf32>
    %74 = vector.broadcast %73 : vector<2x1xf32> to vector<2x128xf32>
    %75 = vector.broadcast %7 : vector<1x128xf32> to vector<2x128xf32>
    %76 = arith.mulf %74, %75 : vector<2x128xf32>
    %77 = vector.broadcast %9 : vector<1x128xf32> to vector<2x128xf32>
    %78 = arith.addf %76, %77 : vector<2x128xf32>
    %79 = vector.extract_strided_slice %0 {offsets = [0, 11], sizes = [2, 1], strides = [1, 1]} : vector<2x32xf32> to vector<2x1xf32>
    %80 = vector.broadcast %79 : vector<2x1xf32> to vector<2x128xf32>
    %81 = vector.broadcast %7 : vector<1x128xf32> to vector<2x128xf32>
    %82 = arith.mulf %80, %81 : vector<2x128xf32>
    %83 = vector.broadcast %9 : vector<1x128xf32> to vector<2x128xf32>
    %84 = arith.addf %82, %83 : vector<2x128xf32>
    %85 = vector.extract_strided_slice %0 {offsets = [0, 12], sizes = [2, 1], strides = [1, 1]} : vector<2x32xf32> to vector<2x1xf32>
    %86 = vector.broadcast %85 : vector<2x1xf32> to vector<2x128xf32>
    %87 = vector.broadcast %7 : vector<1x128xf32> to vector<2x128xf32>
    %88 = arith.mulf %86, %87 : vector<2x128xf32>
    %89 = vector.broadcast %9 : vector<1x128xf32> to vector<2x128xf32>
    %90 = arith.addf %88, %89 : vector<2x128xf32>
    %91 = vector.extract_strided_slice %0 {offsets = [0, 13], sizes = [2, 1], strides = [1, 1]} : vector<2x32xf32> to vector<2x1xf32>
    %92 = vector.broadcast %91 : vector<2x1xf32> to vector<2x128xf32>
    %93 = vector.broadcast %7 : vector<1x128xf32> to vector<2x128xf32>
    %94 = arith.mulf %92, %93 : vector<2x128xf32>
    %95 = vector.broadcast %9 : vector<1x128xf32> to vector<2x128xf32>
    %96 = arith.addf %94, %95 : vector<2x128xf32>
    %97 = vector.extract_strided_slice %0 {offsets = [0, 14], sizes = [2, 1], strides = [1, 1]} : vector<2x32xf32> to vector<2x1xf32>
    %98 = vector.broadcast %97 : vector<2x1xf32> to vector<2x128xf32>
    %99 = vector.broadcast %7 : vector<1x128xf32> to vector<2x128xf32>
    %100 = arith.mulf %98, %99 : vector<2x128xf32>
    %101 = vector.broadcast %9 : vector<1x128xf32> to vector<2x128xf32>
    %102 = arith.addf %100, %101 : vector<2x128xf32>
    %103 = vector.extract_strided_slice %0 {offsets = [0, 15], sizes = [2, 1], strides = [1, 1]} : vector<2x32xf32> to vector<2x1xf32>
    %104 = vector.broadcast %103 : vector<2x1xf32> to vector<2x128xf32>
    %105 = vector.broadcast %7 : vector<1x128xf32> to vector<2x128xf32>
    %106 = arith.mulf %104, %105 : vector<2x128xf32>
    %107 = vector.broadcast %9 : vector<1x128xf32> to vector<2x128xf32>
    %108 = arith.addf %106, %107 : vector<2x128xf32>
    %109 = vector.extract_strided_slice %0 {offsets = [0, 16], sizes = [2, 1], strides = [1, 1]} : vector<2x32xf32> to vector<2x1xf32>
    %110 = vector.broadcast %109 : vector<2x1xf32> to vector<2x128xf32>
    %111 = vector.broadcast %7 : vector<1x128xf32> to vector<2x128xf32>
    %112 = arith.mulf %110, %111 : vector<2x128xf32>
    %113 = vector.broadcast %9 : vector<1x128xf32> to vector<2x128xf32>
    %114 = arith.addf %112, %113 : vector<2x128xf32>
    %115 = vector.extract_strided_slice %0 {offsets = [0, 17], sizes = [2, 1], strides = [1, 1]} : vector<2x32xf32> to vector<2x1xf32>
    %116 = vector.broadcast %115 : vector<2x1xf32> to vector<2x128xf32>
    %117 = vector.broadcast %7 : vector<1x128xf32> to vector<2x128xf32>
    %118 = arith.mulf %116, %117 : vector<2x128xf32>
    %119 = vector.broadcast %9 : vector<1x128xf32> to vector<2x128xf32>
    %120 = arith.addf %118, %119 : vector<2x128xf32>
    %121 = vector.extract_strided_slice %0 {offsets = [0, 18], sizes = [2, 1], strides = [1, 1]} : vector<2x32xf32> to vector<2x1xf32>
    %122 = vector.broadcast %121 : vector<2x1xf32> to vector<2x128xf32>
    %123 = vector.broadcast %7 : vector<1x128xf32> to vector<2x128xf32>
    %124 = arith.mulf %122, %123 : vector<2x128xf32>
    %125 = vector.broadcast %9 : vector<1x128xf32> to vector<2x128xf32>
    %126 = arith.addf %124, %125 : vector<2x128xf32>
    %127 = vector.extract_strided_slice %0 {offsets = [0, 19], sizes = [2, 1], strides = [1, 1]} : vector<2x32xf32> to vector<2x1xf32>
    %128 = vector.broadcast %127 : vector<2x1xf32> to vector<2x128xf32>
    %129 = vector.broadcast %7 : vector<1x128xf32> to vector<2x128xf32>
    %130 = arith.mulf %128, %129 : vector<2x128xf32>
    %131 = vector.broadcast %9 : vector<1x128xf32> to vector<2x128xf32>
    %132 = arith.addf %130, %131 : vector<2x128xf32>
    %133 = vector.extract_strided_slice %0 {offsets = [0, 20], sizes = [2, 1], strides = [1, 1]} : vector<2x32xf32> to vector<2x1xf32>
    %134 = vector.broadcast %133 : vector<2x1xf32> to vector<2x128xf32>
    %135 = vector.broadcast %7 : vector<1x128xf32> to vector<2x128xf32>
    %136 = arith.mulf %134, %135 : vector<2x128xf32>
    %137 = vector.broadcast %9 : vector<1x128xf32> to vector<2x128xf32>
    %138 = arith.addf %136, %137 : vector<2x128xf32>
    %139 = vector.extract_strided_slice %0 {offsets = [0, 21], sizes = [2, 1], strides = [1, 1]} : vector<2x32xf32> to vector<2x1xf32>
    %140 = vector.broadcast %139 : vector<2x1xf32> to vector<2x128xf32>
    %141 = vector.broadcast %7 : vector<1x128xf32> to vector<2x128xf32>
    %142 = arith.mulf %140, %141 : vector<2x128xf32>
    %143 = vector.broadcast %9 : vector<1x128xf32> to vector<2x128xf32>
    %144 = arith.addf %142, %143 : vector<2x128xf32>
    %145 = vector.extract_strided_slice %0 {offsets = [0, 22], sizes = [2, 1], strides = [1, 1]} : vector<2x32xf32> to vector<2x1xf32>
    %146 = vector.broadcast %145 : vector<2x1xf32> to vector<2x128xf32>
    %147 = vector.broadcast %7 : vector<1x128xf32> to vector<2x128xf32>
    %148 = arith.mulf %146, %147 : vector<2x128xf32>
    %149 = vector.broadcast %9 : vector<1x128xf32> to vector<2x128xf32>
    %150 = arith.addf %148, %149 : vector<2x128xf32>
    %151 = vector.extract_strided_slice %0 {offsets = [0, 23], sizes = [2, 1], strides = [1, 1]} : vector<2x32xf32> to vector<2x1xf32>
    %152 = vector.broadcast %151 : vector<2x1xf32> to vector<2x128xf32>
    %153 = vector.broadcast %7 : vector<1x128xf32> to vector<2x128xf32>
    %154 = arith.mulf %152, %153 : vector<2x128xf32>
    %155 = vector.broadcast %9 : vector<1x128xf32> to vector<2x128xf32>
    %156 = arith.addf %154, %155 : vector<2x128xf32>
    %157 = vector.extract_strided_slice %0 {offsets = [0, 24], sizes = [2, 1], strides = [1, 1]} : vector<2x32xf32> to vector<2x1xf32>
    %158 = vector.broadcast %157 : vector<2x1xf32> to vector<2x128xf32>
    %159 = vector.broadcast %7 : vector<1x128xf32> to vector<2x128xf32>
    %160 = arith.mulf %158, %159 : vector<2x128xf32>
    %161 = vector.broadcast %9 : vector<1x128xf32> to vector<2x128xf32>
    %162 = arith.addf %160, %161 : vector<2x128xf32>
    %163 = vector.extract_strided_slice %0 {offsets = [0, 25], sizes = [2, 1], strides = [1, 1]} : vector<2x32xf32> to vector<2x1xf32>
    %164 = vector.broadcast %163 : vector<2x1xf32> to vector<2x128xf32>
    %165 = vector.broadcast %7 : vector<1x128xf32> to vector<2x128xf32>
    %166 = arith.mulf %164, %165 : vector<2x128xf32>
    %167 = vector.broadcast %9 : vector<1x128xf32> to vector<2x128xf32>
    %168 = arith.addf %166, %167 : vector<2x128xf32>
    %169 = vector.extract_strided_slice %0 {offsets = [0, 26], sizes = [2, 1], strides = [1, 1]} : vector<2x32xf32> to vector<2x1xf32>
    %170 = vector.broadcast %169 : vector<2x1xf32> to vector<2x128xf32>
    %171 = vector.broadcast %7 : vector<1x128xf32> to vector<2x128xf32>
    %172 = arith.mulf %170, %171 : vector<2x128xf32>
    %173 = vector.broadcast %9 : vector<1x128xf32> to vector<2x128xf32>
    %174 = arith.addf %172, %173 : vector<2x128xf32>
    %175 = vector.extract_strided_slice %0 {offsets = [0, 27], sizes = [2, 1], strides = [1, 1]} : vector<2x32xf32> to vector<2x1xf32>
    %176 = vector.broadcast %175 : vector<2x1xf32> to vector<2x128xf32>
    %177 = vector.broadcast %7 : vector<1x128xf32> to vector<2x128xf32>
    %178 = arith.mulf %176, %177 : vector<2x128xf32>
    %179 = vector.broadcast %9 : vector<1x128xf32> to vector<2x128xf32>
    %180 = arith.addf %178, %179 : vector<2x128xf32>
    %181 = vector.extract_strided_slice %0 {offsets = [0, 28], sizes = [2, 1], strides = [1, 1]} : vector<2x32xf32> to vector<2x1xf32>
    %182 = vector.broadcast %181 : vector<2x1xf32> to vector<2x128xf32>
    %183 = vector.broadcast %7 : vector<1x128xf32> to vector<2x128xf32>
    %184 = arith.mulf %182, %183 : vector<2x128xf32>
    %185 = vector.broadcast %9 : vector<1x128xf32> to vector<2x128xf32>
    %186 = arith.addf %184, %185 : vector<2x128xf32>
    %187 = vector.extract_strided_slice %0 {offsets = [0, 29], sizes = [2, 1], strides = [1, 1]} : vector<2x32xf32> to vector<2x1xf32>
    %188 = vector.broadcast %187 : vector<2x1xf32> to vector<2x128xf32>
    %189 = vector.broadcast %7 : vector<1x128xf32> to vector<2x128xf32>
    %190 = arith.mulf %188, %189 : vector<2x128xf32>
    %191 = vector.broadcast %9 : vector<1x128xf32> to vector<2x128xf32>
    %192 = arith.addf %190, %191 : vector<2x128xf32>
    %193 = vector.extract_strided_slice %0 {offsets = [0, 30], sizes = [2, 1], strides = [1, 1]} : vector<2x32xf32> to vector<2x1xf32>
    %194 = vector.broadcast %193 : vector<2x1xf32> to vector<2x128xf32>
    %195 = vector.broadcast %7 : vector<1x128xf32> to vector<2x128xf32>
    %196 = arith.mulf %194, %195 : vector<2x128xf32>
    %197 = vector.broadcast %9 : vector<1x128xf32> to vector<2x128xf32>
    %198 = arith.addf %196, %197 : vector<2x128xf32>
    %199 = vector.extract_strided_slice %0 {offsets = [0, 31], sizes = [2, 1], strides = [1, 1]} : vector<2x32xf32> to vector<2x1xf32>
    %200 = vector.broadcast %199 : vector<2x1xf32> to vector<2x128xf32>
    %201 = vector.broadcast %7 : vector<1x128xf32> to vector<2x128xf32>
    %202 = arith.mulf %200, %201 : vector<2x128xf32>
    %203 = vector.broadcast %9 : vector<1x128xf32> to vector<2x128xf32>
    %204 = arith.addf %202, %203 : vector<2x128xf32>
    %cst_19 = arith.constant 0.000000e+00 : f32
    %205 = vector.broadcast %cst_19 : f32 to vector<2x32xf32>
    %cst_20 = arith.constant dense<0.000000e+00> : vector<2x128xf32>
    %206 = tpu.matmul %205, %11, %cst_20 {dimension_numbers = #tpu.dot_dimension_numbers<[1], [0], [0], [1], [0, 0, 1, 1], [], []>} : vector<2x32xf32>, vector<32x128xf32>, vector<2x128xf32> -> vector<2x128xf32>
    %207 = vector.broadcast %12 : vector<1x128xf32> to vector<2x128xf32>
    %208 = arith.addf %206, %207 : vector<2x128xf32>
    %cst_21 = arith.constant dense<0.000000e+00> : vector<2x128xf32>
    %209 = tpu.matmul %205, %8, %cst_21 {dimension_numbers = #tpu.dot_dimension_numbers<[1], [0], [0], [1], [0, 0, 1, 1], [], []>} : vector<2x32xf32>, vector<32x128xf32>, vector<2x128xf32> -> vector<2x128xf32>
    %210 = arith.addf %18, %209 : vector<2x128xf32>
    %211 = arith.negf %210 : vector<2x128xf32>
    %212 = math.exp %211 : vector<2x128xf32>
    %cst_22 = arith.constant 1.000000e+00 : f32
    %213 = vector.broadcast %cst_22 : f32 to vector<2x128xf32>
    %214 = arith.addf %213, %212 : vector<2x128xf32>
    %215 = arith.divf %213, %214 : vector<2x128xf32>
    %216 = math.tanh %210 : vector<2x128xf32>
    %217 = vector.extract_strided_slice %215 {offsets = [0, 0], sizes = [2, 32], strides = [1, 1]} : vector<2x128xf32> to vector<2x32xf32>
    %218 = vector.extract_strided_slice %215 {offsets = [0, 32], sizes = [2, 32], strides = [1, 1]} : vector<2x128xf32> to vector<2x32xf32>
    %219 = vector.extract_strided_slice %216 {offsets = [0, 64], sizes = [2, 32], strides = [1, 1]} : vector<2x128xf32> to vector<2x32xf32>
    %220 = vector.extract_strided_slice %215 {offsets = [0, 96], sizes = [2, 32], strides = [1, 1]} : vector<2x128xf32> to vector<2x32xf32>
    %221 = arith.mulf %218, %205 : vector<2x32xf32>
    %222 = arith.mulf %217, %219 : vector<2x32xf32>
    %223 = arith.addf %221, %222 : vector<2x32xf32>
    %224 = math.tanh %223 : vector<2x32xf32>
    %225 = arith.mulf %220, %224 : vector<2x32xf32>
    %cst_23 = arith.constant dense<0.000000e+00> : vector<2x128xf32>
    %226 = tpu.matmul %225, %10, %cst_23 {dimension_numbers = #tpu.dot_dimension_numbers<[1], [0], [0], [1], [0, 0, 1, 1], [], []>} : vector<2x32xf32>, vector<32x128xf32>, vector<2x128xf32> -> vector<2x128xf32>
    %227 = arith.addf %226, %208 : vector<2x128xf32>
    %228 = arith.negf %227 : vector<2x128xf32>
    %229 = math.exp %228 : vector<2x128xf32>
    %cst_24 = arith.constant 1.000000e+00 : f32
    %230 = vector.broadcast %cst_24 : f32 to vector<2x128xf32>
    %231 = arith.addf %230, %229 : vector<2x128xf32>
    %232 = arith.divf %230, %231 : vector<2x128xf32>
    %233 = math.tanh %227 : vector<2x128xf32>
    %234 = vector.extract_strided_slice %232 {offsets = [0, 0], sizes = [2, 32], strides = [1, 1]} : vector<2x128xf32> to vector<2x32xf32>
    %235 = vector.extract_strided_slice %232 {offsets = [0, 32], sizes = [2, 32], strides = [1, 1]} : vector<2x128xf32> to vector<2x32xf32>
    %236 = vector.extract_strided_slice %233 {offsets = [0, 64], sizes = [2, 32], strides = [1, 1]} : vector<2x128xf32> to vector<2x32xf32>
    %237 = vector.extract_strided_slice %232 {offsets = [0, 96], sizes = [2, 32], strides = [1, 1]} : vector<2x128xf32> to vector<2x32xf32>
    %238 = arith.mulf %235, %205 : vector<2x32xf32>
    %239 = arith.mulf %234, %236 : vector<2x32xf32>
    %240 = arith.addf %238, %239 : vector<2x32xf32>
    %241 = math.tanh %240 : vector<2x32xf32>
    %242 = arith.mulf %237, %241 : vector<2x32xf32>
    %cst_25 = arith.constant dense<0.000000e+00> : vector<2x128xf32>
    %243 = tpu.matmul %242, %11, %cst_25 {dimension_numbers = #tpu.dot_dimension_numbers<[1], [0], [0], [1], [0, 0, 1, 1], [], []>} : vector<2x32xf32>, vector<32x128xf32>, vector<2x128xf32> -> vector<2x128xf32>
    %244 = vector.broadcast %12 : vector<1x128xf32> to vector<2x128xf32>
    %245 = arith.addf %243, %244 : vector<2x128xf32>
    %cst_26 = arith.constant dense<0.000000e+00> : vector<2x128xf32>
    %246 = tpu.matmul %225, %8, %cst_26 {dimension_numbers = #tpu.dot_dimension_numbers<[1], [0], [0], [1], [0, 0, 1, 1], [], []>} : vector<2x32xf32>, vector<32x128xf32>, vector<2x128xf32> -> vector<2x128xf32>
    %247 = arith.addf %66, %246 : vector<2x128xf32>
    %248 = arith.negf %247 : vector<2x128xf32>
    %249 = math.exp %248 : vector<2x128xf32>
    %cst_27 = arith.constant 1.000000e+00 : f32
    %250 = vector.broadcast %cst_27 : f32 to vector<2x128xf32>
    %251 = arith.addf %250, %249 : vector<2x128xf32>
    %252 = arith.divf %250, %251 : vector<2x128xf32>
    %253 = math.tanh %247 : vector<2x128xf32>
    %254 = vector.extract_strided_slice %252 {offsets = [0, 0], sizes = [2, 32], strides = [1, 1]} : vector<2x128xf32> to vector<2x32xf32>
    %255 = vector.extract_strided_slice %252 {offsets = [0, 32], sizes = [2, 32], strides = [1, 1]} : vector<2x128xf32> to vector<2x32xf32>
    %256 = vector.extract_strided_slice %253 {offsets = [0, 64], sizes = [2, 32], strides = [1, 1]} : vector<2x128xf32> to vector<2x32xf32>
    %257 = vector.extract_strided_slice %252 {offsets = [0, 96], sizes = [2, 32], strides = [1, 1]} : vector<2x128xf32> to vector<2x32xf32>
    %258 = arith.mulf %255, %223 : vector<2x32xf32>
    %259 = arith.mulf %254, %256 : vector<2x32xf32>
    %260 = arith.addf %258, %259 : vector<2x32xf32>
    %261 = math.tanh %260 : vector<2x32xf32>
    %262 = arith.mulf %257, %261 : vector<2x32xf32>
    %cst_28 = arith.constant dense<0.000000e+00> : vector<2x128xf32>
    %263 = tpu.matmul %262, %10, %cst_28 {dimension_numbers = #tpu.dot_dimension_numbers<[1], [0], [0], [1], [0, 0, 1, 1], [], []>} : vector<2x32xf32>, vector<32x128xf32>, vector<2x128xf32> -> vector<2x128xf32>
    %264 = arith.addf %263, %245 : vector<2x128xf32>
    %265 = arith.negf %264 : vector<2x128xf32>
    %266 = math.exp %265 : vector<2x128xf32>
    %cst_29 = arith.constant 1.000000e+00 : f32
    %267 = vector.broadcast %cst_29 : f32 to vector<2x128xf32>
    %268 = arith.addf %267, %266 : vector<2x128xf32>
    %269 = arith.divf %267, %268 : vector<2x128xf32>
    %270 = math.tanh %264 : vector<2x128xf32>
    %271 = vector.extract_strided_slice %269 {offsets = [0, 0], sizes = [2, 32], strides = [1, 1]} : vector<2x128xf32> to vector<2x32xf32>
    %272 = vector.extract_strided_slice %269 {offsets = [0, 32], sizes = [2, 32], strides = [1, 1]} : vector<2x128xf32> to vector<2x32xf32>
    %273 = vector.extract_strided_slice %270 {offsets = [0, 64], sizes = [2, 32], strides = [1, 1]} : vector<2x128xf32> to vector<2x32xf32>
    %274 = vector.extract_strided_slice %269 {offsets = [0, 96], sizes = [2, 32], strides = [1, 1]} : vector<2x128xf32> to vector<2x32xf32>
    %275 = arith.mulf %272, %240 : vector<2x32xf32>
    %276 = arith.mulf %271, %273 : vector<2x32xf32>
    %277 = arith.addf %275, %276 : vector<2x32xf32>
    %278 = math.tanh %277 : vector<2x32xf32>
    %279 = arith.mulf %274, %278 : vector<2x32xf32>
    %cst_30 = arith.constant dense<0.000000e+00> : vector<2x128xf32>
    %280 = tpu.matmul %279, %11, %cst_30 {dimension_numbers = #tpu.dot_dimension_numbers<[1], [0], [0], [1], [0, 0, 1, 1], [], []>} : vector<2x32xf32>, vector<32x128xf32>, vector<2x128xf32> -> vector<2x128xf32>
    %281 = vector.broadcast %12 : vector<1x128xf32> to vector<2x128xf32>
    %282 = arith.addf %280, %281 : vector<2x128xf32>
    %cst_31 = arith.constant dense<0.000000e+00> : vector<2x128xf32>
    %283 = tpu.matmul %262, %8, %cst_31 {dimension_numbers = #tpu.dot_dimension_numbers<[1], [0], [0], [1], [0, 0, 1, 1], [], []>} : vector<2x32xf32>, vector<32x128xf32>, vector<2x128xf32> -> vector<2x128xf32>
    %284 = arith.addf %114, %283 : vector<2x128xf32>
    %285 = arith.negf %284 : vector<2x128xf32>
    %286 = math.exp %285 : vector<2x128xf32>
    %cst_32 = arith.constant 1.000000e+00 : f32
    %287 = vector.broadcast %cst_32 : f32 to vector<2x128xf32>
    %288 = arith.addf %287, %286 : vector<2x128xf32>
    %289 = arith.divf %287, %288 : vector<2x128xf32>
    %290 = math.tanh %284 : vector<2x128xf32>
    %291 = vector.extract_strided_slice %289 {offsets = [0, 0], sizes = [2, 32], strides = [1, 1]} : vector<2x128xf32> to vector<2x32xf32>
    %292 = vector.extract_strided_slice %289 {offsets = [0, 32], sizes = [2, 32], strides = [1, 1]} : vector<2x128xf32> to vector<2x32xf32>
    %293 = vector.extract_strided_slice %290 {offsets = [0, 64], sizes = [2, 32], strides = [1, 1]} : vector<2x128xf32> to vector<2x32xf32>
    %294 = vector.extract_strided_slice %289 {offsets = [0, 96], sizes = [2, 32], strides = [1, 1]} : vector<2x128xf32> to vector<2x32xf32>
    %295 = arith.mulf %292, %260 : vector<2x32xf32>
    %296 = arith.mulf %291, %293 : vector<2x32xf32>
    %297 = arith.addf %295, %296 : vector<2x32xf32>
    %298 = math.tanh %297 : vector<2x32xf32>
    %299 = arith.mulf %294, %298 : vector<2x32xf32>
    %cst_33 = arith.constant dense<0.000000e+00> : vector<2x128xf32>
    %300 = tpu.matmul %299, %10, %cst_33 {dimension_numbers = #tpu.dot_dimension_numbers<[1], [0], [0], [1], [0, 0, 1, 1], [], []>} : vector<2x32xf32>, vector<32x128xf32>, vector<2x128xf32> -> vector<2x128xf32>
    %301 = arith.addf %300, %282 : vector<2x128xf32>
    %302 = arith.negf %301 : vector<2x128xf32>
    %303 = math.exp %302 : vector<2x128xf32>
    %cst_34 = arith.constant 1.000000e+00 : f32
    %304 = vector.broadcast %cst_34 : f32 to vector<2x128xf32>
    %305 = arith.addf %304, %303 : vector<2x128xf32>
    %306 = arith.divf %304, %305 : vector<2x128xf32>
    %307 = math.tanh %301 : vector<2x128xf32>
    %308 = vector.extract_strided_slice %306 {offsets = [0, 0], sizes = [2, 32], strides = [1, 1]} : vector<2x128xf32> to vector<2x32xf32>
    %309 = vector.extract_strided_slice %306 {offsets = [0, 32], sizes = [2, 32], strides = [1, 1]} : vector<2x128xf32> to vector<2x32xf32>
    %310 = vector.extract_strided_slice %307 {offsets = [0, 64], sizes = [2, 32], strides = [1, 1]} : vector<2x128xf32> to vector<2x32xf32>
    %311 = vector.extract_strided_slice %306 {offsets = [0, 96], sizes = [2, 32], strides = [1, 1]} : vector<2x128xf32> to vector<2x32xf32>
    %312 = arith.mulf %309, %277 : vector<2x32xf32>
    %313 = arith.mulf %308, %310 : vector<2x32xf32>
    %314 = arith.addf %312, %313 : vector<2x32xf32>
    %315 = math.tanh %314 : vector<2x32xf32>
    %316 = arith.mulf %311, %315 : vector<2x32xf32>
    %cst_35 = arith.constant dense<0.000000e+00> : vector<2x128xf32>
    %317 = tpu.matmul %316, %11, %cst_35 {dimension_numbers = #tpu.dot_dimension_numbers<[1], [0], [0], [1], [0, 0, 1, 1], [], []>} : vector<2x32xf32>, vector<32x128xf32>, vector<2x128xf32> -> vector<2x128xf32>
    %318 = vector.broadcast %12 : vector<1x128xf32> to vector<2x128xf32>
    %319 = arith.addf %317, %318 : vector<2x128xf32>
    %cst_36 = arith.constant dense<0.000000e+00> : vector<2x128xf32>
    %320 = tpu.matmul %299, %8, %cst_36 {dimension_numbers = #tpu.dot_dimension_numbers<[1], [0], [0], [1], [0, 0, 1, 1], [], []>} : vector<2x32xf32>, vector<32x128xf32>, vector<2x128xf32> -> vector<2x128xf32>
    %321 = arith.addf %162, %320 : vector<2x128xf32>
    %322 = arith.negf %321 : vector<2x128xf32>
    %323 = math.exp %322 : vector<2x128xf32>
    %cst_37 = arith.constant 1.000000e+00 : f32
    %324 = vector.broadcast %cst_37 : f32 to vector<2x128xf32>
    %325 = arith.addf %324, %323 : vector<2x128xf32>
    %326 = arith.divf %324, %325 : vector<2x128xf32>
    %327 = math.tanh %321 : vector<2x128xf32>
    %328 = vector.extract_strided_slice %326 {offsets = [0, 0], sizes = [2, 32], strides = [1, 1]} : vector<2x128xf32> to vector<2x32xf32>
    %329 = vector.extract_strided_slice %326 {offsets = [0, 32], sizes = [2, 32], strides = [1, 1]} : vector<2x128xf32> to vector<2x32xf32>
    %330 = vector.extract_strided_slice %327 {offsets = [0, 64], sizes = [2, 32], strides = [1, 1]} : vector<2x128xf32> to vector<2x32xf32>
    %331 = vector.extract_strided_slice %326 {offsets = [0, 96], sizes = [2, 32], strides = [1, 1]} : vector<2x128xf32> to vector<2x32xf32>
    %332 = arith.mulf %329, %297 : vector<2x32xf32>
    %333 = arith.mulf %328, %330 : vector<2x32xf32>
    %334 = arith.addf %332, %333 : vector<2x32xf32>
    %335 = math.tanh %334 : vector<2x32xf32>
    %336 = arith.mulf %331, %335 : vector<2x32xf32>
    %cst_38 = arith.constant dense<0.000000e+00> : vector<2x128xf32>
    %337 = tpu.matmul %336, %10, %cst_38 {dimension_numbers = #tpu.dot_dimension_numbers<[1], [0], [0], [1], [0, 0, 1, 1], [], []>} : vector<2x32xf32>, vector<32x128xf32>, vector<2x128xf32> -> vector<2x128xf32>
    %338 = arith.addf %337, %319 : vector<2x128xf32>
    %339 = arith.negf %338 : vector<2x128xf32>
    %340 = math.exp %339 : vector<2x128xf32>
    %cst_39 = arith.constant 1.000000e+00 : f32
    %341 = vector.broadcast %cst_39 : f32 to vector<2x128xf32>
    %342 = arith.addf %341, %340 : vector<2x128xf32>
    %343 = arith.divf %341, %342 : vector<2x128xf32>
    %344 = math.tanh %338 : vector<2x128xf32>
    %345 = vector.extract_strided_slice %343 {offsets = [0, 0], sizes = [2, 32], strides = [1, 1]} : vector<2x128xf32> to vector<2x32xf32>
    %346 = vector.extract_strided_slice %343 {offsets = [0, 32], sizes = [2, 32], strides = [1, 1]} : vector<2x128xf32> to vector<2x32xf32>
    %347 = vector.extract_strided_slice %344 {offsets = [0, 64], sizes = [2, 32], strides = [1, 1]} : vector<2x128xf32> to vector<2x32xf32>
    %348 = vector.extract_strided_slice %343 {offsets = [0, 96], sizes = [2, 32], strides = [1, 1]} : vector<2x128xf32> to vector<2x32xf32>
    %349 = arith.mulf %346, %314 : vector<2x32xf32>
    %350 = arith.mulf %345, %347 : vector<2x32xf32>
    %351 = arith.addf %349, %350 : vector<2x32xf32>
    %352 = math.tanh %351 : vector<2x32xf32>
    %353 = arith.mulf %348, %352 : vector<2x32xf32>
    %c0_40 = arith.constant 0 : index
    %c0_41 = arith.constant 0 : index
    %c0_42 = arith.constant 0 : index
    %354 = vector.load %arg11[%c0_40, %c0_41, %c0_42] : memref<8x2x32xf32, #tpu.memory_space<vmem>>, vector<1x2x32xf32>
    %355 = vector.shape_cast %354 : vector<1x2x32xf32> to vector<2x32xf32>
    %356 = vector.shape_cast %353 : vector<2x32xf32> to vector<1x2x32xf32>
    tpu.vector_store %arg11[%c0_40, %c0_41, %c0_42], %356 {strides = array<i32>} : memref<8x2x32xf32, #tpu.memory_space<vmem>>, vector<1x2x32xf32>,
    %cst_43 = arith.constant dense<0.000000e+00> : vector<2x128xf32>
    %357 = tpu.matmul %353, %11, %cst_43 {dimension_numbers = #tpu.dot_dimension_numbers<[1], [0], [0], [1], [0, 0, 1, 1], [], []>} : vector<2x32xf32>, vector<32x128xf32>, vector<2x128xf32> -> vector<2x128xf32>
    %358 = vector.broadcast %12 : vector<1x128xf32> to vector<2x128xf32>
    %359 = arith.addf %357, %358 : vector<2x128xf32>
    %cst_44 = arith.constant dense<0.000000e+00> : vector<2x128xf32>
    %360 = tpu.matmul %336, %8, %cst_44 {dimension_numbers = #tpu.dot_dimension_numbers<[1], [0], [0], [1], [0, 0, 1, 1], [], []>} : vector<2x32xf32>, vector<32x128xf32>, vector<2x128xf32> -> vector<2x128xf32>
    %361 = arith.addf %24, %360 : vector<2x128xf32>
    %362 = arith.negf %361 : vector<2x128xf32>
    %363 = math.exp %362 : vector<2x128xf32>
    %cst_45 = arith.constant 1.000000e+00 : f32
    %364 = vector.broadcast %cst_45 : f32 to vector<2x128xf32>
    %365 = arith.addf %364, %363 : vector<2x128xf32>
    %366 = arith.divf %364, %365 : vector<2x128xf32>
    %367 = math.tanh %361 : vector<2x128xf32>
    %368 = vector.extract_strided_slice %366 {offsets = [0, 0], sizes = [2, 32], strides = [1, 1]} : vector<2x128xf32> to vector<2x32xf32>
    %369 = vector.extract_strided_slice %366 {offsets = [0, 32], sizes = [2, 32], strides = [1, 1]} : vector<2x128xf32> to vector<2x32xf32>
    %370 = vector.extract_strided_slice %367 {offsets = [0, 64], sizes = [2, 32], strides = [1, 1]} : vector<2x128xf32> to vector<2x32xf32>
    %371 = vector.extract_strided_slice %366 {offsets = [0, 96], sizes = [2, 32], strides = [1, 1]} : vector<2x128xf32> to vector<2x32xf32>
    %372 = arith.mulf %369, %334 : vector<2x32xf32>
    %373 = arith.mulf %368, %370 : vector<2x32xf32>
    %374 = arith.addf %372, %373 : vector<2x32xf32>
    %375 = math.tanh %374 : vector<2x32xf32>
    %376 = arith.mulf %371, %375 : vector<2x32xf32>
    %cst_46 = arith.constant dense<0.000000e+00> : vector<2x128xf32>
    %377 = tpu.matmul %376, %10, %cst_46 {dimension_numbers = #tpu.dot_dimension_numbers<[1], [0], [0], [1], [0, 0, 1, 1], [], []>} : vector<2x32xf32>, vector<32x128xf32>, vector<2x128xf32> -> vector<2x128xf32>
    %378 = arith.addf %377, %359 : vector<2x128xf32>
    %379 = arith.negf %378 : vector<2x128xf32>
    %380 = math.exp %379 : vector<2x128xf32>
    %cst_47 = arith.constant 1.000000e+00 : f32
    %381 = vector.broadcast %cst_47 : f32 to vector<2x128xf32>
    %382 = arith.addf %381, %380 : vector<2x128xf32>
    %383 = arith.divf %381, %382 : vector<2x128xf32>
    %384 = math.tanh %378 : vector<2x128xf32>
    %385 = vector.extract_strided_slice %383 {offsets = [0, 0], sizes = [2, 32], strides = [1, 1]} : vector<2x128xf32> to vector<2x32xf32>
    %386 = vector.extract_strided_slice %383 {offsets = [0, 32], sizes = [2, 32], strides = [1, 1]} : vector<2x128xf32> to vector<2x32xf32>
    %387 = vector.extract_strided_slice %384 {offsets = [0, 64], sizes = [2, 32], strides = [1, 1]} : vector<2x128xf32> to vector<2x32xf32>
    %388 = vector.extract_strided_slice %383 {offsets = [0, 96], sizes = [2, 32], strides = [1, 1]} : vector<2x128xf32> to vector<2x32xf32>
    %389 = arith.mulf %386, %351 : vector<2x32xf32>
    %390 = arith.mulf %385, %387 : vector<2x32xf32>
    %391 = arith.addf %389, %390 : vector<2x32xf32>
    %392 = math.tanh %391 : vector<2x32xf32>
    %393 = arith.mulf %388, %392 : vector<2x32xf32>
    %cst_48 = arith.constant dense<0.000000e+00> : vector<2x128xf32>
    %394 = tpu.matmul %393, %11, %cst_48 {dimension_numbers = #tpu.dot_dimension_numbers<[1], [0], [0], [1], [0, 0, 1, 1], [], []>} : vector<2x32xf32>, vector<32x128xf32>, vector<2x128xf32> -> vector<2x128xf32>
    %395 = vector.broadcast %12 : vector<1x128xf32> to vector<2x128xf32>
    %396 = arith.addf %394, %395 : vector<2x128xf32>
    %cst_49 = arith.constant dense<0.000000e+00> : vector<2x128xf32>
    %397 = tpu.matmul %376, %8, %cst_49 {dimension_numbers = #tpu.dot_dimension_numbers<[1], [0], [0], [1], [0, 0, 1, 1], [], []>} : vector<2x32xf32>, vector<32x128xf32>, vector<2x128xf32> -> vector<2x128xf32>
    %398 = arith.addf %72, %397 : vector<2x128xf32>
    %399 = arith.negf %398 : vector<2x128xf32>
    %400 = math.exp %399 : vector<2x128xf32>
    %cst_50 = arith.constant 1.000000e+00 : f32
    %401 = vector.broadcast %cst_50 : f32 to vector<2x128xf32>
    %402 = arith.addf %401, %400 : vector<2x128xf32>
    %403 = arith.divf %401, %402 : vector<2x128xf32>
    %404 = math.tanh %398 : vector<2x128xf32>
    %405 = vector.extract_strided_slice %403 {offsets = [0, 0], sizes = [2, 32], strides = [1, 1]} : vector<2x128xf32> to vector<2x32xf32>
    %406 = vector.extract_strided_slice %403 {offsets = [0, 32], sizes = [2, 32], strides = [1, 1]} : vector<2x128xf32> to vector<2x32xf32>
    %407 = vector.extract_strided_slice %404 {offsets = [0, 64], sizes = [2, 32], strides = [1, 1]} : vector<2x128xf32> to vector<2x32xf32>
    %408 = vector.extract_strided_slice %403 {offsets = [0, 96], sizes = [2, 32], strides = [1, 1]} : vector<2x128xf32> to vector<2x32xf32>
    %409 = arith.mulf %406, %374 : vector<2x32xf32>
    %410 = arith.mulf %405, %407 : vector<2x32xf32>
    %411 = arith.addf %409, %410 : vector<2x32xf32>
    %412 = math.tanh %411 : vector<2x32xf32>
    %413 = arith.mulf %408, %412 : vector<2x32xf32>
    %cst_51 = arith.constant dense<0.000000e+00> : vector<2x128xf32>
    %414 = tpu.matmul %413, %10, %cst_51 {dimension_numbers = #tpu.dot_dimension_numbers<[1], [0], [0], [1], [0, 0, 1, 1], [], []>} : vector<2x32xf32>, vector<32x128xf32>, vector<2x128xf32> -> vector<2x128xf32>
    %415 = arith.addf %414, %396 : vector<2x128xf32>
    %416 = arith.negf %415 : vector<2x128xf32>
    %417 = math.exp %416 : vector<2x128xf32>
    %cst_52 = arith.constant 1.000000e+00 : f32
    %418 = vector.broadcast %cst_52 : f32 to vector<2x128xf32>
    %419 = arith.addf %418, %417 : vector<2x128xf32>
    %420 = arith.divf %418, %419 : vector<2x128xf32>
    %421 = math.tanh %415 : vector<2x128xf32>
    %422 = vector.extract_strided_slice %420 {offsets = [0, 0], sizes = [2, 32], strides = [1, 1]} : vector<2x128xf32> to vector<2x32xf32>
    %423 = vector.extract_strided_slice %420 {offsets = [0, 32], sizes = [2, 32], strides = [1, 1]} : vector<2x128xf32> to vector<2x32xf32>
    %424 = vector.extract_strided_slice %421 {offsets = [0, 64], sizes = [2, 32], strides = [1, 1]} : vector<2x128xf32> to vector<2x32xf32>
    %425 = vector.extract_strided_slice %420 {offsets = [0, 96], sizes = [2, 32], strides = [1, 1]} : vector<2x128xf32> to vector<2x32xf32>
    %426 = arith.mulf %423, %391 : vector<2x32xf32>
    %427 = arith.mulf %422, %424 : vector<2x32xf32>
    %428 = arith.addf %426, %427 : vector<2x32xf32>
    %429 = math.tanh %428 : vector<2x32xf32>
    %430 = arith.mulf %425, %429 : vector<2x32xf32>
    %cst_53 = arith.constant dense<0.000000e+00> : vector<2x128xf32>
    %431 = tpu.matmul %430, %11, %cst_53 {dimension_numbers = #tpu.dot_dimension_numbers<[1], [0], [0], [1], [0, 0, 1, 1], [], []>} : vector<2x32xf32>, vector<32x128xf32>, vector<2x128xf32> -> vector<2x128xf32>
    %432 = vector.broadcast %12 : vector<1x128xf32> to vector<2x128xf32>
    %433 = arith.addf %431, %432 : vector<2x128xf32>
    %cst_54 = arith.constant dense<0.000000e+00> : vector<2x128xf32>
    %434 = tpu.matmul %413, %8, %cst_54 {dimension_numbers = #tpu.dot_dimension_numbers<[1], [0], [0], [1], [0, 0, 1, 1], [], []>} : vector<2x32xf32>, vector<32x128xf32>, vector<2x128xf32> -> vector<2x128xf32>
    %435 = arith.addf %120, %434 : vector<2x128xf32>
    %436 = arith.negf %435 : vector<2x128xf32>
    %437 = math.exp %436 : vector<2x128xf32>
    %cst_55 = arith.constant 1.000000e+00 : f32
    %438 = vector.broadcast %cst_55 : f32 to vector<2x128xf32>
    %439 = arith.addf %438, %437 : vector<2x128xf32>
    %440 = arith.divf %438, %439 : vector<2x128xf32>
    %441 = math.tanh %435 : vector<2x128xf32>
    %442 = vector.extract_strided_slice %440 {offsets = [0, 0], sizes = [2, 32], strides = [1, 1]} : vector<2x128xf32> to vector<2x32xf32>
    %443 = vector.extract_strided_slice %440 {offsets = [0, 32], sizes = [2, 32], strides = [1, 1]} : vector<2x128xf32> to vector<2x32xf32>
    %444 = vector.extract_strided_slice %441 {offsets = [0, 64], sizes = [2, 32], strides = [1, 1]} : vector<2x128xf32> to vector<2x32xf32>
    %445 = vector.extract_strided_slice %440 {offsets = [0, 96], sizes = [2, 32], strides = [1, 1]} : vector<2x128xf32> to vector<2x32xf32>
    %446 = arith.mulf %443, %411 : vector<2x32xf32>
    %447 = arith.mulf %442, %444 : vector<2x32xf32>
    %448 = arith.addf %446, %447 : vector<2x32xf32>
    %449 = math.tanh %448 : vector<2x32xf32>
    %450 = arith.mulf %445, %449 : vector<2x32xf32>
    %cst_56 = arith.constant dense<0.000000e+00> : vector<2x128xf32>
    %451 = tpu.matmul %450, %10, %cst_56 {dimension_numbers = #tpu.dot_dimension_numbers<[1], [0], [0], [1], [0, 0, 1, 1], [], []>} : vector<2x32xf32>, vector<32x128xf32>, vector<2x128xf32> -> vector<2x128xf32>
    %452 = arith.addf %451, %433 : vector<2x128xf32>
    %453 = arith.negf %452 : vector<2x128xf32>
    %454 = math.exp %453 : vector<2x128xf32>
    %cst_57 = arith.constant 1.000000e+00 : f32
    %455 = vector.broadcast %cst_57 : f32 to vector<2x128xf32>
    %456 = arith.addf %455, %454 : vector<2x128xf32>
    %457 = arith.divf %455, %456 : vector<2x128xf32>
    %458 = math.tanh %452 : vector<2x128xf32>
    %459 = vector.extract_strided_slice %457 {offsets = [0, 0], sizes = [2, 32], strides = [1, 1]} : vector<2x128xf32> to vector<2x32xf32>
    %460 = vector.extract_strided_slice %457 {offsets = [0, 32], sizes = [2, 32], strides = [1, 1]} : vector<2x128xf32> to vector<2x32xf32>
    %461 = vector.extract_strided_slice %458 {offsets = [0, 64], sizes = [2, 32], strides = [1, 1]} : vector<2x128xf32> to vector<2x32xf32>
    %462 = vector.extract_strided_slice %457 {offsets = [0, 96], sizes = [2, 32], strides = [1, 1]} : vector<2x128xf32> to vector<2x32xf32>
    %463 = arith.mulf %460, %428 : vector<2x32xf32>
    %464 = arith.mulf %459, %461 : vector<2x32xf32>
    %465 = arith.addf %463, %464 : vector<2x32xf32>
    %466 = math.tanh %465 : vector<2x32xf32>
    %467 = arith.mulf %462, %466 : vector<2x32xf32>
    %cst_58 = arith.constant dense<0.000000e+00> : vector<2x128xf32>
    %468 = tpu.matmul %467, %11, %cst_58 {dimension_numbers = #tpu.dot_dimension_numbers<[1], [0], [0], [1], [0, 0, 1, 1], [], []>} : vector<2x32xf32>, vector<32x128xf32>, vector<2x128xf32> -> vector<2x128xf32>
    %469 = vector.broadcast %12 : vector<1x128xf32> to vector<2x128xf32>
    %470 = arith.addf %468, %469 : vector<2x128xf32>
    %cst_59 = arith.constant dense<0.000000e+00> : vector<2x128xf32>
    %471 = tpu.matmul %450, %8, %cst_59 {dimension_numbers = #tpu.dot_dimension_numbers<[1], [0], [0], [1], [0, 0, 1, 1], [], []>} : vector<2x32xf32>, vector<32x128xf32>, vector<2x128xf32> -> vector<2x128xf32>
    %472 = arith.addf %168, %471 : vector<2x128xf32>
    %473 = arith.negf %472 : vector<2x128xf32>
    %474 = math.exp %473 : vector<2x128xf32>
    %cst_60 = arith.constant 1.000000e+00 : f32
    %475 = vector.broadcast %cst_60 : f32 to vector<2x128xf32>
    %476 = arith.addf %475, %474 : vector<2x128xf32>
    %477 = arith.divf %475, %476 : vector<2x128xf32>
    %478 = math.tanh %472 : vector<2x128xf32>
    %479 = vector.extract_strided_slice %477 {offsets = [0, 0], sizes = [2, 32], strides = [1, 1]} : vector<2x128xf32> to vector<2x32xf32>
    %480 = vector.extract_strided_slice %477 {offsets = [0, 32], sizes = [2, 32], strides = [1, 1]} : vector<2x128xf32> to vector<2x32xf32>
    %481 = vector.extract_strided_slice %478 {offsets = [0, 64], sizes = [2, 32], strides = [1, 1]} : vector<2x128xf32> to vector<2x32xf32>
    %482 = vector.extract_strided_slice %477 {offsets = [0, 96], sizes = [2, 32], strides = [1, 1]} : vector<2x128xf32> to vector<2x32xf32>
    %483 = arith.mulf %480, %448 : vector<2x32xf32>
    %484 = arith.mulf %479, %481 : vector<2x32xf32>
    %485 = arith.addf %483, %484 : vector<2x32xf32>
    %486 = math.tanh %485 : vector<2x32xf32>
    %487 = arith.mulf %482, %486 : vector<2x32xf32>
    %cst_61 = arith.constant dense<0.000000e+00> : vector<2x128xf32>
    %488 = tpu.matmul %487, %10, %cst_61 {dimension_numbers = #tpu.dot_dimension_numbers<[1], [0], [0], [1], [0, 0, 1, 1], [], []>} : vector<2x32xf32>, vector<32x128xf32>, vector<2x128xf32> -> vector<2x128xf32>
    %489 = arith.addf %488, %470 : vector<2x128xf32>
    %490 = arith.negf %489 : vector<2x128xf32>
    %491 = math.exp %490 : vector<2x128xf32>
    %cst_62 = arith.constant 1.000000e+00 : f32
    %492 = vector.broadcast %cst_62 : f32 to vector<2x128xf32>
    %493 = arith.addf %492, %491 : vector<2x128xf32>
    %494 = arith.divf %492, %493 : vector<2x128xf32>
    %495 = math.tanh %489 : vector<2x128xf32>
    %496 = vector.extract_strided_slice %494 {offsets = [0, 0], sizes = [2, 32], strides = [1, 1]} : vector<2x128xf32> to vector<2x32xf32>
    %497 = vector.extract_strided_slice %494 {offsets = [0, 32], sizes = [2, 32], strides = [1, 1]} : vector<2x128xf32> to vector<2x32xf32>
    %498 = vector.extract_strided_slice %495 {offsets = [0, 64], sizes = [2, 32], strides = [1, 1]} : vector<2x128xf32> to vector<2x32xf32>
    %499 = vector.extract_strided_slice %494 {offsets = [0, 96], sizes = [2, 32], strides = [1, 1]} : vector<2x128xf32> to vector<2x32xf32>
    %500 = arith.mulf %497, %465 : vector<2x32xf32>
    %501 = arith.mulf %496, %498 : vector<2x32xf32>
    %502 = arith.addf %500, %501 : vector<2x32xf32>
    %503 = math.tanh %502 : vector<2x32xf32>
    %504 = arith.mulf %499, %503 : vector<2x32xf32>
    %c1 = arith.constant 1 : index
    %c0_63 = arith.constant 0 : index
    %c0_64 = arith.constant 0 : index
    %505 = vector.load %arg11[%c1, %c0_63, %c0_64] : memref<8x2x32xf32, #tpu.memory_space<vmem>>, vector<1x2x32xf32>
    %506 = vector.shape_cast %505 : vector<1x2x32xf32> to vector<2x32xf32>
    %507 = vector.shape_cast %504 : vector<2x32xf32> to vector<1x2x32xf32>
    tpu.vector_store %arg11[%c1, %c0_63, %c0_64], %507 {strides = array<i32>} : memref<8x2x32xf32, #tpu.memory_space<vmem>>, vector<1x2x32xf32>,
    %cst_65 = arith.constant dense<0.000000e+00> : vector<2x128xf32>
    %508 = tpu.matmul %504, %11, %cst_65 {dimension_numbers = #tpu.dot_dimension_numbers<[1], [0], [0], [1], [0, 0, 1, 1], [], []>} : vector<2x32xf32>, vector<32x128xf32>, vector<2x128xf32> -> vector<2x128xf32>
    %509 = vector.broadcast %12 : vector<1x128xf32> to vector<2x128xf32>
    %510 = arith.addf %508, %509 : vector<2x128xf32>
    %cst_66 = arith.constant dense<0.000000e+00> : vector<2x128xf32>
    %511 = tpu.matmul %487, %8, %cst_66 {dimension_numbers = #tpu.dot_dimension_numbers<[1], [0], [0], [1], [0, 0, 1, 1], [], []>} : vector<2x32xf32>, vector<32x128xf32>, vector<2x128xf32> -> vector<2x128xf32>
    %512 = arith.addf %30, %511 : vector<2x128xf32>
    %513 = arith.negf %512 : vector<2x128xf32>
    %514 = math.exp %513 : vector<2x128xf32>
    %cst_67 = arith.constant 1.000000e+00 : f32
    %515 = vector.broadcast %cst_67 : f32 to vector<2x128xf32>
    %516 = arith.addf %515, %514 : vector<2x128xf32>
    %517 = arith.divf %515, %516 : vector<2x128xf32>
    %518 = math.tanh %512 : vector<2x128xf32>
    %519 = vector.extract_strided_slice %517 {offsets = [0, 0], sizes = [2, 32], strides = [1, 1]} : vector<2x128xf32> to vector<2x32xf32>
    %520 = vector.extract_strided_slice %517 {offsets = [0, 32], sizes = [2, 32], strides = [1, 1]} : vector<2x128xf32> to vector<2x32xf32>
    %521 = vector.extract_strided_slice %518 {offsets = [0, 64], sizes = [2, 32], strides = [1, 1]} : vector<2x128xf32> to vector<2x32xf32>
    %522 = vector.extract_strided_slice %517 {offsets = [0, 96], sizes = [2, 32], strides = [1, 1]} : vector<2x128xf32> to vector<2x32xf32>
    %523 = arith.mulf %520, %485 : vector<2x32xf32>
    %524 = arith.mulf %519, %521 : vector<2x32xf32>
    %525 = arith.addf %523, %524 : vector<2x32xf32>
    %526 = math.tanh %525 : vector<2x32xf32>
    %527 = arith.mulf %522, %526 : vector<2x32xf32>
    %cst_68 = arith.constant dense<0.000000e+00> : vector<2x128xf32>
    %528 = tpu.matmul %527, %10, %cst_68 {dimension_numbers = #tpu.dot_dimension_numbers<[1], [0], [0], [1], [0, 0, 1, 1], [], []>} : vector<2x32xf32>, vector<32x128xf32>, vector<2x128xf32> -> vector<2x128xf32>
    %529 = arith.addf %528, %510 : vector<2x128xf32>
    %530 = arith.negf %529 : vector<2x128xf32>
    %531 = math.exp %530 : vector<2x128xf32>
    %cst_69 = arith.constant 1.000000e+00 : f32
    %532 = vector.broadcast %cst_69 : f32 to vector<2x128xf32>
    %533 = arith.addf %532, %531 : vector<2x128xf32>
    %534 = arith.divf %532, %533 : vector<2x128xf32>
    %535 = math.tanh %529 : vector<2x128xf32>
    %536 = vector.extract_strided_slice %534 {offsets = [0, 0], sizes = [2, 32], strides = [1, 1]} : vector<2x128xf32> to vector<2x32xf32>
    %537 = vector.extract_strided_slice %534 {offsets = [0, 32], sizes = [2, 32], strides = [1, 1]} : vector<2x128xf32> to vector<2x32xf32>
    %538 = vector.extract_strided_slice %535 {offsets = [0, 64], sizes = [2, 32], strides = [1, 1]} : vector<2x128xf32> to vector<2x32xf32>
    %539 = vector.extract_strided_slice %534 {offsets = [0, 96], sizes = [2, 32], strides = [1, 1]} : vector<2x128xf32> to vector<2x32xf32>
    %540 = arith.mulf %537, %502 : vector<2x32xf32>
    %541 = arith.mulf %536, %538 : vector<2x32xf32>
    %542 = arith.addf %540, %541 : vector<2x32xf32>
    %543 = math.tanh %542 : vector<2x32xf32>
    %544 = arith.mulf %539, %543 : vector<2x32xf32>
    %cst_70 = arith.constant dense<0.000000e+00> : vector<2x128xf32>
    %545 = tpu.matmul %544, %11, %cst_70 {dimension_numbers = #tpu.dot_dimension_numbers<[1], [0], [0], [1], [0, 0, 1, 1], [], []>} : vector<2x32xf32>, vector<32x128xf32>, vector<2x128xf32> -> vector<2x128xf32>
    %546 = vector.broadcast %12 : vector<1x128xf32> to vector<2x128xf32>
    %547 = arith.addf %545, %546 : vector<2x128xf32>
    %cst_71 = arith.constant dense<0.000000e+00> : vector<2x128xf32>
    %548 = tpu.matmul %527, %8, %cst_71 {dimension_numbers = #tpu.dot_dimension_numbers<[1], [0], [0], [1], [0, 0, 1, 1], [], []>} : vector<2x32xf32>, vector<32x128xf32>, vector<2x128xf32> -> vector<2x128xf32>
    %549 = arith.addf %78, %548 : vector<2x128xf32>
    %550 = arith.negf %549 : vector<2x128xf32>
    %551 = math.exp %550 : vector<2x128xf32>
    %cst_72 = arith.constant 1.000000e+00 : f32
    %552 = vector.broadcast %cst_72 : f32 to vector<2x128xf32>
    %553 = arith.addf %552, %551 : vector<2x128xf32>
    %554 = arith.divf %552, %553 : vector<2x128xf32>
    %555 = math.tanh %549 : vector<2x128xf32>
    %556 = vector.extract_strided_slice %554 {offsets = [0, 0], sizes = [2, 32], strides = [1, 1]} : vector<2x128xf32> to vector<2x32xf32>
    %557 = vector.extract_strided_slice %554 {offsets = [0, 32], sizes = [2, 32], strides = [1, 1]} : vector<2x128xf32> to vector<2x32xf32>
    %558 = vector.extract_strided_slice %555 {offsets = [0, 64], sizes = [2, 32], strides = [1, 1]} : vector<2x128xf32> to vector<2x32xf32>
    %559 = vector.extract_strided_slice %554 {offsets = [0, 96], sizes = [2, 32], strides = [1, 1]} : vector<2x128xf32> to vector<2x32xf32>
    %560 = arith.mulf %557, %525 : vector<2x32xf32>
    %561 = arith.mulf %556, %558 : vector<2x32xf32>
    %562 = arith.addf %560, %561 : vector<2x32xf32>
    %563 = math.tanh %562 : vector<2x32xf32>
    %564 = arith.mulf %559, %563 : vector<2x32xf32>
    %cst_73 = arith.constant dense<0.000000e+00> : vector<2x128xf32>
    %565 = tpu.matmul %564, %10, %cst_73 {dimension_numbers = #tpu.dot_dimension_numbers<[1], [0], [0], [1], [0, 0, 1, 1], [], []>} : vector<2x32xf32>, vector<32x128xf32>, vector<2x128xf32> -> vector<2x128xf32>
    %566 = arith.addf %565, %547 : vector<2x128xf32>
    %567 = arith.negf %566 : vector<2x128xf32>
    %568 = math.exp %567 : vector<2x128xf32>
    %cst_74 = arith.constant 1.000000e+00 : f32
    %569 = vector.broadcast %cst_74 : f32 to vector<2x128xf32>
    %570 = arith.addf %569, %568 : vector<2x128xf32>
    %571 = arith.divf %569, %570 : vector<2x128xf32>
    %572 = math.tanh %566 : vector<2x128xf32>
    %573 = vector.extract_strided_slice %571 {offsets = [0, 0], sizes = [2, 32], strides = [1, 1]} : vector<2x128xf32> to vector<2x32xf32>
    %574 = vector.extract_strided_slice %571 {offsets = [0, 32], sizes = [2, 32], strides = [1, 1]} : vector<2x128xf32> to vector<2x32xf32>
    %575 = vector.extract_strided_slice %572 {offsets = [0, 64], sizes = [2, 32], strides = [1, 1]} : vector<2x128xf32> to vector<2x32xf32>
    %576 = vector.extract_strided_slice %571 {offsets = [0, 96], sizes = [2, 32], strides = [1, 1]} : vector<2x128xf32> to vector<2x32xf32>
    %577 = arith.mulf %574, %542 : vector<2x32xf32>
    %578 = arith.mulf %573, %575 : vector<2x32xf32>
    %579 = arith.addf %577, %578 : vector<2x32xf32>
    %580 = math.tanh %579 : vector<2x32xf32>
    %581 = arith.mulf %576, %580 : vector<2x32xf32>
    %cst_75 = arith.constant dense<0.000000e+00> : vector<2x128xf32>
    %582 = tpu.matmul %581, %11, %cst_75 {dimension_numbers = #tpu.dot_dimension_numbers<[1], [0], [0], [1], [0, 0, 1, 1], [], []>} : vector<2x32xf32>, vector<32x128xf32>, vector<2x128xf32> -> vector<2x128xf32>
    %583 = vector.broadcast %12 : vector<1x128xf32> to vector<2x128xf32>
    %584 = arith.addf %582, %583 : vector<2x128xf32>
    %cst_76 = arith.constant dense<0.000000e+00> : vector<2x128xf32>
    %585 = tpu.matmul %564, %8, %cst_76 {dimension_numbers = #tpu.dot_dimension_numbers<[1], [0], [0], [1], [0, 0, 1, 1], [], []>} : vector<2x32xf32>, vector<32x128xf32>, vector<2x128xf32> -> vector<2x128xf32>
    %586 = arith.addf %126, %585 : vector<2x128xf32>
    %587 = arith.negf %586 : vector<2x128xf32>
    %588 = math.exp %587 : vector<2x128xf32>
    %cst_77 = arith.constant 1.000000e+00 : f32
    %589 = vector.broadcast %cst_77 : f32 to vector<2x128xf32>
    %590 = arith.addf %589, %588 : vector<2x128xf32>
    %591 = arith.divf %589, %590 : vector<2x128xf32>
    %592 = math.tanh %586 : vector<2x128xf32>
    %593 = vector.extract_strided_slice %591 {offsets = [0, 0], sizes = [2, 32], strides = [1, 1]} : vector<2x128xf32> to vector<2x32xf32>
    %594 = vector.extract_strided_slice %591 {offsets = [0, 32], sizes = [2, 32], strides = [1, 1]} : vector<2x128xf32> to vector<2x32xf32>
    %595 = vector.extract_strided_slice %592 {offsets = [0, 64], sizes = [2, 32], strides = [1, 1]} : vector<2x128xf32> to vector<2x32xf32>
    %596 = vector.extract_strided_slice %591 {offsets = [0, 96], sizes = [2, 32], strides = [1, 1]} : vector<2x128xf32> to vector<2x32xf32>
    %597 = arith.mulf %594, %562 : vector<2x32xf32>
    %598 = arith.mulf %593, %595 : vector<2x32xf32>
    %599 = arith.addf %597, %598 : vector<2x32xf32>
    %600 = math.tanh %599 : vector<2x32xf32>
    %601 = arith.mulf %596, %600 : vector<2x32xf32>
    %cst_78 = arith.constant dense<0.000000e+00> : vector<2x128xf32>
    %602 = tpu.matmul %601, %10, %cst_78 {dimension_numbers = #tpu.dot_dimension_numbers<[1], [0], [0], [1], [0, 0, 1, 1], [], []>} : vector<2x32xf32>, vector<32x128xf32>, vector<2x128xf32> -> vector<2x128xf32>
    %603 = arith.addf %602, %584 : vector<2x128xf32>
    %604 = arith.negf %603 : vector<2x128xf32>
    %605 = math.exp %604 : vector<2x128xf32>
    %cst_79 = arith.constant 1.000000e+00 : f32
    %606 = vector.broadcast %cst_79 : f32 to vector<2x128xf32>
    %607 = arith.addf %606, %605 : vector<2x128xf32>
    %608 = arith.divf %606, %607 : vector<2x128xf32>
    %609 = math.tanh %603 : vector<2x128xf32>
    %610 = vector.extract_strided_slice %608 {offsets = [0, 0], sizes = [2, 32], strides = [1, 1]} : vector<2x128xf32> to vector<2x32xf32>
    %611 = vector.extract_strided_slice %608 {offsets = [0, 32], sizes = [2, 32], strides = [1, 1]} : vector<2x128xf32> to vector<2x32xf32>
    %612 = vector.extract_strided_slice %609 {offsets = [0, 64], sizes = [2, 32], strides = [1, 1]} : vector<2x128xf32> to vector<2x32xf32>
    %613 = vector.extract_strided_slice %608 {offsets = [0, 96], sizes = [2, 32], strides = [1, 1]} : vector<2x128xf32> to vector<2x32xf32>
    %614 = arith.mulf %611, %579 : vector<2x32xf32>
    %615 = arith.mulf %610, %612 : vector<2x32xf32>
    %616 = arith.addf %614, %615 : vector<2x32xf32>
    %617 = math.tanh %616 : vector<2x32xf32>
    %618 = arith.mulf %613, %617 : vector<2x32xf32>
    %cst_80 = arith.constant dense<0.000000e+00> : vector<2x128xf32>
    %619 = tpu.matmul %618, %11, %cst_80 {dimension_numbers = #tpu.dot_dimension_numbers<[1], [0], [0], [1], [0, 0, 1, 1], [], []>} : vector<2x32xf32>, vector<32x128xf32>, vector<2x128xf32> -> vector<2x128xf32>
    %620 = vector.broadcast %12 : vector<1x128xf32> to vector<2x128xf32>
    %621 = arith.addf %619, %620 : vector<2x128xf32>
    %cst_81 = arith.constant dense<0.000000e+00> : vector<2x128xf32>
    %622 = tpu.matmul %601, %8, %cst_81 {dimension_numbers = #tpu.dot_dimension_numbers<[1], [0], [0], [1], [0, 0, 1, 1], [], []>} : vector<2x32xf32>, vector<32x128xf32>, vector<2x128xf32> -> vector<2x128xf32>
    %623 = arith.addf %174, %622 : vector<2x128xf32>
    %624 = arith.negf %623 : vector<2x128xf32>
    %625 = math.exp %624 : vector<2x128xf32>
    %cst_82 = arith.constant 1.000000e+00 : f32
    %626 = vector.broadcast %cst_82 : f32 to vector<2x128xf32>
    %627 = arith.addf %626, %625 : vector<2x128xf32>
    %628 = arith.divf %626, %627 : vector<2x128xf32>
    %629 = math.tanh %623 : vector<2x128xf32>
    %630 = vector.extract_strided_slice %628 {offsets = [0, 0], sizes = [2, 32], strides = [1, 1]} : vector<2x128xf32> to vector<2x32xf32>
    %631 = vector.extract_strided_slice %628 {offsets = [0, 32], sizes = [2, 32], strides = [1, 1]} : vector<2x128xf32> to vector<2x32xf32>
    %632 = vector.extract_strided_slice %629 {offsets = [0, 64], sizes = [2, 32], strides = [1, 1]} : vector<2x128xf32> to vector<2x32xf32>
    %633 = vector.extract_strided_slice %628 {offsets = [0, 96], sizes = [2, 32], strides = [1, 1]} : vector<2x128xf32> to vector<2x32xf32>
    %634 = arith.mulf %631, %599 : vector<2x32xf32>
    %635 = arith.mulf %630, %632 : vector<2x32xf32>
    %636 = arith.addf %634, %635 : vector<2x32xf32>
    %637 = math.tanh %636 : vector<2x32xf32>
    %638 = arith.mulf %633, %637 : vector<2x32xf32>
    %cst_83 = arith.constant dense<0.000000e+00> : vector<2x128xf32>
    %639 = tpu.matmul %638, %10, %cst_83 {dimension_numbers = #tpu.dot_dimension_numbers<[1], [0], [0], [1], [0, 0, 1, 1], [], []>} : vector<2x32xf32>, vector<32x128xf32>, vector<2x128xf32> -> vector<2x128xf32>
    %640 = arith.addf %639, %621 : vector<2x128xf32>
    %641 = arith.negf %640 : vector<2x128xf32>
    %642 = math.exp %641 : vector<2x128xf32>
    %cst_84 = arith.constant 1.000000e+00 : f32
    %643 = vector.broadcast %cst_84 : f32 to vector<2x128xf32>
    %644 = arith.addf %643, %642 : vector<2x128xf32>
    %645 = arith.divf %643, %644 : vector<2x128xf32>
    %646 = math.tanh %640 : vector<2x128xf32>
    %647 = vector.extract_strided_slice %645 {offsets = [0, 0], sizes = [2, 32], strides = [1, 1]} : vector<2x128xf32> to vector<2x32xf32>
    %648 = vector.extract_strided_slice %645 {offsets = [0, 32], sizes = [2, 32], strides = [1, 1]} : vector<2x128xf32> to vector<2x32xf32>
    %649 = vector.extract_strided_slice %646 {offsets = [0, 64], sizes = [2, 32], strides = [1, 1]} : vector<2x128xf32> to vector<2x32xf32>
    %650 = vector.extract_strided_slice %645 {offsets = [0, 96], sizes = [2, 32], strides = [1, 1]} : vector<2x128xf32> to vector<2x32xf32>
    %651 = arith.mulf %648, %616 : vector<2x32xf32>
    %652 = arith.mulf %647, %649 : vector<2x32xf32>
    %653 = arith.addf %651, %652 : vector<2x32xf32>
    %654 = math.tanh %653 : vector<2x32xf32>
    %655 = arith.mulf %650, %654 : vector<2x32xf32>
    %c2 = arith.constant 2 : index
    %c0_85 = arith.constant 0 : index
    %c0_86 = arith.constant 0 : index
    %656 = vector.load %arg11[%c2, %c0_85, %c0_86] : memref<8x2x32xf32, #tpu.memory_space<vmem>>, vector<1x2x32xf32>
    %657 = vector.shape_cast %656 : vector<1x2x32xf32> to vector<2x32xf32>
    %658 = vector.shape_cast %655 : vector<2x32xf32> to vector<1x2x32xf32>
    tpu.vector_store %arg11[%c2, %c0_85, %c0_86], %658 {strides = array<i32>} : memref<8x2x32xf32, #tpu.memory_space<vmem>>, vector<1x2x32xf32>,
    %cst_87 = arith.constant dense<0.000000e+00> : vector<2x128xf32>
    %659 = tpu.matmul %655, %11, %cst_87 {dimension_numbers = #tpu.dot_dimension_numbers<[1], [0], [0], [1], [0, 0, 1, 1], [], []>} : vector<2x32xf32>, vector<32x128xf32>, vector<2x128xf32> -> vector<2x128xf32>
    %660 = vector.broadcast %12 : vector<1x128xf32> to vector<2x128xf32>
    %661 = arith.addf %659, %660 : vector<2x128xf32>
    %cst_88 = arith.constant dense<0.000000e+00> : vector<2x128xf32>
    %662 = tpu.matmul %638, %8, %cst_88 {dimension_numbers = #tpu.dot_dimension_numbers<[1], [0], [0], [1], [0, 0, 1, 1], [], []>} : vector<2x32xf32>, vector<32x128xf32>, vector<2x128xf32> -> vector<2x128xf32>
    %663 = arith.addf %36, %662 : vector<2x128xf32>
    %664 = arith.negf %663 : vector<2x128xf32>
    %665 = math.exp %664 : vector<2x128xf32>
    %cst_89 = arith.constant 1.000000e+00 : f32
    %666 = vector.broadcast %cst_89 : f32 to vector<2x128xf32>
    %667 = arith.addf %666, %665 : vector<2x128xf32>
    %668 = arith.divf %666, %667 : vector<2x128xf32>
    %669 = math.tanh %663 : vector<2x128xf32>
    %670 = vector.extract_strided_slice %668 {offsets = [0, 0], sizes = [2, 32], strides = [1, 1]} : vector<2x128xf32> to vector<2x32xf32>
    %671 = vector.extract_strided_slice %668 {offsets = [0, 32], sizes = [2, 32], strides = [1, 1]} : vector<2x128xf32> to vector<2x32xf32>
    %672 = vector.extract_strided_slice %669 {offsets = [0, 64], sizes = [2, 32], strides = [1, 1]} : vector<2x128xf32> to vector<2x32xf32>
    %673 = vector.extract_strided_slice %668 {offsets = [0, 96], sizes = [2, 32], strides = [1, 1]} : vector<2x128xf32> to vector<2x32xf32>
    %674 = arith.mulf %671, %636 : vector<2x32xf32>
    %675 = arith.mulf %670, %672 : vector<2x32xf32>
    %676 = arith.addf %674, %675 : vector<2x32xf32>
    %677 = math.tanh %676 : vector<2x32xf32>
    %678 = arith.mulf %673, %677 : vector<2x32xf32>
    %cst_90 = arith.constant dense<0.000000e+00> : vector<2x128xf32>
    %679 = tpu.matmul %678, %10, %cst_90 {dimension_numbers = #tpu.dot_dimension_numbers<[1], [0], [0], [1], [0, 0, 1, 1], [], []>} : vector<2x32xf32>, vector<32x128xf32>, vector<2x128xf32> -> vector<2x128xf32>
    %680 = arith.addf %679, %661 : vector<2x128xf32>
    %681 = arith.negf %680 : vector<2x128xf32>
    %682 = math.exp %681 : vector<2x128xf32>
    %cst_91 = arith.constant 1.000000e+00 : f32
    %683 = vector.broadcast %cst_91 : f32 to vector<2x128xf32>
    %684 = arith.addf %683, %682 : vector<2x128xf32>
    %685 = arith.divf %683, %684 : vector<2x128xf32>
    %686 = math.tanh %680 : vector<2x128xf32>
    %687 = vector.extract_strided_slice %685 {offsets = [0, 0], sizes = [2, 32], strides = [1, 1]} : vector<2x128xf32> to vector<2x32xf32>
    %688 = vector.extract_strided_slice %685 {offsets = [0, 32], sizes = [2, 32], strides = [1, 1]} : vector<2x128xf32> to vector<2x32xf32>
    %689 = vector.extract_strided_slice %686 {offsets = [0, 64], sizes = [2, 32], strides = [1, 1]} : vector<2x128xf32> to vector<2x32xf32>
    %690 = vector.extract_strided_slice %685 {offsets = [0, 96], sizes = [2, 32], strides = [1, 1]} : vector<2x128xf32> to vector<2x32xf32>
    %691 = arith.mulf %688, %653 : vector<2x32xf32>
    %692 = arith.mulf %687, %689 : vector<2x32xf32>
    %693 = arith.addf %691, %692 : vector<2x32xf32>
    %694 = math.tanh %693 : vector<2x32xf32>
    %695 = arith.mulf %690, %694 : vector<2x32xf32>
    %cst_92 = arith.constant dense<0.000000e+00> : vector<2x128xf32>
    %696 = tpu.matmul %695, %11, %cst_92 {dimension_numbers = #tpu.dot_dimension_numbers<[1], [0], [0], [1], [0, 0, 1, 1], [], []>} : vector<2x32xf32>, vector<32x128xf32>, vector<2x128xf32> -> vector<2x128xf32>
    %697 = vector.broadcast %12 : vector<1x128xf32> to vector<2x128xf32>
    %698 = arith.addf %696, %697 : vector<2x128xf32>
    %cst_93 = arith.constant dense<0.000000e+00> : vector<2x128xf32>
    %699 = tpu.matmul %678, %8, %cst_93 {dimension_numbers = #tpu.dot_dimension_numbers<[1], [0], [0], [1], [0, 0, 1, 1], [], []>} : vector<2x32xf32>, vector<32x128xf32>, vector<2x128xf32> -> vector<2x128xf32>
    %700 = arith.addf %84, %699 : vector<2x128xf32>
    %701 = arith.negf %700 : vector<2x128xf32>
    %702 = math.exp %701 : vector<2x128xf32>
    %cst_94 = arith.constant 1.000000e+00 : f32
    %703 = vector.broadcast %cst_94 : f32 to vector<2x128xf32>
    %704 = arith.addf %703, %702 : vector<2x128xf32>
    %705 = arith.divf %703, %704 : vector<2x128xf32>
    %706 = math.tanh %700 : vector<2x128xf32>
    %707 = vector.extract_strided_slice %705 {offsets = [0, 0], sizes = [2, 32], strides = [1, 1]} : vector<2x128xf32> to vector<2x32xf32>
    %708 = vector.extract_strided_slice %705 {offsets = [0, 32], sizes = [2, 32], strides = [1, 1]} : vector<2x128xf32> to vector<2x32xf32>
    %709 = vector.extract_strided_slice %706 {offsets = [0, 64], sizes = [2, 32], strides = [1, 1]} : vector<2x128xf32> to vector<2x32xf32>
    %710 = vector.extract_strided_slice %705 {offsets = [0, 96], sizes = [2, 32], strides = [1, 1]} : vector<2x128xf32> to vector<2x32xf32>
    %711 = arith.mulf %708, %676 : vector<2x32xf32>
    %712 = arith.mulf %707, %709 : vector<2x32xf32>
    %713 = arith.addf %711, %712 : vector<2x32xf32>
    %714 = math.tanh %713 : vector<2x32xf32>
    %715 = arith.mulf %710, %714 : vector<2x32xf32>
    %cst_95 = arith.constant dense<0.000000e+00> : vector<2x128xf32>
    %716 = tpu.matmul %715, %10, %cst_95 {dimension_numbers = #tpu.dot_dimension_numbers<[1], [0], [0], [1], [0, 0, 1, 1], [], []>} : vector<2x32xf32>, vector<32x128xf32>, vector<2x128xf32> -> vector<2x128xf32>
    %717 = arith.addf %716, %698 : vector<2x128xf32>
    %718 = arith.negf %717 : vector<2x128xf32>
    %719 = math.exp %718 : vector<2x128xf32>
    %cst_96 = arith.constant 1.000000e+00 : f32
    %720 = vector.broadcast %cst_96 : f32 to vector<2x128xf32>
    %721 = arith.addf %720, %719 : vector<2x128xf32>
    %722 = arith.divf %720, %721 : vector<2x128xf32>
    %723 = math.tanh %717 : vector<2x128xf32>
    %724 = vector.extract_strided_slice %722 {offsets = [0, 0], sizes = [2, 32], strides = [1, 1]} : vector<2x128xf32> to vector<2x32xf32>
    %725 = vector.extract_strided_slice %722 {offsets = [0, 32], sizes = [2, 32], strides = [1, 1]} : vector<2x128xf32> to vector<2x32xf32>
    %726 = vector.extract_strided_slice %723 {offsets = [0, 64], sizes = [2, 32], strides = [1, 1]} : vector<2x128xf32> to vector<2x32xf32>
    %727 = vector.extract_strided_slice %722 {offsets = [0, 96], sizes = [2, 32], strides = [1, 1]} : vector<2x128xf32> to vector<2x32xf32>
    %728 = arith.mulf %725, %693 : vector<2x32xf32>
    %729 = arith.mulf %724, %726 : vector<2x32xf32>
    %730 = arith.addf %728, %729 : vector<2x32xf32>
    %731 = math.tanh %730 : vector<2x32xf32>
    %732 = arith.mulf %727, %731 : vector<2x32xf32>
    %cst_97 = arith.constant dense<0.000000e+00> : vector<2x128xf32>
    %733 = tpu.matmul %732, %11, %cst_97 {dimension_numbers = #tpu.dot_dimension_numbers<[1], [0], [0], [1], [0, 0, 1, 1], [], []>} : vector<2x32xf32>, vector<32x128xf32>, vector<2x128xf32> -> vector<2x128xf32>
    %734 = vector.broadcast %12 : vector<1x128xf32> to vector<2x128xf32>
    %735 = arith.addf %733, %734 : vector<2x128xf32>
    %cst_98 = arith.constant dense<0.000000e+00> : vector<2x128xf32>
    %736 = tpu.matmul %715, %8, %cst_98 {dimension_numbers = #tpu.dot_dimension_numbers<[1], [0], [0], [1], [0, 0, 1, 1], [], []>} : vector<2x32xf32>, vector<32x128xf32>, vector<2x128xf32> -> vector<2x128xf32>
    %737 = arith.addf %132, %736 : vector<2x128xf32>
    %738 = arith.negf %737 : vector<2x128xf32>
    %739 = math.exp %738 : vector<2x128xf32>
    %cst_99 = arith.constant 1.000000e+00 : f32
    %740 = vector.broadcast %cst_99 : f32 to vector<2x128xf32>
    %741 = arith.addf %740, %739 : vector<2x128xf32>
    %742 = arith.divf %740, %741 : vector<2x128xf32>
    %743 = math.tanh %737 : vector<2x128xf32>
    %744 = vector.extract_strided_slice %742 {offsets = [0, 0], sizes = [2, 32], strides = [1, 1]} : vector<2x128xf32> to vector<2x32xf32>
    %745 = vector.extract_strided_slice %742 {offsets = [0, 32], sizes = [2, 32], strides = [1, 1]} : vector<2x128xf32> to vector<2x32xf32>
    %746 = vector.extract_strided_slice %743 {offsets = [0, 64], sizes = [2, 32], strides = [1, 1]} : vector<2x128xf32> to vector<2x32xf32>
    %747 = vector.extract_strided_slice %742 {offsets = [0, 96], sizes = [2, 32], strides = [1, 1]} : vector<2x128xf32> to vector<2x32xf32>
    %748 = arith.mulf %745, %713 : vector<2x32xf32>
    %749 = arith.mulf %744, %746 : vector<2x32xf32>
    %750 = arith.addf %748, %749 : vector<2x32xf32>
    %751 = math.tanh %750 : vector<2x32xf32>
    %752 = arith.mulf %747, %751 : vector<2x32xf32>
    %cst_100 = arith.constant dense<0.000000e+00> : vector<2x128xf32>
    %753 = tpu.matmul %752, %10, %cst_100 {dimension_numbers = #tpu.dot_dimension_numbers<[1], [0], [0], [1], [0, 0, 1, 1], [], []>} : vector<2x32xf32>, vector<32x128xf32>, vector<2x128xf32> -> vector<2x128xf32>
    %754 = arith.addf %753, %735 : vector<2x128xf32>
    %755 = arith.negf %754 : vector<2x128xf32>
    %756 = math.exp %755 : vector<2x128xf32>
    %cst_101 = arith.constant 1.000000e+00 : f32
    %757 = vector.broadcast %cst_101 : f32 to vector<2x128xf32>
    %758 = arith.addf %757, %756 : vector<2x128xf32>
    %759 = arith.divf %757, %758 : vector<2x128xf32>
    %760 = math.tanh %754 : vector<2x128xf32>
    %761 = vector.extract_strided_slice %759 {offsets = [0, 0], sizes = [2, 32], strides = [1, 1]} : vector<2x128xf32> to vector<2x32xf32>
    %762 = vector.extract_strided_slice %759 {offsets = [0, 32], sizes = [2, 32], strides = [1, 1]} : vector<2x128xf32> to vector<2x32xf32>
    %763 = vector.extract_strided_slice %760 {offsets = [0, 64], sizes = [2, 32], strides = [1, 1]} : vector<2x128xf32> to vector<2x32xf32>
    %764 = vector.extract_strided_slice %759 {offsets = [0, 96], sizes = [2, 32], strides = [1, 1]} : vector<2x128xf32> to vector<2x32xf32>
    %765 = arith.mulf %762, %730 : vector<2x32xf32>
    %766 = arith.mulf %761, %763 : vector<2x32xf32>
    %767 = arith.addf %765, %766 : vector<2x32xf32>
    %768 = math.tanh %767 : vector<2x32xf32>
    %769 = arith.mulf %764, %768 : vector<2x32xf32>
    %cst_102 = arith.constant dense<0.000000e+00> : vector<2x128xf32>
    %770 = tpu.matmul %769, %11, %cst_102 {dimension_numbers = #tpu.dot_dimension_numbers<[1], [0], [0], [1], [0, 0, 1, 1], [], []>} : vector<2x32xf32>, vector<32x128xf32>, vector<2x128xf32> -> vector<2x128xf32>
    %771 = vector.broadcast %12 : vector<1x128xf32> to vector<2x128xf32>
    %772 = arith.addf %770, %771 : vector<2x128xf32>
    %cst_103 = arith.constant dense<0.000000e+00> : vector<2x128xf32>
    %773 = tpu.matmul %752, %8, %cst_103 {dimension_numbers = #tpu.dot_dimension_numbers<[1], [0], [0], [1], [0, 0, 1, 1], [], []>} : vector<2x32xf32>, vector<32x128xf32>, vector<2x128xf32> -> vector<2x128xf32>
    %774 = arith.addf %180, %773 : vector<2x128xf32>
    %775 = arith.negf %774 : vector<2x128xf32>
    %776 = math.exp %775 : vector<2x128xf32>
    %cst_104 = arith.constant 1.000000e+00 : f32
    %777 = vector.broadcast %cst_104 : f32 to vector<2x128xf32>
    %778 = arith.addf %777, %776 : vector<2x128xf32>
    %779 = arith.divf %777, %778 : vector<2x128xf32>
    %780 = math.tanh %774 : vector<2x128xf32>
    %781 = vector.extract_strided_slice %779 {offsets = [0, 0], sizes = [2, 32], strides = [1, 1]} : vector<2x128xf32> to vector<2x32xf32>
    %782 = vector.extract_strided_slice %779 {offsets = [0, 32], sizes = [2, 32], strides = [1, 1]} : vector<2x128xf32> to vector<2x32xf32>
    %783 = vector.extract_strided_slice %780 {offsets = [0, 64], sizes = [2, 32], strides = [1, 1]} : vector<2x128xf32> to vector<2x32xf32>
    %784 = vector.extract_strided_slice %779 {offsets = [0, 96], sizes = [2, 32], strides = [1, 1]} : vector<2x128xf32> to vector<2x32xf32>
    %785 = arith.mulf %782, %750 : vector<2x32xf32>
    %786 = arith.mulf %781, %783 : vector<2x32xf32>
    %787 = arith.addf %785, %786 : vector<2x32xf32>
    %788 = math.tanh %787 : vector<2x32xf32>
    %789 = arith.mulf %784, %788 : vector<2x32xf32>
    %cst_105 = arith.constant dense<0.000000e+00> : vector<2x128xf32>
    %790 = tpu.matmul %789, %10, %cst_105 {dimension_numbers = #tpu.dot_dimension_numbers<[1], [0], [0], [1], [0, 0, 1, 1], [], []>} : vector<2x32xf32>, vector<32x128xf32>, vector<2x128xf32> -> vector<2x128xf32>
    %791 = arith.addf %790, %772 : vector<2x128xf32>
    %792 = arith.negf %791 : vector<2x128xf32>
    %793 = math.exp %792 : vector<2x128xf32>
    %cst_106 = arith.constant 1.000000e+00 : f32
    %794 = vector.broadcast %cst_106 : f32 to vector<2x128xf32>
    %795 = arith.addf %794, %793 : vector<2x128xf32>
    %796 = arith.divf %794, %795 : vector<2x128xf32>
    %797 = math.tanh %791 : vector<2x128xf32>
    %798 = vector.extract_strided_slice %796 {offsets = [0, 0], sizes = [2, 32], strides = [1, 1]} : vector<2x128xf32> to vector<2x32xf32>
    %799 = vector.extract_strided_slice %796 {offsets = [0, 32], sizes = [2, 32], strides = [1, 1]} : vector<2x128xf32> to vector<2x32xf32>
    %800 = vector.extract_strided_slice %797 {offsets = [0, 64], sizes = [2, 32], strides = [1, 1]} : vector<2x128xf32> to vector<2x32xf32>
    %801 = vector.extract_strided_slice %796 {offsets = [0, 96], sizes = [2, 32], strides = [1, 1]} : vector<2x128xf32> to vector<2x32xf32>
    %802 = arith.mulf %799, %767 : vector<2x32xf32>
    %803 = arith.mulf %798, %800 : vector<2x32xf32>
    %804 = arith.addf %802, %803 : vector<2x32xf32>
    %805 = math.tanh %804 : vector<2x32xf32>
    %806 = arith.mulf %801, %805 : vector<2x32xf32>
    %c3 = arith.constant 3 : index
    %c0_107 = arith.constant 0 : index
    %c0_108 = arith.constant 0 : index
    %807 = vector.load %arg11[%c3, %c0_107, %c0_108] : memref<8x2x32xf32, #tpu.memory_space<vmem>>, vector<1x2x32xf32>
    %808 = vector.shape_cast %807 : vector<1x2x32xf32> to vector<2x32xf32>
    %809 = vector.shape_cast %806 : vector<2x32xf32> to vector<1x2x32xf32>
    tpu.vector_store %arg11[%c3, %c0_107, %c0_108], %809 {strides = array<i32>} : memref<8x2x32xf32, #tpu.memory_space<vmem>>, vector<1x2x32xf32>,
    %cst_109 = arith.constant dense<0.000000e+00> : vector<2x128xf32>
    %810 = tpu.matmul %806, %11, %cst_109 {dimension_numbers = #tpu.dot_dimension_numbers<[1], [0], [0], [1], [0, 0, 1, 1], [], []>} : vector<2x32xf32>, vector<32x128xf32>, vector<2x128xf32> -> vector<2x128xf32>
    %811 = vector.broadcast %12 : vector<1x128xf32> to vector<2x128xf32>
    %812 = arith.addf %810, %811 : vector<2x128xf32>
    %cst_110 = arith.constant dense<0.000000e+00> : vector<2x128xf32>
    %813 = tpu.matmul %789, %8, %cst_110 {dimension_numbers = #tpu.dot_dimension_numbers<[1], [0], [0], [1], [0, 0, 1, 1], [], []>} : vector<2x32xf32>, vector<32x128xf32>, vector<2x128xf32> -> vector<2x128xf32>
    %814 = arith.addf %42, %813 : vector<2x128xf32>
    %815 = arith.negf %814 : vector<2x128xf32>
    %816 = math.exp %815 : vector<2x128xf32>
    %cst_111 = arith.constant 1.000000e+00 : f32
    %817 = vector.broadcast %cst_111 : f32 to vector<2x128xf32>
    %818 = arith.addf %817, %816 : vector<2x128xf32>
    %819 = arith.divf %817, %818 : vector<2x128xf32>
    %820 = math.tanh %814 : vector<2x128xf32>
    %821 = vector.extract_strided_slice %819 {offsets = [0, 0], sizes = [2, 32], strides = [1, 1]} : vector<2x128xf32> to vector<2x32xf32>
    %822 = vector.extract_strided_slice %819 {offsets = [0, 32], sizes = [2, 32], strides = [1, 1]} : vector<2x128xf32> to vector<2x32xf32>
    %823 = vector.extract_strided_slice %820 {offsets = [0, 64], sizes = [2, 32], strides = [1, 1]} : vector<2x128xf32> to vector<2x32xf32>
    %824 = vector.extract_strided_slice %819 {offsets = [0, 96], sizes = [2, 32], strides = [1, 1]} : vector<2x128xf32> to vector<2x32xf32>
    %825 = arith.mulf %822, %787 : vector<2x32xf32>
    %826 = arith.mulf %821, %823 : vector<2x32xf32>
    %827 = arith.addf %825, %826 : vector<2x32xf32>
    %828 = math.tanh %827 : vector<2x32xf32>
    %829 = arith.mulf %824, %828 : vector<2x32xf32>
    %cst_112 = arith.constant dense<0.000000e+00> : vector<2x128xf32>
    %830 = tpu.matmul %829, %10, %cst_112 {dimension_numbers = #tpu.dot_dimension_numbers<[1], [0], [0], [1], [0, 0, 1, 1], [], []>} : vector<2x32xf32>, vector<32x128xf32>, vector<2x128xf32> -> vector<2x128xf32>
    %831 = arith.addf %830, %812 : vector<2x128xf32>
    %832 = arith.negf %831 : vector<2x128xf32>
    %833 = math.exp %832 : vector<2x128xf32>
    %cst_113 = arith.constant 1.000000e+00 : f32
    %834 = vector.broadcast %cst_113 : f32 to vector<2x128xf32>
    %835 = arith.addf %834, %833 : vector<2x128xf32>
    %836 = arith.divf %834, %835 : vector<2x128xf32>
    %837 = math.tanh %831 : vector<2x128xf32>
    %838 = vector.extract_strided_slice %836 {offsets = [0, 0], sizes = [2, 32], strides = [1, 1]} : vector<2x128xf32> to vector<2x32xf32>
    %839 = vector.extract_strided_slice %836 {offsets = [0, 32], sizes = [2, 32], strides = [1, 1]} : vector<2x128xf32> to vector<2x32xf32>
    %840 = vector.extract_strided_slice %837 {offsets = [0, 64], sizes = [2, 32], strides = [1, 1]} : vector<2x128xf32> to vector<2x32xf32>
    %841 = vector.extract_strided_slice %836 {offsets = [0, 96], sizes = [2, 32], strides = [1, 1]} : vector<2x128xf32> to vector<2x32xf32>
    %842 = arith.mulf %839, %804 : vector<2x32xf32>
    %843 = arith.mulf %838, %840 : vector<2x32xf32>
    %844 = arith.addf %842, %843 : vector<2x32xf32>
    %845 = math.tanh %844 : vector<2x32xf32>
    %846 = arith.mulf %841, %845 : vector<2x32xf32>
    %cst_114 = arith.constant dense<0.000000e+00> : vector<2x128xf32>
    %847 = tpu.matmul %846, %11, %cst_114 {dimension_numbers = #tpu.dot_dimension_numbers<[1], [0], [0], [1], [0, 0, 1, 1], [], []>} : vector<2x32xf32>, vector<32x128xf32>, vector<2x128xf32> -> vector<2x128xf32>
    %848 = vector.broadcast %12 : vector<1x128xf32> to vector<2x128xf32>
    %849 = arith.addf %847, %848 : vector<2x128xf32>
    %cst_115 = arith.constant dense<0.000000e+00> : vector<2x128xf32>
    %850 = tpu.matmul %829, %8, %cst_115 {dimension_numbers = #tpu.dot_dimension_numbers<[1], [0], [0], [1], [0, 0, 1, 1], [], []>} : vector<2x32xf32>, vector<32x128xf32>, vector<2x128xf32> -> vector<2x128xf32>
    %851 = arith.addf %90, %850 : vector<2x128xf32>
    %852 = arith.negf %851 : vector<2x128xf32>
    %853 = math.exp %852 : vector<2x128xf32>
    %cst_116 = arith.constant 1.000000e+00 : f32
    %854 = vector.broadcast %cst_116 : f32 to vector<2x128xf32>
    %855 = arith.addf %854, %853 : vector<2x128xf32>
    %856 = arith.divf %854, %855 : vector<2x128xf32>
    %857 = math.tanh %851 : vector<2x128xf32>
    %858 = vector.extract_strided_slice %856 {offsets = [0, 0], sizes = [2, 32], strides = [1, 1]} : vector<2x128xf32> to vector<2x32xf32>
    %859 = vector.extract_strided_slice %856 {offsets = [0, 32], sizes = [2, 32], strides = [1, 1]} : vector<2x128xf32> to vector<2x32xf32>
    %860 = vector.extract_strided_slice %857 {offsets = [0, 64], sizes = [2, 32], strides = [1, 1]} : vector<2x128xf32> to vector<2x32xf32>
    %861 = vector.extract_strided_slice %856 {offsets = [0, 96], sizes = [2, 32], strides = [1, 1]} : vector<2x128xf32> to vector<2x32xf32>
    %862 = arith.mulf %859, %827 : vector<2x32xf32>
    %863 = arith.mulf %858, %860 : vector<2x32xf32>
    %864 = arith.addf %862, %863 : vector<2x32xf32>
    %865 = math.tanh %864 : vector<2x32xf32>
    %866 = arith.mulf %861, %865 : vector<2x32xf32>
    %cst_117 = arith.constant dense<0.000000e+00> : vector<2x128xf32>
    %867 = tpu.matmul %866, %10, %cst_117 {dimension_numbers = #tpu.dot_dimension_numbers<[1], [0], [0], [1], [0, 0, 1, 1], [], []>} : vector<2x32xf32>, vector<32x128xf32>, vector<2x128xf32> -> vector<2x128xf32>
    %868 = arith.addf %867, %849 : vector<2x128xf32>
    %869 = arith.negf %868 : vector<2x128xf32>
    %870 = math.exp %869 : vector<2x128xf32>
    %cst_118 = arith.constant 1.000000e+00 : f32
    %871 = vector.broadcast %cst_118 : f32 to vector<2x128xf32>
    %872 = arith.addf %871, %870 : vector<2x128xf32>
    %873 = arith.divf %871, %872 : vector<2x128xf32>
    %874 = math.tanh %868 : vector<2x128xf32>
    %875 = vector.extract_strided_slice %873 {offsets = [0, 0], sizes = [2, 32], strides = [1, 1]} : vector<2x128xf32> to vector<2x32xf32>
    %876 = vector.extract_strided_slice %873 {offsets = [0, 32], sizes = [2, 32], strides = [1, 1]} : vector<2x128xf32> to vector<2x32xf32>
    %877 = vector.extract_strided_slice %874 {offsets = [0, 64], sizes = [2, 32], strides = [1, 1]} : vector<2x128xf32> to vector<2x32xf32>
    %878 = vector.extract_strided_slice %873 {offsets = [0, 96], sizes = [2, 32], strides = [1, 1]} : vector<2x128xf32> to vector<2x32xf32>
    %879 = arith.mulf %876, %844 : vector<2x32xf32>
    %880 = arith.mulf %875, %877 : vector<2x32xf32>
    %881 = arith.addf %879, %880 : vector<2x32xf32>
    %882 = math.tanh %881 : vector<2x32xf32>
    %883 = arith.mulf %878, %882 : vector<2x32xf32>
    %cst_119 = arith.constant dense<0.000000e+00> : vector<2x128xf32>
    %884 = tpu.matmul %883, %11, %cst_119 {dimension_numbers = #tpu.dot_dimension_numbers<[1], [0], [0], [1], [0, 0, 1, 1], [], []>} : vector<2x32xf32>, vector<32x128xf32>, vector<2x128xf32> -> vector<2x128xf32>
    %885 = vector.broadcast %12 : vector<1x128xf32> to vector<2x128xf32>
    %886 = arith.addf %884, %885 : vector<2x128xf32>
    %cst_120 = arith.constant dense<0.000000e+00> : vector<2x128xf32>
    %887 = tpu.matmul %866, %8, %cst_120 {dimension_numbers = #tpu.dot_dimension_numbers<[1], [0], [0], [1], [0, 0, 1, 1], [], []>} : vector<2x32xf32>, vector<32x128xf32>, vector<2x128xf32> -> vector<2x128xf32>
    %888 = arith.addf %138, %887 : vector<2x128xf32>
    %889 = arith.negf %888 : vector<2x128xf32>
    %890 = math.exp %889 : vector<2x128xf32>
    %cst_121 = arith.constant 1.000000e+00 : f32
    %891 = vector.broadcast %cst_121 : f32 to vector<2x128xf32>
    %892 = arith.addf %891, %890 : vector<2x128xf32>
    %893 = arith.divf %891, %892 : vector<2x128xf32>
    %894 = math.tanh %888 : vector<2x128xf32>
    %895 = vector.extract_strided_slice %893 {offsets = [0, 0], sizes = [2, 32], strides = [1, 1]} : vector<2x128xf32> to vector<2x32xf32>
    %896 = vector.extract_strided_slice %893 {offsets = [0, 32], sizes = [2, 32], strides = [1, 1]} : vector<2x128xf32> to vector<2x32xf32>
    %897 = vector.extract_strided_slice %894 {offsets = [0, 64], sizes = [2, 32], strides = [1, 1]} : vector<2x128xf32> to vector<2x32xf32>
    %898 = vector.extract_strided_slice %893 {offsets = [0, 96], sizes = [2, 32], strides = [1, 1]} : vector<2x128xf32> to vector<2x32xf32>
    %899 = arith.mulf %896, %864 : vector<2x32xf32>
    %900 = arith.mulf %895, %897 : vector<2x32xf32>
    %901 = arith.addf %899, %900 : vector<2x32xf32>
    %902 = math.tanh %901 : vector<2x32xf32>
    %903 = arith.mulf %898, %902 : vector<2x32xf32>
    %cst_122 = arith.constant dense<0.000000e+00> : vector<2x128xf32>
    %904 = tpu.matmul %903, %10, %cst_122 {dimension_numbers = #tpu.dot_dimension_numbers<[1], [0], [0], [1], [0, 0, 1, 1], [], []>} : vector<2x32xf32>, vector<32x128xf32>, vector<2x128xf32> -> vector<2x128xf32>
    %905 = arith.addf %904, %886 : vector<2x128xf32>
    %906 = arith.negf %905 : vector<2x128xf32>
    %907 = math.exp %906 : vector<2x128xf32>
    %cst_123 = arith.constant 1.000000e+00 : f32
    %908 = vector.broadcast %cst_123 : f32 to vector<2x128xf32>
    %909 = arith.addf %908, %907 : vector<2x128xf32>
    %910 = arith.divf %908, %909 : vector<2x128xf32>
    %911 = math.tanh %905 : vector<2x128xf32>
    %912 = vector.extract_strided_slice %910 {offsets = [0, 0], sizes = [2, 32], strides = [1, 1]} : vector<2x128xf32> to vector<2x32xf32>
    %913 = vector.extract_strided_slice %910 {offsets = [0, 32], sizes = [2, 32], strides = [1, 1]} : vector<2x128xf32> to vector<2x32xf32>
    %914 = vector.extract_strided_slice %911 {offsets = [0, 64], sizes = [2, 32], strides = [1, 1]} : vector<2x128xf32> to vector<2x32xf32>
    %915 = vector.extract_strided_slice %910 {offsets = [0, 96], sizes = [2, 32], strides = [1, 1]} : vector<2x128xf32> to vector<2x32xf32>
    %916 = arith.mulf %913, %881 : vector<2x32xf32>
    %917 = arith.mulf %912, %914 : vector<2x32xf32>
    %918 = arith.addf %916, %917 : vector<2x32xf32>
    %919 = math.tanh %918 : vector<2x32xf32>
    %920 = arith.mulf %915, %919 : vector<2x32xf32>
    %cst_124 = arith.constant dense<0.000000e+00> : vector<2x128xf32>
    %921 = tpu.matmul %920, %11, %cst_124 {dimension_numbers = #tpu.dot_dimension_numbers<[1], [0], [0], [1], [0, 0, 1, 1], [], []>} : vector<2x32xf32>, vector<32x128xf32>, vector<2x128xf32> -> vector<2x128xf32>
    %922 = vector.broadcast %12 : vector<1x128xf32> to vector<2x128xf32>
    %923 = arith.addf %921, %922 : vector<2x128xf32>
    %cst_125 = arith.constant dense<0.000000e+00> : vector<2x128xf32>
    %924 = tpu.matmul %903, %8, %cst_125 {dimension_numbers = #tpu.dot_dimension_numbers<[1], [0], [0], [1], [0, 0, 1, 1], [], []>} : vector<2x32xf32>, vector<32x128xf32>, vector<2x128xf32> -> vector<2x128xf32>
    %925 = arith.addf %186, %924 : vector<2x128xf32>
    %926 = arith.negf %925 : vector<2x128xf32>
    %927 = math.exp %926 : vector<2x128xf32>
    %cst_126 = arith.constant 1.000000e+00 : f32
    %928 = vector.broadcast %cst_126 : f32 to vector<2x128xf32>
    %929 = arith.addf %928, %927 : vector<2x128xf32>
    %930 = arith.divf %928, %929 : vector<2x128xf32>
    %931 = math.tanh %925 : vector<2x128xf32>
    %932 = vector.extract_strided_slice %930 {offsets = [0, 0], sizes = [2, 32], strides = [1, 1]} : vector<2x128xf32> to vector<2x32xf32>
    %933 = vector.extract_strided_slice %930 {offsets = [0, 32], sizes = [2, 32], strides = [1, 1]} : vector<2x128xf32> to vector<2x32xf32>
    %934 = vector.extract_strided_slice %931 {offsets = [0, 64], sizes = [2, 32], strides = [1, 1]} : vector<2x128xf32> to vector<2x32xf32>
    %935 = vector.extract_strided_slice %930 {offsets = [0, 96], sizes = [2, 32], strides = [1, 1]} : vector<2x128xf32> to vector<2x32xf32>
    %936 = arith.mulf %933, %901 : vector<2x32xf32>
    %937 = arith.mulf %932, %934 : vector<2x32xf32>
    %938 = arith.addf %936, %937 : vector<2x32xf32>
    %939 = math.tanh %938 : vector<2x32xf32>
    %940 = arith.mulf %935, %939 : vector<2x32xf32>
    %cst_127 = arith.constant dense<0.000000e+00> : vector<2x128xf32>
    %941 = tpu.matmul %940, %10, %cst_127 {dimension_numbers = #tpu.dot_dimension_numbers<[1], [0], [0], [1], [0, 0, 1, 1], [], []>} : vector<2x32xf32>, vector<32x128xf32>, vector<2x128xf32> -> vector<2x128xf32>
    %942 = arith.addf %941, %923 : vector<2x128xf32>
    %943 = arith.negf %942 : vector<2x128xf32>
    %944 = math.exp %943 : vector<2x128xf32>
    %cst_128 = arith.constant 1.000000e+00 : f32
    %945 = vector.broadcast %cst_128 : f32 to vector<2x128xf32>
    %946 = arith.addf %945, %944 : vector<2x128xf32>
    %947 = arith.divf %945, %946 : vector<2x128xf32>
    %948 = math.tanh %942 : vector<2x128xf32>
    %949 = vector.extract_strided_slice %947 {offsets = [0, 0], sizes = [2, 32], strides = [1, 1]} : vector<2x128xf32> to vector<2x32xf32>
    %950 = vector.extract_strided_slice %947 {offsets = [0, 32], sizes = [2, 32], strides = [1, 1]} : vector<2x128xf32> to vector<2x32xf32>
    %951 = vector.extract_strided_slice %948 {offsets = [0, 64], sizes = [2, 32], strides = [1, 1]} : vector<2x128xf32> to vector<2x32xf32>
    %952 = vector.extract_strided_slice %947 {offsets = [0, 96], sizes = [2, 32], strides = [1, 1]} : vector<2x128xf32> to vector<2x32xf32>
    %953 = arith.mulf %950, %918 : vector<2x32xf32>
    %954 = arith.mulf %949, %951 : vector<2x32xf32>
    %955 = arith.addf %953, %954 : vector<2x32xf32>
    %956 = math.tanh %955 : vector<2x32xf32>
    %957 = arith.mulf %952, %956 : vector<2x32xf32>
    %c4 = arith.constant 4 : index
    %c0_129 = arith.constant 0 : index
    %c0_130 = arith.constant 0 : index
    %958 = vector.load %arg11[%c4, %c0_129, %c0_130] : memref<8x2x32xf32, #tpu.memory_space<vmem>>, vector<1x2x32xf32>
    %959 = vector.shape_cast %958 : vector<1x2x32xf32> to vector<2x32xf32>
    %960 = vector.shape_cast %957 : vector<2x32xf32> to vector<1x2x32xf32>
    tpu.vector_store %arg11[%c4, %c0_129, %c0_130], %960 {strides = array<i32>} : memref<8x2x32xf32, #tpu.memory_space<vmem>>, vector<1x2x32xf32>,
    %cst_131 = arith.constant dense<0.000000e+00> : vector<2x128xf32>
    %961 = tpu.matmul %957, %11, %cst_131 {dimension_numbers = #tpu.dot_dimension_numbers<[1], [0], [0], [1], [0, 0, 1, 1], [], []>} : vector<2x32xf32>, vector<32x128xf32>, vector<2x128xf32> -> vector<2x128xf32>
    %962 = vector.broadcast %12 : vector<1x128xf32> to vector<2x128xf32>
    %963 = arith.addf %961, %962 : vector<2x128xf32>
    %cst_132 = arith.constant dense<0.000000e+00> : vector<2x128xf32>
    %964 = tpu.matmul %940, %8, %cst_132 {dimension_numbers = #tpu.dot_dimension_numbers<[1], [0], [0], [1], [0, 0, 1, 1], [], []>} : vector<2x32xf32>, vector<32x128xf32>, vector<2x128xf32> -> vector<2x128xf32>
    %965 = arith.addf %48, %964 : vector<2x128xf32>
    %966 = arith.negf %965 : vector<2x128xf32>
    %967 = math.exp %966 : vector<2x128xf32>
    %cst_133 = arith.constant 1.000000e+00 : f32
    %968 = vector.broadcast %cst_133 : f32 to vector<2x128xf32>
    %969 = arith.addf %968, %967 : vector<2x128xf32>
    %970 = arith.divf %968, %969 : vector<2x128xf32>
    %971 = math.tanh %965 : vector<2x128xf32>
    %972 = vector.extract_strided_slice %970 {offsets = [0, 0], sizes = [2, 32], strides = [1, 1]} : vector<2x128xf32> to vector<2x32xf32>
    %973 = vector.extract_strided_slice %970 {offsets = [0, 32], sizes = [2, 32], strides = [1, 1]} : vector<2x128xf32> to vector<2x32xf32>
    %974 = vector.extract_strided_slice %971 {offsets = [0, 64], sizes = [2, 32], strides = [1, 1]} : vector<2x128xf32> to vector<2x32xf32>
    %975 = vector.extract_strided_slice %970 {offsets = [0, 96], sizes = [2, 32], strides = [1, 1]} : vector<2x128xf32> to vector<2x32xf32>
    %976 = arith.mulf %973, %938 : vector<2x32xf32>
    %977 = arith.mulf %972, %974 : vector<2x32xf32>
    %978 = arith.addf %976, %977 : vector<2x32xf32>
    %979 = math.tanh %978 : vector<2x32xf32>
    %980 = arith.mulf %975, %979 : vector<2x32xf32>
    %cst_134 = arith.constant dense<0.000000e+00> : vector<2x128xf32>
    %981 = tpu.matmul %980, %10, %cst_134 {dimension_numbers = #tpu.dot_dimension_numbers<[1], [0], [0], [1], [0, 0, 1, 1], [], []>} : vector<2x32xf32>, vector<32x128xf32>, vector<2x128xf32> -> vector<2x128xf32>
    %982 = arith.addf %981, %963 : vector<2x128xf32>
    %983 = arith.negf %982 : vector<2x128xf32>
    %984 = math.exp %983 : vector<2x128xf32>
    %cst_135 = arith.constant 1.000000e+00 : f32
    %985 = vector.broadcast %cst_135 : f32 to vector<2x128xf32>
    %986 = arith.addf %985, %984 : vector<2x128xf32>
    %987 = arith.divf %985, %986 : vector<2x128xf32>
    %988 = math.tanh %982 : vector<2x128xf32>
    %989 = vector.extract_strided_slice %987 {offsets = [0, 0], sizes = [2, 32], strides = [1, 1]} : vector<2x128xf32> to vector<2x32xf32>
    %990 = vector.extract_strided_slice %987 {offsets = [0, 32], sizes = [2, 32], strides = [1, 1]} : vector<2x128xf32> to vector<2x32xf32>
    %991 = vector.extract_strided_slice %988 {offsets = [0, 64], sizes = [2, 32], strides = [1, 1]} : vector<2x128xf32> to vector<2x32xf32>
    %992 = vector.extract_strided_slice %987 {offsets = [0, 96], sizes = [2, 32], strides = [1, 1]} : vector<2x128xf32> to vector<2x32xf32>
    %993 = arith.mulf %990, %955 : vector<2x32xf32>
    %994 = arith.mulf %989, %991 : vector<2x32xf32>
    %995 = arith.addf %993, %994 : vector<2x32xf32>
    %996 = math.tanh %995 : vector<2x32xf32>
    %997 = arith.mulf %992, %996 : vector<2x32xf32>
    %cst_136 = arith.constant dense<0.000000e+00> : vector<2x128xf32>
    %998 = tpu.matmul %997, %11, %cst_136 {dimension_numbers = #tpu.dot_dimension_numbers<[1], [0], [0], [1], [0, 0, 1, 1], [], []>} : vector<2x32xf32>, vector<32x128xf32>, vector<2x128xf32> -> vector<2x128xf32>
    %999 = vector.broadcast %12 : vector<1x128xf32> to vector<2x128xf32>
    %1000 = arith.addf %998, %999 : vector<2x128xf32>
    %cst_137 = arith.constant dense<0.000000e+00> : vector<2x128xf32>
    %1001 = tpu.matmul %980, %8, %cst_137 {dimension_numbers = #tpu.dot_dimension_numbers<[1], [0], [0], [1], [0, 0, 1, 1], [], []>} : vector<2x32xf32>, vector<32x128xf32>, vector<2x128xf32> -> vector<2x128xf32>
    %1002 = arith.addf %96, %1001 : vector<2x128xf32>
    %1003 = arith.negf %1002 : vector<2x128xf32>
    %1004 = math.exp %1003 : vector<2x128xf32>
    %cst_138 = arith.constant 1.000000e+00 : f32
    %1005 = vector.broadcast %cst_138 : f32 to vector<2x128xf32>
    %1006 = arith.addf %1005, %1004 : vector<2x128xf32>
    %1007 = arith.divf %1005, %1006 : vector<2x128xf32>
    %1008 = math.tanh %1002 : vector<2x128xf32>
    %1009 = vector.extract_strided_slice %1007 {offsets = [0, 0], sizes = [2, 32], strides = [1, 1]} : vector<2x128xf32> to vector<2x32xf32>
    %1010 = vector.extract_strided_slice %1007 {offsets = [0, 32], sizes = [2, 32], strides = [1, 1]} : vector<2x128xf32> to vector<2x32xf32>
    %1011 = vector.extract_strided_slice %1008 {offsets = [0, 64], sizes = [2, 32], strides = [1, 1]} : vector<2x128xf32> to vector<2x32xf32>
    %1012 = vector.extract_strided_slice %1007 {offsets = [0, 96], sizes = [2, 32], strides = [1, 1]} : vector<2x128xf32> to vector<2x32xf32>
    %1013 = arith.mulf %1010, %978 : vector<2x32xf32>
    %1014 = arith.mulf %1009, %1011 : vector<2x32xf32>
    %1015 = arith.addf %1013, %1014 : vector<2x32xf32>
    %1016 = math.tanh %1015 : vector<2x32xf32>
    %1017 = arith.mulf %1012, %1016 : vector<2x32xf32>
    %cst_139 = arith.constant dense<0.000000e+00> : vector<2x128xf32>
    %1018 = tpu.matmul %1017, %10, %cst_139 {dimension_numbers = #tpu.dot_dimension_numbers<[1], [0], [0], [1], [0, 0, 1, 1], [], []>} : vector<2x32xf32>, vector<32x128xf32>, vector<2x128xf32> -> vector<2x128xf32>
    %1019 = arith.addf %1018, %1000 : vector<2x128xf32>
    %1020 = arith.negf %1019 : vector<2x128xf32>
    %1021 = math.exp %1020 : vector<2x128xf32>
    %cst_140 = arith.constant 1.000000e+00 : f32
    %1022 = vector.broadcast %cst_140 : f32 to vector<2x128xf32>
    %1023 = arith.addf %1022, %1021 : vector<2x128xf32>
    %1024 = arith.divf %1022, %1023 : vector<2x128xf32>
    %1025 = math.tanh %1019 : vector<2x128xf32>
    %1026 = vector.extract_strided_slice %1024 {offsets = [0, 0], sizes = [2, 32], strides = [1, 1]} : vector<2x128xf32> to vector<2x32xf32>
    %1027 = vector.extract_strided_slice %1024 {offsets = [0, 32], sizes = [2, 32], strides = [1, 1]} : vector<2x128xf32> to vector<2x32xf32>
    %1028 = vector.extract_strided_slice %1025 {offsets = [0, 64], sizes = [2, 32], strides = [1, 1]} : vector<2x128xf32> to vector<2x32xf32>
    %1029 = vector.extract_strided_slice %1024 {offsets = [0, 96], sizes = [2, 32], strides = [1, 1]} : vector<2x128xf32> to vector<2x32xf32>
    %1030 = arith.mulf %1027, %995 : vector<2x32xf32>
    %1031 = arith.mulf %1026, %1028 : vector<2x32xf32>
    %1032 = arith.addf %1030, %1031 : vector<2x32xf32>
    %1033 = math.tanh %1032 : vector<2x32xf32>
    %1034 = arith.mulf %1029, %1033 : vector<2x32xf32>
    %cst_141 = arith.constant dense<0.000000e+00> : vector<2x128xf32>
    %1035 = tpu.matmul %1034, %11, %cst_141 {dimension_numbers = #tpu.dot_dimension_numbers<[1], [0], [0], [1], [0, 0, 1, 1], [], []>} : vector<2x32xf32>, vector<32x128xf32>, vector<2x128xf32> -> vector<2x128xf32>
    %1036 = vector.broadcast %12 : vector<1x128xf32> to vector<2x128xf32>
    %1037 = arith.addf %1035, %1036 : vector<2x128xf32>
    %cst_142 = arith.constant dense<0.000000e+00> : vector<2x128xf32>
    %1038 = tpu.matmul %1017, %8, %cst_142 {dimension_numbers = #tpu.dot_dimension_numbers<[1], [0], [0], [1], [0, 0, 1, 1], [], []>} : vector<2x32xf32>, vector<32x128xf32>, vector<2x128xf32> -> vector<2x128xf32>
    %1039 = arith.addf %144, %1038 : vector<2x128xf32>
    %1040 = arith.negf %1039 : vector<2x128xf32>
    %1041 = math.exp %1040 : vector<2x128xf32>
    %cst_143 = arith.constant 1.000000e+00 : f32
    %1042 = vector.broadcast %cst_143 : f32 to vector<2x128xf32>
    %1043 = arith.addf %1042, %1041 : vector<2x128xf32>
    %1044 = arith.divf %1042, %1043 : vector<2x128xf32>
    %1045 = math.tanh %1039 : vector<2x128xf32>
    %1046 = vector.extract_strided_slice %1044 {offsets = [0, 0], sizes = [2, 32], strides = [1, 1]} : vector<2x128xf32> to vector<2x32xf32>
    %1047 = vector.extract_strided_slice %1044 {offsets = [0, 32], sizes = [2, 32], strides = [1, 1]} : vector<2x128xf32> to vector<2x32xf32>
    %1048 = vector.extract_strided_slice %1045 {offsets = [0, 64], sizes = [2, 32], strides = [1, 1]} : vector<2x128xf32> to vector<2x32xf32>
    %1049 = vector.extract_strided_slice %1044 {offsets = [0, 96], sizes = [2, 32], strides = [1, 1]} : vector<2x128xf32> to vector<2x32xf32>
    %1050 = arith.mulf %1047, %1015 : vector<2x32xf32>
    %1051 = arith.mulf %1046, %1048 : vector<2x32xf32>
    %1052 = arith.addf %1050, %1051 : vector<2x32xf32>
    %1053 = math.tanh %1052 : vector<2x32xf32>
    %1054 = arith.mulf %1049, %1053 : vector<2x32xf32>
    %cst_144 = arith.constant dense<0.000000e+00> : vector<2x128xf32>
    %1055 = tpu.matmul %1054, %10, %cst_144 {dimension_numbers = #tpu.dot_dimension_numbers<[1], [0], [0], [1], [0, 0, 1, 1], [], []>} : vector<2x32xf32>, vector<32x128xf32>, vector<2x128xf32> -> vector<2x128xf32>
    %1056 = arith.addf %1055, %1037 : vector<2x128xf32>
    %1057 = arith.negf %1056 : vector<2x128xf32>
    %1058 = math.exp %1057 : vector<2x128xf32>
    %cst_145 = arith.constant 1.000000e+00 : f32
    %1059 = vector.broadcast %cst_145 : f32 to vector<2x128xf32>
    %1060 = arith.addf %1059, %1058 : vector<2x128xf32>
    %1061 = arith.divf %1059, %1060 : vector<2x128xf32>
    %1062 = math.tanh %1056 : vector<2x128xf32>
    %1063 = vector.extract_strided_slice %1061 {offsets = [0, 0], sizes = [2, 32], strides = [1, 1]} : vector<2x128xf32> to vector<2x32xf32>
    %1064 = vector.extract_strided_slice %1061 {offsets = [0, 32], sizes = [2, 32], strides = [1, 1]} : vector<2x128xf32> to vector<2x32xf32>
    %1065 = vector.extract_strided_slice %1062 {offsets = [0, 64], sizes = [2, 32], strides = [1, 1]} : vector<2x128xf32> to vector<2x32xf32>
    %1066 = vector.extract_strided_slice %1061 {offsets = [0, 96], sizes = [2, 32], strides = [1, 1]} : vector<2x128xf32> to vector<2x32xf32>
    %1067 = arith.mulf %1064, %1032 : vector<2x32xf32>
    %1068 = arith.mulf %1063, %1065 : vector<2x32xf32>
    %1069 = arith.addf %1067, %1068 : vector<2x32xf32>
    %1070 = math.tanh %1069 : vector<2x32xf32>
    %1071 = arith.mulf %1066, %1070 : vector<2x32xf32>
    %cst_146 = arith.constant dense<0.000000e+00> : vector<2x128xf32>
    %1072 = tpu.matmul %1071, %11, %cst_146 {dimension_numbers = #tpu.dot_dimension_numbers<[1], [0], [0], [1], [0, 0, 1, 1], [], []>} : vector<2x32xf32>, vector<32x128xf32>, vector<2x128xf32> -> vector<2x128xf32>
    %1073 = vector.broadcast %12 : vector<1x128xf32> to vector<2x128xf32>
    %1074 = arith.addf %1072, %1073 : vector<2x128xf32>
    %cst_147 = arith.constant dense<0.000000e+00> : vector<2x128xf32>
    %1075 = tpu.matmul %1054, %8, %cst_147 {dimension_numbers = #tpu.dot_dimension_numbers<[1], [0], [0], [1], [0, 0, 1, 1], [], []>} : vector<2x32xf32>, vector<32x128xf32>, vector<2x128xf32> -> vector<2x128xf32>
    %1076 = arith.addf %192, %1075 : vector<2x128xf32>
    %1077 = arith.negf %1076 : vector<2x128xf32>
    %1078 = math.exp %1077 : vector<2x128xf32>
    %cst_148 = arith.constant 1.000000e+00 : f32
    %1079 = vector.broadcast %cst_148 : f32 to vector<2x128xf32>
    %1080 = arith.addf %1079, %1078 : vector<2x128xf32>
    %1081 = arith.divf %1079, %1080 : vector<2x128xf32>
    %1082 = math.tanh %1076 : vector<2x128xf32>
    %1083 = vector.extract_strided_slice %1081 {offsets = [0, 0], sizes = [2, 32], strides = [1, 1]} : vector<2x128xf32> to vector<2x32xf32>
    %1084 = vector.extract_strided_slice %1081 {offsets = [0, 32], sizes = [2, 32], strides = [1, 1]} : vector<2x128xf32> to vector<2x32xf32>
    %1085 = vector.extract_strided_slice %1082 {offsets = [0, 64], sizes = [2, 32], strides = [1, 1]} : vector<2x128xf32> to vector<2x32xf32>
    %1086 = vector.extract_strided_slice %1081 {offsets = [0, 96], sizes = [2, 32], strides = [1, 1]} : vector<2x128xf32> to vector<2x32xf32>
    %1087 = arith.mulf %1084, %1052 : vector<2x32xf32>
    %1088 = arith.mulf %1083, %1085 : vector<2x32xf32>
    %1089 = arith.addf %1087, %1088 : vector<2x32xf32>
    %1090 = math.tanh %1089 : vector<2x32xf32>
    %1091 = arith.mulf %1086, %1090 : vector<2x32xf32>
    %cst_149 = arith.constant dense<0.000000e+00> : vector<2x128xf32>
    %1092 = tpu.matmul %1091, %10, %cst_149 {dimension_numbers = #tpu.dot_dimension_numbers<[1], [0], [0], [1], [0, 0, 1, 1], [], []>} : vector<2x32xf32>, vector<32x128xf32>, vector<2x128xf32> -> vector<2x128xf32>
    %1093 = arith.addf %1092, %1074 : vector<2x128xf32>
    %1094 = arith.negf %1093 : vector<2x128xf32>
    %1095 = math.exp %1094 : vector<2x128xf32>
    %cst_150 = arith.constant 1.000000e+00 : f32
    %1096 = vector.broadcast %cst_150 : f32 to vector<2x128xf32>
    %1097 = arith.addf %1096, %1095 : vector<2x128xf32>
    %1098 = arith.divf %1096, %1097 : vector<2x128xf32>
    %1099 = math.tanh %1093 : vector<2x128xf32>
    %1100 = vector.extract_strided_slice %1098 {offsets = [0, 0], sizes = [2, 32], strides = [1, 1]} : vector<2x128xf32> to vector<2x32xf32>
    %1101 = vector.extract_strided_slice %1098 {offsets = [0, 32], sizes = [2, 32], strides = [1, 1]} : vector<2x128xf32> to vector<2x32xf32>
    %1102 = vector.extract_strided_slice %1099 {offsets = [0, 64], sizes = [2, 32], strides = [1, 1]} : vector<2x128xf32> to vector<2x32xf32>
    %1103 = vector.extract_strided_slice %1098 {offsets = [0, 96], sizes = [2, 32], strides = [1, 1]} : vector<2x128xf32> to vector<2x32xf32>
    %1104 = arith.mulf %1101, %1069 : vector<2x32xf32>
    %1105 = arith.mulf %1100, %1102 : vector<2x32xf32>
    %1106 = arith.addf %1104, %1105 : vector<2x32xf32>
    %1107 = math.tanh %1106 : vector<2x32xf32>
    %1108 = arith.mulf %1103, %1107 : vector<2x32xf32>
    %c5 = arith.constant 5 : index
    %c0_151 = arith.constant 0 : index
    %c0_152 = arith.constant 0 : index
    %1109 = vector.load %arg11[%c5, %c0_151, %c0_152] : memref<8x2x32xf32, #tpu.memory_space<vmem>>, vector<1x2x32xf32>
    %1110 = vector.shape_cast %1109 : vector<1x2x32xf32> to vector<2x32xf32>
    %1111 = vector.shape_cast %1108 : vector<2x32xf32> to vector<1x2x32xf32>
    tpu.vector_store %arg11[%c5, %c0_151, %c0_152], %1111 {strides = array<i32>} : memref<8x2x32xf32, #tpu.memory_space<vmem>>, vector<1x2x32xf32>,
    %cst_153 = arith.constant dense<0.000000e+00> : vector<2x128xf32>
    %1112 = tpu.matmul %1108, %11, %cst_153 {dimension_numbers = #tpu.dot_dimension_numbers<[1], [0], [0], [1], [0, 0, 1, 1], [], []>} : vector<2x32xf32>, vector<32x128xf32>, vector<2x128xf32> -> vector<2x128xf32>
    %1113 = vector.broadcast %12 : vector<1x128xf32> to vector<2x128xf32>
    %1114 = arith.addf %1112, %1113 : vector<2x128xf32>
    %cst_154 = arith.constant dense<0.000000e+00> : vector<2x128xf32>
    %1115 = tpu.matmul %1091, %8, %cst_154 {dimension_numbers = #tpu.dot_dimension_numbers<[1], [0], [0], [1], [0, 0, 1, 1], [], []>} : vector<2x32xf32>, vector<32x128xf32>, vector<2x128xf32> -> vector<2x128xf32>
    %1116 = arith.addf %54, %1115 : vector<2x128xf32>
    %1117 = arith.negf %1116 : vector<2x128xf32>
    %1118 = math.exp %1117 : vector<2x128xf32>
    %cst_155 = arith.constant 1.000000e+00 : f32
    %1119 = vector.broadcast %cst_155 : f32 to vector<2x128xf32>
    %1120 = arith.addf %1119, %1118 : vector<2x128xf32>
    %1121 = arith.divf %1119, %1120 : vector<2x128xf32>
    %1122 = math.tanh %1116 : vector<2x128xf32>
    %1123 = vector.extract_strided_slice %1121 {offsets = [0, 0], sizes = [2, 32], strides = [1, 1]} : vector<2x128xf32> to vector<2x32xf32>
    %1124 = vector.extract_strided_slice %1121 {offsets = [0, 32], sizes = [2, 32], strides = [1, 1]} : vector<2x128xf32> to vector<2x32xf32>
    %1125 = vector.extract_strided_slice %1122 {offsets = [0, 64], sizes = [2, 32], strides = [1, 1]} : vector<2x128xf32> to vector<2x32xf32>
    %1126 = vector.extract_strided_slice %1121 {offsets = [0, 96], sizes = [2, 32], strides = [1, 1]} : vector<2x128xf32> to vector<2x32xf32>
    %1127 = arith.mulf %1124, %1089 : vector<2x32xf32>
    %1128 = arith.mulf %1123, %1125 : vector<2x32xf32>
    %1129 = arith.addf %1127, %1128 : vector<2x32xf32>
    %1130 = math.tanh %1129 : vector<2x32xf32>
    %1131 = arith.mulf %1126, %1130 : vector<2x32xf32>
    %cst_156 = arith.constant dense<0.000000e+00> : vector<2x128xf32>
    %1132 = tpu.matmul %1131, %10, %cst_156 {dimension_numbers = #tpu.dot_dimension_numbers<[1], [0], [0], [1], [0, 0, 1, 1], [], []>} : vector<2x32xf32>, vector<32x128xf32>, vector<2x128xf32> -> vector<2x128xf32>
    %1133 = arith.addf %1132, %1114 : vector<2x128xf32>
    %1134 = arith.negf %1133 : vector<2x128xf32>
    %1135 = math.exp %1134 : vector<2x128xf32>
    %cst_157 = arith.constant 1.000000e+00 : f32
    %1136 = vector.broadcast %cst_157 : f32 to vector<2x128xf32>
    %1137 = arith.addf %1136, %1135 : vector<2x128xf32>
    %1138 = arith.divf %1136, %1137 : vector<2x128xf32>
    %1139 = math.tanh %1133 : vector<2x128xf32>
    %1140 = vector.extract_strided_slice %1138 {offsets = [0, 0], sizes = [2, 32], strides = [1, 1]} : vector<2x128xf32> to vector<2x32xf32>
    %1141 = vector.extract_strided_slice %1138 {offsets = [0, 32], sizes = [2, 32], strides = [1, 1]} : vector<2x128xf32> to vector<2x32xf32>
    %1142 = vector.extract_strided_slice %1139 {offsets = [0, 64], sizes = [2, 32], strides = [1, 1]} : vector<2x128xf32> to vector<2x32xf32>
    %1143 = vector.extract_strided_slice %1138 {offsets = [0, 96], sizes = [2, 32], strides = [1, 1]} : vector<2x128xf32> to vector<2x32xf32>
    %1144 = arith.mulf %1141, %1106 : vector<2x32xf32>
    %1145 = arith.mulf %1140, %1142 : vector<2x32xf32>
    %1146 = arith.addf %1144, %1145 : vector<2x32xf32>
    %1147 = math.tanh %1146 : vector<2x32xf32>
    %1148 = arith.mulf %1143, %1147 : vector<2x32xf32>
    %cst_158 = arith.constant dense<0.000000e+00> : vector<2x128xf32>
    %1149 = tpu.matmul %1148, %11, %cst_158 {dimension_numbers = #tpu.dot_dimension_numbers<[1], [0], [0], [1], [0, 0, 1, 1], [], []>} : vector<2x32xf32>, vector<32x128xf32>, vector<2x128xf32> -> vector<2x128xf32>
    %1150 = vector.broadcast %12 : vector<1x128xf32> to vector<2x128xf32>
    %1151 = arith.addf %1149, %1150 : vector<2x128xf32>
    %cst_159 = arith.constant dense<0.000000e+00> : vector<2x128xf32>
    %1152 = tpu.matmul %1131, %8, %cst_159 {dimension_numbers = #tpu.dot_dimension_numbers<[1], [0], [0], [1], [0, 0, 1, 1], [], []>} : vector<2x32xf32>, vector<32x128xf32>, vector<2x128xf32> -> vector<2x128xf32>
    %1153 = arith.addf %102, %1152 : vector<2x128xf32>
    %1154 = arith.negf %1153 : vector<2x128xf32>
    %1155 = math.exp %1154 : vector<2x128xf32>
    %cst_160 = arith.constant 1.000000e+00 : f32
    %1156 = vector.broadcast %cst_160 : f32 to vector<2x128xf32>
    %1157 = arith.addf %1156, %1155 : vector<2x128xf32>
    %1158 = arith.divf %1156, %1157 : vector<2x128xf32>
    %1159 = math.tanh %1153 : vector<2x128xf32>
    %1160 = vector.extract_strided_slice %1158 {offsets = [0, 0], sizes = [2, 32], strides = [1, 1]} : vector<2x128xf32> to vector<2x32xf32>
    %1161 = vector.extract_strided_slice %1158 {offsets = [0, 32], sizes = [2, 32], strides = [1, 1]} : vector<2x128xf32> to vector<2x32xf32>
    %1162 = vector.extract_strided_slice %1159 {offsets = [0, 64], sizes = [2, 32], strides = [1, 1]} : vector<2x128xf32> to vector<2x32xf32>
    %1163 = vector.extract_strided_slice %1158 {offsets = [0, 96], sizes = [2, 32], strides = [1, 1]} : vector<2x128xf32> to vector<2x32xf32>
    %1164 = arith.mulf %1161, %1129 : vector<2x32xf32>
    %1165 = arith.mulf %1160, %1162 : vector<2x32xf32>
    %1166 = arith.addf %1164, %1165 : vector<2x32xf32>
    %1167 = math.tanh %1166 : vector<2x32xf32>
    %1168 = arith.mulf %1163, %1167 : vector<2x32xf32>
    %cst_161 = arith.constant dense<0.000000e+00> : vector<2x128xf32>
    %1169 = tpu.matmul %1168, %10, %cst_161 {dimension_numbers = #tpu.dot_dimension_numbers<[1], [0], [0], [1], [0, 0, 1, 1], [], []>} : vector<2x32xf32>, vector<32x128xf32>, vector<2x128xf32> -> vector<2x128xf32>
    %1170 = arith.addf %1169, %1151 : vector<2x128xf32>
    %1171 = arith.negf %1170 : vector<2x128xf32>
    %1172 = math.exp %1171 : vector<2x128xf32>
    %cst_162 = arith.constant 1.000000e+00 : f32
    %1173 = vector.broadcast %cst_162 : f32 to vector<2x128xf32>
    %1174 = arith.addf %1173, %1172 : vector<2x128xf32>
    %1175 = arith.divf %1173, %1174 : vector<2x128xf32>
    %1176 = math.tanh %1170 : vector<2x128xf32>
    %1177 = vector.extract_strided_slice %1175 {offsets = [0, 0], sizes = [2, 32], strides = [1, 1]} : vector<2x128xf32> to vector<2x32xf32>
    %1178 = vector.extract_strided_slice %1175 {offsets = [0, 32], sizes = [2, 32], strides = [1, 1]} : vector<2x128xf32> to vector<2x32xf32>
    %1179 = vector.extract_strided_slice %1176 {offsets = [0, 64], sizes = [2, 32], strides = [1, 1]} : vector<2x128xf32> to vector<2x32xf32>
    %1180 = vector.extract_strided_slice %1175 {offsets = [0, 96], sizes = [2, 32], strides = [1, 1]} : vector<2x128xf32> to vector<2x32xf32>
    %1181 = arith.mulf %1178, %1146 : vector<2x32xf32>
    %1182 = arith.mulf %1177, %1179 : vector<2x32xf32>
    %1183 = arith.addf %1181, %1182 : vector<2x32xf32>
    %1184 = math.tanh %1183 : vector<2x32xf32>
    %1185 = arith.mulf %1180, %1184 : vector<2x32xf32>
    %cst_163 = arith.constant dense<0.000000e+00> : vector<2x128xf32>
    %1186 = tpu.matmul %1185, %11, %cst_163 {dimension_numbers = #tpu.dot_dimension_numbers<[1], [0], [0], [1], [0, 0, 1, 1], [], []>} : vector<2x32xf32>, vector<32x128xf32>, vector<2x128xf32> -> vector<2x128xf32>
    %1187 = vector.broadcast %12 : vector<1x128xf32> to vector<2x128xf32>
    %1188 = arith.addf %1186, %1187 : vector<2x128xf32>
    %cst_164 = arith.constant dense<0.000000e+00> : vector<2x128xf32>
    %1189 = tpu.matmul %1168, %8, %cst_164 {dimension_numbers = #tpu.dot_dimension_numbers<[1], [0], [0], [1], [0, 0, 1, 1], [], []>} : vector<2x32xf32>, vector<32x128xf32>, vector<2x128xf32> -> vector<2x128xf32>
    %1190 = arith.addf %150, %1189 : vector<2x128xf32>
    %1191 = arith.negf %1190 : vector<2x128xf32>
    %1192 = math.exp %1191 : vector<2x128xf32>
    %cst_165 = arith.constant 1.000000e+00 : f32
    %1193 = vector.broadcast %cst_165 : f32 to vector<2x128xf32>
    %1194 = arith.addf %1193, %1192 : vector<2x128xf32>
    %1195 = arith.divf %1193, %1194 : vector<2x128xf32>
    %1196 = math.tanh %1190 : vector<2x128xf32>
    %1197 = vector.extract_strided_slice %1195 {offsets = [0, 0], sizes = [2, 32], strides = [1, 1]} : vector<2x128xf32> to vector<2x32xf32>
    %1198 = vector.extract_strided_slice %1195 {offsets = [0, 32], sizes = [2, 32], strides = [1, 1]} : vector<2x128xf32> to vector<2x32xf32>
    %1199 = vector.extract_strided_slice %1196 {offsets = [0, 64], sizes = [2, 32], strides = [1, 1]} : vector<2x128xf32> to vector<2x32xf32>
    %1200 = vector.extract_strided_slice %1195 {offsets = [0, 96], sizes = [2, 32], strides = [1, 1]} : vector<2x128xf32> to vector<2x32xf32>
    %1201 = arith.mulf %1198, %1166 : vector<2x32xf32>
    %1202 = arith.mulf %1197, %1199 : vector<2x32xf32>
    %1203 = arith.addf %1201, %1202 : vector<2x32xf32>
    %1204 = math.tanh %1203 : vector<2x32xf32>
    %1205 = arith.mulf %1200, %1204 : vector<2x32xf32>
    %cst_166 = arith.constant dense<0.000000e+00> : vector<2x128xf32>
    %1206 = tpu.matmul %1205, %10, %cst_166 {dimension_numbers = #tpu.dot_dimension_numbers<[1], [0], [0], [1], [0, 0, 1, 1], [], []>} : vector<2x32xf32>, vector<32x128xf32>, vector<2x128xf32> -> vector<2x128xf32>
    %1207 = arith.addf %1206, %1188 : vector<2x128xf32>
    %1208 = arith.negf %1207 : vector<2x128xf32>
    %1209 = math.exp %1208 : vector<2x128xf32>
    %cst_167 = arith.constant 1.000000e+00 : f32
    %1210 = vector.broadcast %cst_167 : f32 to vector<2x128xf32>
    %1211 = arith.addf %1210, %1209 : vector<2x128xf32>
    %1212 = arith.divf %1210, %1211 : vector<2x128xf32>
    %1213 = math.tanh %1207 : vector<2x128xf32>
    %1214 = vector.extract_strided_slice %1212 {offsets = [0, 0], sizes = [2, 32], strides = [1, 1]} : vector<2x128xf32> to vector<2x32xf32>
    %1215 = vector.extract_strided_slice %1212 {offsets = [0, 32], sizes = [2, 32], strides = [1, 1]} : vector<2x128xf32> to vector<2x32xf32>
    %1216 = vector.extract_strided_slice %1213 {offsets = [0, 64], sizes = [2, 32], strides = [1, 1]} : vector<2x128xf32> to vector<2x32xf32>
    %1217 = vector.extract_strided_slice %1212 {offsets = [0, 96], sizes = [2, 32], strides = [1, 1]} : vector<2x128xf32> to vector<2x32xf32>
    %1218 = arith.mulf %1215, %1183 : vector<2x32xf32>
    %1219 = arith.mulf %1214, %1216 : vector<2x32xf32>
    %1220 = arith.addf %1218, %1219 : vector<2x32xf32>
    %1221 = math.tanh %1220 : vector<2x32xf32>
    %1222 = arith.mulf %1217, %1221 : vector<2x32xf32>
    %cst_168 = arith.constant dense<0.000000e+00> : vector<2x128xf32>
    %1223 = tpu.matmul %1222, %11, %cst_168 {dimension_numbers = #tpu.dot_dimension_numbers<[1], [0], [0], [1], [0, 0, 1, 1], [], []>} : vector<2x32xf32>, vector<32x128xf32>, vector<2x128xf32> -> vector<2x128xf32>
    %1224 = vector.broadcast %12 : vector<1x128xf32> to vector<2x128xf32>
    %1225 = arith.addf %1223, %1224 : vector<2x128xf32>
    %cst_169 = arith.constant dense<0.000000e+00> : vector<2x128xf32>
    %1226 = tpu.matmul %1205, %8, %cst_169 {dimension_numbers = #tpu.dot_dimension_numbers<[1], [0], [0], [1], [0, 0, 1, 1], [], []>} : vector<2x32xf32>, vector<32x128xf32>, vector<2x128xf32> -> vector<2x128xf32>
    %1227 = arith.addf %198, %1226 : vector<2x128xf32>
    %1228 = arith.negf %1227 : vector<2x128xf32>
    %1229 = math.exp %1228 : vector<2x128xf32>
    %cst_170 = arith.constant 1.000000e+00 : f32
    %1230 = vector.broadcast %cst_170 : f32 to vector<2x128xf32>
    %1231 = arith.addf %1230, %1229 : vector<2x128xf32>
    %1232 = arith.divf %1230, %1231 : vector<2x128xf32>
    %1233 = math.tanh %1227 : vector<2x128xf32>
    %1234 = vector.extract_strided_slice %1232 {offsets = [0, 0], sizes = [2, 32], strides = [1, 1]} : vector<2x128xf32> to vector<2x32xf32>
    %1235 = vector.extract_strided_slice %1232 {offsets = [0, 32], sizes = [2, 32], strides = [1, 1]} : vector<2x128xf32> to vector<2x32xf32>
    %1236 = vector.extract_strided_slice %1233 {offsets = [0, 64], sizes = [2, 32], strides = [1, 1]} : vector<2x128xf32> to vector<2x32xf32>
    %1237 = vector.extract_strided_slice %1232 {offsets = [0, 96], sizes = [2, 32], strides = [1, 1]} : vector<2x128xf32> to vector<2x32xf32>
    %1238 = arith.mulf %1235, %1203 : vector<2x32xf32>
    %1239 = arith.mulf %1234, %1236 : vector<2x32xf32>
    %1240 = arith.addf %1238, %1239 : vector<2x32xf32>
    %1241 = math.tanh %1240 : vector<2x32xf32>
    %1242 = arith.mulf %1237, %1241 : vector<2x32xf32>
    %cst_171 = arith.constant dense<0.000000e+00> : vector<2x128xf32>
    %1243 = tpu.matmul %1242, %10, %cst_171 {dimension_numbers = #tpu.dot_dimension_numbers<[1], [0], [0], [1], [0, 0, 1, 1], [], []>} : vector<2x32xf32>, vector<32x128xf32>, vector<2x128xf32> -> vector<2x128xf32>
    %1244 = arith.addf %1243, %1225 : vector<2x128xf32>
    %1245 = arith.negf %1244 : vector<2x128xf32>
    %1246 = math.exp %1245 : vector<2x128xf32>
    %cst_172 = arith.constant 1.000000e+00 : f32
    %1247 = vector.broadcast %cst_172 : f32 to vector<2x128xf32>
    %1248 = arith.addf %1247, %1246 : vector<2x128xf32>
    %1249 = arith.divf %1247, %1248 : vector<2x128xf32>
    %1250 = math.tanh %1244 : vector<2x128xf32>
    %1251 = vector.extract_strided_slice %1249 {offsets = [0, 0], sizes = [2, 32], strides = [1, 1]} : vector<2x128xf32> to vector<2x32xf32>
    %1252 = vector.extract_strided_slice %1249 {offsets = [0, 32], sizes = [2, 32], strides = [1, 1]} : vector<2x128xf32> to vector<2x32xf32>
    %1253 = vector.extract_strided_slice %1250 {offsets = [0, 64], sizes = [2, 32], strides = [1, 1]} : vector<2x128xf32> to vector<2x32xf32>
    %1254 = vector.extract_strided_slice %1249 {offsets = [0, 96], sizes = [2, 32], strides = [1, 1]} : vector<2x128xf32> to vector<2x32xf32>
    %1255 = arith.mulf %1252, %1220 : vector<2x32xf32>
    %1256 = arith.mulf %1251, %1253 : vector<2x32xf32>
    %1257 = arith.addf %1255, %1256 : vector<2x32xf32>
    %1258 = math.tanh %1257 : vector<2x32xf32>
    %1259 = arith.mulf %1254, %1258 : vector<2x32xf32>
    %c6 = arith.constant 6 : index
    %c0_173 = arith.constant 0 : index
    %c0_174 = arith.constant 0 : index
    %1260 = vector.load %arg11[%c6, %c0_173, %c0_174] : memref<8x2x32xf32, #tpu.memory_space<vmem>>, vector<1x2x32xf32>
    %1261 = vector.shape_cast %1260 : vector<1x2x32xf32> to vector<2x32xf32>
    %1262 = vector.shape_cast %1259 : vector<2x32xf32> to vector<1x2x32xf32>
    tpu.vector_store %arg11[%c6, %c0_173, %c0_174], %1262 {strides = array<i32>} : memref<8x2x32xf32, #tpu.memory_space<vmem>>, vector<1x2x32xf32>,
    %cst_175 = arith.constant dense<0.000000e+00> : vector<2x128xf32>
    %1263 = tpu.matmul %1259, %11, %cst_175 {dimension_numbers = #tpu.dot_dimension_numbers<[1], [0], [0], [1], [0, 0, 1, 1], [], []>} : vector<2x32xf32>, vector<32x128xf32>, vector<2x128xf32> -> vector<2x128xf32>
    %1264 = vector.broadcast %12 : vector<1x128xf32> to vector<2x128xf32>
    %1265 = arith.addf %1263, %1264 : vector<2x128xf32>
    %cst_176 = arith.constant dense<0.000000e+00> : vector<2x128xf32>
    %1266 = tpu.matmul %1242, %8, %cst_176 {dimension_numbers = #tpu.dot_dimension_numbers<[1], [0], [0], [1], [0, 0, 1, 1], [], []>} : vector<2x32xf32>, vector<32x128xf32>, vector<2x128xf32> -> vector<2x128xf32>
    %1267 = arith.addf %60, %1266 : vector<2x128xf32>
    %1268 = arith.negf %1267 : vector<2x128xf32>
    %1269 = math.exp %1268 : vector<2x128xf32>
    %cst_177 = arith.constant 1.000000e+00 : f32
    %1270 = vector.broadcast %cst_177 : f32 to vector<2x128xf32>
    %1271 = arith.addf %1270, %1269 : vector<2x128xf32>
    %1272 = arith.divf %1270, %1271 : vector<2x128xf32>
    %1273 = math.tanh %1267 : vector<2x128xf32>
    %1274 = vector.extract_strided_slice %1272 {offsets = [0, 0], sizes = [2, 32], strides = [1, 1]} : vector<2x128xf32> to vector<2x32xf32>
    %1275 = vector.extract_strided_slice %1272 {offsets = [0, 32], sizes = [2, 32], strides = [1, 1]} : vector<2x128xf32> to vector<2x32xf32>
    %1276 = vector.extract_strided_slice %1273 {offsets = [0, 64], sizes = [2, 32], strides = [1, 1]} : vector<2x128xf32> to vector<2x32xf32>
    %1277 = vector.extract_strided_slice %1272 {offsets = [0, 96], sizes = [2, 32], strides = [1, 1]} : vector<2x128xf32> to vector<2x32xf32>
    %1278 = arith.mulf %1275, %1240 : vector<2x32xf32>
    %1279 = arith.mulf %1274, %1276 : vector<2x32xf32>
    %1280 = arith.addf %1278, %1279 : vector<2x32xf32>
    %1281 = math.tanh %1280 : vector<2x32xf32>
    %1282 = arith.mulf %1277, %1281 : vector<2x32xf32>
    %cst_178 = arith.constant dense<0.000000e+00> : vector<2x128xf32>
    %1283 = tpu.matmul %1282, %10, %cst_178 {dimension_numbers = #tpu.dot_dimension_numbers<[1], [0], [0], [1], [0, 0, 1, 1], [], []>} : vector<2x32xf32>, vector<32x128xf32>, vector<2x128xf32> -> vector<2x128xf32>
    %1284 = arith.addf %1283, %1265 : vector<2x128xf32>
    %1285 = arith.negf %1284 : vector<2x128xf32>
    %1286 = math.exp %1285 : vector<2x128xf32>
    %cst_179 = arith.constant 1.000000e+00 : f32
    %1287 = vector.broadcast %cst_179 : f32 to vector<2x128xf32>
    %1288 = arith.addf %1287, %1286 : vector<2x128xf32>
    %1289 = arith.divf %1287, %1288 : vector<2x128xf32>
    %1290 = math.tanh %1284 : vector<2x128xf32>
    %1291 = vector.extract_strided_slice %1289 {offsets = [0, 0], sizes = [2, 32], strides = [1, 1]} : vector<2x128xf32> to vector<2x32xf32>
    %1292 = vector.extract_strided_slice %1289 {offsets = [0, 32], sizes = [2, 32], strides = [1, 1]} : vector<2x128xf32> to vector<2x32xf32>
    %1293 = vector.extract_strided_slice %1290 {offsets = [0, 64], sizes = [2, 32], strides = [1, 1]} : vector<2x128xf32> to vector<2x32xf32>
    %1294 = vector.extract_strided_slice %1289 {offsets = [0, 96], sizes = [2, 32], strides = [1, 1]} : vector<2x128xf32> to vector<2x32xf32>
    %1295 = arith.mulf %1292, %1257 : vector<2x32xf32>
    %1296 = arith.mulf %1291, %1293 : vector<2x32xf32>
    %1297 = arith.addf %1295, %1296 : vector<2x32xf32>
    %1298 = math.tanh %1297 : vector<2x32xf32>
    %1299 = arith.mulf %1294, %1298 : vector<2x32xf32>
    %cst_180 = arith.constant dense<0.000000e+00> : vector<2x128xf32>
    %1300 = tpu.matmul %1299, %11, %cst_180 {dimension_numbers = #tpu.dot_dimension_numbers<[1], [0], [0], [1], [0, 0, 1, 1], [], []>} : vector<2x32xf32>, vector<32x128xf32>, vector<2x128xf32> -> vector<2x128xf32>
    %1301 = vector.broadcast %12 : vector<1x128xf32> to vector<2x128xf32>
    %1302 = arith.addf %1300, %1301 : vector<2x128xf32>
    %cst_181 = arith.constant dense<0.000000e+00> : vector<2x128xf32>
    %1303 = tpu.matmul %1282, %8, %cst_181 {dimension_numbers = #tpu.dot_dimension_numbers<[1], [0], [0], [1], [0, 0, 1, 1], [], []>} : vector<2x32xf32>, vector<32x128xf32>, vector<2x128xf32> -> vector<2x128xf32>
    %1304 = arith.addf %108, %1303 : vector<2x128xf32>
    %1305 = arith.negf %1304 : vector<2x128xf32>
    %1306 = math.exp %1305 : vector<2x128xf32>
    %cst_182 = arith.constant 1.000000e+00 : f32
    %1307 = vector.broadcast %cst_182 : f32 to vector<2x128xf32>
    %1308 = arith.addf %1307, %1306 : vector<2x128xf32>
    %1309 = arith.divf %1307, %1308 : vector<2x128xf32>
    %1310 = math.tanh %1304 : vector<2x128xf32>
    %1311 = vector.extract_strided_slice %1309 {offsets = [0, 0], sizes = [2, 32], strides = [1, 1]} : vector<2x128xf32> to vector<2x32xf32>
    %1312 = vector.extract_strided_slice %1309 {offsets = [0, 32], sizes = [2, 32], strides = [1, 1]} : vector<2x128xf32> to vector<2x32xf32>
    %1313 = vector.extract_strided_slice %1310 {offsets = [0, 64], sizes = [2, 32], strides = [1, 1]} : vector<2x128xf32> to vector<2x32xf32>
    %1314 = vector.extract_strided_slice %1309 {offsets = [0, 96], sizes = [2, 32], strides = [1, 1]} : vector<2x128xf32> to vector<2x32xf32>
    %1315 = arith.mulf %1312, %1280 : vector<2x32xf32>
    %1316 = arith.mulf %1311, %1313 : vector<2x32xf32>
    %1317 = arith.addf %1315, %1316 : vector<2x32xf32>
    %1318 = math.tanh %1317 : vector<2x32xf32>
    %1319 = arith.mulf %1314, %1318 : vector<2x32xf32>
    %cst_183 = arith.constant dense<0.000000e+00> : vector<2x128xf32>
    %1320 = tpu.matmul %1319, %10, %cst_183 {dimension_numbers = #tpu.dot_dimension_numbers<[1], [0], [0], [1], [0, 0, 1, 1], [], []>} : vector<2x32xf32>, vector<32x128xf32>, vector<2x128xf32> -> vector<2x128xf32>
    %1321 = arith.addf %1320, %1302 : vector<2x128xf32>
    %1322 = arith.negf %1321 : vector<2x128xf32>
    %1323 = math.exp %1322 : vector<2x128xf32>
    %cst_184 = arith.constant 1.000000e+00 : f32
    %1324 = vector.broadcast %cst_184 : f32 to vector<2x128xf32>
    %1325 = arith.addf %1324, %1323 : vector<2x128xf32>
    %1326 = arith.divf %1324, %1325 : vector<2x128xf32>
    %1327 = math.tanh %1321 : vector<2x128xf32>
    %1328 = vector.extract_strided_slice %1326 {offsets = [0, 0], sizes = [2, 32], strides = [1, 1]} : vector<2x128xf32> to vector<2x32xf32>
    %1329 = vector.extract_strided_slice %1326 {offsets = [0, 32], sizes = [2, 32], strides = [1, 1]} : vector<2x128xf32> to vector<2x32xf32>
    %1330 = vector.extract_strided_slice %1327 {offsets = [0, 64], sizes = [2, 32], strides = [1, 1]} : vector<2x128xf32> to vector<2x32xf32>
    %1331 = vector.extract_strided_slice %1326 {offsets = [0, 96], sizes = [2, 32], strides = [1, 1]} : vector<2x128xf32> to vector<2x32xf32>
    %1332 = arith.mulf %1329, %1297 : vector<2x32xf32>
    %1333 = arith.mulf %1328, %1330 : vector<2x32xf32>
    %1334 = arith.addf %1332, %1333 : vector<2x32xf32>
    %1335 = math.tanh %1334 : vector<2x32xf32>
    %1336 = arith.mulf %1331, %1335 : vector<2x32xf32>
    %cst_185 = arith.constant dense<0.000000e+00> : vector<2x128xf32>
    %1337 = tpu.matmul %1336, %11, %cst_185 {dimension_numbers = #tpu.dot_dimension_numbers<[1], [0], [0], [1], [0, 0, 1, 1], [], []>} : vector<2x32xf32>, vector<32x128xf32>, vector<2x128xf32> -> vector<2x128xf32>
    %1338 = vector.broadcast %12 : vector<1x128xf32> to vector<2x128xf32>
    %1339 = arith.addf %1337, %1338 : vector<2x128xf32>
    %cst_186 = arith.constant dense<0.000000e+00> : vector<2x128xf32>
    %1340 = tpu.matmul %1319, %8, %cst_186 {dimension_numbers = #tpu.dot_dimension_numbers<[1], [0], [0], [1], [0, 0, 1, 1], [], []>} : vector<2x32xf32>, vector<32x128xf32>, vector<2x128xf32> -> vector<2x128xf32>
    %1341 = arith.addf %156, %1340 : vector<2x128xf32>
    %1342 = arith.negf %1341 : vector<2x128xf32>
    %1343 = math.exp %1342 : vector<2x128xf32>
    %cst_187 = arith.constant 1.000000e+00 : f32
    %1344 = vector.broadcast %cst_187 : f32 to vector<2x128xf32>
    %1345 = arith.addf %1344, %1343 : vector<2x128xf32>
    %1346 = arith.divf %1344, %1345 : vector<2x128xf32>
    %1347 = math.tanh %1341 : vector<2x128xf32>
    %1348 = vector.extract_strided_slice %1346 {offsets = [0, 0], sizes = [2, 32], strides = [1, 1]} : vector<2x128xf32> to vector<2x32xf32>
    %1349 = vector.extract_strided_slice %1346 {offsets = [0, 32], sizes = [2, 32], strides = [1, 1]} : vector<2x128xf32> to vector<2x32xf32>
    %1350 = vector.extract_strided_slice %1347 {offsets = [0, 64], sizes = [2, 32], strides = [1, 1]} : vector<2x128xf32> to vector<2x32xf32>
    %1351 = vector.extract_strided_slice %1346 {offsets = [0, 96], sizes = [2, 32], strides = [1, 1]} : vector<2x128xf32> to vector<2x32xf32>
    %1352 = arith.mulf %1349, %1317 : vector<2x32xf32>
    %1353 = arith.mulf %1348, %1350 : vector<2x32xf32>
    %1354 = arith.addf %1352, %1353 : vector<2x32xf32>
    %1355 = math.tanh %1354 : vector<2x32xf32>
    %1356 = arith.mulf %1351, %1355 : vector<2x32xf32>
    %cst_188 = arith.constant dense<0.000000e+00> : vector<2x128xf32>
    %1357 = tpu.matmul %1356, %10, %cst_188 {dimension_numbers = #tpu.dot_dimension_numbers<[1], [0], [0], [1], [0, 0, 1, 1], [], []>} : vector<2x32xf32>, vector<32x128xf32>, vector<2x128xf32> -> vector<2x128xf32>
    %1358 = arith.addf %1357, %1339 : vector<2x128xf32>
    %1359 = arith.negf %1358 : vector<2x128xf32>
    %1360 = math.exp %1359 : vector<2x128xf32>
    %cst_189 = arith.constant 1.000000e+00 : f32
    %1361 = vector.broadcast %cst_189 : f32 to vector<2x128xf32>
    %1362 = arith.addf %1361, %1360 : vector<2x128xf32>
    %1363 = arith.divf %1361, %1362 : vector<2x128xf32>
    %1364 = math.tanh %1358 : vector<2x128xf32>
    %1365 = vector.extract_strided_slice %1363 {offsets = [0, 0], sizes = [2, 32], strides = [1, 1]} : vector<2x128xf32> to vector<2x32xf32>
    %1366 = vector.extract_strided_slice %1363 {offsets = [0, 32], sizes = [2, 32], strides = [1, 1]} : vector<2x128xf32> to vector<2x32xf32>
    %1367 = vector.extract_strided_slice %1364 {offsets = [0, 64], sizes = [2, 32], strides = [1, 1]} : vector<2x128xf32> to vector<2x32xf32>
    %1368 = vector.extract_strided_slice %1363 {offsets = [0, 96], sizes = [2, 32], strides = [1, 1]} : vector<2x128xf32> to vector<2x32xf32>
    %1369 = arith.mulf %1366, %1334 : vector<2x32xf32>
    %1370 = arith.mulf %1365, %1367 : vector<2x32xf32>
    %1371 = arith.addf %1369, %1370 : vector<2x32xf32>
    %1372 = math.tanh %1371 : vector<2x32xf32>
    %1373 = arith.mulf %1368, %1372 : vector<2x32xf32>
    %cst_190 = arith.constant dense<0.000000e+00> : vector<2x128xf32>
    %1374 = tpu.matmul %1373, %11, %cst_190 {dimension_numbers = #tpu.dot_dimension_numbers<[1], [0], [0], [1], [0, 0, 1, 1], [], []>} : vector<2x32xf32>, vector<32x128xf32>, vector<2x128xf32> -> vector<2x128xf32>
    %1375 = vector.broadcast %12 : vector<1x128xf32> to vector<2x128xf32>
    %1376 = arith.addf %1374, %1375 : vector<2x128xf32>
    %cst_191 = arith.constant dense<0.000000e+00> : vector<2x128xf32>
    %1377 = tpu.matmul %1356, %8, %cst_191 {dimension_numbers = #tpu.dot_dimension_numbers<[1], [0], [0], [1], [0, 0, 1, 1], [], []>} : vector<2x32xf32>, vector<32x128xf32>, vector<2x128xf32> -> vector<2x128xf32>
    %1378 = arith.addf %204, %1377 : vector<2x128xf32>
    %1379 = arith.negf %1378 : vector<2x128xf32>
    %1380 = math.exp %1379 : vector<2x128xf32>
    %cst_192 = arith.constant 1.000000e+00 : f32
    %1381 = vector.broadcast %cst_192 : f32 to vector<2x128xf32>
    %1382 = arith.addf %1381, %1380 : vector<2x128xf32>
    %1383 = arith.divf %1381, %1382 : vector<2x128xf32>
    %1384 = math.tanh %1378 : vector<2x128xf32>
    %1385 = vector.extract_strided_slice %1383 {offsets = [0, 0], sizes = [2, 32], strides = [1, 1]} : vector<2x128xf32> to vector<2x32xf32>
    %1386 = vector.extract_strided_slice %1383 {offsets = [0, 32], sizes = [2, 32], strides = [1, 1]} : vector<2x128xf32> to vector<2x32xf32>
    %1387 = vector.extract_strided_slice %1384 {offsets = [0, 64], sizes = [2, 32], strides = [1, 1]} : vector<2x128xf32> to vector<2x32xf32>
    %1388 = vector.extract_strided_slice %1383 {offsets = [0, 96], sizes = [2, 32], strides = [1, 1]} : vector<2x128xf32> to vector<2x32xf32>
    %1389 = arith.mulf %1386, %1354 : vector<2x32xf32>
    %1390 = arith.mulf %1385, %1387 : vector<2x32xf32>
    %1391 = arith.addf %1389, %1390 : vector<2x32xf32>
    %1392 = math.tanh %1391 : vector<2x32xf32>
    %1393 = arith.mulf %1388, %1392 : vector<2x32xf32>
    %cst_193 = arith.constant dense<0.000000e+00> : vector<2x128xf32>
    %1394 = tpu.matmul %1393, %10, %cst_193 {dimension_numbers = #tpu.dot_dimension_numbers<[1], [0], [0], [1], [0, 0, 1, 1], [], []>} : vector<2x32xf32>, vector<32x128xf32>, vector<2x128xf32> -> vector<2x128xf32>
    %1395 = arith.addf %1394, %1376 : vector<2x128xf32>
    %1396 = arith.negf %1395 : vector<2x128xf32>
    %1397 = math.exp %1396 : vector<2x128xf32>
    %cst_194 = arith.constant 1.000000e+00 : f32
    %1398 = vector.broadcast %cst_194 : f32 to vector<2x128xf32>
    %1399 = arith.addf %1398, %1397 : vector<2x128xf32>
    %1400 = arith.divf %1398, %1399 : vector<2x128xf32>
    %1401 = math.tanh %1395 : vector<2x128xf32>
    %1402 = vector.extract_strided_slice %1400 {offsets = [0, 0], sizes = [2, 32], strides = [1, 1]} : vector<2x128xf32> to vector<2x32xf32>
    %1403 = vector.extract_strided_slice %1400 {offsets = [0, 32], sizes = [2, 32], strides = [1, 1]} : vector<2x128xf32> to vector<2x32xf32>
    %1404 = vector.extract_strided_slice %1401 {offsets = [0, 64], sizes = [2, 32], strides = [1, 1]} : vector<2x128xf32> to vector<2x32xf32>
    %1405 = vector.extract_strided_slice %1400 {offsets = [0, 96], sizes = [2, 32], strides = [1, 1]} : vector<2x128xf32> to vector<2x32xf32>
    %1406 = arith.mulf %1403, %1371 : vector<2x32xf32>
    %1407 = arith.mulf %1402, %1404 : vector<2x32xf32>
    %1408 = arith.addf %1406, %1407 : vector<2x32xf32>
    %1409 = math.tanh %1408 : vector<2x32xf32>
    %1410 = arith.mulf %1405, %1409 : vector<2x32xf32>
    %c7 = arith.constant 7 : index
    %c0_195 = arith.constant 0 : index
    %c0_196 = arith.constant 0 : index
    %1411 = vector.load %arg11[%c7, %c0_195, %c0_196] : memref<8x2x32xf32, #tpu.memory_space<vmem>>, vector<1x2x32xf32>
    %1412 = vector.shape_cast %1411 : vector<1x2x32xf32> to vector<2x32xf32>
    %1413 = vector.shape_cast %1410 : vector<2x32xf32> to vector<1x2x32xf32>
    tpu.vector_store %arg11[%c7, %c0_195, %c0_196], %1413 {strides = array<i32>} : memref<8x2x32xf32, #tpu.memory_space<vmem>>, vector<1x2x32xf32>,
    return
  }
  func.func @transform_0(%arg0: i32) -> (i32, i32) {
    %c0_i32 = arith.constant 0 : i32
    %c0_i32_0 = arith.constant 0 : i32
    %c0_i32_1 = arith.constant 0 : i32
    return %c0_i32, %c0_i32_0 : i32, i32
  }
  func.func @transform_1(%arg0: i32) -> (i32, i32) {
    %c0_i32 = arith.constant 0 : i32
    %c0_i32_0 = arith.constant 0 : i32
    %c0_i32_1 = arith.constant 0 : i32
    return %c0_i32, %c0_i32_0 : i32, i32
  }
  func.func @transform_2(%arg0: i32) -> (i32, i32) {
    %c0_i32 = arith.constant 0 : i32
    %c0_i32_0 = arith.constant 0 : i32
    %c0_i32_1 = arith.constant 0 : i32
    return %c0_i32, %c0_i32_0 : i32, i32
  }
  func.func @transform_3(%arg0: i32) -> (i32, i32) {
    %c0_i32 = arith.constant 0 : i32
    %c0_i32_0 = arith.constant 0 : i32
    %c0_i32_1 = arith.constant 0 : i32
    return %c0_i32, %c0_i32_0 : i32, i32
  }
  func.func @transform_4(%arg0: i32) -> (i32, i32) {
    %c0_i32 = arith.constant 0 : i32
    %c0_i32_0 = arith.constant 0 : i32
    %c0_i32_1 = arith.constant 0 : i32
    return %c0_i32, %c0_i32_0 : i32, i32
  }
  func.func @transform_5(%arg0: i32) -> (i32, i32) {
    %c0_i32 = arith.constant 0 : i32
    %c0_i32_0 = arith.constant 0 : i32
    %c0_i32_1 = arith.constant 0 : i32
    return %c0_i32, %c0_i32_0 : i32, i32
  }
  func.func @transform_6(%arg0: i32) -> (i32, i32) {
    %c0_i32 = arith.constant 0 : i32
    %c0_i32_0 = arith.constant 0 : i32
    %c0_i32_1 = arith.constant 0 : i32
    return %c0_i32, %c0_i32_0 : i32, i32
  }
  func.func @transform_7(%arg0: i32) -> (i32, i32) {
    %c0_i32 = arith.constant 0 : i32
    %c0_i32_0 = arith.constant 0 : i32
    %c0_i32_1 = arith.constant 0 : i32
    return %c0_i32, %c0_i32_0 : i32, i32
  }
  func.func @transform_8(%arg0: i32) -> (i32, i32) {
    %c0_i32 = arith.constant 0 : i32
    %c0_i32_0 = arith.constant 0 : i32
    %c0_i32_1 = arith.constant 0 : i32
    return %c0_i32, %c0_i32_0 : i32, i32
  }
  func.func @transform_9(%arg0: i32) -> (i32, i32) {
    %c0_i32 = arith.constant 0 : i32
    %c0_i32_0 = arith.constant 0 : i32
    %c0_i32_1 = arith.constant 0 : i32
    return %c0_i32, %c0_i32_0 : i32, i32
  }
  func.func @transform_10(%arg0: i32) -> (i32, i32, i32) {
    %c0_i32 = arith.constant 0 : i32
    %c0_i32_0 = arith.constant 0 : i32
    %c0_i32_1 = arith.constant 0 : i32
    %c0_i32_2 = arith.constant 0 : i32
    return %c0_i32, %c0_i32_0, %c0_i32_1 : i32, i32, i32
  }
}

</mosaic_0001>

<llo_original>
// kernel: tpu_custom_call.1
$region0: #{tpu_custom_call.1}
  #allocation0 [shape = 'u32[]', space=smem, size = 0x4, offset = 0x4, fixed_abs, tag = 'smem constant byte address 0x4 - core index']
  #allocation1 [shape = 'u32[144,128]{1,0:T(1,128)}', space=vmem, size = 0x12000, scoped, tag = 'internal scratch']
  %s0 = inlined_call_operand.hbm [shape: f32[2,32], index: 0, kind: input, shape index: {}]
  %s1 = inlined_call_operand.hbm [shape: f32[32,512], index: 1, kind: input, shape index: {}]
  %s2 = inlined_call_operand.hbm [shape: f32[1,512], index: 2, kind: input, shape index: {}]
  %s3 = inlined_call_operand.vmem [shape: f32[1,128], index: 3, kind: input, shape index: {}]
  %s4 = inlined_call_operand.hbm [shape: f32[32,128], index: 4, kind: input, shape index: {}]
  %s5 = inlined_call_operand.vmem [shape: f32[1,128], index: 5, kind: input, shape index: {}]
  %s6 = inlined_call_operand.hbm [shape: f32[32,128], index: 6, kind: input, shape index: {}]
  %s7 = inlined_call_operand.hbm [shape: f32[32,128], index: 7, kind: input, shape index: {}]
  %s8 = inlined_call_operand.vmem [shape: f32[1,128], index: 8, kind: input, shape index: {}]
  %s9 = inlined_call_operand.hbm [shape: f32[2,512], index: 9, kind: output, shape index: {0}]
  %s10 = inlined_call_operand.hbm [shape: f32[8,2,32], index: 10, kind: output, shape index: {1}]
  %11 = xla_tuple %s9, %s10
  %s12 = sld [smem:[#allocation0]]
  $region78: #{tpu_custom_call.1} parent=0
    _
  %s14 = ssub.s32 1, %s12
  %s15 = scalar_select 0, %s14, %s12
  $region1: #{tpu_custom_call.1} parent=0
    #allocation2 [shape = 'u8[1024]{0}', space=vmem, size = 0x400, scoped, tag = 'input window, operand 0, single buffered']
    #allocation3 [shape = 's32[1]{0}', space=sflag, size = 0x4, scoped, tag = 'scoped memory for tpu_custom_call.1']
    #allocation4 [shape = 's32[1]{0}', space=sflag, size = 0x4, scoped, tag = 'scoped memory for tpu_custom_call.1']
    #allocation5 [shape = 'u8[65536]{0}', space=vmem, size = 0x10000, scoped, tag = 'input window, operand 1, single buffered']
    #allocation6 [shape = 's32[1]{0}', space=sflag, size = 0x4, scoped, tag = 'scoped memory for tpu_custom_call.1']
    #allocation7 [shape = 'u8[2048]{0}', space=vmem, size = 0x800, scoped, tag = 'input window, operand 2, single buffered']
    #allocation8 [shape = 'u8[16384]{0}', space=vmem, size = 0x4000, scoped, tag = 'input window, operand 4, single buffered']
    #allocation9 [shape = 's32[1]{0}', space=sflag, size = 0x4, scoped, tag = 'scoped memory for tpu_custom_call.1']
    #allocation10 [shape = 'u8[16384]{0}', space=vmem, size = 0x4000, scoped, tag = 'input window, operand 6, single buffered']
    #allocation11 [shape = 'u8[16384]{0}', space=vmem, size = 0x4000, scoped, tag = 'input window, operand 7, single buffered']
    #allocation12 [shape = 's32[1]{0}', space=sflag, size = 0x4, scoped, tag = 'scoped memory for tpu_custom_call.1']
    #allocation13 [shape = 'u8[4096]{0}', space=vmem, size = 0x1000, scoped, tag = 'output window, operand 0, single buffered']
    #allocation14 [shape = 'u8[8192]{0}', space=vmem, size = 0x2000, scoped, tag = 'output window, operand 1, single buffered']
    #allocation15 [shape = 's32[1]{0}', space=sflag, size = 0x4, scoped, tag = 'scoped memory for tpu_custom_call.1']
    %16 = vsyncpa [#allocation3], 0
    %17 = vsyncpa [#allocation6], 0
    %18 = vsyncpa [#allocation9], 0
    %19 = vsyncpa [#allocation12], 0
    %20 = vsyncpa [#allocation4], 0
    %21 = vsyncpa [#allocation15], 0
    // Predicated region
    $region2: #{tpu_custom_call.1} parent=1 // pred_check
      _
    $region3: #{tpu_custom_call.1} parent=1 // pred_check_branch
      %23 = sbr.rel (0) target = $region5
    $region4: #{tpu_custom_call.1} parent=1 // pred_region
      %s25 = ssub.s32 32, 32
      %26 = vsyncadd [#allocation3], %s25
      %s28 = sshll.u32 [#allocation2], 4
      %s29 = int_to_ptr.vmem [resolvable:$true] %s28
      %31 = dma.hbm_to_vmem [thread:$0]  %s0, 32, %s29, [#allocation3]
    $region5: #{tpu_custom_call.1} parent=1 // pred_fallthru
      _
    // Predicated region
    $region6: #{tpu_custom_call.1} parent=1 // pred_check
      _
    $region7: #{tpu_custom_call.1} parent=1 // pred_check_branch
      %33 = sbr.rel (0) target = $region9
    $region8: #{tpu_custom_call.1} parent=1 // pred_region
      %s35 = ssub.s32 2048, 2048
      %36 = vsyncadd [#allocation6], %s35
      %s37 = sshll.u32 [#allocation5], 4
      %s38 = int_to_ptr.vmem [resolvable:$true] %s37
      %43 = dma.hbm_to_vmem [thread:$0]  %s1, 2048, %s38, [#allocation6], 512, 512, 32
    $region9: #{tpu_custom_call.1} parent=1 // pred_fallthru
      _
    // Predicated region
    $region10: #{tpu_custom_call.1} parent=1 // pred_check
      _
    $region11: #{tpu_custom_call.1} parent=1 // pred_check_branch
      %45 = sbr.rel (0) target = $region13
    $region12: #{tpu_custom_call.1} parent=1 // pred_region
      %s47 = ssub.s32 64, 64
      %48 = vsyncadd [#allocation6], %s47
      %s50 = sshll.u32 [#allocation7], 4
      %s51 = int_to_ptr.vmem [resolvable:$true] %s50
      %53 = dma.hbm_to_vmem [thread:$0]  %s2, 64, %s51, [#allocation6]
    $region13: #{tpu_custom_call.1} parent=1 // pred_fallthru
      _
    // Predicated region
    $region14: #{tpu_custom_call.1} parent=1 // pred_check
      _
    $region15: #{tpu_custom_call.1} parent=1 // pred_check_branch
      %55 = sbr.rel (0) target = $region17
    $region16: #{tpu_custom_call.1} parent=1 // pred_region
      _
    $region17: #{tpu_custom_call.1} parent=1 // pred_fallthru
      _
    // Predicated region
    $region18: #{tpu_custom_call.1} parent=1 // pred_check
      _
    $region19: #{tpu_custom_call.1} parent=1 // pred_check_branch
      %57 = sbr.rel (0) target = $region21
    $region20: #{tpu_custom_call.1} parent=1 // pred_region
      %s59 = ssub.s32 512, 512
      %60 = vsyncadd [#allocation9], %s59
      %s61 = sshll.u32 [#allocation8], 4
      %s62 = int_to_ptr.vmem [resolvable:$true] %s61
      %67 = dma.hbm_to_vmem [thread:$0]  %s4, 512, %s62, [#allocation9], 128, 128, 8
    $region21: #{tpu_custom_call.1} parent=1 // pred_fallthru
      _
    // Predicated region
    $region22: #{tpu_custom_call.1} parent=1 // pred_check
      _
    $region23: #{tpu_custom_call.1} parent=1 // pred_check_branch
      %69 = sbr.rel (0) target = $region25
    $region24: #{tpu_custom_call.1} parent=1 // pred_region
      _
    $region25: #{tpu_custom_call.1} parent=1 // pred_fallthru
      _
    // Predicated region
    $region26: #{tpu_custom_call.1} parent=1 // pred_check
      _
    $region27: #{tpu_custom_call.1} parent=1 // pred_check_branch
      %71 = sbr.rel (0) target = $region29
    $region28: #{tpu_custom_call.1} parent=1 // pred_region
      %s73 = ssub.s32 512, 512
      %74 = vsyncadd [#allocation9], %s73
      %s75 = sshll.u32 [#allocation10], 4
      %s76 = int_to_ptr.vmem [resolvable:$true] %s75
      %81 = dma.hbm_to_vmem [thread:$0]  %s6, 512, %s76, [#allocation9], 128, 128, 8
    $region29: #{tpu_custom_call.1} parent=1 // pred_fallthru
      _
    // Predicated region
    $region30: #{tpu_custom_call.1} parent=1 // pred_check
      _
    $region31: #{tpu_custom_call.1} parent=1 // pred_check_branch
      %83 = sbr.rel (0) target = $region33
    $region32: #{tpu_custom_call.1} parent=1 // pred_region
      %s85 = ssub.s32 512, 512
      %86 = vsyncadd [#allocation12], %s85
      %s87 = sshll.u32 [#allocation11], 4
      %s88 = int_to_ptr.vmem [resolvable:$true] %s87
      %93 = dma.hbm_to_vmem [thread:$0]  %s7, 512, %s88, [#allocation12], 128, 128, 8
    $region33: #{tpu_custom_call.1} parent=1 // pred_fallthru
      _
    // Predicated region
    $region34: #{tpu_custom_call.1} parent=1 // pred_check
      _
    $region35: #{tpu_custom_call.1} parent=1 // pred_check_branch
      %95 = sbr.rel (0) target = $region37
    $region36: #{tpu_custom_call.1} parent=1 // pred_region
      _
    $region37: #{tpu_custom_call.1} parent=1 // pred_fallthru
      _
    // Predicated region
    $region38: #{tpu_custom_call.1} parent=1 // pred_check
      _
    $region39: #{tpu_custom_call.1} parent=1 // pred_check_branch
      %97 = sbr.rel (0) target = $region41
    $region40: #{tpu_custom_call.1} parent=1 // pred_region
      %98 = dma.done [#allocation3], 32
    $region41: #{tpu_custom_call.1} parent=1 // pred_fallthru
      _
    // Predicated region
    $region42: #{tpu_custom_call.1} parent=1 // pred_check
      _
    $region43: #{tpu_custom_call.1} parent=1 // pred_check_branch
      %100 = sbr.rel (0) target = $region45
    $region44: #{tpu_custom_call.1} parent=1 // pred_region
      %101 = dma.done [#allocation6], 2048
    $region45: #{tpu_custom_call.1} parent=1 // pred_fallthru
      _
    // Predicated region
    $region46: #{tpu_custom_call.1} parent=1 // pred_check
      _
    $region47: #{tpu_custom_call.1} parent=1 // pred_check_branch
      %103 = sbr.rel (0) target = $region49
    $region48: #{tpu_custom_call.1} parent=1 // pred_region
      %104 = dma.done [#allocation6], 64
    $region49: #{tpu_custom_call.1} parent=1 // pred_fallthru
      _
    // Predicated region
    $region50: #{tpu_custom_call.1} parent=1 // pred_check
      _
    $region51: #{tpu_custom_call.1} parent=1 // pred_check_branch
      %106 = sbr.rel (0) target = $region53
    $region52: #{tpu_custom_call.1} parent=1 // pred_region
      %107 = dma.done [#allocation9], 512
    $region53: #{tpu_custom_call.1} parent=1 // pred_fallthru
      _
    // Predicated region
    $region54: #{tpu_custom_call.1} parent=1 // pred_check
      _
    $region55: #{tpu_custom_call.1} parent=1 // pred_check_branch
      %109 = sbr.rel (0) target = $region57
    $region56: #{tpu_custom_call.1} parent=1 // pred_region
      %110 = dma.done [#allocation9], 512
    $region57: #{tpu_custom_call.1} parent=1 // pred_fallthru
      _
    // Predicated region
    $region58: #{tpu_custom_call.1} parent=1 // pred_check
      _
    $region59: #{tpu_custom_call.1} parent=1 // pred_check_branch
      %112 = sbr.rel (0) target = $region61
    $region60: #{tpu_custom_call.1} parent=1 // pred_region
      %113 = dma.done [#allocation12], 512
    $region61: #{tpu_custom_call.1} parent=1 // pred_fallthru
      _
    %v114 = vld [vmem:[#allocation2] sm:$0x3]
    %v115 = vld [vmem:[#allocation5] sm:$0xff]
    %v116 = vld [vmem:[#allocation5 + $0x8] sm:$0xff]
    %v117 = vld [vmem:[#allocation5 + $0x10] sm:$0xff]
    %v118 = vld [vmem:[#allocation5 + $0x18] sm:$0xff]
    %v119 = vld [vmem:[#allocation5 + $0x20] sm:$0xff]
    %v120 = vld [vmem:[#allocation5 + $0x28] sm:$0xff]
    %v121 = vld [vmem:[#allocation5 + $0x30] sm:$0xff]
    %v122 = vld [vmem:[#allocation5 + $0x38] sm:$0xff]
    %v123 = vld [vmem:[#allocation5 + $0x40] sm:$0xff]
    %v124 = vld [vmem:[#allocation5 + $0x48] sm:$0xff]
    %v125 = vld [vmem:[#allocation5 + $0x50] sm:$0xff]
    %v126 = vld [vmem:[#allocation5 + $0x58] sm:$0xff]
    %v127 = vld [vmem:[#allocation5 + $0x60] sm:$0xff]
    %v128 = vld [vmem:[#allocation5 + $0x68] sm:$0xff]
    %v129 = vld [vmem:[#allocation5 + $0x70] sm:$0xff]
    %v130 = vld [vmem:[#allocation5 + $0x78] sm:$0xff]
    %v131 = vld [vmem:[#allocation7] sm:$0xf]
    %v133 = vlaneseq
    %v134 = vshrl.u32 %v133, 7
    %v135 = vsub.s32 0, %v134
    %v136 = vrot.slane %v131, %v135
    %v137 = vlaneseq
    %v138 = vshrl.u32 %v137, 7
    %v139 = vsub.s32 1, %v138
    %v140 = vrot.slane %v131, %v139
    %v141 = vlaneseq
    %v142 = vshrl.u32 %v141, 7
    %v143 = vsub.s32 2, %v142
    %v144 = vrot.slane %v131, %v143
    %v145 = vlaneseq
    %v146 = vshrl.u32 %v145, 7
    %v147 = vsub.s32 3, %v146
    %v148 = vrot.slane %v131, %v147
    %vm153 = vcmask 261120
    %v155 = vsel %vm153, %v114, 0
    %157 = vmatprep.subr.mxu0 0.0
    %158 = vmatpush1.msra.mxu0 0.0
    %159 = vmatprep.subr.mxu0 0.0
    %160 = vmatpush1.msra.mxu0 0.0
    %161 = vmatprep.subr.mxu0 0.0
    %162 = vmatpush1.msra.mxu0 0.0
    %163 = vmatprep.subr.mxu0 0.0
    %164 = vmatpush1.msra.mxu0 0.0
    %165 = vmatprep.subr.mxu0 0.0
    %166 = vmatpush1.msra.mxu0 0.0
    %167 = vmatprep.subr.mxu0 0.0
    %168 = vmatpush1.msra.mxu0 0.0
    %169 = vmatprep.subr.mxu0 0.0
    %170 = vmatpush1.msra.mxu0 0.0
    %171 = vmatprep.subr.mxu0 0.0
    %172 = vmatpush1.msra.mxu0 0.0
    %173 = vmatprep.subr.mxu0 0.0
    %174 = vmatpush1.msra.mxu0 0.0
    %175 = vmatprep.subr.mxu0 0.0
    %176 = vmatpush1.msra.mxu0 0.0
    %177 = vmatprep.subr.mxu0 0.0
    %178 = vmatpush1.msra.mxu0 0.0
    %179 = vmatprep.subr.mxu0 0.0
    %180 = vmatpush1.msra.mxu0 0.0
    %181 = vmatprep.subr.mxu0 %v128
    %182 = vmatpush1.msra.mxu0 %v127
    %183 = vmatprep.subr.mxu0 %v124
    %184 = vmatpush1.msra.mxu0 %v123
    %185 = vmatprep.subr.mxu0 %v120
    %186 = vmatpush1.msra.mxu0 %v119
    %187 = vmatprep.subr.mxu0 %v116
    %188 = vmatpush1.msra.mxu0 %v115
    %189 = vmatprep.subr.mxu0 0.0
    %190 = vmatpush2.msra.mxu0 0.0
    %191 = vmatprep.subr.mxu0 0.0
    %192 = vmatpush2.msra.mxu0 0.0
    %193 = vmatprep.subr.mxu0 0.0
    %194 = vmatpush2.msra.mxu0 0.0
    %195 = vmatprep.subr.mxu0 0.0
    %196 = vmatpush2.msra.mxu0 0.0
    %197 = vmatprep.subr.mxu0 0.0
    %198 = vmatpush2.msra.mxu0 0.0
    %199 = vmatprep.subr.mxu0 0.0
    %200 = vmatpush2.msra.mxu0 0.0
    %201 = vmatprep.subr.mxu0 0.0
    %202 = vmatpush2.msra.mxu0 0.0
    %203 = vmatprep.subr.mxu0 0.0
    %204 = vmatpush2.msra.mxu0 0.0
    %205 = vmatprep.subr.mxu0 0.0
    %206 = vmatpush2.msra.mxu0 0.0
    %207 = vmatprep.subr.mxu0 0.0
    %208 = vmatpush2.msra.mxu0 0.0
    %209 = vmatprep.subr.mxu0 0.0
    %210 = vmatpush2.msra.mxu0 0.0
    %211 = vmatprep.subr.mxu0 0.0
    %212 = vmatpush2.msra.mxu0 0.0
    %213 = vmatprep.subr.mxu0 0.0
    %214 = vmatpush2.msra.mxu0 0.0
    %215 = vmatprep.subr.mxu0 0.0
    %216 = vmatpush2.msra.mxu0 0.0
    %217 = vmatprep.subr.mxu0 0.0
    %218 = vmatpush2.msra.mxu0 0.0
    %219 = vmatprep.subr.mxu0 0.0
    %220 = vmatpush2.msra.mxu0 0.0
    %221 = vmatprep.mubr.f32.mxu0 0.0
    %222 = vmatmul.mubr.f32.gmra.mxu0 %v155
    %v223 = vpop.f32.mrf.mxu0
    %v224 = vadd.f32 %v136, %v223
    %v225 = vpop.f32.mrf.mxu0
    %v226 = vadd.f32 %v140, %v225
    %227 = vdwg.mxu0
    %228 = vmatprep.subr.mxu0 0.0
    %229 = vmatpush1.msra.mxu0 0.0
    %230 = vmatprep.subr.mxu0 0.0
    %231 = vmatpush1.msra.mxu0 0.0
    %232 = vmatprep.subr.mxu0 0.0
    %233 = vmatpush1.msra.mxu0 0.0
    %234 = vmatprep.subr.mxu0 0.0
    %235 = vmatpush1.msra.mxu0 0.0
    %236 = vmatprep.subr.mxu0 0.0
    %237 = vmatpush1.msra.mxu0 0.0
    %238 = vmatprep.subr.mxu0 0.0
    %239 = vmatpush1.msra.mxu0 0.0
    %240 = vmatprep.subr.mxu0 0.0
    %241 = vmatpush1.msra.mxu0 0.0
    %242 = vmatprep.subr.mxu0 0.0
    %243 = vmatpush1.msra.mxu0 0.0
    %244 = vmatprep.subr.mxu0 0.0
    %245 = vmatpush1.msra.mxu0 0.0
    %246 = vmatprep.subr.mxu0 0.0
    %247 = vmatpush1.msra.mxu0 0.0
    %248 = vmatprep.subr.mxu0 0.0
    %249 = vmatpush1.msra.mxu0 0.0
    %250 = vmatprep.subr.mxu0 0.0
    %251 = vmatpush1.msra.mxu0 0.0
    %252 = vmatprep.subr.mxu0 %v130
    %253 = vmatpush1.msra.mxu0 %v129
    %254 = vmatprep.subr.mxu0 %v126
    %255 = vmatpush1.msra.mxu0 %v125
    %256 = vmatprep.subr.mxu0 %v122
    %257 = vmatpush1.msra.mxu0 %v121
    %258 = vmatprep.subr.mxu0 %v118
    %259 = vmatpush1.msra.mxu0 %v117
    %260 = vmatprep.subr.mxu0 0.0
    %261 = vmatpush2.msra.mxu0 0.0
    %262 = vmatprep.subr.mxu0 0.0
    %263 = vmatpush2.msra.mxu0 0.0
    %264 = vmatprep.subr.mxu0 0.0
    %265 = vmatpush2.msra.mxu0 0.0
    %266 = vmatprep.subr.mxu0 0.0
    %267 = vmatpush2.msra.mxu0 0.0
    %268 = vmatprep.subr.mxu0 0.0
    %269 = vmatpush2.msra.mxu0 0.0
    %270 = vmatprep.subr.mxu0 0.0
    %271 = vmatpush2.msra.mxu0 0.0
    %272 = vmatprep.subr.mxu0 0.0
    %273 = vmatpush2.msra.mxu0 0.0
    %274 = vmatprep.subr.mxu0 0.0
    %275 = vmatpush2.msra.mxu0 0.0
    %276 = vmatprep.subr.mxu0 0.0
    %277 = vmatpush2.msra.mxu0 0.0
    %278 = vmatprep.subr.mxu0 0.0
    %279 = vmatpush2.msra.mxu0 0.0
    %280 = vmatprep.subr.mxu0 0.0
    %281 = vmatpush2.msra.mxu0 0.0
    %282 = vmatprep.subr.mxu0 0.0
    %283 = vmatpush2.msra.mxu0 0.0
    %284 = vmatprep.subr.mxu0 0.0
    %285 = vmatpush2.msra.mxu0 0.0
    %286 = vmatprep.subr.mxu0 0.0
    %287 = vmatpush2.msra.mxu0 0.0
    %288 = vmatprep.subr.mxu0 0.0
    %289 = vmatpush2.msra.mxu0 0.0
    %290 = vmatprep.subr.mxu0 0.0
    %291 = vmatpush2.msra.mxu0 0.0
    %292 = vmatprep.mubr.f32.mxu0 0.0
    %293 = vmatmul.mubr.f32.gmra.mxu0 %v155
    %v294 = vpop.f32.mrf.mxu0
    %v295 = vadd.f32 %v144, %v294
    %v296 = vpop.f32.mrf.mxu0
    %v297 = vadd.f32 %v148, %v296
    %298 = vdwg.mxu0
    %v303 = vcombine.low %v224, %v226
    %v304 = vcombine.low %v295, %v297
    %v306 = vunpack.c.l.s4 1983009808
    %v307 = vunpack.c.0.s8 %v306
    %v308 = vlaneseq
    %v309 = vshrl.u32 %v308, 7
    %v310 = vsub.s32 %v307, %v309
    %v311 = vrot.slane %v303, %v310
    %v313 = vunpack.c.l.s4 1983009808
    %v314 = vunpack.c.0.s8 %v313
    %v315 = vlaneseq
    %v316 = vshrl.u32 %v315, 7
    %v317 = vsub.s32 %v314, %v316
    %v318 = vrot.slane %v304, %v317
    %v319 = vcombine.low %v311, %v318
    %321 = vst [vmem:[#allocation13] sm:$0xff] %v319
    %v322 = vld [vmem:[%s3] sm:$0x1]
    %v323 = vld [vmem:[#allocation8] sm:$0xff]
    %v324 = vld [vmem:[#allocation8 + $0x8] sm:$0xff]
    %v325 = vld [vmem:[#allocation8 + $0x10] sm:$0xff]
    %v326 = vld [vmem:[#allocation8 + $0x18] sm:$0xff]
    %v327 = vld [vmem:[%s5] sm:$0x1]
    %v328 = vld [vmem:[#allocation10] sm:$0xff]
    %v329 = vld [vmem:[#allocation10 + $0x8] sm:$0xff]
    %v330 = vld [vmem:[#allocation10 + $0x10] sm:$0xff]
    %v331 = vld [vmem:[#allocation10 + $0x18] sm:$0xff]
    %v332 = vld [vmem:[#allocation11] sm:$0xff]
    %v333 = vld [vmem:[#allocation11 + $0x8] sm:$0xff]
    %v334 = vld [vmem:[#allocation11 + $0x10] sm:$0xff]
    %v335 = vld [vmem:[#allocation11 + $0x18] sm:$0xff]
    %v336 = vld [vmem:[%s8] sm:$0x1]
    %337 = vset.pattern.permute.xlu0 0
    %338 = vperm.xlu0 %337, %v114
    %v339 = vpop.permute.xlu0 %338
    %v342 = vlaneseq
    %v343 = vshrl.u32 %v342, 7
    %v344 = vsub.s32 0, %v343
    %v345 = vrot.slane %v322, %v344
    %v347 = vmul.f32 %v339, %v345
    %v349 = vlaneseq
    %v350 = vshrl.u32 %v349, 7
    %v351 = vsub.s32 0, %v350
    %v352 = vrot.slane %v327, %v351
    %v354 = vadd.f32 %v347, %v352
    %355 = vset.pattern.permute.xlu0 1
    %356 = vperm.xlu0 %355, %v114
    %v357 = vpop.permute.xlu0 %356
    %v359 = vmul.f32 %v357, %v345
    %v360 = vadd.f32 %v359, %v352
    %361 = vset.pattern.permute.xlu0 2
    %362 = vperm.xlu0 %361, %v114
    %v363 = vpop.permute.xlu0 %362
    %v365 = vmul.f32 %v363, %v345
    %v366 = vadd.f32 %v365, %v352
    %367 = vset.pattern.permute.xlu0 3
    %368 = vperm.xlu0 %367, %v114
    %v369 = vpop.permute.xlu0 %368
    %v371 = vmul.f32 %v369, %v345
    %v372 = vadd.f32 %v371, %v352
    %373 = vset.pattern.permute.xlu0 4
    %374 = vperm.xlu0 %373, %v114
    %v375 = vpop.permute.xlu0 %374
    %v377 = vmul.f32 %v375, %v345
    %v378 = vadd.f32 %v377, %v352
    %379 = vset.pattern.permute.xlu0 5
    %380 = vperm.xlu0 %379, %v114
    %v381 = vpop.permute.xlu0 %380
    %v383 = vmul.f32 %v381, %v345
    %v384 = vadd.f32 %v383, %v352
    %385 = vset.pattern.permute.xlu0 6
    %386 = vperm.xlu0 %385, %v114
    %v387 = vpop.permute.xlu0 %386
    %v389 = vmul.f32 %v387, %v345
    %v390 = vadd.f32 %v389, %v352
    %391 = vset.pattern.permute.xlu0 7
    %392 = vperm.xlu0 %391, %v114
    %v393 = vpop.permute.xlu0 %392
    %v395 = vmul.f32 %v393, %v345
    %v396 = vadd.f32 %v395, %v352
    %397 = vset.pattern.permute.xlu0 8
    %398 = vperm.xlu0 %397, %v114
    %v399 = vpop.permute.xlu0 %398
    %v401 = vmul.f32 %v399, %v345
    %v402 = vadd.f32 %v401, %v352
    %403 = vset.pattern.permute.xlu0 9
    %404 = vperm.xlu0 %403, %v114
    %v405 = vpop.permute.xlu0 %404
    %v407 = vmul.f32 %v405, %v345
    %v408 = vadd.f32 %v407, %v352
    %409 = vset.pattern.permute.xlu0 10
    %410 = vperm.xlu0 %409, %v114
    %v411 = vpop.permute.xlu0 %410
    %v413 = vmul.f32 %v411, %v345
    %v414 = vadd.f32 %v413, %v352
    %415 = vset.pattern.permute.xlu0 11
    %416 = vperm.xlu0 %415, %v114
    %v417 = vpop.permute.xlu0 %416
    %v419 = vmul.f32 %v417, %v345
    %v420 = vadd.f32 %v419, %v352
    %421 = vset.pattern.permute.xlu0 12
    %422 = vperm.xlu0 %421, %v114
    %v423 = vpop.permute.xlu0 %422
    %v425 = vmul.f32 %v423, %v345
    %v426 = vadd.f32 %v425, %v352
    %427 = vset.pattern.permute.xlu0 13
    %428 = vperm.xlu0 %427, %v114
    %v429 = vpop.permute.xlu0 %428
    %v431 = vmul.f32 %v429, %v345
    %v432 = vadd.f32 %v431, %v352
    %433 = vset.pattern.permute.xlu0 14
    %434 = vperm.xlu0 %433, %v114
    %v435 = vpop.permute.xlu0 %434
    %v437 = vmul.f32 %v435, %v345
    %v438 = vadd.f32 %v437, %v352
    %439 = vset.pattern.permute.xlu0 15
    %440 = vperm.xlu0 %439, %v114
    %v441 = vpop.permute.xlu0 %440
    %v443 = vmul.f32 %v441, %v345
    %v444 = vadd.f32 %v443, %v352
    %445 = vset.pattern.permute.xlu0 16
    %446 = vperm.xlu0 %445, %v114
    %v447 = vpop.permute.xlu0 %446
    %v449 = vmul.f32 %v447, %v345
    %v450 = vadd.f32 %v449, %v352
    %451 = vset.pattern.permute.xlu0 17
    %452 = vperm.xlu0 %451, %v114
    %v453 = vpop.permute.xlu0 %452
    %v455 = vmul.f32 %v453, %v345
    %v456 = vadd.f32 %v455, %v352
    %457 = vset.pattern.permute.xlu0 18
    %458 = vperm.xlu0 %457, %v114
    %v459 = vpop.permute.xlu0 %458
    %v461 = vmul.f32 %v459, %v345
    %v462 = vadd.f32 %v461, %v352
    %463 = vset.pattern.permute.xlu0 19
    %464 = vperm.xlu0 %463, %v114
    %v465 = vpop.permute.xlu0 %464
    %v467 = vmul.f32 %v465, %v345
    %v468 = vadd.f32 %v467, %v352
    %469 = vset.pattern.permute.xlu0 20
    %470 = vperm.xlu0 %469, %v114
    %v471 = vpop.permute.xlu0 %470
    %v473 = vmul.f32 %v471, %v345
    %v474 = vadd.f32 %v473, %v352
    %475 = vset.pattern.permute.xlu0 21
    %476 = vperm.xlu0 %475, %v114
    %v477 = vpop.permute.xlu0 %476
    %v479 = vmul.f32 %v477, %v345
    %v480 = vadd.f32 %v479, %v352
    %481 = vset.pattern.permute.xlu0 22
    %482 = vperm.xlu0 %481, %v114
    %v483 = vpop.permute.xlu0 %482
    %v485 = vmul.f32 %v483, %v345
    %v486 = vadd.f32 %v485, %v352
    %487 = vset.pattern.permute.xlu0 23
    %488 = vperm.xlu0 %487, %v114
    %v489 = vpop.permute.xlu0 %488
    %v491 = vmul.f32 %v489, %v345
    %v492 = vadd.f32 %v491, %v352
    %493 = vset.pattern.permute.xlu0 24
    %494 = vperm.xlu0 %493, %v114
    %v495 = vpop.permute.xlu0 %494
    %v497 = vmul.f32 %v495, %v345
    %v498 = vadd.f32 %v497, %v352
    %499 = vset.pattern.permute.xlu0 25
    %500 = vperm.xlu0 %499, %v114
    %v501 = vpop.permute.xlu0 %500
    %v503 = vmul.f32 %v501, %v345
    %v504 = vadd.f32 %v503, %v352
    %505 = vset.pattern.permute.xlu0 26
    %506 = vperm.xlu0 %505, %v114
    %v507 = vpop.permute.xlu0 %506
    %v509 = vmul.f32 %v507, %v345
    %v510 = vadd.f32 %v509, %v352
    %511 = vset.pattern.permute.xlu0 27
    %512 = vperm.xlu0 %511, %v114
    %v513 = vpop.permute.xlu0 %512
    %v515 = vmul.f32 %v513, %v345
    %v516 = vadd.f32 %v515, %v352
    %517 = vset.pattern.permute.xlu0 28
    %518 = vperm.xlu0 %517, %v114
    %v519 = vpop.permute.xlu0 %518
    %v521 = vmul.f32 %v519, %v345
    %v522 = vadd.f32 %v521, %v352
    %523 = vset.pattern.permute.xlu0 29
    %524 = vperm.xlu0 %523, %v114
    %v525 = vpop.permute.xlu0 %524
    %v527 = vmul.f32 %v525, %v345
    %v528 = vadd.f32 %v527, %v352
    %529 = vset.pattern.permute.xlu0 30
    %530 = vperm.xlu0 %529, %v114
    %v531 = vpop.permute.xlu0 %530
    %v533 = vmul.f32 %v531, %v345
    %v534 = vadd.f32 %v533, %v352
    %535 = vset.pattern.permute.xlu0 31
    %536 = vperm.xlu0 %535, %v114
    %v537 = vpop.permute.xlu0 %536
    %v539 = vmul.f32 %v537, %v345
    %v540 = vadd.f32 %v539, %v352
    %v542 = vlaneseq
    %v543 = vshrl.u32 %v542, 7
    %v544 = vsub.s32 0, %v543
    %v545 = vrot.slane %v336, %v544
    %v548 = vsel %vm153, 0.0, 0
    %550 = vmatprep.subr.mxu0 0.0
    %551 = vmatpush1.msra.mxu0 0.0
    %552 = vmatprep.subr.mxu0 0.0
    %553 = vmatpush1.msra.mxu0 0.0
    %554 = vmatprep.subr.mxu0 0.0
    %555 = vmatpush1.msra.mxu0 0.0
    %556 = vmatprep.subr.mxu0 0.0
    %557 = vmatpush1.msra.mxu0 0.0
    %558 = vmatprep.subr.mxu0 0.0
    %559 = vmatpush1.msra.mxu0 0.0
    %560 = vmatprep.subr.mxu0 0.0
    %561 = vmatpush1.msra.mxu0 0.0
    %562 = vmatprep.subr.mxu0 0.0
    %563 = vmatpush1.msra.mxu0 0.0
    %564 = vmatprep.subr.mxu0 0.0
    %565 = vmatpush1.msra.mxu0 0.0
    %566 = vmatprep.subr.mxu0 0.0
    %567 = vmatpush1.msra.mxu0 0.0
    %568 = vmatprep.subr.mxu0 0.0
    %569 = vmatpush1.msra.mxu0 0.0
    %570 = vmatprep.subr.mxu0 0.0
    %571 = vmatpush1.msra.mxu0 0.0
    %572 = vmatprep.subr.mxu0 0.0
    %573 = vmatpush1.msra.mxu0 0.0
    %574 = vmatprep.subr.mxu0 0.0
    %575 = vmatpush1.msra.mxu0 %v335
    %576 = vmatprep.subr.mxu0 0.0
    %577 = vmatpush1.msra.mxu0 %v334
    %578 = vmatprep.subr.mxu0 0.0
    %579 = vmatpush1.msra.mxu0 %v333
    %580 = vmatprep.subr.mxu0 0.0
    %581 = vmatpush1.msra.mxu0 %v332
    %582 = vmatprep.subr.mxu0 0.0
    %583 = vmatpush2.msra.mxu0 0.0
    %584 = vmatprep.subr.mxu0 0.0
    %585 = vmatpush2.msra.mxu0 0.0
    %586 = vmatprep.subr.mxu0 0.0
    %587 = vmatpush2.msra.mxu0 0.0
    %588 = vmatprep.subr.mxu0 0.0
    %589 = vmatpush2.msra.mxu0 0.0
    %590 = vmatprep.subr.mxu0 0.0
    %591 = vmatpush2.msra.mxu0 0.0
    %592 = vmatprep.subr.mxu0 0.0
    %593 = vmatpush2.msra.mxu0 0.0
    %594 = vmatprep.subr.mxu0 0.0
    %595 = vmatpush2.msra.mxu0 0.0
    %596 = vmatprep.subr.mxu0 0.0
    %597 = vmatpush2.msra.mxu0 0.0
    %598 = vmatprep.subr.mxu0 0.0
    %599 = vmatpush2.msra.mxu0 0.0
    %600 = vmatprep.subr.mxu0 0.0
    %601 = vmatpush2.msra.mxu0 0.0
    %602 = vmatprep.subr.mxu0 0.0
    %603 = vmatpush2.msra.mxu0 0.0
    %604 = vmatprep.subr.mxu0 0.0
    %605 = vmatpush2.msra.mxu0 0.0
    %606 = vmatprep.subr.mxu0 0.0
    %607 = vmatpush2.msra.mxu0 0.0
    %608 = vmatprep.subr.mxu0 0.0
    %609 = vmatpush2.msra.mxu0 0.0
    %610 = vmatprep.subr.mxu0 0.0
    %611 = vmatpush2.msra.mxu0 0.0
    %612 = vmatprep.subr.mxu0 0.0
    %613 = vmatpush2.msra.mxu0 0.0
    %614 = vmatprep.mubr.f32.mxu0 0.0
    %615 = vmatmul.mubr.f32.gmra.mxu0 %v548
    %v616 = vpop.f32.mrf.mxu0
    %v617 = vadd.f32 %v545, %v616
    %v618 = vpop.f32.mrf.mxu0
    %619 = vdwg.mxu0
    %620 = vmatprep.subr.mxu0 0.0
    %621 = vmatpush1.msra.mxu0 0.0
    %622 = vmatprep.subr.mxu0 0.0
    %623 = vmatpush1.msra.mxu0 0.0
    %624 = vmatprep.subr.mxu0 0.0
    %625 = vmatpush1.msra.mxu0 0.0
    %626 = vmatprep.subr.mxu0 0.0
    %627 = vmatpush1.msra.mxu0 0.0
    %628 = vmatprep.subr.mxu0 0.0
    %629 = vmatpush1.msra.mxu0 0.0
    %630 = vmatprep.subr.mxu0 0.0
    %631 = vmatpush1.msra.mxu0 0.0
    %632 = vmatprep.subr.mxu0 0.0
    %633 = vmatpush1.msra.mxu0 0.0
    %634 = vmatprep.subr.mxu0 0.0
    %635 = vmatpush1.msra.mxu0 0.0
    %636 = vmatprep.subr.mxu0 0.0
    %637 = vmatpush1.msra.mxu0 0.0
    %638 = vmatprep.subr.mxu0 0.0
    %639 = vmatpush1.msra.mxu0 0.0
    %640 = vmatprep.subr.mxu0 0.0
    %641 = vmatpush1.msra.mxu0 0.0
    %642 = vmatprep.subr.mxu0 0.0
    %643 = vmatpush1.msra.mxu0 0.0
    %644 = vmatprep.subr.mxu0 0.0
    %645 = vmatpush1.msra.mxu0 %v326
    %646 = vmatprep.subr.mxu0 0.0
    %647 = vmatpush1.msra.mxu0 %v325
    %648 = vmatprep.subr.mxu0 0.0
    %649 = vmatpush1.msra.mxu0 %v324
    %650 = vmatprep.subr.mxu0 0.0
    %651 = vmatpush1.msra.mxu0 %v323
    %652 = vmatprep.subr.mxu0 0.0
    %653 = vmatpush2.msra.mxu0 0.0
    %654 = vmatprep.subr.mxu0 0.0
    %655 = vmatpush2.msra.mxu0 0.0
    %656 = vmatprep.subr.mxu0 0.0
    %657 = vmatpush2.msra.mxu0 0.0
    %658 = vmatprep.subr.mxu0 0.0
    %659 = vmatpush2.msra.mxu0 0.0
    %660 = vmatprep.subr.mxu0 0.0
    %661 = vmatpush2.msra.mxu0 0.0
    %662 = vmatprep.subr.mxu0 0.0
    %663 = vmatpush2.msra.mxu0 0.0
    %664 = vmatprep.subr.mxu0 0.0
    %665 = vmatpush2.msra.mxu0 0.0
    %666 = vmatprep.subr.mxu0 0.0
    %667 = vmatpush2.msra.mxu0 0.0
    %668 = vmatprep.subr.mxu0 0.0
    %669 = vmatpush2.msra.mxu0 0.0
    %670 = vmatprep.subr.mxu0 0.0
    %671 = vmatpush2.msra.mxu0 0.0
    %672 = vmatprep.subr.mxu0 0.0
    %673 = vmatpush2.msra.mxu0 0.0
    %674 = vmatprep.subr.mxu0 0.0
    %675 = vmatpush2.msra.mxu0 0.0
    %676 = vmatprep.subr.mxu0 0.0
    %677 = vmatpush2.msra.mxu0 0.0
    %678 = vmatprep.subr.mxu0 0.0
    %679 = vmatpush2.msra.mxu0 0.0
    %680 = vmatprep.subr.mxu0 0.0
    %681 = vmatpush2.msra.mxu0 0.0
    %682 = vmatprep.subr.mxu0 0.0
    %683 = vmatpush2.msra.mxu0 0.0
    %684 = vmatprep.mubr.f32.mxu0 0.0
    %685 = vmatmul.mubr.f32.gmra.mxu0 %v548
    %v686 = vpop.f32.mrf.mxu0
    %v687 = vadd.f32 0.0, %v686
    %v688 = vpop.f32.mrf.mxu0
    %689 = vdwg.mxu0
    %v690 = vadd.f32 %v354, %v687
    %v691 = vxor.u32 %v690, 2147483648
    %v692 = vmul.f32 %v691, 1.442695
    %v693 = vpow.pop %v692
    %v694 = vadd.f32 %v693, 1.0
    %v695 = vrcp.pop %v694
    %v696 = vmul.f32 1.0, %v695
    %v697 = vtanh.pop %v690
    %v698 = vmul.f32 %v696, 0.0
    %700 = vrot.lane.b32.xlu0 %v697, 64
    %v701 = vpop.permute.xlu0 %700
    %v703 = vmul.f32 %v696, %v701
    %705 = vrot.lane.b32.xlu0 %v703, 32
    %v706 = vpop.permute.xlu0 %705
    %v708 = vadd.f32 %v698, %v706
    %v709 = vtanh.pop %v708
    %711 = vrot.lane.b32.xlu0 %v709, 64
    %v712 = vpop.permute.xlu0 %711
    %v714 = vmul.f32 %v696, %v712
    %716 = vrot.lane.b32.xlu0 %v714, 32
    %v717 = vpop.permute.xlu0 %716
    %v718 = vsel %vm153, %v717, 0
    %720 = vmatprep.subr.mxu0 0.0
    %721 = vmatpush1.msra.mxu0 0.0
    %722 = vmatprep.subr.mxu0 0.0
    %723 = vmatpush1.msra.mxu0 0.0
    %724 = vmatprep.subr.mxu0 0.0
    %725 = vmatpush1.msra.mxu0 0.0
    %726 = vmatprep.subr.mxu0 0.0
    %727 = vmatpush1.msra.mxu0 0.0
    %728 = vmatprep.subr.mxu0 0.0
    %729 = vmatpush1.msra.mxu0 0.0
    %730 = vmatprep.subr.mxu0 0.0
    %731 = vmatpush1.msra.mxu0 0.0
    %732 = vmatprep.subr.mxu0 0.0
    %733 = vmatpush1.msra.mxu0 0.0
    %734 = vmatprep.subr.mxu0 0.0
    %735 = vmatpush1.msra.mxu0 0.0
    %736 = vmatprep.subr.mxu0 0.0
    %737 = vmatpush1.msra.mxu0 0.0
    %738 = vmatprep.subr.mxu0 0.0
    %739 = vmatpush1.msra.mxu0 0.0
    %740 = vmatprep.subr.mxu0 0.0
    %741 = vmatpush1.msra.mxu0 0.0
    %742 = vmatprep.subr.mxu0 0.0
    %743 = vmatpush1.msra.mxu0 0.0
    %744 = vmatprep.subr.mxu0 0.0
    %745 = vmatpush1.msra.mxu0 %v331
    %746 = vmatprep.subr.mxu0 0.0
    %747 = vmatpush1.msra.mxu0 %v330
    %748 = vmatprep.subr.mxu0 0.0
    %749 = vmatpush1.msra.mxu0 %v329
    %750 = vmatprep.subr.mxu0 0.0
    %751 = vmatpush1.msra.mxu0 %v328
    %752 = vmatprep.subr.mxu0 0.0
    %753 = vmatpush2.msra.mxu0 0.0
    %754 = vmatprep.subr.mxu0 0.0
    %755 = vmatpush2.msra.mxu0 0.0
    %756 = vmatprep.subr.mxu0 0.0
    %757 = vmatpush2.msra.mxu0 0.0
    %758 = vmatprep.subr.mxu0 0.0
    %759 = vmatpush2.msra.mxu0 0.0
    %760 = vmatprep.subr.mxu0 0.0
    %761 = vmatpush2.msra.mxu0 0.0
    %762 = vmatprep.subr.mxu0 0.0
    %763 = vmatpush2.msra.mxu0 0.0
    %764 = vmatprep.subr.mxu0 0.0
    %765 = vmatpush2.msra.mxu0 0.0
    %766 = vmatprep.subr.mxu0 0.0
    %767 = vmatpush2.msra.mxu0 0.0
    %768 = vmatprep.subr.mxu0 0.0
    %769 = vmatpush2.msra.mxu0 0.0
    %770 = vmatprep.subr.mxu0 0.0
    %771 = vmatpush2.msra.mxu0 0.0
    %772 = vmatprep.subr.mxu0 0.0
    %773 = vmatpush2.msra.mxu0 0.0
    %774 = vmatprep.subr.mxu0 0.0
    %775 = vmatpush2.msra.mxu0 0.0
    %776 = vmatprep.subr.mxu0 0.0
    %777 = vmatpush2.msra.mxu0 0.0
    %778 = vmatprep.subr.mxu0 0.0
    %779 = vmatpush2.msra.mxu0 0.0
    %780 = vmatprep.subr.mxu0 0.0
    %781 = vmatpush2.msra.mxu0 0.0
    %782 = vmatprep.subr.mxu0 0.0
    %783 = vmatpush2.msra.mxu0 0.0
    %784 = vmatprep.mubr.f32.mxu0 0.0
    %785 = vmatmul.mubr.f32.gmra.mxu0 %v718
    %v786 = vpop.f32.mrf.mxu0
    %v787 = vadd.f32 %v617, %v786
    %v788 = vpop.f32.mrf.mxu0
    %789 = vdwg.mxu0
    %v790 = vxor.u32 %v787, 2147483648
    %v791 = vmul.f32 %v790, 1.442695
    %v792 = vpow.pop %v791
    %v793 = vadd.f32 %v792, 1.0
    %v794 = vrcp.pop %v793
    %v795 = vmul.f32 1.0, %v794
    %v796 = vtanh.pop %v787
    %v797 = vmul.f32 %v795, 0.0
    %799 = vrot.lane.b32.xlu0 %v796, 64
    %v800 = vpop.permute.xlu0 %799
    %v802 = vmul.f32 %v795, %v800
    %804 = vrot.lane.b32.xlu0 %v802, 32
    %v805 = vpop.permute.xlu0 %804
    %v807 = vadd.f32 %v797, %v805
    %v808 = vtanh.pop %v807
    %810 = vrot.lane.b32.xlu0 %v808, 64
    %v811 = vpop.permute.xlu0 %810
    %v813 = vmul.f32 %v795, %v811
    %815 = vrot.lane.b32.xlu0 %v813, 32
    %v816 = vpop.permute.xlu0 %815
    %v817 = vsel %vm153, %v816, 0
    %819 = vmatprep.subr.mxu0 0.0
    %820 = vmatpush1.msra.mxu0 0.0
    %821 = vmatprep.subr.mxu0 0.0
    %822 = vmatpush1.msra.mxu0 0.0
    %823 = vmatprep.subr.mxu0 0.0
    %824 = vmatpush1.msra.mxu0 0.0
    %825 = vmatprep.subr.mxu0 0.0
    %826 = vmatpush1.msra.mxu0 0.0
    %827 = vmatprep.subr.mxu0 0.0
    %828 = vmatpush1.msra.mxu0 0.0
    %829 = vmatprep.subr.mxu0 0.0
    %830 = vmatpush1.msra.mxu0 0.0
    %831 = vmatprep.subr.mxu0 0.0
    %832 = vmatpush1.msra.mxu0 0.0
    %833 = vmatprep.subr.mxu0 0.0
    %834 = vmatpush1.msra.mxu0 0.0
    %835 = vmatprep.subr.mxu0 0.0
    %836 = vmatpush1.msra.mxu0 0.0
    %837 = vmatprep.subr.mxu0 0.0
    %838 = vmatpush1.msra.mxu0 0.0
    %839 = vmatprep.subr.mxu0 0.0
    %840 = vmatpush1.msra.mxu0 0.0
    %841 = vmatprep.subr.mxu0 0.0
    %842 = vmatpush1.msra.mxu0 0.0
    %843 = vmatprep.subr.mxu0 0.0
    %844 = vmatpush1.msra.mxu0 %v335
    %845 = vmatprep.subr.mxu0 0.0
    %846 = vmatpush1.msra.mxu0 %v334
    %847 = vmatprep.subr.mxu0 0.0
    %848 = vmatpush1.msra.mxu0 %v333
    %849 = vmatprep.subr.mxu0 0.0
    %850 = vmatpush1.msra.mxu0 %v332
    %851 = vmatprep.subr.mxu0 0.0
    %852 = vmatpush2.msra.mxu0 0.0
    %853 = vmatprep.subr.mxu0 0.0
    %854 = vmatpush2.msra.mxu0 0.0
    %855 = vmatprep.subr.mxu0 0.0
    %856 = vmatpush2.msra.mxu0 0.0
    %857 = vmatprep.subr.mxu0 0.0
    %858 = vmatpush2.msra.mxu0 0.0
    %859 = vmatprep.subr.mxu0 0.0
    %860 = vmatpush2.msra.mxu0 0.0
    %861 = vmatprep.subr.mxu0 0.0
    %862 = vmatpush2.msra.mxu0 0.0
    %863 = vmatprep.subr.mxu0 0.0
    %864 = vmatpush2.msra.mxu0 0.0
    %865 = vmatprep.subr.mxu0 0.0
    %866 = vmatpush2.msra.mxu0 0.0
    %867 = vmatprep.subr.mxu0 0.0
    %868 = vmatpush2.msra.mxu0 0.0
    %869 = vmatprep.subr.mxu0 0.0
    %870 = vmatpush2.msra.mxu0 0.0
    %871 = vmatprep.subr.mxu0 0.0
    %872 = vmatpush2.msra.mxu0 0.0
    %873 = vmatprep.subr.mxu0 0.0
    %874 = vmatpush2.msra.mxu0 0.0
    %875 = vmatprep.subr.mxu0 0.0
    %876 = vmatpush2.msra.mxu0 0.0
    %877 = vmatprep.subr.mxu0 0.0
    %878 = vmatpush2.msra.mxu0 0.0
    %879 = vmatprep.subr.mxu0 0.0
    %880 = vmatpush2.msra.mxu0 0.0
    %881 = vmatprep.subr.mxu0 0.0
    %882 = vmatpush2.msra.mxu0 0.0
    %883 = vmatprep.mubr.f32.mxu0 0.0
    %884 = vmatmul.mubr.f32.gmra.mxu0 %v817
    %v885 = vpop.f32.mrf.mxu0
    %v886 = vadd.f32 %v545, %v885
    %v887 = vpop.f32.mrf.mxu0
    %888 = vdwg.mxu0
    %889 = vmatprep.subr.mxu0 0.0
    %890 = vmatpush1.msra.mxu0 0.0
    %891 = vmatprep.subr.mxu0 0.0
    %892 = vmatpush1.msra.mxu0 0.0
    %893 = vmatprep.subr.mxu0 0.0
    %894 = vmatpush1.msra.mxu0 0.0
    %895 = vmatprep.subr.mxu0 0.0
    %896 = vmatpush1.msra.mxu0 0.0
    %897 = vmatprep.subr.mxu0 0.0
    %898 = vmatpush1.msra.mxu0 0.0
    %899 = vmatprep.subr.mxu0 0.0
    %900 = vmatpush1.msra.mxu0 0.0
    %901 = vmatprep.subr.mxu0 0.0
    %902 = vmatpush1.msra.mxu0 0.0
    %903 = vmatprep.subr.mxu0 0.0
    %904 = vmatpush1.msra.mxu0 0.0
    %905 = vmatprep.subr.mxu0 0.0
    %906 = vmatpush1.msra.mxu0 0.0
    %907 = vmatprep.subr.mxu0 0.0
    %908 = vmatpush1.msra.mxu0 0.0
    %909 = vmatprep.subr.mxu0 0.0
    %910 = vmatpush1.msra.mxu0 0.0
    %911 = vmatprep.subr.mxu0 0.0
    %912 = vmatpush1.msra.mxu0 0.0
    %913 = vmatprep.subr.mxu0 0.0
    %914 = vmatpush1.msra.mxu0 %v326
    %915 = vmatprep.subr.mxu0 0.0
    %916 = vmatpush1.msra.mxu0 %v325
    %917 = vmatprep.subr.mxu0 0.0
    %918 = vmatpush1.msra.mxu0 %v324
    %919 = vmatprep.subr.mxu0 0.0
    %920 = vmatpush1.msra.mxu0 %v323
    %921 = vmatprep.subr.mxu0 0.0
    %922 = vmatpush2.msra.mxu0 0.0
    %923 = vmatprep.subr.mxu0 0.0
    %924 = vmatpush2.msra.mxu0 0.0
    %925 = vmatprep.subr.mxu0 0.0
    %926 = vmatpush2.msra.mxu0 0.0
    %927 = vmatprep.subr.mxu0 0.0
    %928 = vmatpush2.msra.mxu0 0.0
    %929 = vmatprep.subr.mxu0 0.0
    %930 = vmatpush2.msra.mxu0 0.0
    %931 = vmatprep.subr.mxu0 0.0
    %932 = vmatpush2.msra.mxu0 0.0
    %933 = vmatprep.subr.mxu0 0.0
    %934 = vmatpush2.msra.mxu0 0.0
    %935 = vmatprep.subr.mxu0 0.0
    %936 = vmatpush2.msra.mxu0 0.0
    %937 = vmatprep.subr.mxu0 0.0
    %938 = vmatpush2.msra.mxu0 0.0
    %939 = vmatprep.subr.mxu0 0.0
    %940 = vmatpush2.msra.mxu0 0.0
    %941 = vmatprep.subr.mxu0 0.0
    %942 = vmatpush2.msra.mxu0 0.0
    %943 = vmatprep.subr.mxu0 0.0
    %944 = vmatpush2.msra.mxu0 0.0
    %945 = vmatprep.subr.mxu0 0.0
    %946 = vmatpush2.msra.mxu0 0.0
    %947 = vmatprep.subr.mxu0 0.0
    %948 = vmatpush2.msra.mxu0 0.0
    %949 = vmatprep.subr.mxu0 0.0
    %950 = vmatpush2.msra.mxu0 0.0
    %951 = vmatprep.subr.mxu0 0.0
    %952 = vmatpush2.msra.mxu0 0.0
    %953 = vmatprep.mubr.f32.mxu0 0.0
    %954 = vmatmul.mubr.f32.gmra.mxu0 %v718
    %v955 = vpop.f32.mrf.mxu0
    %v956 = vadd.f32 0.0, %v955
    %v957 = vpop.f32.mrf.mxu0
    %958 = vdwg.mxu0
    %v959 = vadd.f32 %v402, %v956
    %v960 = vxor.u32 %v959, 2147483648
    %v961 = vmul.f32 %v960, 1.442695
    %v962 = vpow.pop %v961
    %v963 = vadd.f32 %v962, 1.0
    %v964 = vrcp.pop %v963
    %v965 = vmul.f32 1.0, %v964
    %v966 = vtanh.pop %v959
    %v967 = vmul.f32 %v965, %v708
    %969 = vrot.lane.b32.xlu0 %v966, 64
    %v970 = vpop.permute.xlu0 %969
    %v972 = vmul.f32 %v965, %v970
    %974 = vrot.lane.b32.xlu0 %v972, 32
    %v975 = vpop.permute.xlu0 %974
    %v977 = vadd.f32 %v967, %v975
    %v978 = vtanh.pop %v977
    %980 = vrot.lane.b32.xlu0 %v978, 64
    %v981 = vpop.permute.xlu0 %980
    %v983 = vmul.f32 %v965, %v981
    %985 = vrot.lane.b32.xlu0 %v983, 32
    %v986 = vpop.permute.xlu0 %985
    %v987 = vsel %vm153, %v986, 0
    %989 = vmatprep.subr.mxu0 0.0
    %990 = vmatpush1.msra.mxu0 0.0
    %991 = vmatprep.subr.mxu0 0.0
    %992 = vmatpush1.msra.mxu0 0.0
    %993 = vmatprep.subr.mxu0 0.0
    %994 = vmatpush1.msra.mxu0 0.0
    %995 = vmatprep.subr.mxu0 0.0
    %996 = vmatpush1.msra.mxu0 0.0
    %997 = vmatprep.subr.mxu0 0.0
    %998 = vmatpush1.msra.mxu0 0.0
    %999 = vmatprep.subr.mxu0 0.0
    %1000 = vmatpush1.msra.mxu0 0.0
    %1001 = vmatprep.subr.mxu0 0.0
    %1002 = vmatpush1.msra.mxu0 0.0
    %1003 = vmatprep.subr.mxu0 0.0
    %1004 = vmatpush1.msra.mxu0 0.0
    %1005 = vmatprep.subr.mxu0 0.0
    %1006 = vmatpush1.msra.mxu0 0.0
    %1007 = vmatprep.subr.mxu0 0.0
    %1008 = vmatpush1.msra.mxu0 0.0
    %1009 = vmatprep.subr.mxu0 0.0
    %1010 = vmatpush1.msra.mxu0 0.0
    %1011 = vmatprep.subr.mxu0 0.0
    %1012 = vmatpush1.msra.mxu0 0.0
    %1013 = vmatprep.subr.mxu0 0.0
    %1014 = vmatpush1.msra.mxu0 %v331
    %1015 = vmatprep.subr.mxu0 0.0
    %1016 = vmatpush1.msra.mxu0 %v330
    %1017 = vmatprep.subr.mxu0 0.0
    %1018 = vmatpush1.msra.mxu0 %v329
    %1019 = vmatprep.subr.mxu0 0.0
    %1020 = vmatpush1.msra.mxu0 %v328
    %1021 = vmatprep.subr.mxu0 0.0
    %1022 = vmatpush2.msra.mxu0 0.0
    %1023 = vmatprep.subr.mxu0 0.0
    %1024 = vmatpush2.msra.mxu0 0.0
    %1025 = vmatprep.subr.mxu0 0.0
    %1026 = vmatpush2.msra.mxu0 0.0
    %1027 = vmatprep.subr.mxu0 0.0
    %1028 = vmatpush2.msra.mxu0 0.0
    %1029 = vmatprep.subr.mxu0 0.0
    %1030 = vmatpush2.msra.mxu0 0.0
    %1031 = vmatprep.subr.mxu0 0.0
    %1032 = vmatpush2.msra.mxu0 0.0
    %1033 = vmatprep.subr.mxu0 0.0
    %1034 = vmatpush2.msra.mxu0 0.0
    %1035 = vmatprep.subr.mxu0 0.0
    %1036 = vmatpush2.msra.mxu0 0.0
    %1037 = vmatprep.subr.mxu0 0.0
    %1038 = vmatpush2.msra.mxu0 0.0
    %1039 = vmatprep.subr.mxu0 0.0
    %1040 = vmatpush2.msra.mxu0 0.0
    %1041 = vmatprep.subr.mxu0 0.0
    %1042 = vmatpush2.msra.mxu0 0.0
    %1043 = vmatprep.subr.mxu0 0.0
    %1044 = vmatpush2.msra.mxu0 0.0
    %1045 = vmatprep.subr.mxu0 0.0
    %1046 = vmatpush2.msra.mxu0 0.0
    %1047 = vmatprep.subr.mxu0 0.0
    %1048 = vmatpush2.msra.mxu0 0.0
    %1049 = vmatprep.subr.mxu0 0.0
    %1050 = vmatpush2.msra.mxu0 0.0
    %1051 = vmatprep.subr.mxu0 0.0
    %1052 = vmatpush2.msra.mxu0 0.0
    %1053 = vmatprep.mubr.f32.mxu0 0.0
    %1054 = vmatmul.mubr.f32.gmra.mxu0 %v987
    %v1055 = vpop.f32.mrf.mxu0
    %v1056 = vadd.f32 %v886, %v1055
    %v1057 = vpop.f32.mrf.mxu0
    %1058 = vdwg.mxu0
    %v1059 = vxor.u32 %v1056, 2147483648
    %v1060 = vmul.f32 %v1059, 1.442695
    %v1061 = vpow.pop %v1060
    %v1062 = vadd.f32 %v1061, 1.0
    %v1063 = vrcp.pop %v1062
    %v1064 = vmul.f32 1.0, %v1063
    %v1065 = vtanh.pop %v1056
    %v1066 = vmul.f32 %v1064, %v807
    %1068 = vrot.lane.b32.xlu0 %v1065, 64
    %v1069 = vpop.permute.xlu0 %1068
    %v1071 = vmul.f32 %v1064, %v1069
    %1073 = vrot.lane.b32.xlu0 %v1071, 32
    %v1074 = vpop.permute.xlu0 %1073
    %v1076 = vadd.f32 %v1066, %v1074
    %v1077 = vtanh.pop %v1076
    %1079 = vrot.lane.b32.xlu0 %v1077, 64
    %v1080 = vpop.permute.xlu0 %1079
    %v1082 = vmul.f32 %v1064, %v1080
    %1084 = vrot.lane.b32.xlu0 %v1082, 32
    %v1085 = vpop.permute.xlu0 %1084
    %v1086 = vsel %vm153, %v1085, 0
    %1088 = vmatprep.subr.mxu0 0.0
    %1089 = vmatpush1.msra.mxu0 0.0
    %1090 = vmatprep.subr.mxu0 0.0
    %1091 = vmatpush1.msra.mxu0 0.0
    %1092 = vmatprep.subr.mxu0 0.0
    %1093 = vmatpush1.msra.mxu0 0.0
    %1094 = vmatprep.subr.mxu0 0.0
    %1095 = vmatpush1.msra.mxu0 0.0
    %1096 = vmatprep.subr.mxu0 0.0
    %1097 = vmatpush1.msra.mxu0 0.0
    %1098 = vmatprep.subr.mxu0 0.0
    %1099 = vmatpush1.msra.mxu0 0.0
    %1100 = vmatprep.subr.mxu0 0.0
    %1101 = vmatpush1.msra.mxu0 0.0
    %1102 = vmatprep.subr.mxu0 0.0
    %1103 = vmatpush1.msra.mxu0 0.0
    %1104 = vmatprep.subr.mxu0 0.0
    %1105 = vmatpush1.msra.mxu0 0.0
    %1106 = vmatprep.subr.mxu0 0.0
    %1107 = vmatpush1.msra.mxu0 0.0
    %1108 = vmatprep.subr.mxu0 0.0
    %1109 = vmatpush1.msra.mxu0 0.0
    %1110 = vmatprep.subr.mxu0 0.0
    %1111 = vmatpush1.msra.mxu0 0.0
    %1112 = vmatprep.subr.mxu0 0.0
    %1113 = vmatpush1.msra.mxu0 %v335
    %1114 = vmatprep.subr.mxu0 0.0
    %1115 = vmatpush1.msra.mxu0 %v334
    %1116 = vmatprep.subr.mxu0 0.0
    %1117 = vmatpush1.msra.mxu0 %v333
    %1118 = vmatprep.subr.mxu0 0.0
    %1119 = vmatpush1.msra.mxu0 %v332
    %1120 = vmatprep.subr.mxu0 0.0
    %1121 = vmatpush2.msra.mxu0 0.0
    %1122 = vmatprep.subr.mxu0 0.0
    %1123 = vmatpush2.msra.mxu0 0.0
    %1124 = vmatprep.subr.mxu0 0.0
    %1125 = vmatpush2.msra.mxu0 0.0
    %1126 = vmatprep.subr.mxu0 0.0
    %1127 = vmatpush2.msra.mxu0 0.0
    %1128 = vmatprep.subr.mxu0 0.0
    %1129 = vmatpush2.msra.mxu0 0.0
    %1130 = vmatprep.subr.mxu0 0.0
    %1131 = vmatpush2.msra.mxu0 0.0
    %1132 = vmatprep.subr.mxu0 0.0
    %1133 = vmatpush2.msra.mxu0 0.0
    %1134 = vmatprep.subr.mxu0 0.0
    %1135 = vmatpush2.msra.mxu0 0.0
    %1136 = vmatprep.subr.mxu0 0.0
    %1137 = vmatpush2.msra.mxu0 0.0
    %1138 = vmatprep.subr.mxu0 0.0
    %1139 = vmatpush2.msra.mxu0 0.0
    %1140 = vmatprep.subr.mxu0 0.0
    %1141 = vmatpush2.msra.mxu0 0.0
    %1142 = vmatprep.subr.mxu0 0.0
    %1143 = vmatpush2.msra.mxu0 0.0
    %1144 = vmatprep.subr.mxu0 0.0
    %1145 = vmatpush2.msra.mxu0 0.0
    %1146 = vmatprep.subr.mxu0 0.0
    %1147 = vmatpush2.msra.mxu0 0.0
    %1148 = vmatprep.subr.mxu0 0.0
    %1149 = vmatpush2.msra.mxu0 0.0
    %1150 = vmatprep.subr.mxu0 0.0
    %1151 = vmatpush2.msra.mxu0 0.0
    %1152 = vmatprep.mubr.f32.mxu0 0.0
    %1153 = vmatmul.mubr.f32.gmra.mxu0 %v1086
    %v1154 = vpop.f32.mrf.mxu0
    %v1155 = vadd.f32 %v545, %v1154
    %v1156 = vpop.f32.mrf.mxu0
    %1157 = vdwg.mxu0
    %1158 = vmatprep.subr.mxu0 0.0
    %1159 = vmatpush1.msra.mxu0 0.0
    %1160 = vmatprep.subr.mxu0 0.0
    %1161 = vmatpush1.msra.mxu0 0.0
    %1162 = vmatprep.subr.mxu0 0.0
    %1163 = vmatpush1.msra.mxu0 0.0
    %1164 = vmatprep.subr.mxu0 0.0
    %1165 = vmatpush1.msra.mxu0 0.0
    %1166 = vmatprep.subr.mxu0 0.0
    %1167 = vmatpush1.msra.mxu0 0.0
    %1168 = vmatprep.subr.mxu0 0.0
    %1169 = vmatpush1.msra.mxu0 0.0
    %1170 = vmatprep.subr.mxu0 0.0
    %1171 = vmatpush1.msra.mxu0 0.0
    %1172 = vmatprep.subr.mxu0 0.0
    %1173 = vmatpush1.msra.mxu0 0.0
    %1174 = vmatprep.subr.mxu0 0.0
    %1175 = vmatpush1.msra.mxu0 0.0
    %1176 = vmatprep.subr.mxu0 0.0
    %1177 = vmatpush1.msra.mxu0 0.0
    %1178 = vmatprep.subr.mxu0 0.0
    %1179 = vmatpush1.msra.mxu0 0.0
    %1180 = vmatprep.subr.mxu0 0.0
    %1181 = vmatpush1.msra.mxu0 0.0
    %1182 = vmatprep.subr.mxu0 0.0
    %1183 = vmatpush1.msra.mxu0 %v326
    %1184 = vmatprep.subr.mxu0 0.0
    %1185 = vmatpush1.msra.mxu0 %v325
    %1186 = vmatprep.subr.mxu0 0.0
    %1187 = vmatpush1.msra.mxu0 %v324
    %1188 = vmatprep.subr.mxu0 0.0
    %1189 = vmatpush1.msra.mxu0 %v323
    %1190 = vmatprep.subr.mxu0 0.0
    %1191 = vmatpush2.msra.mxu0 0.0
    %1192 = vmatprep.subr.mxu0 0.0
    %1193 = vmatpush2.msra.mxu0 0.0
    %1194 = vmatprep.subr.mxu0 0.0
    %1195 = vmatpush2.msra.mxu0 0.0
    %1196 = vmatprep.subr.mxu0 0.0
    %1197 = vmatpush2.msra.mxu0 0.0
    %1198 = vmatprep.subr.mxu0 0.0
    %1199 = vmatpush2.msra.mxu0 0.0
    %1200 = vmatprep.subr.mxu0 0.0
    %1201 = vmatpush2.msra.mxu0 0.0
    %1202 = vmatprep.subr.mxu0 0.0
    %1203 = vmatpush2.msra.mxu0 0.0
    %1204 = vmatprep.subr.mxu0 0.0
    %1205 = vmatpush2.msra.mxu0 0.0
    %1206 = vmatprep.subr.mxu0 0.0
    %1207 = vmatpush2.msra.mxu0 0.0
    %1208 = vmatprep.subr.mxu0 0.0
    %1209 = vmatpush2.msra.mxu0 0.0
    %1210 = vmatprep.subr.mxu0 0.0
    %1211 = vmatpush2.msra.mxu0 0.0
    %1212 = vmatprep.subr.mxu0 0.0
    %1213 = vmatpush2.msra.mxu0 0.0
    %1214 = vmatprep.subr.mxu0 0.0
    %1215 = vmatpush2.msra.mxu0 0.0
    %1216 = vmatprep.subr.mxu0 0.0
    %1217 = vmatpush2.msra.mxu0 0.0
    %1218 = vmatprep.subr.mxu0 0.0
    %1219 = vmatpush2.msra.mxu0 0.0
    %1220 = vmatprep.subr.mxu0 0.0
    %1221 = vmatpush2.msra.mxu0 0.0
    %1222 = vmatprep.mubr.f32.mxu0 0.0
    %1223 = vmatmul.mubr.f32.gmra.mxu0 %v987
    %v1224 = vpop.f32.mrf.mxu0
    %v1225 = vadd.f32 0.0, %v1224
    %v1226 = vpop.f32.mrf.mxu0
    %1227 = vdwg.mxu0
    %v1228 = vadd.f32 %v450, %v1225
    %v1229 = vxor.u32 %v1228, 2147483648
    %v1230 = vmul.f32 %v1229, 1.442695
    %v1231 = vpow.pop %v1230
    %v1232 = vadd.f32 %v1231, 1.0
    %v1233 = vrcp.pop %v1232
    %v1234 = vmul.f32 1.0, %v1233
    %v1235 = vtanh.pop %v1228
    %v1236 = vmul.f32 %v1234, %v977
    %1238 = vrot.lane.b32.xlu0 %v1235, 64
    %v1239 = vpop.permute.xlu0 %1238
    %v1241 = vmul.f32 %v1234, %v1239
    %1243 = vrot.lane.b32.xlu0 %v1241, 32
    %v1244 = vpop.permute.xlu0 %1243
    %v1246 = vadd.f32 %v1236, %v1244
    %v1247 = vtanh.pop %v1246
    %1249 = vrot.lane.b32.xlu0 %v1247, 64
    %v1250 = vpop.permute.xlu0 %1249
    %v1252 = vmul.f32 %v1234, %v1250
    %1254 = vrot.lane.b32.xlu0 %v1252, 32
    %v1255 = vpop.permute.xlu0 %1254
    %v1256 = vsel %vm153, %v1255, 0
    %1258 = vmatprep.subr.mxu0 0.0
    %1259 = vmatpush1.msra.mxu0 0.0
    %1260 = vmatprep.subr.mxu0 0.0
    %1261 = vmatpush1.msra.mxu0 0.0
    %1262 = vmatprep.subr.mxu0 0.0
    %1263 = vmatpush1.msra.mxu0 0.0
    %1264 = vmatprep.subr.mxu0 0.0
    %1265 = vmatpush1.msra.mxu0 0.0
    %1266 = vmatprep.subr.mxu0 0.0
    %1267 = vmatpush1.msra.mxu0 0.0
    %1268 = vmatprep.subr.mxu0 0.0
    %1269 = vmatpush1.msra.mxu0 0.0
    %1270 = vmatprep.subr.mxu0 0.0
    %1271 = vmatpush1.msra.mxu0 0.0
    %1272 = vmatprep.subr.mxu0 0.0
    %1273 = vmatpush1.msra.mxu0 0.0
    %1274 = vmatprep.subr.mxu0 0.0
    %1275 = vmatpush1.msra.mxu0 0.0
    %1276 = vmatprep.subr.mxu0 0.0
    %1277 = vmatpush1.msra.mxu0 0.0
    %1278 = vmatprep.subr.mxu0 0.0
    %1279 = vmatpush1.msra.mxu0 0.0
    %1280 = vmatprep.subr.mxu0 0.0
    %1281 = vmatpush1.msra.mxu0 0.0
    %1282 = vmatprep.subr.mxu0 0.0
    %1283 = vmatpush1.msra.mxu0 %v331
    %1284 = vmatprep.subr.mxu0 0.0
    %1285 = vmatpush1.msra.mxu0 %v330
    %1286 = vmatprep.subr.mxu0 0.0
    %1287 = vmatpush1.msra.mxu0 %v329
    %1288 = vmatprep.subr.mxu0 0.0
    %1289 = vmatpush1.msra.mxu0 %v328
    %1290 = vmatprep.subr.mxu0 0.0
    %1291 = vmatpush2.msra.mxu0 0.0
    %1292 = vmatprep.subr.mxu0 0.0
    %1293 = vmatpush2.msra.mxu0 0.0
    %1294 = vmatprep.subr.mxu0 0.0
    %1295 = vmatpush2.msra.mxu0 0.0
    %1296 = vmatprep.subr.mxu0 0.0
    %1297 = vmatpush2.msra.mxu0 0.0
    %1298 = vmatprep.subr.mxu0 0.0
    %1299 = vmatpush2.msra.mxu0 0.0
    %1300 = vmatprep.subr.mxu0 0.0
    %1301 = vmatpush2.msra.mxu0 0.0
    %1302 = vmatprep.subr.mxu0 0.0
    %1303 = vmatpush2.msra.mxu0 0.0
    %1304 = vmatprep.subr.mxu0 0.0
    %1305 = vmatpush2.msra.mxu0 0.0
    %1306 = vmatprep.subr.mxu0 0.0
    %1307 = vmatpush2.msra.mxu0 0.0
    %1308 = vmatprep.subr.mxu0 0.0
    %1309 = vmatpush2.msra.mxu0 0.0
    %1310 = vmatprep.subr.mxu0 0.0
    %1311 = vmatpush2.msra.mxu0 0.0
    %1312 = vmatprep.subr.mxu0 0.0
    %1313 = vmatpush2.msra.mxu0 0.0
    %1314 = vmatprep.subr.mxu0 0.0
    %1315 = vmatpush2.msra.mxu0 0.0
    %1316 = vmatprep.subr.mxu0 0.0
    %1317 = vmatpush2.msra.mxu0 0.0
    %1318 = vmatprep.subr.mxu0 0.0
    %1319 = vmatpush2.msra.mxu0 0.0
    %1320 = vmatprep.subr.mxu0 0.0
    %1321 = vmatpush2.msra.mxu0 0.0
    %1322 = vmatprep.mubr.f32.mxu0 0.0
    %1323 = vmatmul.mubr.f32.gmra.mxu0 %v1256
    %v1324 = vpop.f32.mrf.mxu0
    %v1325 = vadd.f32 %v1155, %v1324
    %v1326 = vpop.f32.mrf.mxu0
    %1327 = vdwg.mxu0
    %v1328 = vxor.u32 %v1325, 2147483648
    %v1329 = vmul.f32 %v1328, 1.442695
    %v1330 = vpow.pop %v1329
    %v1331 = vadd.f32 %v1330, 1.0
    %v1332 = vrcp.pop %v1331
    %v1333 = vmul.f32 1.0, %v1332
    %v1334 = vtanh.pop %v1325
    %v1335 = vmul.f32 %v1333, %v1076
    %1337 = vrot.lane.b32.xlu0 %v1334, 64
    %v1338 = vpop.permute.xlu0 %1337
    %v1340 = vmul.f32 %v1333, %v1338
    %1342 = vrot.lane.b32.xlu0 %v1340, 32
    %v1343 = vpop.permute.xlu0 %1342
    %v1345 = vadd.f32 %v1335, %v1343
    %v1346 = vtanh.pop %v1345
    %1348 = vrot.lane.b32.xlu0 %v1346, 64
    %v1349 = vpop.permute.xlu0 %1348
    %v1351 = vmul.f32 %v1333, %v1349
    %1353 = vrot.lane.b32.xlu0 %v1351, 32
    %v1354 = vpop.permute.xlu0 %1353
    %v1355 = vsel %vm153, %v1354, 0
    %1357 = vmatprep.subr.mxu0 0.0
    %1358 = vmatpush1.msra.mxu0 0.0
    %1359 = vmatprep.subr.mxu0 0.0
    %1360 = vmatpush1.msra.mxu0 0.0
    %1361 = vmatprep.subr.mxu0 0.0
    %1362 = vmatpush1.msra.mxu0 0.0
    %1363 = vmatprep.subr.mxu0 0.0
    %1364 = vmatpush1.msra.mxu0 0.0
    %1365 = vmatprep.subr.mxu0 0.0
    %1366 = vmatpush1.msra.mxu0 0.0
    %1367 = vmatprep.subr.mxu0 0.0
    %1368 = vmatpush1.msra.mxu0 0.0
    %1369 = vmatprep.subr.mxu0 0.0
    %1370 = vmatpush1.msra.mxu0 0.0
    %1371 = vmatprep.subr.mxu0 0.0
    %1372 = vmatpush1.msra.mxu0 0.0
    %1373 = vmatprep.subr.mxu0 0.0
    %1374 = vmatpush1.msra.mxu0 0.0
    %1375 = vmatprep.subr.mxu0 0.0
    %1376 = vmatpush1.msra.mxu0 0.0
    %1377 = vmatprep.subr.mxu0 0.0
    %1378 = vmatpush1.msra.mxu0 0.0
    %1379 = vmatprep.subr.mxu0 0.0
    %1380 = vmatpush1.msra.mxu0 0.0
    %1381 = vmatprep.subr.mxu0 0.0
    %1382 = vmatpush1.msra.mxu0 %v335
    %1383 = vmatprep.subr.mxu0 0.0
    %1384 = vmatpush1.msra.mxu0 %v334
    %1385 = vmatprep.subr.mxu0 0.0
    %1386 = vmatpush1.msra.mxu0 %v333
    %1387 = vmatprep.subr.mxu0 0.0
    %1388 = vmatpush1.msra.mxu0 %v332
    %1389 = vmatprep.subr.mxu0 0.0
    %1390 = vmatpush2.msra.mxu0 0.0
    %1391 = vmatprep.subr.mxu0 0.0
    %1392 = vmatpush2.msra.mxu0 0.0
    %1393 = vmatprep.subr.mxu0 0.0
    %1394 = vmatpush2.msra.mxu0 0.0
    %1395 = vmatprep.subr.mxu0 0.0
    %1396 = vmatpush2.msra.mxu0 0.0
    %1397 = vmatprep.subr.mxu0 0.0
    %1398 = vmatpush2.msra.mxu0 0.0
    %1399 = vmatprep.subr.mxu0 0.0
    %1400 = vmatpush2.msra.mxu0 0.0
    %1401 = vmatprep.subr.mxu0 0.0
    %1402 = vmatpush2.msra.mxu0 0.0
    %1403 = vmatprep.subr.mxu0 0.0
    %1404 = vmatpush2.msra.mxu0 0.0
    %1405 = vmatprep.subr.mxu0 0.0
    %1406 = vmatpush2.msra.mxu0 0.0
    %1407 = vmatprep.subr.mxu0 0.0
    %1408 = vmatpush2.msra.mxu0 0.0
    %1409 = vmatprep.subr.mxu0 0.0
    %1410 = vmatpush2.msra.mxu0 0.0
    %1411 = vmatprep.subr.mxu0 0.0
    %1412 = vmatpush2.msra.mxu0 0.0
    %1413 = vmatprep.subr.mxu0 0.0
    %1414 = vmatpush2.msra.mxu0 0.0
    %1415 = vmatprep.subr.mxu0 0.0
    %1416 = vmatpush2.msra.mxu0 0.0
    %1417 = vmatprep.subr.mxu0 0.0
    %1418 = vmatpush2.msra.mxu0 0.0
    %1419 = vmatprep.subr.mxu0 0.0
    %1420 = vmatpush2.msra.mxu0 0.0
    %1421 = vmatprep.mubr.f32.mxu0 0.0
    %1422 = vmatmul.mubr.f32.gmra.mxu0 %v1355
    %v1423 = vpop.f32.mrf.mxu0
    %v1424 = vadd.f32 %v545, %v1423
    %v1425 = vpop.f32.mrf.mxu0
    %1426 = vdwg.mxu0
    %1427 = vmatprep.subr.mxu0 0.0
    %1428 = vmatpush1.msra.mxu0 0.0
    %1429 = vmatprep.subr.mxu0 0.0
    %1430 = vmatpush1.msra.mxu0 0.0
    %1431 = vmatprep.subr.mxu0 0.0
    %1432 = vmatpush1.msra.mxu0 0.0
    %1433 = vmatprep.subr.mxu0 0.0
    %1434 = vmatpush1.msra.mxu0 0.0
    %1435 = vmatprep.subr.mxu0 0.0
    %1436 = vmatpush1.msra.mxu0 0.0
    %1437 = vmatprep.subr.mxu0 0.0
    %1438 = vmatpush1.msra.mxu0 0.0
    %1439 = vmatprep.subr.mxu0 0.0
    %1440 = vmatpush1.msra.mxu0 0.0
    %1441 = vmatprep.subr.mxu0 0.0
    %1442 = vmatpush1.msra.mxu0 0.0
    %1443 = vmatprep.subr.mxu0 0.0
    %1444 = vmatpush1.msra.mxu0 0.0
    %1445 = vmatprep.subr.mxu0 0.0
    %1446 = vmatpush1.msra.mxu0 0.0
    %1447 = vmatprep.subr.mxu0 0.0
    %1448 = vmatpush1.msra.mxu0 0.0
    %1449 = vmatprep.subr.mxu0 0.0
    %1450 = vmatpush1.msra.mxu0 0.0
    %1451 = vmatprep.subr.mxu0 0.0
    %1452 = vmatpush1.msra.mxu0 %v326
    %1453 = vmatprep.subr.mxu0 0.0
    %1454 = vmatpush1.msra.mxu0 %v325
    %1455 = vmatprep.subr.mxu0 0.0
    %1456 = vmatpush1.msra.mxu0 %v324
    %1457 = vmatprep.subr.mxu0 0.0
    %1458 = vmatpush1.msra.mxu0 %v323
    %1459 = vmatprep.subr.mxu0 0.0
    %1460 = vmatpush2.msra.mxu0 0.0
    %1461 = vmatprep.subr.mxu0 0.0
    %1462 = vmatpush2.msra.mxu0 0.0
    %1463 = vmatprep.subr.mxu0 0.0
    %1464 = vmatpush2.msra.mxu0 0.0
    %1465 = vmatprep.subr.mxu0 0.0
    %1466 = vmatpush2.msra.mxu0 0.0
    %1467 = vmatprep.subr.mxu0 0.0
    %1468 = vmatpush2.msra.mxu0 0.0
    %1469 = vmatprep.subr.mxu0 0.0
    %1470 = vmatpush2.msra.mxu0 0.0
    %1471 = vmatprep.subr.mxu0 0.0
    %1472 = vmatpush2.msra.mxu0 0.0
    %1473 = vmatprep.subr.mxu0 0.0
    %1474 = vmatpush2.msra.mxu0 0.0
    %1475 = vmatprep.subr.mxu0 0.0
    %1476 = vmatpush2.msra.mxu0 0.0
    %1477 = vmatprep.subr.mxu0 0.0
    %1478 = vmatpush2.msra.mxu0 0.0
    %1479 = vmatprep.subr.mxu0 0.0
    %1480 = vmatpush2.msra.mxu0 0.0
    %1481 = vmatprep.subr.mxu0 0.0
    %1482 = vmatpush2.msra.mxu0 0.0
    %1483 = vmatprep.subr.mxu0 0.0
    %1484 = vmatpush2.msra.mxu0 0.0
    %1485 = vmatprep.subr.mxu0 0.0
    %1486 = vmatpush2.msra.mxu0 0.0
    %1487 = vmatprep.subr.mxu0 0.0
    %1488 = vmatpush2.msra.mxu0 0.0
    %1489 = vmatprep.subr.mxu0 0.0
    %1490 = vmatpush2.msra.mxu0 0.0
    %1491 = vmatprep.mubr.f32.mxu0 0.0
    %1492 = vmatmul.mubr.f32.gmra.mxu0 %v1256
    %v1493 = vpop.f32.mrf.mxu0
    %v1494 = vadd.f32 0.0, %v1493
    %v1495 = vpop.f32.mrf.mxu0
    %1496 = vdwg.mxu0
    %v1497 = vadd.f32 %v498, %v1494
    %v1498 = vxor.u32 %v1497, 2147483648
    %v1499 = vmul.f32 %v1498, 1.442695
    %v1500 = vpow.pop %v1499
    %v1501 = vadd.f32 %v1500, 1.0
    %v1502 = vrcp.pop %v1501
    %v1503 = vmul.f32 1.0, %v1502
    %v1504 = vtanh.pop %v1497
    %v1505 = vmul.f32 %v1503, %v1246
    %1507 = vrot.lane.b32.xlu0 %v1504, 64
    %v1508 = vpop.permute.xlu0 %1507
    %v1510 = vmul.f32 %v1503, %v1508
    %1512 = vrot.lane.b32.xlu0 %v1510, 32
    %v1513 = vpop.permute.xlu0 %1512
    %v1515 = vadd.f32 %v1505, %v1513
    %v1516 = vtanh.pop %v1515
    %1518 = vrot.lane.b32.xlu0 %v1516, 64
    %v1519 = vpop.permute.xlu0 %1518
    %v1521 = vmul.f32 %v1503, %v1519
    %1523 = vrot.lane.b32.xlu0 %v1521, 32
    %v1524 = vpop.permute.xlu0 %1523
    %v1525 = vsel %vm153, %v1524, 0
    %1527 = vmatprep.subr.mxu0 0.0
    %1528 = vmatpush1.msra.mxu0 0.0
    %1529 = vmatprep.subr.mxu0 0.0
    %1530 = vmatpush1.msra.mxu0 0.0
    %1531 = vmatprep.subr.mxu0 0.0
    %1532 = vmatpush1.msra.mxu0 0.0
    %1533 = vmatprep.subr.mxu0 0.0
    %1534 = vmatpush1.msra.mxu0 0.0
    %1535 = vmatprep.subr.mxu0 0.0
    %1536 = vmatpush1.msra.mxu0 0.0
    %1537 = vmatprep.subr.mxu0 0.0
    %1538 = vmatpush1.msra.mxu0 0.0
    %1539 = vmatprep.subr.mxu0 0.0
    %1540 = vmatpush1.msra.mxu0 0.0
    %1541 = vmatprep.subr.mxu0 0.0
    %1542 = vmatpush1.msra.mxu0 0.0
    %1543 = vmatprep.subr.mxu0 0.0
    %1544 = vmatpush1.msra.mxu0 0.0
    %1545 = vmatprep.subr.mxu0 0.0
    %1546 = vmatpush1.msra.mxu0 0.0
    %1547 = vmatprep.subr.mxu0 0.0
    %1548 = vmatpush1.msra.mxu0 0.0
    %1549 = vmatprep.subr.mxu0 0.0
    %1550 = vmatpush1.msra.mxu0 0.0
    %1551 = vmatprep.subr.mxu0 0.0
    %1552 = vmatpush1.msra.mxu0 %v331
    %1553 = vmatprep.subr.mxu0 0.0
    %1554 = vmatpush1.msra.mxu0 %v330
    %1555 = vmatprep.subr.mxu0 0.0
    %1556 = vmatpush1.msra.mxu0 %v329
    %1557 = vmatprep.subr.mxu0 0.0
    %1558 = vmatpush1.msra.mxu0 %v328
    %1559 = vmatprep.subr.mxu0 0.0
    %1560 = vmatpush2.msra.mxu0 0.0
    %1561 = vmatprep.subr.mxu0 0.0
    %1562 = vmatpush2.msra.mxu0 0.0
    %1563 = vmatprep.subr.mxu0 0.0
    %1564 = vmatpush2.msra.mxu0 0.0
    %1565 = vmatprep.subr.mxu0 0.0
    %1566 = vmatpush2.msra.mxu0 0.0
    %1567 = vmatprep.subr.mxu0 0.0
    %1568 = vmatpush2.msra.mxu0 0.0
    %1569 = vmatprep.subr.mxu0 0.0
    %1570 = vmatpush2.msra.mxu0 0.0
    %1571 = vmatprep.subr.mxu0 0.0
    %1572 = vmatpush2.msra.mxu0 0.0
    %1573 = vmatprep.subr.mxu0 0.0
    %1574 = vmatpush2.msra.mxu0 0.0
    %1575 = vmatprep.subr.mxu0 0.0
    %1576 = vmatpush2.msra.mxu0 0.0
    %1577 = vmatprep.subr.mxu0 0.0
    %1578 = vmatpush2.msra.mxu0 0.0
    %1579 = vmatprep.subr.mxu0 0.0
    %1580 = vmatpush2.msra.mxu0 0.0
    %1581 = vmatprep.subr.mxu0 0.0
    %1582 = vmatpush2.msra.mxu0 0.0
    %1583 = vmatprep.subr.mxu0 0.0
    %1584 = vmatpush2.msra.mxu0 0.0
    %1585 = vmatprep.subr.mxu0 0.0
    %1586 = vmatpush2.msra.mxu0 0.0
    %1587 = vmatprep.subr.mxu0 0.0
    %1588 = vmatpush2.msra.mxu0 0.0
    %1589 = vmatprep.subr.mxu0 0.0
    %1590 = vmatpush2.msra.mxu0 0.0
    %1591 = vmatprep.mubr.f32.mxu0 0.0
    %1592 = vmatmul.mubr.f32.gmra.mxu0 %v1525
    %v1593 = vpop.f32.mrf.mxu0
    %v1594 = vadd.f32 %v1424, %v1593
    %v1595 = vpop.f32.mrf.mxu0
    %1596 = vdwg.mxu0
    %v1597 = vxor.u32 %v1594, 2147483648
    %v1598 = vmul.f32 %v1597, 1.442695
    %v1599 = vpow.pop %v1598
    %v1600 = vadd.f32 %v1599, 1.0
    %v1601 = vrcp.pop %v1600
    %v1602 = vmul.f32 1.0, %v1601
    %v1603 = vtanh.pop %v1594
    %v1604 = vmul.f32 %v1602, %v1345
    %1606 = vrot.lane.b32.xlu0 %v1603, 64
    %v1607 = vpop.permute.xlu0 %1606
    %v1609 = vmul.f32 %v1602, %v1607
    %1611 = vrot.lane.b32.xlu0 %v1609, 32
    %v1612 = vpop.permute.xlu0 %1611
    %v1614 = vadd.f32 %v1604, %v1612
    %v1615 = vtanh.pop %v1614
    %1617 = vrot.lane.b32.xlu0 %v1615, 64
    %v1618 = vpop.permute.xlu0 %1617
    %v1620 = vmul.f32 %v1602, %v1618
    %1622 = vrot.lane.b32.xlu0 %v1620, 32
    %v1623 = vpop.permute.xlu0 %1622
    %vm1625 = vcmask 254976
    %1626 = vst.msk [vmem:[#allocation14] sm:$0x3] %vm1625, %v1623
    %v1627 = vsel %vm153, %v1623, 0
    %1629 = vmatprep.subr.mxu0 0.0
    %1630 = vmatpush1.msra.mxu0 0.0
    %1631 = vmatprep.subr.mxu0 0.0
    %1632 = vmatpush1.msra.mxu0 0.0
    %1633 = vmatprep.subr.mxu0 0.0
    %1634 = vmatpush1.msra.mxu0 0.0
    %1635 = vmatprep.subr.mxu0 0.0
    %1636 = vmatpush1.msra.mxu0 0.0
    %1637 = vmatprep.subr.mxu0 0.0
    %1638 = vmatpush1.msra.mxu0 0.0
    %1639 = vmatprep.subr.mxu0 0.0
    %1640 = vmatpush1.msra.mxu0 0.0
    %1641 = vmatprep.subr.mxu0 0.0
    %1642 = vmatpush1.msra.mxu0 0.0
    %1643 = vmatprep.subr.mxu0 0.0
    %1644 = vmatpush1.msra.mxu0 0.0
    %1645 = vmatprep.subr.mxu0 0.0
    %1646 = vmatpush1.msra.mxu0 0.0
    %1647 = vmatprep.subr.mxu0 0.0
    %1648 = vmatpush1.msra.mxu0 0.0
    %1649 = vmatprep.subr.mxu0 0.0
    %1650 = vmatpush1.msra.mxu0 0.0
    %1651 = vmatprep.subr.mxu0 0.0
    %1652 = vmatpush1.msra.mxu0 0.0
    %1653 = vmatprep.subr.mxu0 0.0
    %1654 = vmatpush1.msra.mxu0 %v335
    %1655 = vmatprep.subr.mxu0 0.0
    %1656 = vmatpush1.msra.mxu0 %v334
    %1657 = vmatprep.subr.mxu0 0.0
    %1658 = vmatpush1.msra.mxu0 %v333
    %1659 = vmatprep.subr.mxu0 0.0
    %1660 = vmatpush1.msra.mxu0 %v332
    %1661 = vmatprep.subr.mxu0 0.0
    %1662 = vmatpush2.msra.mxu0 0.0
    %1663 = vmatprep.subr.mxu0 0.0
    %1664 = vmatpush2.msra.mxu0 0.0
    %1665 = vmatprep.subr.mxu0 0.0
    %1666 = vmatpush2.msra.mxu0 0.0
    %1667 = vmatprep.subr.mxu0 0.0
    %1668 = vmatpush2.msra.mxu0 0.0
    %1669 = vmatprep.subr.mxu0 0.0
    %1670 = vmatpush2.msra.mxu0 0.0
    %1671 = vmatprep.subr.mxu0 0.0
    %1672 = vmatpush2.msra.mxu0 0.0
    %1673 = vmatprep.subr.mxu0 0.0
    %1674 = vmatpush2.msra.mxu0 0.0
    %1675 = vmatprep.subr.mxu0 0.0
    %1676 = vmatpush2.msra.mxu0 0.0
    %1677 = vmatprep.subr.mxu0 0.0
    %1678 = vmatpush2.msra.mxu0 0.0
    %1679 = vmatprep.subr.mxu0 0.0
    %1680 = vmatpush2.msra.mxu0 0.0
    %1681 = vmatprep.subr.mxu0 0.0
    %1682 = vmatpush2.msra.mxu0 0.0
    %1683 = vmatprep.subr.mxu0 0.0
    %1684 = vmatpush2.msra.mxu0 0.0
    %1685 = vmatprep.subr.mxu0 0.0
    %1686 = vmatpush2.msra.mxu0 0.0
    %1687 = vmatprep.subr.mxu0 0.0
    %1688 = vmatpush2.msra.mxu0 0.0
    %1689 = vmatprep.subr.mxu0 0.0
    %1690 = vmatpush2.msra.mxu0 0.0
    %1691 = vmatprep.subr.mxu0 0.0
    %1692 = vmatpush2.msra.mxu0 0.0
    %1693 = vmatprep.mubr.f32.mxu0 0.0
    %1694 = vmatmul.mubr.f32.gmra.mxu0 %v1627
    %v1695 = vpop.f32.mrf.mxu0
    %v1696 = vadd.f32 %v545, %v1695
    %v1697 = vpop.f32.mrf.mxu0
    %1698 = vdwg.mxu0
    %1699 = vmatprep.subr.mxu0 0.0
    %1700 = vmatpush1.msra.mxu0 0.0
    %1701 = vmatprep.subr.mxu0 0.0
    %1702 = vmatpush1.msra.mxu0 0.0
    %1703 = vmatprep.subr.mxu0 0.0
    %1704 = vmatpush1.msra.mxu0 0.0
    %1705 = vmatprep.subr.mxu0 0.0
    %1706 = vmatpush1.msra.mxu0 0.0
    %1707 = vmatprep.subr.mxu0 0.0
    %1708 = vmatpush1.msra.mxu0 0.0
    %1709 = vmatprep.subr.mxu0 0.0
    %1710 = vmatpush1.msra.mxu0 0.0
    %1711 = vmatprep.subr.mxu0 0.0
    %1712 = vmatpush1.msra.mxu0 0.0
    %1713 = vmatprep.subr.mxu0 0.0
    %1714 = vmatpush1.msra.mxu0 0.0
    %1715 = vmatprep.subr.mxu0 0.0
    %1716 = vmatpush1.msra.mxu0 0.0
    %1717 = vmatprep.subr.mxu0 0.0
    %1718 = vmatpush1.msra.mxu0 0.0
    %1719 = vmatprep.subr.mxu0 0.0
    %1720 = vmatpush1.msra.mxu0 0.0
    %1721 = vmatprep.subr.mxu0 0.0
    %1722 = vmatpush1.msra.mxu0 0.0
    %1723 = vmatprep.subr.mxu0 0.0
    %1724 = vmatpush1.msra.mxu0 %v326
    %1725 = vmatprep.subr.mxu0 0.0
    %1726 = vmatpush1.msra.mxu0 %v325
    %1727 = vmatprep.subr.mxu0 0.0
    %1728 = vmatpush1.msra.mxu0 %v324
    %1729 = vmatprep.subr.mxu0 0.0
    %1730 = vmatpush1.msra.mxu0 %v323
    %1731 = vmatprep.subr.mxu0 0.0
    %1732 = vmatpush2.msra.mxu0 0.0
    %1733 = vmatprep.subr.mxu0 0.0
    %1734 = vmatpush2.msra.mxu0 0.0
    %1735 = vmatprep.subr.mxu0 0.0
    %1736 = vmatpush2.msra.mxu0 0.0
    %1737 = vmatprep.subr.mxu0 0.0
    %1738 = vmatpush2.msra.mxu0 0.0
    %1739 = vmatprep.subr.mxu0 0.0
    %1740 = vmatpush2.msra.mxu0 0.0
    %1741 = vmatprep.subr.mxu0 0.0
    %1742 = vmatpush2.msra.mxu0 0.0
    %1743 = vmatprep.subr.mxu0 0.0
    %1744 = vmatpush2.msra.mxu0 0.0
    %1745 = vmatprep.subr.mxu0 0.0
    %1746 = vmatpush2.msra.mxu0 0.0
    %1747 = vmatprep.subr.mxu0 0.0
    %1748 = vmatpush2.msra.mxu0 0.0
    %1749 = vmatprep.subr.mxu0 0.0
    %1750 = vmatpush2.msra.mxu0 0.0
    %1751 = vmatprep.subr.mxu0 0.0
    %1752 = vmatpush2.msra.mxu0 0.0
    %1753 = vmatprep.subr.mxu0 0.0
    %1754 = vmatpush2.msra.mxu0 0.0
    %1755 = vmatprep.subr.mxu0 0.0
    %1756 = vmatpush2.msra.mxu0 0.0
    %1757 = vmatprep.subr.mxu0 0.0
    %1758 = vmatpush2.msra.mxu0 0.0
    %1759 = vmatprep.subr.mxu0 0.0
    %1760 = vmatpush2.msra.mxu0 0.0
    %1761 = vmatprep.subr.mxu0 0.0
    %1762 = vmatpush2.msra.mxu0 0.0
    %1763 = vmatprep.mubr.f32.mxu0 0.0
    %1764 = vmatmul.mubr.f32.gmra.mxu0 %v1525
    %v1765 = vpop.f32.mrf.mxu0
    %v1766 = vadd.f32 0.0, %v1765
    %v1767 = vpop.f32.mrf.mxu0
    %1768 = vdwg.mxu0
    %v1769 = vadd.f32 %v360, %v1766
    %v1770 = vxor.u32 %v1769, 2147483648
    %v1771 = vmul.f32 %v1770, 1.442695
    %v1772 = vpow.pop %v1771
    %v1773 = vadd.f32 %v1772, 1.0
    %v1774 = vrcp.pop %v1773
    %v1775 = vmul.f32 1.0, %v1774
    %v1776 = vtanh.pop %v1769
    %v1777 = vmul.f32 %v1775, %v1515
    %1779 = vrot.lane.b32.xlu0 %v1776, 64
    %v1780 = vpop.permute.xlu0 %1779
    %v1782 = vmul.f32 %v1775, %v1780
    %1784 = vrot.lane.b32.xlu0 %v1782, 32
    %v1785 = vpop.permute.xlu0 %1784
    %v1787 = vadd.f32 %v1777, %v1785
    %v1788 = vtanh.pop %v1787
    %1790 = vrot.lane.b32.xlu0 %v1788, 64
    %v1791 = vpop.permute.xlu0 %1790
    %v1793 = vmul.f32 %v1775, %v1791
    %1795 = vrot.lane.b32.xlu0 %v1793, 32
    %v1796 = vpop.permute.xlu0 %1795
    %v1797 = vsel %vm153, %v1796, 0
    %1799 = vmatprep.subr.mxu0 0.0
    %1800 = vmatpush1.msra.mxu0 0.0
    %1801 = vmatprep.subr.mxu0 0.0
    %1802 = vmatpush1.msra.mxu0 0.0
    %1803 = vmatprep.subr.mxu0 0.0
    %1804 = vmatpush1.msra.mxu0 0.0
    %1805 = vmatprep.subr.mxu0 0.0
    %1806 = vmatpush1.msra.mxu0 0.0
    %1807 = vmatprep.subr.mxu0 0.0
    %1808 = vmatpush1.msra.mxu0 0.0
    %1809 = vmatprep.subr.mxu0 0.0
    %1810 = vmatpush1.msra.mxu0 0.0
    %1811 = vmatprep.subr.mxu0 0.0
    %1812 = vmatpush1.msra.mxu0 0.0
    %1813 = vmatprep.subr.mxu0 0.0
    %1814 = vmatpush1.msra.mxu0 0.0
    %1815 = vmatprep.subr.mxu0 0.0
    %1816 = vmatpush1.msra.mxu0 0.0
    %1817 = vmatprep.subr.mxu0 0.0
    %1818 = vmatpush1.msra.mxu0 0.0
    %1819 = vmatprep.subr.mxu0 0.0
    %1820 = vmatpush1.msra.mxu0 0.0
    %1821 = vmatprep.subr.mxu0 0.0
    %1822 = vmatpush1.msra.mxu0 0.0
    %1823 = vmatprep.subr.mxu0 0.0
    %1824 = vmatpush1.msra.mxu0 %v331
    %1825 = vmatprep.subr.mxu0 0.0
    %1826 = vmatpush1.msra.mxu0 %v330
    %1827 = vmatprep.subr.mxu0 0.0
    %1828 = vmatpush1.msra.mxu0 %v329
    %1829 = vmatprep.subr.mxu0 0.0
    %1830 = vmatpush1.msra.mxu0 %v328
    %1831 = vmatprep.subr.mxu0 0.0
    %1832 = vmatpush2.msra.mxu0 0.0
    %1833 = vmatprep.subr.mxu0 0.0
    %1834 = vmatpush2.msra.mxu0 0.0
    %1835 = vmatprep.subr.mxu0 0.0
    %1836 = vmatpush2.msra.mxu0 0.0
    %1837 = vmatprep.subr.mxu0 0.0
    %1838 = vmatpush2.msra.mxu0 0.0
    %1839 = vmatprep.subr.mxu0 0.0
    %1840 = vmatpush2.msra.mxu0 0.0
    %1841 = vmatprep.subr.mxu0 0.0
    %1842 = vmatpush2.msra.mxu0 0.0
    %1843 = vmatprep.subr.mxu0 0.0
    %1844 = vmatpush2.msra.mxu0 0.0
    %1845 = vmatprep.subr.mxu0 0.0
    %1846 = vmatpush2.msra.mxu0 0.0
    %1847 = vmatprep.subr.mxu0 0.0
    %1848 = vmatpush2.msra.mxu0 0.0
    %1849 = vmatprep.subr.mxu0 0.0
    %1850 = vmatpush2.msra.mxu0 0.0
    %1851 = vmatprep.subr.mxu0 0.0
    %1852 = vmatpush2.msra.mxu0 0.0
    %1853 = vmatprep.subr.mxu0 0.0
    %1854 = vmatpush2.msra.mxu0 0.0
    %1855 = vmatprep.subr.mxu0 0.0
    %1856 = vmatpush2.msra.mxu0 0.0
    %1857 = vmatprep.subr.mxu0 0.0
    %1858 = vmatpush2.msra.mxu0 0.0
    %1859 = vmatprep.subr.mxu0 0.0
    %1860 = vmatpush2.msra.mxu0 0.0
    %1861 = vmatprep.subr.mxu0 0.0
    %1862 = vmatpush2.msra.mxu0 0.0
    %1863 = vmatprep.mubr.f32.mxu0 0.0
    %1864 = vmatmul.mubr.f32.gmra.mxu0 %v1797
    %v1865 = vpop.f32.mrf.mxu0
    %v1866 = vadd.f32 %v1696, %v1865
    %v1867 = vpop.f32.mrf.mxu0
    %1868 = vdwg.mxu0
    %v1869 = vxor.u32 %v1866, 2147483648
    %v1870 = vmul.f32 %v1869, 1.442695
    %v1871 = vpow.pop %v1870
    %v1872 = vadd.f32 %v1871, 1.0
    %v1873 = vrcp.pop %v1872
    %v1874 = vmul.f32 1.0, %v1873
    %v1875 = vtanh.pop %v1866
    %v1876 = vmul.f32 %v1874, %v1614
    %1878 = vrot.lane.b32.xlu0 %v1875, 64
    %v1879 = vpop.permute.xlu0 %1878
    %v1881 = vmul.f32 %v1874, %v1879
    %1883 = vrot.lane.b32.xlu0 %v1881, 32
    %v1884 = vpop.permute.xlu0 %1883
    %v1886 = vadd.f32 %v1876, %v1884
    %v1887 = vtanh.pop %v1886
    %1889 = vrot.lane.b32.xlu0 %v1887, 64
    %v1890 = vpop.permute.xlu0 %1889
    %v1892 = vmul.f32 %v1874, %v1890
    %1894 = vrot.lane.b32.xlu0 %v1892, 32
    %v1895 = vpop.permute.xlu0 %1894
    %v1896 = vsel %vm153, %v1895, 0
    %1898 = vmatprep.subr.mxu0 0.0
    %1899 = vmatpush1.msra.mxu0 0.0
    %1900 = vmatprep.subr.mxu0 0.0
    %1901 = vmatpush1.msra.mxu0 0.0
    %1902 = vmatprep.subr.mxu0 0.0
    %1903 = vmatpush1.msra.mxu0 0.0
    %1904 = vmatprep.subr.mxu0 0.0
    %1905 = vmatpush1.msra.mxu0 0.0
    %1906 = vmatprep.subr.mxu0 0.0
    %1907 = vmatpush1.msra.mxu0 0.0
    %1908 = vmatprep.subr.mxu0 0.0
    %1909 = vmatpush1.msra.mxu0 0.0
    %1910 = vmatprep.subr.mxu0 0.0
    %1911 = vmatpush1.msra.mxu0 0.0
    %1912 = vmatprep.subr.mxu0 0.0
    %1913 = vmatpush1.msra.mxu0 0.0
    %1914 = vmatprep.subr.mxu0 0.0
    %1915 = vmatpush1.msra.mxu0 0.0
    %1916 = vmatprep.subr.mxu0 0.0
    %1917 = vmatpush1.msra.mxu0 0.0
    %1918 = vmatprep.subr.mxu0 0.0
    %1919 = vmatpush1.msra.mxu0 0.0
    %1920 = vmatprep.subr.mxu0 0.0
    %1921 = vmatpush1.msra.mxu0 0.0
    %1922 = vmatprep.subr.mxu0 0.0
    %1923 = vmatpush1.msra.mxu0 %v335
    %1924 = vmatprep.subr.mxu0 0.0
    %1925 = vmatpush1.msra.mxu0 %v334
    %1926 = vmatprep.subr.mxu0 0.0
    %1927 = vmatpush1.msra.mxu0 %v333
    %1928 = vmatprep.subr.mxu0 0.0
    %1929 = vmatpush1.msra.mxu0 %v332
    %1930 = vmatprep.subr.mxu0 0.0
    %1931 = vmatpush2.msra.mxu0 0.0
    %1932 = vmatprep.subr.mxu0 0.0
    %1933 = vmatpush2.msra.mxu0 0.0
    %1934 = vmatprep.subr.mxu0 0.0
    %1935 = vmatpush2.msra.mxu0 0.0
    %1936 = vmatprep.subr.mxu0 0.0
    %1937 = vmatpush2.msra.mxu0 0.0
    %1938 = vmatprep.subr.mxu0 0.0
    %1939 = vmatpush2.msra.mxu0 0.0
    %1940 = vmatprep.subr.mxu0 0.0
    %1941 = vmatpush2.msra.mxu0 0.0
    %1942 = vmatprep.subr.mxu0 0.0
    %1943 = vmatpush2.msra.mxu0 0.0
    %1944 = vmatprep.subr.mxu0 0.0
    %1945 = vmatpush2.msra.mxu0 0.0
    %1946 = vmatprep.subr.mxu0 0.0
    %1947 = vmatpush2.msra.mxu0 0.0
    %1948 = vmatprep.subr.mxu0 0.0
    %1949 = vmatpush2.msra.mxu0 0.0
    %1950 = vmatprep.subr.mxu0 0.0
    %1951 = vmatpush2.msra.mxu0 0.0
    %1952 = vmatprep.subr.mxu0 0.0
    %1953 = vmatpush2.msra.mxu0 0.0
    %1954 = vmatprep.subr.mxu0 0.0
    %1955 = vmatpush2.msra.mxu0 0.0
    %1956 = vmatprep.subr.mxu0 0.0
    %1957 = vmatpush2.msra.mxu0 0.0
    %1958 = vmatprep.subr.mxu0 0.0
    %1959 = vmatpush2.msra.mxu0 0.0
    %1960 = vmatprep.subr.mxu0 0.0
    %1961 = vmatpush2.msra.mxu0 0.0
    %1962 = vmatprep.mubr.f32.mxu0 0.0
    %1963 = vmatmul.mubr.f32.gmra.mxu0 %v1896
    %v1964 = vpop.f32.mrf.mxu0
    %v1965 = vadd.f32 %v545, %v1964
    %v1966 = vpop.f32.mrf.mxu0
    %1967 = vdwg.mxu0
    %1968 = vmatprep.subr.mxu0 0.0
    %1969 = vmatpush1.msra.mxu0 0.0
    %1970 = vmatprep.subr.mxu0 0.0
    %1971 = vmatpush1.msra.mxu0 0.0
    %1972 = vmatprep.subr.mxu0 0.0
    %1973 = vmatpush1.msra.mxu0 0.0
    %1974 = vmatprep.subr.mxu0 0.0
    %1975 = vmatpush1.msra.mxu0 0.0
    %1976 = vmatprep.subr.mxu0 0.0
    %1977 = vmatpush1.msra.mxu0 0.0
    %1978 = vmatprep.subr.mxu0 0.0
    %1979 = vmatpush1.msra.mxu0 0.0
    %1980 = vmatprep.subr.mxu0 0.0
    %1981 = vmatpush1.msra.mxu0 0.0
    %1982 = vmatprep.subr.mxu0 0.0
    %1983 = vmatpush1.msra.mxu0 0.0
    %1984 = vmatprep.subr.mxu0 0.0
    %1985 = vmatpush1.msra.mxu0 0.0
    %1986 = vmatprep.subr.mxu0 0.0
    %1987 = vmatpush1.msra.mxu0 0.0
    %1988 = vmatprep.subr.mxu0 0.0
    %1989 = vmatpush1.msra.mxu0 0.0
    %1990 = vmatprep.subr.mxu0 0.0
    %1991 = vmatpush1.msra.mxu0 0.0
    %1992 = vmatprep.subr.mxu0 0.0
    %1993 = vmatpush1.msra.mxu0 %v326
    %1994 = vmatprep.subr.mxu0 0.0
    %1995 = vmatpush1.msra.mxu0 %v325
    %1996 = vmatprep.subr.mxu0 0.0
    %1997 = vmatpush1.msra.mxu0 %v324
    %1998 = vmatprep.subr.mxu0 0.0
    %1999 = vmatpush1.msra.mxu0 %v323
    %2000 = vmatprep.subr.mxu0 0.0
    %2001 = vmatpush2.msra.mxu0 0.0
    %2002 = vmatprep.subr.mxu0 0.0
    %2003 = vmatpush2.msra.mxu0 0.0
    %2004 = vmatprep.subr.mxu0 0.0
    %2005 = vmatpush2.msra.mxu0 0.0
    %2006 = vmatprep.subr.mxu0 0.0
    %2007 = vmatpush2.msra.mxu0 0.0
    %2008 = vmatprep.subr.mxu0 0.0
    %2009 = vmatpush2.msra.mxu0 0.0
    %2010 = vmatprep.subr.mxu0 0.0
    %2011 = vmatpush2.msra.mxu0 0.0
    %2012 = vmatprep.subr.mxu0 0.0
    %2013 = vmatpush2.msra.mxu0 0.0
    %2014 = vmatprep.subr.mxu0 0.0
    %2015 = vmatpush2.msra.mxu0 0.0
    %2016 = vmatprep.subr.mxu0 0.0
    %2017 = vmatpush2.msra.mxu0 0.0
    %2018 = vmatprep.subr.mxu0 0.0
    %2019 = vmatpush2.msra.mxu0 0.0
    %2020 = vmatprep.subr.mxu0 0.0
    %2021 = vmatpush2.msra.mxu0 0.0
    %2022 = vmatprep.subr.mxu0 0.0
    %2023 = vmatpush2.msra.mxu0 0.0
    %2024 = vmatprep.subr.mxu0 0.0
    %2025 = vmatpush2.msra.mxu0 0.0
    %2026 = vmatprep.subr.mxu0 0.0
    %2027 = vmatpush2.msra.mxu0 0.0
    %2028 = vmatprep.subr.mxu0 0.0
    %2029 = vmatpush2.msra.mxu0 0.0
    %2030 = vmatprep.subr.mxu0 0.0
    %2031 = vmatpush2.msra.mxu0 0.0
    %2032 = vmatprep.mubr.f32.mxu0 0.0
    %2033 = vmatmul.mubr.f32.gmra.mxu0 %v1797
    %v2034 = vpop.f32.mrf.mxu0
    %v2035 = vadd.f32 0.0, %v2034
    %v2036 = vpop.f32.mrf.mxu0
    %2037 = vdwg.mxu0
    %v2038 = vadd.f32 %v408, %v2035
    %v2039 = vxor.u32 %v2038, 2147483648
    %v2040 = vmul.f32 %v2039, 1.442695
    %v2041 = vpow.pop %v2040
    %v2042 = vadd.f32 %v2041, 1.0
    %v2043 = vrcp.pop %v2042
    %v2044 = vmul.f32 1.0, %v2043
    %v2045 = vtanh.pop %v2038
    %v2046 = vmul.f32 %v2044, %v1787
    %2048 = vrot.lane.b32.xlu0 %v2045, 64
    %v2049 = vpop.permute.xlu0 %2048
    %v2051 = vmul.f32 %v2044, %v2049
    %2053 = vrot.lane.b32.xlu0 %v2051, 32
    %v2054 = vpop.permute.xlu0 %2053
    %v2056 = vadd.f32 %v2046, %v2054
    %v2057 = vtanh.pop %v2056
    %2059 = vrot.lane.b32.xlu0 %v2057, 64
    %v2060 = vpop.permute.xlu0 %2059
    %v2062 = vmul.f32 %v2044, %v2060
    %2064 = vrot.lane.b32.xlu0 %v2062, 32
    %v2065 = vpop.permute.xlu0 %2064
    %v2066 = vsel %vm153, %v2065, 0
    %2068 = vmatprep.subr.mxu0 0.0
    %2069 = vmatpush1.msra.mxu0 0.0
    %2070 = vmatprep.subr.mxu0 0.0
    %2071 = vmatpush1.msra.mxu0 0.0
    %2072 = vmatprep.subr.mxu0 0.0
    %2073 = vmatpush1.msra.mxu0 0.0
    %2074 = vmatprep.subr.mxu0 0.0
    %2075 = vmatpush1.msra.mxu0 0.0
    %2076 = vmatprep.subr.mxu0 0.0
    %2077 = vmatpush1.msra.mxu0 0.0
    %2078 = vmatprep.subr.mxu0 0.0
    %2079 = vmatpush1.msra.mxu0 0.0
    %2080 = vmatprep.subr.mxu0 0.0
    %2081 = vmatpush1.msra.mxu0 0.0
    %2082 = vmatprep.subr.mxu0 0.0
    %2083 = vmatpush1.msra.mxu0 0.0
    %2084 = vmatprep.subr.mxu0 0.0
    %2085 = vmatpush1.msra.mxu0 0.0
    %2086 = vmatprep.subr.mxu0 0.0
    %2087 = vmatpush1.msra.mxu0 0.0
    %2088 = vmatprep.subr.mxu0 0.0
    %2089 = vmatpush1.msra.mxu0 0.0
    %2090 = vmatprep.subr.mxu0 0.0
    %2091 = vmatpush1.msra.mxu0 0.0
    %2092 = vmatprep.subr.mxu0 0.0
    %2093 = vmatpush1.msra.mxu0 %v331
    %2094 = vmatprep.subr.mxu0 0.0
    %2095 = vmatpush1.msra.mxu0 %v330
    %2096 = vmatprep.subr.mxu0 0.0
    %2097 = vmatpush1.msra.mxu0 %v329
    %2098 = vmatprep.subr.mxu0 0.0
    %2099 = vmatpush1.msra.mxu0 %v328
    %2100 = vmatprep.subr.mxu0 0.0
    %2101 = vmatpush2.msra.mxu0 0.0
    %2102 = vmatprep.subr.mxu0 0.0
    %2103 = vmatpush2.msra.mxu0 0.0
    %2104 = vmatprep.subr.mxu0 0.0
    %2105 = vmatpush2.msra.mxu0 0.0
    %2106 = vmatprep.subr.mxu0 0.0
    %2107 = vmatpush2.msra.mxu0 0.0
    %2108 = vmatprep.subr.mxu0 0.0
    %2109 = vmatpush2.msra.mxu0 0.0
    %2110 = vmatprep.subr.mxu0 0.0
    %2111 = vmatpush2.msra.mxu0 0.0
    %2112 = vmatprep.subr.mxu0 0.0
    %2113 = vmatpush2.msra.mxu0 0.0
    %2114 = vmatprep.subr.mxu0 0.0
    %2115 = vmatpush2.msra.mxu0 0.0
    %2116 = vmatprep.subr.mxu0 0.0
    %2117 = vmatpush2.msra.mxu0 0.0
    %2118 = vmatprep.subr.mxu0 0.0
    %2119 = vmatpush2.msra.mxu0 0.0
    %2120 = vmatprep.subr.mxu0 0.0
    %2121 = vmatpush2.msra.mxu0 0.0
    %2122 = vmatprep.subr.mxu0 0.0
    %2123 = vmatpush2.msra.mxu0 0.0
    %2124 = vmatprep.subr.mxu0 0.0
    %2125 = vmatpush2.msra.mxu0 0.0
    %2126 = vmatprep.subr.mxu0 0.0
    %2127 = vmatpush2.msra.mxu0 0.0
    %2128 = vmatprep.subr.mxu0 0.0
    %2129 = vmatpush2.msra.mxu0 0.0
    %2130 = vmatprep.subr.mxu0 0.0
    %2131 = vmatpush2.msra.mxu0 0.0
    %2132 = vmatprep.mubr.f32.mxu0 0.0
    %2133 = vmatmul.mubr.f32.gmra.mxu0 %v2066
    %v2134 = vpop.f32.mrf.mxu0
    %v2135 = vadd.f32 %v1965, %v2134
    %v2136 = vpop.f32.mrf.mxu0
    %2137 = vdwg.mxu0
    %v2138 = vxor.u32 %v2135, 2147483648
    %v2139 = vmul.f32 %v2138, 1.442695
    %v2140 = vpow.pop %v2139
    %v2141 = vadd.f32 %v2140, 1.0
    %v2142 = vrcp.pop %v2141
    %v2143 = vmul.f32 1.0, %v2142
    %v2144 = vtanh.pop %v2135
    %v2145 = vmul.f32 %v2143, %v1886
    %2147 = vrot.lane.b32.xlu0 %v2144, 64
    %v2148 = vpop.permute.xlu0 %2147
    %v2150 = vmul.f32 %v2143, %v2148
    %2152 = vrot.lane.b32.xlu0 %v2150, 32
    %v2153 = vpop.permute.xlu0 %2152
    %v2155 = vadd.f32 %v2145, %v2153
    %v2156 = vtanh.pop %v2155
    %2158 = vrot.lane.b32.xlu0 %v2156, 64
    %v2159 = vpop.permute.xlu0 %2158
    %v2161 = vmul.f32 %v2143, %v2159
    %2163 = vrot.lane.b32.xlu0 %v2161, 32
    %v2164 = vpop.permute.xlu0 %2163
    %v2165 = vsel %vm153, %v2164, 0
    %2167 = vmatprep.subr.mxu0 0.0
    %2168 = vmatpush1.msra.mxu0 0.0
    %2169 = vmatprep.subr.mxu0 0.0
    %2170 = vmatpush1.msra.mxu0 0.0
    %2171 = vmatprep.subr.mxu0 0.0
    %2172 = vmatpush1.msra.mxu0 0.0
    %2173 = vmatprep.subr.mxu0 0.0
    %2174 = vmatpush1.msra.mxu0 0.0
    %2175 = vmatprep.subr.mxu0 0.0
    %2176 = vmatpush1.msra.mxu0 0.0
    %2177 = vmatprep.subr.mxu0 0.0
    %2178 = vmatpush1.msra.mxu0 0.0
    %2179 = vmatprep.subr.mxu0 0.0
    %2180 = vmatpush1.msra.mxu0 0.0
    %2181 = vmatprep.subr.mxu0 0.0
    %2182 = vmatpush1.msra.mxu0 0.0
    %2183 = vmatprep.subr.mxu0 0.0
    %2184 = vmatpush1.msra.mxu0 0.0
    %2185 = vmatprep.subr.mxu0 0.0
    %2186 = vmatpush1.msra.mxu0 0.0
    %2187 = vmatprep.subr.mxu0 0.0
    %2188 = vmatpush1.msra.mxu0 0.0
    %2189 = vmatprep.subr.mxu0 0.0
    %2190 = vmatpush1.msra.mxu0 0.0
    %2191 = vmatprep.subr.mxu0 0.0
    %2192 = vmatpush1.msra.mxu0 %v335
    %2193 = vmatprep.subr.mxu0 0.0
    %2194 = vmatpush1.msra.mxu0 %v334
    %2195 = vmatprep.subr.mxu0 0.0
    %2196 = vmatpush1.msra.mxu0 %v333
    %2197 = vmatprep.subr.mxu0 0.0
    %2198 = vmatpush1.msra.mxu0 %v332
    %2199 = vmatprep.subr.mxu0 0.0
    %2200 = vmatpush2.msra.mxu0 0.0
    %2201 = vmatprep.subr.mxu0 0.0
    %2202 = vmatpush2.msra.mxu0 0.0
    %2203 = vmatprep.subr.mxu0 0.0
    %2204 = vmatpush2.msra.mxu0 0.0
    %2205 = vmatprep.subr.mxu0 0.0
    %2206 = vmatpush2.msra.mxu0 0.0
    %2207 = vmatprep.subr.mxu0 0.0
    %2208 = vmatpush2.msra.mxu0 0.0
    %2209 = vmatprep.subr.mxu0 0.0
    %2210 = vmatpush2.msra.mxu0 0.0
    %2211 = vmatprep.subr.mxu0 0.0
    %2212 = vmatpush2.msra.mxu0 0.0
    %2213 = vmatprep.subr.mxu0 0.0
    %2214 = vmatpush2.msra.mxu0 0.0
    %2215 = vmatprep.subr.mxu0 0.0
    %2216 = vmatpush2.msra.mxu0 0.0
    %2217 = vmatprep.subr.mxu0 0.0
    %2218 = vmatpush2.msra.mxu0 0.0
    %2219 = vmatprep.subr.mxu0 0.0
    %2220 = vmatpush2.msra.mxu0 0.0
    %2221 = vmatprep.subr.mxu0 0.0
    %2222 = vmatpush2.msra.mxu0 0.0
    %2223 = vmatprep.subr.mxu0 0.0
    %2224 = vmatpush2.msra.mxu0 0.0
    %2225 = vmatprep.subr.mxu0 0.0
    %2226 = vmatpush2.msra.mxu0 0.0
    %2227 = vmatprep.subr.mxu0 0.0
    %2228 = vmatpush2.msra.mxu0 0.0
    %2229 = vmatprep.subr.mxu0 0.0
    %2230 = vmatpush2.msra.mxu0 0.0
    %2231 = vmatprep.mubr.f32.mxu0 0.0
    %2232 = vmatmul.mubr.f32.gmra.mxu0 %v2165
    %v2233 = vpop.f32.mrf.mxu0
    %v2234 = vadd.f32 %v545, %v2233
    %v2235 = vpop.f32.mrf.mxu0
    %2236 = vdwg.mxu0
    %2237 = vmatprep.subr.mxu0 0.0
    %2238 = vmatpush1.msra.mxu0 0.0
    %2239 = vmatprep.subr.mxu0 0.0
    %2240 = vmatpush1.msra.mxu0 0.0
    %2241 = vmatprep.subr.mxu0 0.0
    %2242 = vmatpush1.msra.mxu0 0.0
    %2243 = vmatprep.subr.mxu0 0.0
    %2244 = vmatpush1.msra.mxu0 0.0
    %2245 = vmatprep.subr.mxu0 0.0
    %2246 = vmatpush1.msra.mxu0 0.0
    %2247 = vmatprep.subr.mxu0 0.0
    %2248 = vmatpush1.msra.mxu0 0.0
    %2249 = vmatprep.subr.mxu0 0.0
    %2250 = vmatpush1.msra.mxu0 0.0
    %2251 = vmatprep.subr.mxu0 0.0
    %2252 = vmatpush1.msra.mxu0 0.0
    %2253 = vmatprep.subr.mxu0 0.0
    %2254 = vmatpush1.msra.mxu0 0.0
    %2255 = vmatprep.subr.mxu0 0.0
    %2256 = vmatpush1.msra.mxu0 0.0
    %2257 = vmatprep.subr.mxu0 0.0
    %2258 = vmatpush1.msra.mxu0 0.0
    %2259 = vmatprep.subr.mxu0 0.0
    %2260 = vmatpush1.msra.mxu0 0.0
    %2261 = vmatprep.subr.mxu0 0.0
    %2262 = vmatpush1.msra.mxu0 %v326
    %2263 = vmatprep.subr.mxu0 0.0
    %2264 = vmatpush1.msra.mxu0 %v325
    %2265 = vmatprep.subr.mxu0 0.0
    %2266 = vmatpush1.msra.mxu0 %v324
    %2267 = vmatprep.subr.mxu0 0.0
    %2268 = vmatpush1.msra.mxu0 %v323
    %2269 = vmatprep.subr.mxu0 0.0
    %2270 = vmatpush2.msra.mxu0 0.0
    %2271 = vmatprep.subr.mxu0 0.0
    %2272 = vmatpush2.msra.mxu0 0.0
    %2273 = vmatprep.subr.mxu0 0.0
    %2274 = vmatpush2.msra.mxu0 0.0
    %2275 = vmatprep.subr.mxu0 0.0
    %2276 = vmatpush2.msra.mxu0 0.0
    %2277 = vmatprep.subr.mxu0 0.0
    %2278 = vmatpush2.msra.mxu0 0.0
    %2279 = vmatprep.subr.mxu0 0.0
    %2280 = vmatpush2.msra.mxu0 0.0
    %2281 = vmatprep.subr.mxu0 0.0
    %2282 = vmatpush2.msra.mxu0 0.0
    %2283 = vmatprep.subr.mxu0 0.0
    %2284 = vmatpush2.msra.mxu0 0.0
    %2285 = vmatprep.subr.mxu0 0.0
    %2286 = vmatpush2.msra.mxu0 0.0
    %2287 = vmatprep.subr.mxu0 0.0
    %2288 = vmatpush2.msra.mxu0 0.0
    %2289 = vmatprep.subr.mxu0 0.0
    %2290 = vmatpush2.msra.mxu0 0.0
    %2291 = vmatprep.subr.mxu0 0.0
    %2292 = vmatpush2.msra.mxu0 0.0
    %2293 = vmatprep.subr.mxu0 0.0
    %2294 = vmatpush2.msra.mxu0 0.0
    %2295 = vmatprep.subr.mxu0 0.0
    %2296 = vmatpush2.msra.mxu0 0.0
    %2297 = vmatprep.subr.mxu0 0.0
    %2298 = vmatpush2.msra.mxu0 0.0
    %2299 = vmatprep.subr.mxu0 0.0
    %2300 = vmatpush2.msra.mxu0 0.0
    %2301 = vmatprep.mubr.f32.mxu0 0.0
    %2302 = vmatmul.mubr.f32.gmra.mxu0 %v2066
    %v2303 = vpop.f32.mrf.mxu0
    %v2304 = vadd.f32 0.0, %v2303
    %v2305 = vpop.f32.mrf.mxu0
    %2306 = vdwg.mxu0
    %v2307 = vadd.f32 %v456, %v2304
    %v2308 = vxor.u32 %v2307, 2147483648
    %v2309 = vmul.f32 %v2308, 1.442695
    %v2310 = vpow.pop %v2309
    %v2311 = vadd.f32 %v2310, 1.0
    %v2312 = vrcp.pop %v2311
    %v2313 = vmul.f32 1.0, %v2312
    %v2314 = vtanh.pop %v2307
    %v2315 = vmul.f32 %v2313, %v2056
    %2317 = vrot.lane.b32.xlu0 %v2314, 64
    %v2318 = vpop.permute.xlu0 %2317
    %v2320 = vmul.f32 %v2313, %v2318
    %2322 = vrot.lane.b32.xlu0 %v2320, 32
    %v2323 = vpop.permute.xlu0 %2322
    %v2325 = vadd.f32 %v2315, %v2323
    %v2326 = vtanh.pop %v2325
    %2328 = vrot.lane.b32.xlu0 %v2326, 64
    %v2329 = vpop.permute.xlu0 %2328
    %v2331 = vmul.f32 %v2313, %v2329
    %2333 = vrot.lane.b32.xlu0 %v2331, 32
    %v2334 = vpop.permute.xlu0 %2333
    %v2335 = vsel %vm153, %v2334, 0
    %2337 = vmatprep.subr.mxu0 0.0
    %2338 = vmatpush1.msra.mxu0 0.0
    %2339 = vmatprep.subr.mxu0 0.0
    %2340 = vmatpush1.msra.mxu0 0.0
    %2341 = vmatprep.subr.mxu0 0.0
    %2342 = vmatpush1.msra.mxu0 0.0
    %2343 = vmatprep.subr.mxu0 0.0
    %2344 = vmatpush1.msra.mxu0 0.0
    %2345 = vmatprep.subr.mxu0 0.0
    %2346 = vmatpush1.msra.mxu0 0.0
    %2347 = vmatprep.subr.mxu0 0.0
    %2348 = vmatpush1.msra.mxu0 0.0
    %2349 = vmatprep.subr.mxu0 0.0
    %2350 = vmatpush1.msra.mxu0 0.0
    %2351 = vmatprep.subr.mxu0 0.0
    %2352 = vmatpush1.msra.mxu0 0.0
    %2353 = vmatprep.subr.mxu0 0.0
    %2354 = vmatpush1.msra.mxu0 0.0
    %2355 = vmatprep.subr.mxu0 0.0
    %2356 = vmatpush1.msra.mxu0 0.0
    %2357 = vmatprep.subr.mxu0 0.0
    %2358 = vmatpush1.msra.mxu0 0.0
    %2359 = vmatprep.subr.mxu0 0.0
    %2360 = vmatpush1.msra.mxu0 0.0
    %2361 = vmatprep.subr.mxu0 0.0
    %2362 = vmatpush1.msra.mxu0 %v331
    %2363 = vmatprep.subr.mxu0 0.0
    %2364 = vmatpush1.msra.mxu0 %v330
    %2365 = vmatprep.subr.mxu0 0.0
    %2366 = vmatpush1.msra.mxu0 %v329
    %2367 = vmatprep.subr.mxu0 0.0
    %2368 = vmatpush1.msra.mxu0 %v328
    %2369 = vmatprep.subr.mxu0 0.0
    %2370 = vmatpush2.msra.mxu0 0.0
    %2371 = vmatprep.subr.mxu0 0.0
    %2372 = vmatpush2.msra.mxu0 0.0
    %2373 = vmatprep.subr.mxu0 0.0
    %2374 = vmatpush2.msra.mxu0 0.0
    %2375 = vmatprep.subr.mxu0 0.0
    %2376 = vmatpush2.msra.mxu0 0.0
    %2377 = vmatprep.subr.mxu0 0.0
    %2378 = vmatpush2.msra.mxu0 0.0
    %2379 = vmatprep.subr.mxu0 0.0
    %2380 = vmatpush2.msra.mxu0 0.0
    %2381 = vmatprep.subr.mxu0 0.0
    %2382 = vmatpush2.msra.mxu0 0.0
    %2383 = vmatprep.subr.mxu0 0.0
    %2384 = vmatpush2.msra.mxu0 0.0
    %2385 = vmatprep.subr.mxu0 0.0
    %2386 = vmatpush2.msra.mxu0 0.0
    %2387 = vmatprep.subr.mxu0 0.0
    %2388 = vmatpush2.msra.mxu0 0.0
    %2389 = vmatprep.subr.mxu0 0.0
    %2390 = vmatpush2.msra.mxu0 0.0
    %2391 = vmatprep.subr.mxu0 0.0
    %2392 = vmatpush2.msra.mxu0 0.0
    %2393 = vmatprep.subr.mxu0 0.0
    %2394 = vmatpush2.msra.mxu0 0.0
    %2395 = vmatprep.subr.mxu0 0.0
    %2396 = vmatpush2.msra.mxu0 0.0
    %2397 = vmatprep.subr.mxu0 0.0
    %2398 = vmatpush2.msra.mxu0 0.0
    %2399 = vmatprep.subr.mxu0 0.0
    %2400 = vmatpush2.msra.mxu0 0.0
    %2401 = vmatprep.mubr.f32.mxu0 0.0
    %2402 = vmatmul.mubr.f32.gmra.mxu0 %v2335
    %v2403 = vpop.f32.mrf.mxu0
    %v2404 = vadd.f32 %v2234, %v2403
    %v2405 = vpop.f32.mrf.mxu0
    %2406 = vdwg.mxu0
    %v2407 = vxor.u32 %v2404, 2147483648
    %v2408 = vmul.f32 %v2407, 1.442695
    %v2409 = vpow.pop %v2408
    %v2410 = vadd.f32 %v2409, 1.0
    %v2411 = vrcp.pop %v2410
    %v2412 = vmul.f32 1.0, %v2411
    %v2413 = vtanh.pop %v2404
    %v2414 = vmul.f32 %v2412, %v2155
    %2416 = vrot.lane.b32.xlu0 %v2413, 64
    %v2417 = vpop.permute.xlu0 %2416
    %v2419 = vmul.f32 %v2412, %v2417
    %2421 = vrot.lane.b32.xlu0 %v2419, 32
    %v2422 = vpop.permute.xlu0 %2421
    %v2424 = vadd.f32 %v2414, %v2422
    %v2425 = vtanh.pop %v2424
    %2427 = vrot.lane.b32.xlu0 %v2425, 64
    %v2428 = vpop.permute.xlu0 %2427
    %v2430 = vmul.f32 %v2412, %v2428
    %2432 = vrot.lane.b32.xlu0 %v2430, 32
    %v2433 = vpop.permute.xlu0 %2432
    %v2434 = vsel %vm153, %v2433, 0
    %2436 = vmatprep.subr.mxu0 0.0
    %2437 = vmatpush1.msra.mxu0 0.0
    %2438 = vmatprep.subr.mxu0 0.0
    %2439 = vmatpush1.msra.mxu0 0.0
    %2440 = vmatprep.subr.mxu0 0.0
    %2441 = vmatpush1.msra.mxu0 0.0
    %2442 = vmatprep.subr.mxu0 0.0
    %2443 = vmatpush1.msra.mxu0 0.0
    %2444 = vmatprep.subr.mxu0 0.0
    %2445 = vmatpush1.msra.mxu0 0.0
    %2446 = vmatprep.subr.mxu0 0.0
    %2447 = vmatpush1.msra.mxu0 0.0
    %2448 = vmatprep.subr.mxu0 0.0
    %2449 = vmatpush1.msra.mxu0 0.0
    %2450 = vmatprep.subr.mxu0 0.0
    %2451 = vmatpush1.msra.mxu0 0.0
    %2452 = vmatprep.subr.mxu0 0.0
    %2453 = vmatpush1.msra.mxu0 0.0
    %2454 = vmatprep.subr.mxu0 0.0
    %2455 = vmatpush1.msra.mxu0 0.0
    %2456 = vmatprep.subr.mxu0 0.0
    %2457 = vmatpush1.msra.mxu0 0.0
    %2458 = vmatprep.subr.mxu0 0.0
    %2459 = vmatpush1.msra.mxu0 0.0
    %2460 = vmatprep.subr.mxu0 0.0
    %2461 = vmatpush1.msra.mxu0 %v335
    %2462 = vmatprep.subr.mxu0 0.0
    %2463 = vmatpush1.msra.mxu0 %v334
    %2464 = vmatprep.subr.mxu0 0.0
    %2465 = vmatpush1.msra.mxu0 %v333
    %2466 = vmatprep.subr.mxu0 0.0
    %2467 = vmatpush1.msra.mxu0 %v332
    %2468 = vmatprep.subr.mxu0 0.0
    %2469 = vmatpush2.msra.mxu0 0.0
    %2470 = vmatprep.subr.mxu0 0.0
    %2471 = vmatpush2.msra.mxu0 0.0
    %2472 = vmatprep.subr.mxu0 0.0
    %2473 = vmatpush2.msra.mxu0 0.0
    %2474 = vmatprep.subr.mxu0 0.0
    %2475 = vmatpush2.msra.mxu0 0.0
    %2476 = vmatprep.subr.mxu0 0.0
    %2477 = vmatpush2.msra.mxu0 0.0
    %2478 = vmatprep.subr.mxu0 0.0
    %2479 = vmatpush2.msra.mxu0 0.0
    %2480 = vmatprep.subr.mxu0 0.0
    %2481 = vmatpush2.msra.mxu0 0.0
    %2482 = vmatprep.subr.mxu0 0.0
    %2483 = vmatpush2.msra.mxu0 0.0
    %2484 = vmatprep.subr.mxu0 0.0
    %2485 = vmatpush2.msra.mxu0 0.0
    %2486 = vmatprep.subr.mxu0 0.0
    %2487 = vmatpush2.msra.mxu0 0.0
    %2488 = vmatprep.subr.mxu0 0.0
    %2489 = vmatpush2.msra.mxu0 0.0
    %2490 = vmatprep.subr.mxu0 0.0
    %2491 = vmatpush2.msra.mxu0 0.0
    %2492 = vmatprep.subr.mxu0 0.0
    %2493 = vmatpush2.msra.mxu0 0.0
    %2494 = vmatprep.subr.mxu0 0.0
    %2495 = vmatpush2.msra.mxu0 0.0
    %2496 = vmatprep.subr.mxu0 0.0
    %2497 = vmatpush2.msra.mxu0 0.0
    %2498 = vmatprep.subr.mxu0 0.0
    %2499 = vmatpush2.msra.mxu0 0.0
    %2500 = vmatprep.mubr.f32.mxu0 0.0
    %2501 = vmatmul.mubr.f32.gmra.mxu0 %v2434
    %v2502 = vpop.f32.mrf.mxu0
    %v2503 = vadd.f32 %v545, %v2502
    %v2504 = vpop.f32.mrf.mxu0
    %2505 = vdwg.mxu0
    %2506 = vmatprep.subr.mxu0 0.0
    %2507 = vmatpush1.msra.mxu0 0.0
    %2508 = vmatprep.subr.mxu0 0.0
    %2509 = vmatpush1.msra.mxu0 0.0
    %2510 = vmatprep.subr.mxu0 0.0
    %2511 = vmatpush1.msra.mxu0 0.0
    %2512 = vmatprep.subr.mxu0 0.0
    %2513 = vmatpush1.msra.mxu0 0.0
    %2514 = vmatprep.subr.mxu0 0.0
    %2515 = vmatpush1.msra.mxu0 0.0
    %2516 = vmatprep.subr.mxu0 0.0
    %2517 = vmatpush1.msra.mxu0 0.0
    %2518 = vmatprep.subr.mxu0 0.0
    %2519 = vmatpush1.msra.mxu0 0.0
    %2520 = vmatprep.subr.mxu0 0.0
    %2521 = vmatpush1.msra.mxu0 0.0
    %2522 = vmatprep.subr.mxu0 0.0
    %2523 = vmatpush1.msra.mxu0 0.0
    %2524 = vmatprep.subr.mxu0 0.0
    %2525 = vmatpush1.msra.mxu0 0.0
    %2526 = vmatprep.subr.mxu0 0.0
    %2527 = vmatpush1.msra.mxu0 0.0
    %2528 = vmatprep.subr.mxu0 0.0
    %2529 = vmatpush1.msra.mxu0 0.0
    %2530 = vmatprep.subr.mxu0 0.0
    %2531 = vmatpush1.msra.mxu0 %v326
    %2532 = vmatprep.subr.mxu0 0.0
    %2533 = vmatpush1.msra.mxu0 %v325
    %2534 = vmatprep.subr.mxu0 0.0
    %2535 = vmatpush1.msra.mxu0 %v324
    %2536 = vmatprep.subr.mxu0 0.0
    %2537 = vmatpush1.msra.mxu0 %v323
    %2538 = vmatprep.subr.mxu0 0.0
    %2539 = vmatpush2.msra.mxu0 0.0
    %2540 = vmatprep.subr.mxu0 0.0
    %2541 = vmatpush2.msra.mxu0 0.0
    %2542 = vmatprep.subr.mxu0 0.0
    %2543 = vmatpush2.msra.mxu0 0.0
    %2544 = vmatprep.subr.mxu0 0.0
    %2545 = vmatpush2.msra.mxu0 0.0
    %2546 = vmatprep.subr.mxu0 0.0
    %2547 = vmatpush2.msra.mxu0 0.0
    %2548 = vmatprep.subr.mxu0 0.0
    %2549 = vmatpush2.msra.mxu0 0.0
    %2550 = vmatprep.subr.mxu0 0.0
    %2551 = vmatpush2.msra.mxu0 0.0
    %2552 = vmatprep.subr.mxu0 0.0
    %2553 = vmatpush2.msra.mxu0 0.0
    %2554 = vmatprep.subr.mxu0 0.0
    %2555 = vmatpush2.msra.mxu0 0.0
    %2556 = vmatprep.subr.mxu0 0.0
    %2557 = vmatpush2.msra.mxu0 0.0
    %2558 = vmatprep.subr.mxu0 0.0
    %2559 = vmatpush2.msra.mxu0 0.0
    %2560 = vmatprep.subr.mxu0 0.0
    %2561 = vmatpush2.msra.mxu0 0.0
    %2562 = vmatprep.subr.mxu0 0.0
    %2563 = vmatpush2.msra.mxu0 0.0
    %2564 = vmatprep.subr.mxu0 0.0
    %2565 = vmatpush2.msra.mxu0 0.0
    %2566 = vmatprep.subr.mxu0 0.0
    %2567 = vmatpush2.msra.mxu0 0.0
    %2568 = vmatprep.subr.mxu0 0.0
    %2569 = vmatpush2.msra.mxu0 0.0
    %2570 = vmatprep.mubr.f32.mxu0 0.0
    %2571 = vmatmul.mubr.f32.gmra.mxu0 %v2335
    %v2572 = vpop.f32.mrf.mxu0
    %v2573 = vadd.f32 0.0, %v2572
    %v2574 = vpop.f32.mrf.mxu0
    %2575 = vdwg.mxu0
    %v2576 = vadd.f32 %v504, %v2573
    %v2577 = vxor.u32 %v2576, 2147483648
    %v2578 = vmul.f32 %v2577, 1.442695
    %v2579 = vpow.pop %v2578
    %v2580 = vadd.f32 %v2579, 1.0
    %v2581 = vrcp.pop %v2580
    %v2582 = vmul.f32 1.0, %v2581
    %v2583 = vtanh.pop %v2576
    %v2584 = vmul.f32 %v2582, %v2325
    %2586 = vrot.lane.b32.xlu0 %v2583, 64
    %v2587 = vpop.permute.xlu0 %2586
    %v2589 = vmul.f32 %v2582, %v2587
    %2591 = vrot.lane.b32.xlu0 %v2589, 32
    %v2592 = vpop.permute.xlu0 %2591
    %v2594 = vadd.f32 %v2584, %v2592
    %v2595 = vtanh.pop %v2594
    %2597 = vrot.lane.b32.xlu0 %v2595, 64
    %v2598 = vpop.permute.xlu0 %2597
    %v2600 = vmul.f32 %v2582, %v2598
    %2602 = vrot.lane.b32.xlu0 %v2600, 32
    %v2603 = vpop.permute.xlu0 %2602
    %v2604 = vsel %vm153, %v2603, 0
    %2606 = vmatprep.subr.mxu0 0.0
    %2607 = vmatpush1.msra.mxu0 0.0
    %2608 = vmatprep.subr.mxu0 0.0
    %2609 = vmatpush1.msra.mxu0 0.0
    %2610 = vmatprep.subr.mxu0 0.0
    %2611 = vmatpush1.msra.mxu0 0.0
    %2612 = vmatprep.subr.mxu0 0.0
    %2613 = vmatpush1.msra.mxu0 0.0
    %2614 = vmatprep.subr.mxu0 0.0
    %2615 = vmatpush1.msra.mxu0 0.0
    %2616 = vmatprep.subr.mxu0 0.0
    %2617 = vmatpush1.msra.mxu0 0.0
    %2618 = vmatprep.subr.mxu0 0.0
    %2619 = vmatpush1.msra.mxu0 0.0
    %2620 = vmatprep.subr.mxu0 0.0
    %2621 = vmatpush1.msra.mxu0 0.0
    %2622 = vmatprep.subr.mxu0 0.0
    %2623 = vmatpush1.msra.mxu0 0.0
    %2624 = vmatprep.subr.mxu0 0.0
    %2625 = vmatpush1.msra.mxu0 0.0
    %2626 = vmatprep.subr.mxu0 0.0
    %2627 = vmatpush1.msra.mxu0 0.0
    %2628 = vmatprep.subr.mxu0 0.0
    %2629 = vmatpush1.msra.mxu0 0.0
    %2630 = vmatprep.subr.mxu0 0.0
    %2631 = vmatpush1.msra.mxu0 %v331
    %2632 = vmatprep.subr.mxu0 0.0
    %2633 = vmatpush1.msra.mxu0 %v330
    %2634 = vmatprep.subr.mxu0 0.0
    %2635 = vmatpush1.msra.mxu0 %v329
    %2636 = vmatprep.subr.mxu0 0.0
    %2637 = vmatpush1.msra.mxu0 %v328
    %2638 = vmatprep.subr.mxu0 0.0
    %2639 = vmatpush2.msra.mxu0 0.0
    %2640 = vmatprep.subr.mxu0 0.0
    %2641 = vmatpush2.msra.mxu0 0.0
    %2642 = vmatprep.subr.mxu0 0.0
    %2643 = vmatpush2.msra.mxu0 0.0
    %2644 = vmatprep.subr.mxu0 0.0
    %2645 = vmatpush2.msra.mxu0 0.0
    %2646 = vmatprep.subr.mxu0 0.0
    %2647 = vmatpush2.msra.mxu0 0.0
    %2648 = vmatprep.subr.mxu0 0.0
    %2649 = vmatpush2.msra.mxu0 0.0
    %2650 = vmatprep.subr.mxu0 0.0
    %2651 = vmatpush2.msra.mxu0 0.0
    %2652 = vmatprep.subr.mxu0 0.0
    %2653 = vmatpush2.msra.mxu0 0.0
    %2654 = vmatprep.subr.mxu0 0.0
    %2655 = vmatpush2.msra.mxu0 0.0
    %2656 = vmatprep.subr.mxu0 0.0
    %2657 = vmatpush2.msra.mxu0 0.0
    %2658 = vmatprep.subr.mxu0 0.0
    %2659 = vmatpush2.msra.mxu0 0.0
    %2660 = vmatprep.subr.mxu0 0.0
    %2661 = vmatpush2.msra.mxu0 0.0
    %2662 = vmatprep.subr.mxu0 0.0
    %2663 = vmatpush2.msra.mxu0 0.0
    %2664 = vmatprep.subr.mxu0 0.0
    %2665 = vmatpush2.msra.mxu0 0.0
    %2666 = vmatprep.subr.mxu0 0.0
    %2667 = vmatpush2.msra.mxu0 0.0
    %2668 = vmatprep.subr.mxu0 0.0
    %2669 = vmatpush2.msra.mxu0 0.0
    %2670 = vmatprep.mubr.f32.mxu0 0.0
    %2671 = vmatmul.mubr.f32.gmra.mxu0 %v2604
    %v2672 = vpop.f32.mrf.mxu0
    %v2673 = vadd.f32 %v2503, %v2672
    %v2674 = vpop.f32.mrf.mxu0
    %2675 = vdwg.mxu0
    %v2676 = vxor.u32 %v2673, 2147483648
    %v2677 = vmul.f32 %v2676, 1.442695
    %v2678 = vpow.pop %v2677
    %v2679 = vadd.f32 %v2678, 1.0
    %v2680 = vrcp.pop %v2679
    %v2681 = vmul.f32 1.0, %v2680
    %v2682 = vtanh.pop %v2673
    %v2683 = vmul.f32 %v2681, %v2424
    %2685 = vrot.lane.b32.xlu0 %v2682, 64
    %v2686 = vpop.permute.xlu0 %2685
    %v2688 = vmul.f32 %v2681, %v2686
    %2690 = vrot.lane.b32.xlu0 %v2688, 32
    %v2691 = vpop.permute.xlu0 %2690
    %v2693 = vadd.f32 %v2683, %v2691
    %v2694 = vtanh.pop %v2693
    %2696 = vrot.lane.b32.xlu0 %v2694, 64
    %v2697 = vpop.permute.xlu0 %2696
    %v2699 = vmul.f32 %v2681, %v2697
    %2701 = vrot.lane.b32.xlu0 %v2699, 32
    %v2702 = vpop.permute.xlu0 %2701
    %s2704 = scalar_lea.vmem [#allocation14], 2
    %2705 = vst.msk [vmem:[%s2704] sm:$0x3] %vm1625, %v2702
    %v2706 = vsel %vm153, %v2702, 0
    %2708 = vmatprep.subr.mxu0 0.0
    %2709 = vmatpush1.msra.mxu0 0.0
    %2710 = vmatprep.subr.mxu0 0.0
    %2711 = vmatpush1.msra.mxu0 0.0
    %2712 = vmatprep.subr.mxu0 0.0
    %2713 = vmatpush1.msra.mxu0 0.0
    %2714 = vmatprep.subr.mxu0 0.0
    %2715 = vmatpush1.msra.mxu0 0.0
    %2716 = vmatprep.subr.mxu0 0.0
    %2717 = vmatpush1.msra.mxu0 0.0
    %2718 = vmatprep.subr.mxu0 0.0
    %2719 = vmatpush1.msra.mxu0 0.0
    %2720 = vmatprep.subr.mxu0 0.0
    %2721 = vmatpush1.msra.mxu0 0.0
    %2722 = vmatprep.subr.mxu0 0.0
    %2723 = vmatpush1.msra.mxu0 0.0
    %2724 = vmatprep.subr.mxu0 0.0
    %2725 = vmatpush1.msra.mxu0 0.0
    %2726 = vmatprep.subr.mxu0 0.0
    %2727 = vmatpush1.msra.mxu0 0.0
    %2728 = vmatprep.subr.mxu0 0.0
    %2729 = vmatpush1.msra.mxu0 0.0
    %2730 = vmatprep.subr.mxu0 0.0
    %2731 = vmatpush1.msra.mxu0 0.0
    %2732 = vmatprep.subr.mxu0 0.0
    %2733 = vmatpush1.msra.mxu0 %v335
    %2734 = vmatprep.subr.mxu0 0.0
    %2735 = vmatpush1.msra.mxu0 %v334
    %2736 = vmatprep.subr.mxu0 0.0
    %2737 = vmatpush1.msra.mxu0 %v333
    %2738 = vmatprep.subr.mxu0 0.0
    %2739 = vmatpush1.msra.mxu0 %v332
    %2740 = vmatprep.subr.mxu0 0.0
    %2741 = vmatpush2.msra.mxu0 0.0
    %2742 = vmatprep.subr.mxu0 0.0
    %2743 = vmatpush2.msra.mxu0 0.0
    %2744 = vmatprep.subr.mxu0 0.0
    %2745 = vmatpush2.msra.mxu0 0.0
    %2746 = vmatprep.subr.mxu0 0.0
    %2747 = vmatpush2.msra.mxu0 0.0
    %2748 = vmatprep.subr.mxu0 0.0
    %2749 = vmatpush2.msra.mxu0 0.0
    %2750 = vmatprep.subr.mxu0 0.0
    %2751 = vmatpush2.msra.mxu0 0.0
    %2752 = vmatprep.subr.mxu0 0.0
    %2753 = vmatpush2.msra.mxu0 0.0
    %2754 = vmatprep.subr.mxu0 0.0
    %2755 = vmatpush2.msra.mxu0 0.0
    %2756 = vmatprep.subr.mxu0 0.0
    %2757 = vmatpush2.msra.mxu0 0.0
    %2758 = vmatprep.subr.mxu0 0.0
    %2759 = vmatpush2.msra.mxu0 0.0
    %2760 = vmatprep.subr.mxu0 0.0
    %2761 = vmatpush2.msra.mxu0 0.0
    %2762 = vmatprep.subr.mxu0 0.0
    %2763 = vmatpush2.msra.mxu0 0.0
    %2764 = vmatprep.subr.mxu0 0.0
    %2765 = vmatpush2.msra.mxu0 0.0
    %2766 = vmatprep.subr.mxu0 0.0
    %2767 = vmatpush2.msra.mxu0 0.0
    %2768 = vmatprep.subr.mxu0 0.0
    %2769 = vmatpush2.msra.mxu0 0.0
    %2770 = vmatprep.subr.mxu0 0.0
    %2771 = vmatpush2.msra.mxu0 0.0
    %2772 = vmatprep.mubr.f32.mxu0 0.0
    %2773 = vmatmul.mubr.f32.gmra.mxu0 %v2706
    %v2774 = vpop.f32.mrf.mxu0
    %v2775 = vadd.f32 %v545, %v2774
    %v2776 = vpop.f32.mrf.mxu0
    %2777 = vdwg.mxu0
    %2778 = vmatprep.subr.mxu0 0.0
    %2779 = vmatpush1.msra.mxu0 0.0
    %2780 = vmatprep.subr.mxu0 0.0
    %2781 = vmatpush1.msra.mxu0 0.0
    %2782 = vmatprep.subr.mxu0 0.0
    %2783 = vmatpush1.msra.mxu0 0.0
    %2784 = vmatprep.subr.mxu0 0.0
    %2785 = vmatpush1.msra.mxu0 0.0
    %2786 = vmatprep.subr.mxu0 0.0
    %2787 = vmatpush1.msra.mxu0 0.0
    %2788 = vmatprep.subr.mxu0 0.0
    %2789 = vmatpush1.msra.mxu0 0.0
    %2790 = vmatprep.subr.mxu0 0.0
    %2791 = vmatpush1.msra.mxu0 0.0
    %2792 = vmatprep.subr.mxu0 0.0
    %2793 = vmatpush1.msra.mxu0 0.0
    %2794 = vmatprep.subr.mxu0 0.0
    %2795 = vmatpush1.msra.mxu0 0.0
    %2796 = vmatprep.subr.mxu0 0.0
    %2797 = vmatpush1.msra.mxu0 0.0
    %2798 = vmatprep.subr.mxu0 0.0
    %2799 = vmatpush1.msra.mxu0 0.0
    %2800 = vmatprep.subr.mxu0 0.0
    %2801 = vmatpush1.msra.mxu0 0.0
    %2802 = vmatprep.subr.mxu0 0.0
    %2803 = vmatpush1.msra.mxu0 %v326
    %2804 = vmatprep.subr.mxu0 0.0
    %2805 = vmatpush1.msra.mxu0 %v325
    %2806 = vmatprep.subr.mxu0 0.0
    %2807 = vmatpush1.msra.mxu0 %v324
    %2808 = vmatprep.subr.mxu0 0.0
    %2809 = vmatpush1.msra.mxu0 %v323
    %2810 = vmatprep.subr.mxu0 0.0
    %2811 = vmatpush2.msra.mxu0 0.0
    %2812 = vmatprep.subr.mxu0 0.0
    %2813 = vmatpush2.msra.mxu0 0.0
    %2814 = vmatprep.subr.mxu0 0.0
    %2815 = vmatpush2.msra.mxu0 0.0
    %2816 = vmatprep.subr.mxu0 0.0
    %2817 = vmatpush2.msra.mxu0 0.0
    %2818 = vmatprep.subr.mxu0 0.0
    %2819 = vmatpush2.msra.mxu0 0.0
    %2820 = vmatprep.subr.mxu0 0.0
    %2821 = vmatpush2.msra.mxu0 0.0
    %2822 = vmatprep.subr.mxu0 0.0
    %2823 = vmatpush2.msra.mxu0 0.0
    %2824 = vmatprep.subr.mxu0 0.0
    %2825 = vmatpush2.msra.mxu0 0.0
    %2826 = vmatprep.subr.mxu0 0.0
    %2827 = vmatpush2.msra.mxu0 0.0
    %2828 = vmatprep.subr.mxu0 0.0
    %2829 = vmatpush2.msra.mxu0 0.0
    %2830 = vmatprep.subr.mxu0 0.0
    %2831 = vmatpush2.msra.mxu0 0.0
    %2832 = vmatprep.subr.mxu0 0.0
    %2833 = vmatpush2.msra.mxu0 0.0
    %2834 = vmatprep.subr.mxu0 0.0
    %2835 = vmatpush2.msra.mxu0 0.0
    %2836 = vmatprep.subr.mxu0 0.0
    %2837 = vmatpush2.msra.mxu0 0.0
    %2838 = vmatprep.subr.mxu0 0.0
    %2839 = vmatpush2.msra.mxu0 0.0
    %2840 = vmatprep.subr.mxu0 0.0
    %2841 = vmatpush2.msra.mxu0 0.0
    %2842 = vmatprep.mubr.f32.mxu0 0.0
    %2843 = vmatmul.mubr.f32.gmra.mxu0 %v2604
    %v2844 = vpop.f32.mrf.mxu0
    %v2845 = vadd.f32 0.0, %v2844
    %v2846 = vpop.f32.mrf.mxu0
    %2847 = vdwg.mxu0
    %v2848 = vadd.f32 %v366, %v2845
    %v2849 = vxor.u32 %v2848, 2147483648
    %v2850 = vmul.f32 %v2849, 1.442695
    %v2851 = vpow.pop %v2850
    %v2852 = vadd.f32 %v2851, 1.0
    %v2853 = vrcp.pop %v2852
    %v2854 = vmul.f32 1.0, %v2853
    %v2855 = vtanh.pop %v2848
    %v2856 = vmul.f32 %v2854, %v2594
    %2858 = vrot.lane.b32.xlu0 %v2855, 64
    %v2859 = vpop.permute.xlu0 %2858
    %v2861 = vmul.f32 %v2854, %v2859
    %2863 = vrot.lane.b32.xlu0 %v2861, 32
    %v2864 = vpop.permute.xlu0 %2863
    %v2866 = vadd.f32 %v2856, %v2864
    %v2867 = vtanh.pop %v2866
    %2869 = vrot.lane.b32.xlu0 %v2867, 64
    %v2870 = vpop.permute.xlu0 %2869
    %v2872 = vmul.f32 %v2854, %v2870
    %2874 = vrot.lane.b32.xlu0 %v2872, 32
    %v2875 = vpop.permute.xlu0 %2874
    %v2876 = vsel %vm153, %v2875, 0
    %2878 = vmatprep.subr.mxu0 0.0
    %2879 = vmatpush1.msra.mxu0 0.0
    %2880 = vmatprep.subr.mxu0 0.0
    %2881 = vmatpush1.msra.mxu0 0.0
    %2882 = vmatprep.subr.mxu0 0.0
    %2883 = vmatpush1.msra.mxu0 0.0
    %2884 = vmatprep.subr.mxu0 0.0
    %2885 = vmatpush1.msra.mxu0 0.0
    %2886 = vmatprep.subr.mxu0 0.0
    %2887 = vmatpush1.msra.mxu0 0.0
    %2888 = vmatprep.subr.mxu0 0.0
    %2889 = vmatpush1.msra.mxu0 0.0
    %2890 = vmatprep.subr.mxu0 0.0
    %2891 = vmatpush1.msra.mxu0 0.0
    %2892 = vmatprep.subr.mxu0 0.0
    %2893 = vmatpush1.msra.mxu0 0.0
    %2894 = vmatprep.subr.mxu0 0.0
    %2895 = vmatpush1.msra.mxu0 0.0
    %2896 = vmatprep.subr.mxu0 0.0
    %2897 = vmatpush1.msra.mxu0 0.0
    %2898 = vmatprep.subr.mxu0 0.0
    %2899 = vmatpush1.msra.mxu0 0.0
    %2900 = vmatprep.subr.mxu0 0.0
    %2901 = vmatpush1.msra.mxu0 0.0
    %2902 = vmatprep.subr.mxu0 0.0
    %2903 = vmatpush1.msra.mxu0 %v331
    %2904 = vmatprep.subr.mxu0 0.0
    %2905 = vmatpush1.msra.mxu0 %v330
    %2906 = vmatprep.subr.mxu0 0.0
    %2907 = vmatpush1.msra.mxu0 %v329
    %2908 = vmatprep.subr.mxu0 0.0
    %2909 = vmatpush1.msra.mxu0 %v328
    %2910 = vmatprep.subr.mxu0 0.0
    %2911 = vmatpush2.msra.mxu0 0.0
    %2912 = vmatprep.subr.mxu0 0.0
    %2913 = vmatpush2.msra.mxu0 0.0
    %2914 = vmatprep.subr.mxu0 0.0
    %2915 = vmatpush2.msra.mxu0 0.0
    %2916 = vmatprep.subr.mxu0 0.0
    %2917 = vmatpush2.msra.mxu0 0.0
    %2918 = vmatprep.subr.mxu0 0.0
    %2919 = vmatpush2.msra.mxu0 0.0
    %2920 = vmatprep.subr.mxu0 0.0
    %2921 = vmatpush2.msra.mxu0 0.0
    %2922 = vmatprep.subr.mxu0 0.0
    %2923 = vmatpush2.msra.mxu0 0.0
    %2924 = vmatprep.subr.mxu0 0.0
    %2925 = vmatpush2.msra.mxu0 0.0
    %2926 = vmatprep.subr.mxu0 0.0
    %2927 = vmatpush2.msra.mxu0 0.0
    %2928 = vmatprep.subr.mxu0 0.0
    %2929 = vmatpush2.msra.mxu0 0.0
    %2930 = vmatprep.subr.mxu0 0.0
    %2931 = vmatpush2.msra.mxu0 0.0
    %2932 = vmatprep.subr.mxu0 0.0
    %2933 = vmatpush2.msra.mxu0 0.0
    %2934 = vmatprep.subr.mxu0 0.0
    %2935 = vmatpush2.msra.mxu0 0.0
    %2936 = vmatprep.subr.mxu0 0.0
    %2937 = vmatpush2.msra.mxu0 0.0
    %2938 = vmatprep.subr.mxu0 0.0
    %2939 = vmatpush2.msra.mxu0 0.0
    %2940 = vmatprep.subr.mxu0 0.0
    %2941 = vmatpush2.msra.mxu0 0.0
    %2942 = vmatprep.mubr.f32.mxu0 0.0
    %2943 = vmatmul.mubr.f32.gmra.mxu0 %v2876
    %v2944 = vpop.f32.mrf.mxu0
    %v2945 = vadd.f32 %v2775, %v2944
    %v2946 = vpop.f32.mrf.mxu0
    %2947 = vdwg.mxu0
    %v2948 = vxor.u32 %v2945, 2147483648
    %v2949 = vmul.f32 %v2948, 1.442695
    %v2950 = vpow.pop %v2949
    %v2951 = vadd.f32 %v2950, 1.0
    %v2952 = vrcp.pop %v2951
    %v2953 = vmul.f32 1.0, %v2952
    %v2954 = vtanh.pop %v2945
    %v2955 = vmul.f32 %v2953, %v2693
    %2957 = vrot.lane.b32.xlu0 %v2954, 64
    %v2958 = vpop.permute.xlu0 %2957
    %v2960 = vmul.f32 %v2953, %v2958
    %2962 = vrot.lane.b32.xlu0 %v2960, 32
    %v2963 = vpop.permute.xlu0 %2962
    %v2965 = vadd.f32 %v2955, %v2963
    %v2966 = vtanh.pop %v2965
    %2968 = vrot.lane.b32.xlu0 %v2966, 64
    %v2969 = vpop.permute.xlu0 %2968
    %v2971 = vmul.f32 %v2953, %v2969
    %2973 = vrot.lane.b32.xlu0 %v2971, 32
    %v2974 = vpop.permute.xlu0 %2973
    %v2975 = vsel %vm153, %v2974, 0
    %2977 = vmatprep.subr.mxu0 0.0
    %2978 = vmatpush1.msra.mxu0 0.0
    %2979 = vmatprep.subr.mxu0 0.0
    %2980 = vmatpush1.msra.mxu0 0.0
    %2981 = vmatprep.subr.mxu0 0.0
    %2982 = vmatpush1.msra.mxu0 0.0
    %2983 = vmatprep.subr.mxu0 0.0
    %2984 = vmatpush1.msra.mxu0 0.0
    %2985 = vmatprep.subr.mxu0 0.0
    %2986 = vmatpush1.msra.mxu0 0.0
    %2987 = vmatprep.subr.mxu0 0.0
    %2988 = vmatpush1.msra.mxu0 0.0
    %2989 = vmatprep.subr.mxu0 0.0
    %2990 = vmatpush1.msra.mxu0 0.0
    %2991 = vmatprep.subr.mxu0 0.0
    %2992 = vmatpush1.msra.mxu0 0.0
    %2993 = vmatprep.subr.mxu0 0.0
    %2994 = vmatpush1.msra.mxu0 0.0
    %2995 = vmatprep.subr.mxu0 0.0
    %2996 = vmatpush1.msra.mxu0 0.0
    %2997 = vmatprep.subr.mxu0 0.0
    %2998 = vmatpush1.msra.mxu0 0.0
    %2999 = vmatprep.subr.mxu0 0.0
    %3000 = vmatpush1.msra.mxu0 0.0
    %3001 = vmatprep.subr.mxu0 0.0
    %3002 = vmatpush1.msra.mxu0 %v335
    %3003 = vmatprep.subr.mxu0 0.0
    %3004 = vmatpush1.msra.mxu0 %v334
    %3005 = vmatprep.subr.mxu0 0.0
    %3006 = vmatpush1.msra.mxu0 %v333
    %3007 = vmatprep.subr.mxu0 0.0
    %3008 = vmatpush1.msra.mxu0 %v332
    %3009 = vmatprep.subr.mxu0 0.0
    %3010 = vmatpush2.msra.mxu0 0.0
    %3011 = vmatprep.subr.mxu0 0.0
    %3012 = vmatpush2.msra.mxu0 0.0
    %3013 = vmatprep.subr.mxu0 0.0
    %3014 = vmatpush2.msra.mxu0 0.0
    %3015 = vmatprep.subr.mxu0 0.0
    %3016 = vmatpush2.msra.mxu0 0.0
    %3017 = vmatprep.subr.mxu0 0.0
    %3018 = vmatpush2.msra.mxu0 0.0
    %3019 = vmatprep.subr.mxu0 0.0
    %3020 = vmatpush2.msra.mxu0 0.0
    %3021 = vmatprep.subr.mxu0 0.0
    %3022 = vmatpush2.msra.mxu0 0.0
    %3023 = vmatprep.subr.mxu0 0.0
    %3024 = vmatpush2.msra.mxu0 0.0
    %3025 = vmatprep.subr.mxu0 0.0
    %3026 = vmatpush2.msra.mxu0 0.0
    %3027 = vmatprep.subr.mxu0 0.0
    %3028 = vmatpush2.msra.mxu0 0.0
    %3029 = vmatprep.subr.mxu0 0.0
    %3030 = vmatpush2.msra.mxu0 0.0
    %3031 = vmatprep.subr.mxu0 0.0
    %3032 = vmatpush2.msra.mxu0 0.0
    %3033 = vmatprep.subr.mxu0 0.0
    %3034 = vmatpush2.msra.mxu0 0.0
    %3035 = vmatprep.subr.mxu0 0.0
    %3036 = vmatpush2.msra.mxu0 0.0
    %3037 = vmatprep.subr.mxu0 0.0
    %3038 = vmatpush2.msra.mxu0 0.0
    %3039 = vmatprep.subr.mxu0 0.0
    %3040 = vmatpush2.msra.mxu0 0.0
    %3041 = vmatprep.mubr.f32.mxu0 0.0
    %3042 = vmatmul.mubr.f32.gmra.mxu0 %v2975
    %v3043 = vpop.f32.mrf.mxu0
    %v3044 = vadd.f32 %v545, %v3043
    %v3045 = vpop.f32.mrf.mxu0
    %3046 = vdwg.mxu0
    %3047 = vmatprep.subr.mxu0 0.0
    %3048 = vmatpush1.msra.mxu0 0.0
    %3049 = vmatprep.subr.mxu0 0.0
    %3050 = vmatpush1.msra.mxu0 0.0
    %3051 = vmatprep.subr.mxu0 0.0
    %3052 = vmatpush1.msra.mxu0 0.0
    %3053 = vmatprep.subr.mxu0 0.0
    %3054 = vmatpush1.msra.mxu0 0.0
    %3055 = vmatprep.subr.mxu0 0.0
    %3056 = vmatpush1.msra.mxu0 0.0
    %3057 = vmatprep.subr.mxu0 0.0
    %3058 = vmatpush1.msra.mxu0 0.0
    %3059 = vmatprep.subr.mxu0 0.0
    %3060 = vmatpush1.msra.mxu0 0.0
    %3061 = vmatprep.subr.mxu0 0.0
    %3062 = vmatpush1.msra.mxu0 0.0
    %3063 = vmatprep.subr.mxu0 0.0
    %3064 = vmatpush1.msra.mxu0 0.0
    %3065 = vmatprep.subr.mxu0 0.0
    %3066 = vmatpush1.msra.mxu0 0.0
    %3067 = vmatprep.subr.mxu0 0.0
    %3068 = vmatpush1.msra.mxu0 0.0
    %3069 = vmatprep.subr.mxu0 0.0
    %3070 = vmatpush1.msra.mxu0 0.0
    %3071 = vmatprep.subr.mxu0 0.0
    %3072 = vmatpush1.msra.mxu0 %v326
    %3073 = vmatprep.subr.mxu0 0.0
    %3074 = vmatpush1.msra.mxu0 %v325
    %3075 = vmatprep.subr.mxu0 0.0
    %3076 = vmatpush1.msra.mxu0 %v324
    %3077 = vmatprep.subr.mxu0 0.0
    %3078 = vmatpush1.msra.mxu0 %v323
    %3079 = vmatprep.subr.mxu0 0.0
    %3080 = vmatpush2.msra.mxu0 0.0
    %3081 = vmatprep.subr.mxu0 0.0
    %3082 = vmatpush2.msra.mxu0 0.0
    %3083 = vmatprep.subr.mxu0 0.0
    %3084 = vmatpush2.msra.mxu0 0.0
    %3085 = vmatprep.subr.mxu0 0.0
    %3086 = vmatpush2.msra.mxu0 0.0
    %3087 = vmatprep.subr.mxu0 0.0
    %3088 = vmatpush2.msra.mxu0 0.0
    %3089 = vmatprep.subr.mxu0 0.0
    %3090 = vmatpush2.msra.mxu0 0.0
    %3091 = vmatprep.subr.mxu0 0.0
    %3092 = vmatpush2.msra.mxu0 0.0
    %3093 = vmatprep.subr.mxu0 0.0
    %3094 = vmatpush2.msra.mxu0 0.0
    %3095 = vmatprep.subr.mxu0 0.0
    %3096 = vmatpush2.msra.mxu0 0.0
    %3097 = vmatprep.subr.mxu0 0.0
    %3098 = vmatpush2.msra.mxu0 0.0
    %3099 = vmatprep.subr.mxu0 0.0
    %3100 = vmatpush2.msra.mxu0 0.0
    %3101 = vmatprep.subr.mxu0 0.0
    %3102 = vmatpush2.msra.mxu0 0.0
    %3103 = vmatprep.subr.mxu0 0.0
    %3104 = vmatpush2.msra.mxu0 0.0
    %3105 = vmatprep.subr.mxu0 0.0
    %3106 = vmatpush2.msra.mxu0 0.0
    %3107 = vmatprep.subr.mxu0 0.0
    %3108 = vmatpush2.msra.mxu0 0.0
    %3109 = vmatprep.subr.mxu0 0.0
    %3110 = vmatpush2.msra.mxu0 0.0
    %3111 = vmatprep.mubr.f32.mxu0 0.0
    %3112 = vmatmul.mubr.f32.gmra.mxu0 %v2876
    %v3113 = vpop.f32.mrf.mxu0
    %v3114 = vadd.f32 0.0, %v3113
    %v3115 = vpop.f32.mrf.mxu0
    %3116 = vdwg.mxu0
    %v3117 = vadd.f32 %v414, %v3114
    %v3118 = vxor.u32 %v3117, 2147483648
    %v3119 = vmul.f32 %v3118, 1.442695
    %v3120 = vpow.pop %v3119
    %v3121 = vadd.f32 %v3120, 1.0
    %v3122 = vrcp.pop %v3121
    %v3123 = vmul.f32 1.0, %v3122
    %v3124 = vtanh.pop %v3117
    %v3125 = vmul.f32 %v3123, %v2866
    %3127 = vrot.lane.b32.xlu0 %v3124, 64
    %v3128 = vpop.permute.xlu0 %3127
    %v3130 = vmul.f32 %v3123, %v3128
    %3132 = vrot.lane.b32.xlu0 %v3130, 32
    %v3133 = vpop.permute.xlu0 %3132
    %v3135 = vadd.f32 %v3125, %v3133
    %v3136 = vtanh.pop %v3135
    %3138 = vrot.lane.b32.xlu0 %v3136, 64
    %v3139 = vpop.permute.xlu0 %3138
    %v3141 = vmul.f32 %v3123, %v3139
    %3143 = vrot.lane.b32.xlu0 %v3141, 32
    %v3144 = vpop.permute.xlu0 %3143
    %v3145 = vsel %vm153, %v3144, 0
    %3147 = vmatprep.subr.mxu0 0.0
    %3148 = vmatpush1.msra.mxu0 0.0
    %3149 = vmatprep.subr.mxu0 0.0
    %3150 = vmatpush1.msra.mxu0 0.0
    %3151 = vmatprep.subr.mxu0 0.0
    %3152 = vmatpush1.msra.mxu0 0.0
    %3153 = vmatprep.subr.mxu0 0.0
    %3154 = vmatpush1.msra.mxu0 0.0
    %3155 = vmatprep.subr.mxu0 0.0
    %3156 = vmatpush1.msra.mxu0 0.0
    %3157 = vmatprep.subr.mxu0 0.0
    %3158 = vmatpush1.msra.mxu0 0.0
    %3159 = vmatprep.subr.mxu0 0.0
    %3160 = vmatpush1.msra.mxu0 0.0
    %3161 = vmatprep.subr.mxu0 0.0
    %3162 = vmatpush1.msra.mxu0 0.0
    %3163 = vmatprep.subr.mxu0 0.0
    %3164 = vmatpush1.msra.mxu0 0.0
    %3165 = vmatprep.subr.mxu0 0.0
    %3166 = vmatpush1.msra.mxu0 0.0
    %3167 = vmatprep.subr.mxu0 0.0
    %3168 = vmatpush1.msra.mxu0 0.0
    %3169 = vmatprep.subr.mxu0 0.0
    %3170 = vmatpush1.msra.mxu0 0.0
    %3171 = vmatprep.subr.mxu0 0.0
    %3172 = vmatpush1.msra.mxu0 %v331
    %3173 = vmatprep.subr.mxu0 0.0
    %3174 = vmatpush1.msra.mxu0 %v330
    %3175 = vmatprep.subr.mxu0 0.0
    %3176 = vmatpush1.msra.mxu0 %v329
    %3177 = vmatprep.subr.mxu0 0.0
    %3178 = vmatpush1.msra.mxu0 %v328
    %3179 = vmatprep.subr.mxu0 0.0
    %3180 = vmatpush2.msra.mxu0 0.0
    %3181 = vmatprep.subr.mxu0 0.0
    %3182 = vmatpush2.msra.mxu0 0.0
    %3183 = vmatprep.subr.mxu0 0.0
    %3184 = vmatpush2.msra.mxu0 0.0
    %3185 = vmatprep.subr.mxu0 0.0
    %3186 = vmatpush2.msra.mxu0 0.0
    %3187 = vmatprep.subr.mxu0 0.0
    %3188 = vmatpush2.msra.mxu0 0.0
    %3189 = vmatprep.subr.mxu0 0.0
    %3190 = vmatpush2.msra.mxu0 0.0
    %3191 = vmatprep.subr.mxu0 0.0
    %3192 = vmatpush2.msra.mxu0 0.0
    %3193 = vmatprep.subr.mxu0 0.0
    %3194 = vmatpush2.msra.mxu0 0.0
    %3195 = vmatprep.subr.mxu0 0.0
    %3196 = vmatpush2.msra.mxu0 0.0
    %3197 = vmatprep.subr.mxu0 0.0
    %3198 = vmatpush2.msra.mxu0 0.0
    %3199 = vmatprep.subr.mxu0 0.0
    %3200 = vmatpush2.msra.mxu0 0.0
    %3201 = vmatprep.subr.mxu0 0.0
    %3202 = vmatpush2.msra.mxu0 0.0
    %3203 = vmatprep.subr.mxu0 0.0
    %3204 = vmatpush2.msra.mxu0 0.0
    %3205 = vmatprep.subr.mxu0 0.0
    %3206 = vmatpush2.msra.mxu0 0.0
    %3207 = vmatprep.subr.mxu0 0.0
    %3208 = vmatpush2.msra.mxu0 0.0
    %3209 = vmatprep.subr.mxu0 0.0
    %3210 = vmatpush2.msra.mxu0 0.0
    %3211 = vmatprep.mubr.f32.mxu0 0.0
    %3212 = vmatmul.mubr.f32.gmra.mxu0 %v3145
    %v3213 = vpop.f32.mrf.mxu0
    %v3214 = vadd.f32 %v3044, %v3213
    %v3215 = vpop.f32.mrf.mxu0
    %3216 = vdwg.mxu0
    %v3217 = vxor.u32 %v3214, 2147483648
    %v3218 = vmul.f32 %v3217, 1.442695
    %v3219 = vpow.pop %v3218
    %v3220 = vadd.f32 %v3219, 1.0
    %v3221 = vrcp.pop %v3220
    %v3222 = vmul.f32 1.0, %v3221
    %v3223 = vtanh.pop %v3214
    %v3224 = vmul.f32 %v3222, %v2965
    %3226 = vrot.lane.b32.xlu0 %v3223, 64
    %v3227 = vpop.permute.xlu0 %3226
    %v3229 = vmul.f32 %v3222, %v3227
    %3231 = vrot.lane.b32.xlu0 %v3229, 32
    %v3232 = vpop.permute.xlu0 %3231
    %v3234 = vadd.f32 %v3224, %v3232
    %v3235 = vtanh.pop %v3234
    %3237 = vrot.lane.b32.xlu0 %v3235, 64
    %v3238 = vpop.permute.xlu0 %3237
    %v3240 = vmul.f32 %v3222, %v3238
    %3242 = vrot.lane.b32.xlu0 %v3240, 32
    %v3243 = vpop.permute.xlu0 %3242
    %v3244 = vsel %vm153, %v3243, 0
    %3246 = vmatprep.subr.mxu0 0.0
    %3247 = vmatpush1.msra.mxu0 0.0
    %3248 = vmatprep.subr.mxu0 0.0
    %3249 = vmatpush1.msra.mxu0 0.0
    %3250 = vmatprep.subr.mxu0 0.0
    %3251 = vmatpush1.msra.mxu0 0.0
    %3252 = vmatprep.subr.mxu0 0.0
    %3253 = vmatpush1.msra.mxu0 0.0
    %3254 = vmatprep.subr.mxu0 0.0
    %3255 = vmatpush1.msra.mxu0 0.0
    %3256 = vmatprep.subr.mxu0 0.0
    %3257 = vmatpush1.msra.mxu0 0.0
    %3258 = vmatprep.subr.mxu0 0.0
    %3259 = vmatpush1.msra.mxu0 0.0
    %3260 = vmatprep.subr.mxu0 0.0
    %3261 = vmatpush1.msra.mxu0 0.0
    %3262 = vmatprep.subr.mxu0 0.0
    %3263 = vmatpush1.msra.mxu0 0.0
    %3264 = vmatprep.subr.mxu0 0.0
    %3265 = vmatpush1.msra.mxu0 0.0
    %3266 = vmatprep.subr.mxu0 0.0
    %3267 = vmatpush1.msra.mxu0 0.0
    %3268 = vmatprep.subr.mxu0 0.0
    %3269 = vmatpush1.msra.mxu0 0.0
    %3270 = vmatprep.subr.mxu0 0.0
    %3271 = vmatpush1.msra.mxu0 %v335
    %3272 = vmatprep.subr.mxu0 0.0
    %3273 = vmatpush1.msra.mxu0 %v334
    %3274 = vmatprep.subr.mxu0 0.0
    %3275 = vmatpush1.msra.mxu0 %v333
    %3276 = vmatprep.subr.mxu0 0.0
    %3277 = vmatpush1.msra.mxu0 %v332
    %3278 = vmatprep.subr.mxu0 0.0
    %3279 = vmatpush2.msra.mxu0 0.0
    %3280 = vmatprep.subr.mxu0 0.0
    %3281 = vmatpush2.msra.mxu0 0.0
    %3282 = vmatprep.subr.mxu0 0.0
    %3283 = vmatpush2.msra.mxu0 0.0
    %3284 = vmatprep.subr.mxu0 0.0
    %3285 = vmatpush2.msra.mxu0 0.0
    %3286 = vmatprep.subr.mxu0 0.0
    %3287 = vmatpush2.msra.mxu0 0.0
    %3288 = vmatprep.subr.mxu0 0.0
    %3289 = vmatpush2.msra.mxu0 0.0
    %3290 = vmatprep.subr.mxu0 0.0
    %3291 = vmatpush2.msra.mxu0 0.0
    %3292 = vmatprep.subr.mxu0 0.0
    %3293 = vmatpush2.msra.mxu0 0.0
    %3294 = vmatprep.subr.mxu0 0.0
    %3295 = vmatpush2.msra.mxu0 0.0
    %3296 = vmatprep.subr.mxu0 0.0
    %3297 = vmatpush2.msra.mxu0 0.0
    %3298 = vmatprep.subr.mxu0 0.0
    %3299 = vmatpush2.msra.mxu0 0.0
    %3300 = vmatprep.subr.mxu0 0.0
    %3301 = vmatpush2.msra.mxu0 0.0
    %3302 = vmatprep.subr.mxu0 0.0
    %3303 = vmatpush2.msra.mxu0 0.0
    %3304 = vmatprep.subr.mxu0 0.0
    %3305 = vmatpush2.msra.mxu0 0.0
    %3306 = vmatprep.subr.mxu0 0.0
    %3307 = vmatpush2.msra.mxu0 0.0
    %3308 = vmatprep.subr.mxu0 0.0
    %3309 = vmatpush2.msra.mxu0 0.0
    %3310 = vmatprep.mubr.f32.mxu0 0.0
    %3311 = vmatmul.mubr.f32.gmra.mxu0 %v3244
    %v3312 = vpop.f32.mrf.mxu0
    %v3313 = vadd.f32 %v545, %v3312
    %v3314 = vpop.f32.mrf.mxu0
    %3315 = vdwg.mxu0
    %3316 = vmatprep.subr.mxu0 0.0
    %3317 = vmatpush1.msra.mxu0 0.0
    %3318 = vmatprep.subr.mxu0 0.0
    %3319 = vmatpush1.msra.mxu0 0.0
    %3320 = vmatprep.subr.mxu0 0.0
    %3321 = vmatpush1.msra.mxu0 0.0
    %3322 = vmatprep.subr.mxu0 0.0
    %3323 = vmatpush1.msra.mxu0 0.0
    %3324 = vmatprep.subr.mxu0 0.0
    %3325 = vmatpush1.msra.mxu0 0.0
    %3326 = vmatprep.subr.mxu0 0.0
    %3327 = vmatpush1.msra.mxu0 0.0
    %3328 = vmatprep.subr.mxu0 0.0
    %3329 = vmatpush1.msra.mxu0 0.0
    %3330 = vmatprep.subr.mxu0 0.0
    %3331 = vmatpush1.msra.mxu0 0.0
    %3332 = vmatprep.subr.mxu0 0.0
    %3333 = vmatpush1.msra.mxu0 0.0
    %3334 = vmatprep.subr.mxu0 0.0
    %3335 = vmatpush1.msra.mxu0 0.0
    %3336 = vmatprep.subr.mxu0 0.0
    %3337 = vmatpush1.msra.mxu0 0.0
    %3338 = vmatprep.subr.mxu0 0.0
    %3339 = vmatpush1.msra.mxu0 0.0
    %3340 = vmatprep.subr.mxu0 0.0
    %3341 = vmatpush1.msra.mxu0 %v326
    %3342 = vmatprep.subr.mxu0 0.0
    %3343 = vmatpush1.msra.mxu0 %v325
    %3344 = vmatprep.subr.mxu0 0.0
    %3345 = vmatpush1.msra.mxu0 %v324
    %3346 = vmatprep.subr.mxu0 0.0
    %3347 = vmatpush1.msra.mxu0 %v323
    %3348 = vmatprep.subr.mxu0 0.0
    %3349 = vmatpush2.msra.mxu0 0.0
    %3350 = vmatprep.subr.mxu0 0.0
    %3351 = vmatpush2.msra.mxu0 0.0
    %3352 = vmatprep.subr.mxu0 0.0
    %3353 = vmatpush2.msra.mxu0 0.0
    %3354 = vmatprep.subr.mxu0 0.0
    %3355 = vmatpush2.msra.mxu0 0.0
    %3356 = vmatprep.subr.mxu0 0.0
    %3357 = vmatpush2.msra.mxu0 0.0
    %3358 = vmatprep.subr.mxu0 0.0
    %3359 = vmatpush2.msra.mxu0 0.0
    %3360 = vmatprep.subr.mxu0 0.0
    %3361 = vmatpush2.msra.mxu0 0.0
    %3362 = vmatprep.subr.mxu0 0.0
    %3363 = vmatpush2.msra.mxu0 0.0
    %3364 = vmatprep.subr.mxu0 0.0
    %3365 = vmatpush2.msra.mxu0 0.0
    %3366 = vmatprep.subr.mxu0 0.0
    %3367 = vmatpush2.msra.mxu0 0.0
    %3368 = vmatprep.subr.mxu0 0.0
    %3369 = vmatpush2.msra.mxu0 0.0
    %3370 = vmatprep.subr.mxu0 0.0
    %3371 = vmatpush2.msra.mxu0 0.0
    %3372 = vmatprep.subr.mxu0 0.0
    %3373 = vmatpush2.msra.mxu0 0.0
    %3374 = vmatprep.subr.mxu0 0.0
    %3375 = vmatpush2.msra.mxu0 0.0
    %3376 = vmatprep.subr.mxu0 0.0
    %3377 = vmatpush2.msra.mxu0 0.0
    %3378 = vmatprep.subr.mxu0 0.0
    %3379 = vmatpush2.msra.mxu0 0.0
    %3380 = vmatprep.mubr.f32.mxu0 0.0
    %3381 = vmatmul.mubr.f32.gmra.mxu0 %v3145
    %v3382 = vpop.f32.mrf.mxu0
    %v3383 = vadd.f32 0.0, %v3382
    %v3384 = vpop.f32.mrf.mxu0
    %3385 = vdwg.mxu0
    %v3386 = vadd.f32 %v462, %v3383
    %v3387 = vxor.u32 %v3386, 2147483648
    %v3388 = vmul.f32 %v3387, 1.442695
    %v3389 = vpow.pop %v3388
    %v3390 = vadd.f32 %v3389, 1.0
    %v3391 = vrcp.pop %v3390
    %v3392 = vmul.f32 1.0, %v3391
    %v3393 = vtanh.pop %v3386
    %v3394 = vmul.f32 %v3392, %v3135
    %3396 = vrot.lane.b32.xlu0 %v3393, 64
    %v3397 = vpop.permute.xlu0 %3396
    %v3399 = vmul.f32 %v3392, %v3397
    %3401 = vrot.lane.b32.xlu0 %v3399, 32
    %v3402 = vpop.permute.xlu0 %3401
    %v3404 = vadd.f32 %v3394, %v3402
    %v3405 = vtanh.pop %v3404
    %3407 = vrot.lane.b32.xlu0 %v3405, 64
    %v3408 = vpop.permute.xlu0 %3407
    %v3410 = vmul.f32 %v3392, %v3408
    %3412 = vrot.lane.b32.xlu0 %v3410, 32
    %v3413 = vpop.permute.xlu0 %3412
    %v3414 = vsel %vm153, %v3413, 0
    %3416 = vmatprep.subr.mxu0 0.0
    %3417 = vmatpush1.msra.mxu0 0.0
    %3418 = vmatprep.subr.mxu0 0.0
    %3419 = vmatpush1.msra.mxu0 0.0
    %3420 = vmatprep.subr.mxu0 0.0
    %3421 = vmatpush1.msra.mxu0 0.0
    %3422 = vmatprep.subr.mxu0 0.0
    %3423 = vmatpush1.msra.mxu0 0.0
    %3424 = vmatprep.subr.mxu0 0.0
    %3425 = vmatpush1.msra.mxu0 0.0
    %3426 = vmatprep.subr.mxu0 0.0
    %3427 = vmatpush1.msra.mxu0 0.0
    %3428 = vmatprep.subr.mxu0 0.0
    %3429 = vmatpush1.msra.mxu0 0.0
    %3430 = vmatprep.subr.mxu0 0.0
    %3431 = vmatpush1.msra.mxu0 0.0
    %3432 = vmatprep.subr.mxu0 0.0
    %3433 = vmatpush1.msra.mxu0 0.0
    %3434 = vmatprep.subr.mxu0 0.0
    %3435 = vmatpush1.msra.mxu0 0.0
    %3436 = vmatprep.subr.mxu0 0.0
    %3437 = vmatpush1.msra.mxu0 0.0
    %3438 = vmatprep.subr.mxu0 0.0
    %3439 = vmatpush1.msra.mxu0 0.0
    %3440 = vmatprep.subr.mxu0 0.0
    %3441 = vmatpush1.msra.mxu0 %v331
    %3442 = vmatprep.subr.mxu0 0.0
    %3443 = vmatpush1.msra.mxu0 %v330
    %3444 = vmatprep.subr.mxu0 0.0
    %3445 = vmatpush1.msra.mxu0 %v329
    %3446 = vmatprep.subr.mxu0 0.0
    %3447 = vmatpush1.msra.mxu0 %v328
    %3448 = vmatprep.subr.mxu0 0.0
    %3449 = vmatpush2.msra.mxu0 0.0
    %3450 = vmatprep.subr.mxu0 0.0
    %3451 = vmatpush2.msra.mxu0 0.0
    %3452 = vmatprep.subr.mxu0 0.0
    %3453 = vmatpush2.msra.mxu0 0.0
    %3454 = vmatprep.subr.mxu0 0.0
    %3455 = vmatpush2.msra.mxu0 0.0
    %3456 = vmatprep.subr.mxu0 0.0
    %3457 = vmatpush2.msra.mxu0 0.0
    %3458 = vmatprep.subr.mxu0 0.0
    %3459 = vmatpush2.msra.mxu0 0.0
    %3460 = vmatprep.subr.mxu0 0.0
    %3461 = vmatpush2.msra.mxu0 0.0
    %3462 = vmatprep.subr.mxu0 0.0
    %3463 = vmatpush2.msra.mxu0 0.0
    %3464 = vmatprep.subr.mxu0 0.0
    %3465 = vmatpush2.msra.mxu0 0.0
    %3466 = vmatprep.subr.mxu0 0.0
    %3467 = vmatpush2.msra.mxu0 0.0
    %3468 = vmatprep.subr.mxu0 0.0
    %3469 = vmatpush2.msra.mxu0 0.0
    %3470 = vmatprep.subr.mxu0 0.0
    %3471 = vmatpush2.msra.mxu0 0.0
    %3472 = vmatprep.subr.mxu0 0.0
    %3473 = vmatpush2.msra.mxu0 0.0
    %3474 = vmatprep.subr.mxu0 0.0
    %3475 = vmatpush2.msra.mxu0 0.0
    %3476 = vmatprep.subr.mxu0 0.0
    %3477 = vmatpush2.msra.mxu0 0.0
    %3478 = vmatprep.subr.mxu0 0.0
    %3479 = vmatpush2.msra.mxu0 0.0
    %3480 = vmatprep.mubr.f32.mxu0 0.0
    %3481 = vmatmul.mubr.f32.gmra.mxu0 %v3414
    %v3482 = vpop.f32.mrf.mxu0
    %v3483 = vadd.f32 %v3313, %v3482
    %v3484 = vpop.f32.mrf.mxu0
    %3485 = vdwg.mxu0
    %v3486 = vxor.u32 %v3483, 2147483648
    %v3487 = vmul.f32 %v3486, 1.442695
    %v3488 = vpow.pop %v3487
    %v3489 = vadd.f32 %v3488, 1.0
    %v3490 = vrcp.pop %v3489
    %v3491 = vmul.f32 1.0, %v3490
    %v3492 = vtanh.pop %v3483
    %v3493 = vmul.f32 %v3491, %v3234
    %3495 = vrot.lane.b32.xlu0 %v3492, 64
    %v3496 = vpop.permute.xlu0 %3495
    %v3498 = vmul.f32 %v3491, %v3496
    %3500 = vrot.lane.b32.xlu0 %v3498, 32
    %v3501 = vpop.permute.xlu0 %3500
    %v3503 = vadd.f32 %v3493, %v3501
    %v3504 = vtanh.pop %v3503
    %3506 = vrot.lane.b32.xlu0 %v3504, 64
    %v3507 = vpop.permute.xlu0 %3506
    %v3509 = vmul.f32 %v3491, %v3507
    %3511 = vrot.lane.b32.xlu0 %v3509, 32
    %v3512 = vpop.permute.xlu0 %3511
    %v3513 = vsel %vm153, %v3512, 0
    %3515 = vmatprep.subr.mxu0 0.0
    %3516 = vmatpush1.msra.mxu0 0.0
    %3517 = vmatprep.subr.mxu0 0.0
    %3518 = vmatpush1.msra.mxu0 0.0
    %3519 = vmatprep.subr.mxu0 0.0
    %3520 = vmatpush1.msra.mxu0 0.0
    %3521 = vmatprep.subr.mxu0 0.0
    %3522 = vmatpush1.msra.mxu0 0.0
    %3523 = vmatprep.subr.mxu0 0.0
    %3524 = vmatpush1.msra.mxu0 0.0
    %3525 = vmatprep.subr.mxu0 0.0
    %3526 = vmatpush1.msra.mxu0 0.0
    %3527 = vmatprep.subr.mxu0 0.0
    %3528 = vmatpush1.msra.mxu0 0.0
    %3529 = vmatprep.subr.mxu0 0.0
    %3530 = vmatpush1.msra.mxu0 0.0
    %3531 = vmatprep.subr.mxu0 0.0
    %3532 = vmatpush1.msra.mxu0 0.0
    %3533 = vmatprep.subr.mxu0 0.0
    %3534 = vmatpush1.msra.mxu0 0.0
    %3535 = vmatprep.subr.mxu0 0.0
    %3536 = vmatpush1.msra.mxu0 0.0
    %3537 = vmatprep.subr.mxu0 0.0
    %3538 = vmatpush1.msra.mxu0 0.0
    %3539 = vmatprep.subr.mxu0 0.0
    %3540 = vmatpush1.msra.mxu0 %v335
    %3541 = vmatprep.subr.mxu0 0.0
    %3542 = vmatpush1.msra.mxu0 %v334
    %3543 = vmatprep.subr.mxu0 0.0
    %3544 = vmatpush1.msra.mxu0 %v333
    %3545 = vmatprep.subr.mxu0 0.0
    %3546 = vmatpush1.msra.mxu0 %v332
    %3547 = vmatprep.subr.mxu0 0.0
    %3548 = vmatpush2.msra.mxu0 0.0
    %3549 = vmatprep.subr.mxu0 0.0
    %3550 = vmatpush2.msra.mxu0 0.0
    %3551 = vmatprep.subr.mxu0 0.0
    %3552 = vmatpush2.msra.mxu0 0.0
    %3553 = vmatprep.subr.mxu0 0.0
    %3554 = vmatpush2.msra.mxu0 0.0
    %3555 = vmatprep.subr.mxu0 0.0
    %3556 = vmatpush2.msra.mxu0 0.0
    %3557 = vmatprep.subr.mxu0 0.0
    %3558 = vmatpush2.msra.mxu0 0.0
    %3559 = vmatprep.subr.mxu0 0.0
    %3560 = vmatpush2.msra.mxu0 0.0
    %3561 = vmatprep.subr.mxu0 0.0
    %3562 = vmatpush2.msra.mxu0 0.0
    %3563 = vmatprep.subr.mxu0 0.0
    %3564 = vmatpush2.msra.mxu0 0.0
    %3565 = vmatprep.subr.mxu0 0.0
    %3566 = vmatpush2.msra.mxu0 0.0
    %3567 = vmatprep.subr.mxu0 0.0
    %3568 = vmatpush2.msra.mxu0 0.0
    %3569 = vmatprep.subr.mxu0 0.0
    %3570 = vmatpush2.msra.mxu0 0.0
    %3571 = vmatprep.subr.mxu0 0.0
    %3572 = vmatpush2.msra.mxu0 0.0
    %3573 = vmatprep.subr.mxu0 0.0
    %3574 = vmatpush2.msra.mxu0 0.0
    %3575 = vmatprep.subr.mxu0 0.0
    %3576 = vmatpush2.msra.mxu0 0.0
    %3577 = vmatprep.subr.mxu0 0.0
    %3578 = vmatpush2.msra.mxu0 0.0
    %3579 = vmatprep.mubr.f32.mxu0 0.0
    %3580 = vmatmul.mubr.f32.gmra.mxu0 %v3513
    %v3581 = vpop.f32.mrf.mxu0
    %v3582 = vadd.f32 %v545, %v3581
    %v3583 = vpop.f32.mrf.mxu0
    %3584 = vdwg.mxu0
    %3585 = vmatprep.subr.mxu0 0.0
    %3586 = vmatpush1.msra.mxu0 0.0
    %3587 = vmatprep.subr.mxu0 0.0
    %3588 = vmatpush1.msra.mxu0 0.0
    %3589 = vmatprep.subr.mxu0 0.0
    %3590 = vmatpush1.msra.mxu0 0.0
    %3591 = vmatprep.subr.mxu0 0.0
    %3592 = vmatpush1.msra.mxu0 0.0
    %3593 = vmatprep.subr.mxu0 0.0
    %3594 = vmatpush1.msra.mxu0 0.0
    %3595 = vmatprep.subr.mxu0 0.0
    %3596 = vmatpush1.msra.mxu0 0.0
    %3597 = vmatprep.subr.mxu0 0.0
    %3598 = vmatpush1.msra.mxu0 0.0
    %3599 = vmatprep.subr.mxu0 0.0
    %3600 = vmatpush1.msra.mxu0 0.0
    %3601 = vmatprep.subr.mxu0 0.0
    %3602 = vmatpush1.msra.mxu0 0.0
    %3603 = vmatprep.subr.mxu0 0.0
    %3604 = vmatpush1.msra.mxu0 0.0
    %3605 = vmatprep.subr.mxu0 0.0
    %3606 = vmatpush1.msra.mxu0 0.0
    %3607 = vmatprep.subr.mxu0 0.0
    %3608 = vmatpush1.msra.mxu0 0.0
    %3609 = vmatprep.subr.mxu0 0.0
    %3610 = vmatpush1.msra.mxu0 %v326
    %3611 = vmatprep.subr.mxu0 0.0
    %3612 = vmatpush1.msra.mxu0 %v325
    %3613 = vmatprep.subr.mxu0 0.0
    %3614 = vmatpush1.msra.mxu0 %v324
    %3615 = vmatprep.subr.mxu0 0.0
    %3616 = vmatpush1.msra.mxu0 %v323
    %3617 = vmatprep.subr.mxu0 0.0
    %3618 = vmatpush2.msra.mxu0 0.0
    %3619 = vmatprep.subr.mxu0 0.0
    %3620 = vmatpush2.msra.mxu0 0.0
    %3621 = vmatprep.subr.mxu0 0.0
    %3622 = vmatpush2.msra.mxu0 0.0
    %3623 = vmatprep.subr.mxu0 0.0
    %3624 = vmatpush2.msra.mxu0 0.0
    %3625 = vmatprep.subr.mxu0 0.0
    %3626 = vmatpush2.msra.mxu0 0.0
    %3627 = vmatprep.subr.mxu0 0.0
    %3628 = vmatpush2.msra.mxu0 0.0
    %3629 = vmatprep.subr.mxu0 0.0
    %3630 = vmatpush2.msra.mxu0 0.0
    %3631 = vmatprep.subr.mxu0 0.0
    %3632 = vmatpush2.msra.mxu0 0.0
    %3633 = vmatprep.subr.mxu0 0.0
    %3634 = vmatpush2.msra.mxu0 0.0
    %3635 = vmatprep.subr.mxu0 0.0
    %3636 = vmatpush2.msra.mxu0 0.0
    %3637 = vmatprep.subr.mxu0 0.0
    %3638 = vmatpush2.msra.mxu0 0.0
    %3639 = vmatprep.subr.mxu0 0.0
    %3640 = vmatpush2.msra.mxu0 0.0
    %3641 = vmatprep.subr.mxu0 0.0
    %3642 = vmatpush2.msra.mxu0 0.0
    %3643 = vmatprep.subr.mxu0 0.0
    %3644 = vmatpush2.msra.mxu0 0.0
    %3645 = vmatprep.subr.mxu0 0.0
    %3646 = vmatpush2.msra.mxu0 0.0
    %3647 = vmatprep.subr.mxu0 0.0
    %3648 = vmatpush2.msra.mxu0 0.0
    %3649 = vmatprep.mubr.f32.mxu0 0.0
    %3650 = vmatmul.mubr.f32.gmra.mxu0 %v3414
    %v3651 = vpop.f32.mrf.mxu0
    %v3652 = vadd.f32 0.0, %v3651
    %v3653 = vpop.f32.mrf.mxu0
    %3654 = vdwg.mxu0
    %v3655 = vadd.f32 %v510, %v3652
    %v3656 = vxor.u32 %v3655, 2147483648
    %v3657 = vmul.f32 %v3656, 1.442695
    %v3658 = vpow.pop %v3657
    %v3659 = vadd.f32 %v3658, 1.0
    %v3660 = vrcp.pop %v3659
    %v3661 = vmul.f32 1.0, %v3660
    %v3662 = vtanh.pop %v3655
    %v3663 = vmul.f32 %v3661, %v3404
    %3665 = vrot.lane.b32.xlu0 %v3662, 64
    %v3666 = vpop.permute.xlu0 %3665
    %v3668 = vmul.f32 %v3661, %v3666
    %3670 = vrot.lane.b32.xlu0 %v3668, 32
    %v3671 = vpop.permute.xlu0 %3670
    %v3673 = vadd.f32 %v3663, %v3671
    %v3674 = vtanh.pop %v3673
    %3676 = vrot.lane.b32.xlu0 %v3674, 64
    %v3677 = vpop.permute.xlu0 %3676
    %v3679 = vmul.f32 %v3661, %v3677
    %3681 = vrot.lane.b32.xlu0 %v3679, 32
    %v3682 = vpop.permute.xlu0 %3681
    %v3683 = vsel %vm153, %v3682, 0
    %3685 = vmatprep.subr.mxu0 0.0
    %3686 = vmatpush1.msra.mxu0 0.0
    %3687 = vmatprep.subr.mxu0 0.0
    %3688 = vmatpush1.msra.mxu0 0.0
    %3689 = vmatprep.subr.mxu0 0.0
    %3690 = vmatpush1.msra.mxu0 0.0
    %3691 = vmatprep.subr.mxu0 0.0
    %3692 = vmatpush1.msra.mxu0 0.0
    %3693 = vmatprep.subr.mxu0 0.0
    %3694 = vmatpush1.msra.mxu0 0.0
    %3695 = vmatprep.subr.mxu0 0.0
    %3696 = vmatpush1.msra.mxu0 0.0
    %3697 = vmatprep.subr.mxu0 0.0
    %3698 = vmatpush1.msra.mxu0 0.0
    %3699 = vmatprep.subr.mxu0 0.0
    %3700 = vmatpush1.msra.mxu0 0.0
    %3701 = vmatprep.subr.mxu0 0.0
    %3702 = vmatpush1.msra.mxu0 0.0
    %3703 = vmatprep.subr.mxu0 0.0
    %3704 = vmatpush1.msra.mxu0 0.0
    %3705 = vmatprep.subr.mxu0 0.0
    %3706 = vmatpush1.msra.mxu0 0.0
    %3707 = vmatprep.subr.mxu0 0.0
    %3708 = vmatpush1.msra.mxu0 0.0
    %3709 = vmatprep.subr.mxu0 0.0
    %3710 = vmatpush1.msra.mxu0 %v331
    %3711 = vmatprep.subr.mxu0 0.0
    %3712 = vmatpush1.msra.mxu0 %v330
    %3713 = vmatprep.subr.mxu0 0.0
    %3714 = vmatpush1.msra.mxu0 %v329
    %3715 = vmatprep.subr.mxu0 0.0
    %3716 = vmatpush1.msra.mxu0 %v328
    %3717 = vmatprep.subr.mxu0 0.0
    %3718 = vmatpush2.msra.mxu0 0.0
    %3719 = vmatprep.subr.mxu0 0.0
    %3720 = vmatpush2.msra.mxu0 0.0
    %3721 = vmatprep.subr.mxu0 0.0
    %3722 = vmatpush2.msra.mxu0 0.0
    %3723 = vmatprep.subr.mxu0 0.0
    %3724 = vmatpush2.msra.mxu0 0.0
    %3725 = vmatprep.subr.mxu0 0.0
    %3726 = vmatpush2.msra.mxu0 0.0
    %3727 = vmatprep.subr.mxu0 0.0
    %3728 = vmatpush2.msra.mxu0 0.0
    %3729 = vmatprep.subr.mxu0 0.0
    %3730 = vmatpush2.msra.mxu0 0.0
    %3731 = vmatprep.subr.mxu0 0.0
    %3732 = vmatpush2.msra.mxu0 0.0
    %3733 = vmatprep.subr.mxu0 0.0
    %3734 = vmatpush2.msra.mxu0 0.0
    %3735 = vmatprep.subr.mxu0 0.0
    %3736 = vmatpush2.msra.mxu0 0.0
    %3737 = vmatprep.subr.mxu0 0.0
    %3738 = vmatpush2.msra.mxu0 0.0
    %3739 = vmatprep.subr.mxu0 0.0
    %3740 = vmatpush2.msra.mxu0 0.0
    %3741 = vmatprep.subr.mxu0 0.0
    %3742 = vmatpush2.msra.mxu0 0.0
    %3743 = vmatprep.subr.mxu0 0.0
    %3744 = vmatpush2.msra.mxu0 0.0
    %3745 = vmatprep.subr.mxu0 0.0
    %3746 = vmatpush2.msra.mxu0 0.0
    %3747 = vmatprep.subr.mxu0 0.0
    %3748 = vmatpush2.msra.mxu0 0.0
    %3749 = vmatprep.mubr.f32.mxu0 0.0
    %3750 = vmatmul.mubr.f32.gmra.mxu0 %v3683
    %v3751 = vpop.f32.mrf.mxu0
    %v3752 = vadd.f32 %v3582, %v3751
    %v3753 = vpop.f32.mrf.mxu0
    %3754 = vdwg.mxu0
    %v3755 = vxor.u32 %v3752, 2147483648
    %v3756 = vmul.f32 %v3755, 1.442695
    %v3757 = vpow.pop %v3756
    %v3758 = vadd.f32 %v3757, 1.0
    %v3759 = vrcp.pop %v3758
    %v3760 = vmul.f32 1.0, %v3759
    %v3761 = vtanh.pop %v3752
    %v3762 = vmul.f32 %v3760, %v3503
    %3764 = vrot.lane.b32.xlu0 %v3761, 64
    %v3765 = vpop.permute.xlu0 %3764
    %v3767 = vmul.f32 %v3760, %v3765
    %3769 = vrot.lane.b32.xlu0 %v3767, 32
    %v3770 = vpop.permute.xlu0 %3769
    %v3772 = vadd.f32 %v3762, %v3770
    %v3773 = vtanh.pop %v3772
    %3775 = vrot.lane.b32.xlu0 %v3773, 64
    %v3776 = vpop.permute.xlu0 %3775
    %v3778 = vmul.f32 %v3760, %v3776
    %3780 = vrot.lane.b32.xlu0 %v3778, 32
    %v3781 = vpop.permute.xlu0 %3780
    %s3783 = scalar_lea.vmem [#allocation14], 4
    %3784 = vst.msk [vmem:[%s3783] sm:$0x3] %vm1625, %v3781
    %v3785 = vsel %vm153, %v3781, 0
    %3787 = vmatprep.subr.mxu0 0.0
    %3788 = vmatpush1.msra.mxu0 0.0
    %3789 = vmatprep.subr.mxu0 0.0
    %3790 = vmatpush1.msra.mxu0 0.0
    %3791 = vmatprep.subr.mxu0 0.0
    %3792 = vmatpush1.msra.mxu0 0.0
    %3793 = vmatprep.subr.mxu0 0.0
    %3794 = vmatpush1.msra.mxu0 0.0
    %3795 = vmatprep.subr.mxu0 0.0
    %3796 = vmatpush1.msra.mxu0 0.0
    %3797 = vmatprep.subr.mxu0 0.0
    %3798 = vmatpush1.msra.mxu0 0.0
    %3799 = vmatprep.subr.mxu0 0.0
    %3800 = vmatpush1.msra.mxu0 0.0
    %3801 = vmatprep.subr.mxu0 0.0
    %3802 = vmatpush1.msra.mxu0 0.0
    %3803 = vmatprep.subr.mxu0 0.0
    %3804 = vmatpush1.msra.mxu0 0.0
    %3805 = vmatprep.subr.mxu0 0.0
    %3806 = vmatpush1.msra.mxu0 0.0
    %3807 = vmatprep.subr.mxu0 0.0
    %3808 = vmatpush1.msra.mxu0 0.0
    %3809 = vmatprep.subr.mxu0 0.0
    %3810 = vmatpush1.msra.mxu0 0.0
    %3811 = vmatprep.subr.mxu0 0.0
    %3812 = vmatpush1.msra.mxu0 %v335
    %3813 = vmatprep.subr.mxu0 0.0
    %3814 = vmatpush1.msra.mxu0 %v334
    %3815 = vmatprep.subr.mxu0 0.0
    %3816 = vmatpush1.msra.mxu0 %v333
    %3817 = vmatprep.subr.mxu0 0.0
    %3818 = vmatpush1.msra.mxu0 %v332
    %3819 = vmatprep.subr.mxu0 0.0
    %3820 = vmatpush2.msra.mxu0 0.0
    %3821 = vmatprep.subr.mxu0 0.0
    %3822 = vmatpush2.msra.mxu0 0.0
    %3823 = vmatprep.subr.mxu0 0.0
    %3824 = vmatpush2.msra.mxu0 0.0
    %3825 = vmatprep.subr.mxu0 0.0
    %3826 = vmatpush2.msra.mxu0 0.0
    %3827 = vmatprep.subr.mxu0 0.0
    %3828 = vmatpush2.msra.mxu0 0.0
    %3829 = vmatprep.subr.mxu0 0.0
    %3830 = vmatpush2.msra.mxu0 0.0
    %3831 = vmatprep.subr.mxu0 0.0
    %3832 = vmatpush2.msra.mxu0 0.0
    %3833 = vmatprep.subr.mxu0 0.0
    %3834 = vmatpush2.msra.mxu0 0.0
    %3835 = vmatprep.subr.mxu0 0.0
    %3836 = vmatpush2.msra.mxu0 0.0
    %3837 = vmatprep.subr.mxu0 0.0
    %3838 = vmatpush2.msra.mxu0 0.0
    %3839 = vmatprep.subr.mxu0 0.0
    %3840 = vmatpush2.msra.mxu0 0.0
    %3841 = vmatprep.subr.mxu0 0.0
    %3842 = vmatpush2.msra.mxu0 0.0
    %3843 = vmatprep.subr.mxu0 0.0
    %3844 = vmatpush2.msra.mxu0 0.0
    %3845 = vmatprep.subr.mxu0 0.0
    %3846 = vmatpush2.msra.mxu0 0.0
    %3847 = vmatprep.subr.mxu0 0.0
    %3848 = vmatpush2.msra.mxu0 0.0
    %3849 = vmatprep.subr.mxu0 0.0
    %3850 = vmatpush2.msra.mxu0 0.0
    %3851 = vmatprep.mubr.f32.mxu0 0.0
    %3852 = vmatmul.mubr.f32.gmra.mxu0 %v3785
    %v3853 = vpop.f32.mrf.mxu0
    %v3854 = vadd.f32 %v545, %v3853
    %v3855 = vpop.f32.mrf.mxu0
    %3856 = vdwg.mxu0
    %3857 = vmatprep.subr.mxu0 0.0
    %3858 = vmatpush1.msra.mxu0 0.0
    %3859 = vmatprep.subr.mxu0 0.0
    %3860 = vmatpush1.msra.mxu0 0.0
    %3861 = vmatprep.subr.mxu0 0.0
    %3862 = vmatpush1.msra.mxu0 0.0
    %3863 = vmatprep.subr.mxu0 0.0
    %3864 = vmatpush1.msra.mxu0 0.0
    %3865 = vmatprep.subr.mxu0 0.0
    %3866 = vmatpush1.msra.mxu0 0.0
    %3867 = vmatprep.subr.mxu0 0.0
    %3868 = vmatpush1.msra.mxu0 0.0
    %3869 = vmatprep.subr.mxu0 0.0
    %3870 = vmatpush1.msra.mxu0 0.0
    %3871 = vmatprep.subr.mxu0 0.0
    %3872 = vmatpush1.msra.mxu0 0.0
    %3873 = vmatprep.subr.mxu0 0.0
    %3874 = vmatpush1.msra.mxu0 0.0
    %3875 = vmatprep.subr.mxu0 0.0
    %3876 = vmatpush1.msra.mxu0 0.0
    %3877 = vmatprep.subr.mxu0 0.0
    %3878 = vmatpush1.msra.mxu0 0.0
    %3879 = vmatprep.subr.mxu0 0.0
    %3880 = vmatpush1.msra.mxu0 0.0
    %3881 = vmatprep.subr.mxu0 0.0
    %3882 = vmatpush1.msra.mxu0 %v326
    %3883 = vmatprep.subr.mxu0 0.0
    %3884 = vmatpush1.msra.mxu0 %v325
    %3885 = vmatprep.subr.mxu0 0.0
    %3886 = vmatpush1.msra.mxu0 %v324
    %3887 = vmatprep.subr.mxu0 0.0
    %3888 = vmatpush1.msra.mxu0 %v323
    %3889 = vmatprep.subr.mxu0 0.0
    %3890 = vmatpush2.msra.mxu0 0.0
    %3891 = vmatprep.subr.mxu0 0.0
    %3892 = vmatpush2.msra.mxu0 0.0
    %3893 = vmatprep.subr.mxu0 0.0
    %3894 = vmatpush2.msra.mxu0 0.0
    %3895 = vmatprep.subr.mxu0 0.0
    %3896 = vmatpush2.msra.mxu0 0.0
    %3897 = vmatprep.subr.mxu0 0.0
    %3898 = vmatpush2.msra.mxu0 0.0
    %3899 = vmatprep.subr.mxu0 0.0
    %3900 = vmatpush2.msra.mxu0 0.0
    %3901 = vmatprep.subr.mxu0 0.0
    %3902 = vmatpush2.msra.mxu0 0.0
    %3903 = vmatprep.subr.mxu0 0.0
    %3904 = vmatpush2.msra.mxu0 0.0
    %3905 = vmatprep.subr.mxu0 0.0
    %3906 = vmatpush2.msra.mxu0 0.0
    %3907 = vmatprep.subr.mxu0 0.0
    %3908 = vmatpush2.msra.mxu0 0.0
    %3909 = vmatprep.subr.mxu0 0.0
    %3910 = vmatpush2.msra.mxu0 0.0
    %3911 = vmatprep.subr.mxu0 0.0
    %3912 = vmatpush2.msra.mxu0 0.0
    %3913 = vmatprep.subr.mxu0 0.0
    %3914 = vmatpush2.msra.mxu0 0.0
    %3915 = vmatprep.subr.mxu0 0.0
    %3916 = vmatpush2.msra.mxu0 0.0
    %3917 = vmatprep.subr.mxu0 0.0
    %3918 = vmatpush2.msra.mxu0 0.0
    %3919 = vmatprep.subr.mxu0 0.0
    %3920 = vmatpush2.msra.mxu0 0.0
    %3921 = vmatprep.mubr.f32.mxu0 0.0
    %3922 = vmatmul.mubr.f32.gmra.mxu0 %v3683
    %v3923 = vpop.f32.mrf.mxu0
    %v3924 = vadd.f32 0.0, %v3923
    %v3925 = vpop.f32.mrf.mxu0
    %3926 = vdwg.mxu0
    %v3927 = vadd.f32 %v372, %v3924
    %v3928 = vxor.u32 %v3927, 2147483648
    %v3929 = vmul.f32 %v3928, 1.442695
    %v3930 = vpow.pop %v3929
    %v3931 = vadd.f32 %v3930, 1.0
    %v3932 = vrcp.pop %v3931
    %v3933 = vmul.f32 1.0, %v3932
    %v3934 = vtanh.pop %v3927
    %v3935 = vmul.f32 %v3933, %v3673
    %3937 = vrot.lane.b32.xlu0 %v3934, 64
    %v3938 = vpop.permute.xlu0 %3937
    %v3940 = vmul.f32 %v3933, %v3938
    %3942 = vrot.lane.b32.xlu0 %v3940, 32
    %v3943 = vpop.permute.xlu0 %3942
    %v3945 = vadd.f32 %v3935, %v3943
    %v3946 = vtanh.pop %v3945
    %3948 = vrot.lane.b32.xlu0 %v3946, 64
    %v3949 = vpop.permute.xlu0 %3948
    %v3951 = vmul.f32 %v3933, %v3949
    %3953 = vrot.lane.b32.xlu0 %v3951, 32
    %v3954 = vpop.permute.xlu0 %3953
    %v3955 = vsel %vm153, %v3954, 0
    %3957 = vmatprep.subr.mxu0 0.0
    %3958 = vmatpush1.msra.mxu0 0.0
    %3959 = vmatprep.subr.mxu0 0.0
    %3960 = vmatpush1.msra.mxu0 0.0
    %3961 = vmatprep.subr.mxu0 0.0
    %3962 = vmatpush1.msra.mxu0 0.0
    %3963 = vmatprep.subr.mxu0 0.0
    %3964 = vmatpush1.msra.mxu0 0.0
    %3965 = vmatprep.subr.mxu0 0.0
    %3966 = vmatpush1.msra.mxu0 0.0
    %3967 = vmatprep.subr.mxu0 0.0
    %3968 = vmatpush1.msra.mxu0 0.0
    %3969 = vmatprep.subr.mxu0 0.0
    %3970 = vmatpush1.msra.mxu0 0.0
    %3971 = vmatprep.subr.mxu0 0.0
    %3972 = vmatpush1.msra.mxu0 0.0
    %3973 = vmatprep.subr.mxu0 0.0
    %3974 = vmatpush1.msra.mxu0 0.0
    %3975 = vmatprep.subr.mxu0 0.0
    %3976 = vmatpush1.msra.mxu0 0.0
    %3977 = vmatprep.subr.mxu0 0.0
    %3978 = vmatpush1.msra.mxu0 0.0
    %3979 = vmatprep.subr.mxu0 0.0
    %3980 = vmatpush1.msra.mxu0 0.0
    %3981 = vmatprep.subr.mxu0 0.0
    %3982 = vmatpush1.msra.mxu0 %v331
    %3983 = vmatprep.subr.mxu0 0.0
    %3984 = vmatpush1.msra.mxu0 %v330
    %3985 = vmatprep.subr.mxu0 0.0
    %3986 = vmatpush1.msra.mxu0 %v329
    %3987 = vmatprep.subr.mxu0 0.0
    %3988 = vmatpush1.msra.mxu0 %v328
    %3989 = vmatprep.subr.mxu0 0.0
    %3990 = vmatpush2.msra.mxu0 0.0
    %3991 = vmatprep.subr.mxu0 0.0
    %3992 = vmatpush2.msra.mxu0 0.0
    %3993 = vmatprep.subr.mxu0 0.0
    %3994 = vmatpush2.msra.mxu0 0.0
    %3995 = vmatprep.subr.mxu0 0.0
    %3996 = vmatpush2.msra.mxu0 0.0
    %3997 = vmatprep.subr.mxu0 0.0
    %3998 = vmatpush2.msra.mxu0 0.0
    %3999 = vmatprep.subr.mxu0 0.0
    %4000 = vmatpush2.msra.mxu0 0.0
    %4001 = vmatprep.subr.mxu0 0.0
    %4002 = vmatpush2.msra.mxu0 0.0
    %4003 = vmatprep.subr.mxu0 0.0
    %4004 = vmatpush2.msra.mxu0 0.0
    %4005 = vmatprep.subr.mxu0 0.0
    %4006 = vmatpush2.msra.mxu0 0.0
    %4007 = vmatprep.subr.mxu0 0.0
    %4008 = vmatpush2.msra.mxu0 0.0
    %4009 = vmatprep.subr.mxu0 0.0
    %4010 = vmatpush2.msra.mxu0 0.0
    %4011 = vmatprep.subr.mxu0 0.0
    %4012 = vmatpush2.msra.mxu0 0.0
    %4013 = vmatprep.subr.mxu0 0.0
    %4014 = vmatpush2.msra.mxu0 0.0
    %4015 = vmatprep.subr.mxu0 0.0
    %4016 = vmatpush2.msra.mxu0 0.0
    %4017 = vmatprep.subr.mxu0 0.0
    %4018 = vmatpush2.msra.mxu0 0.0
    %4019 = vmatprep.subr.mxu0 0.0
    %4020 = vmatpush2.msra.mxu0 0.0
    %4021 = vmatprep.mubr.f32.mxu0 0.0
    %4022 = vmatmul.mubr.f32.gmra.mxu0 %v3955
    %v4023 = vpop.f32.mrf.mxu0
    %v4024 = vadd.f32 %v3854, %v4023
    %v4025 = vpop.f32.mrf.mxu0
    %4026 = vdwg.mxu0
    %v4027 = vxor.u32 %v4024, 2147483648
    %v4028 = vmul.f32 %v4027, 1.442695
    %v4029 = vpow.pop %v4028
    %v4030 = vadd.f32 %v4029, 1.0
    %v4031 = vrcp.pop %v4030
    %v4032 = vmul.f32 1.0, %v4031
    %v4033 = vtanh.pop %v4024
    %v4034 = vmul.f32 %v4032, %v3772
    %4036 = vrot.lane.b32.xlu0 %v4033, 64
    %v4037 = vpop.permute.xlu0 %4036
    %v4039 = vmul.f32 %v4032, %v4037
    %4041 = vrot.lane.b32.xlu0 %v4039, 32
    %v4042 = vpop.permute.xlu0 %4041
    %v4044 = vadd.f32 %v4034, %v4042
    %v4045 = vtanh.pop %v4044
    %4047 = vrot.lane.b32.xlu0 %v4045, 64
    %v4048 = vpop.permute.xlu0 %4047
    %v4050 = vmul.f32 %v4032, %v4048
    %4052 = vrot.lane.b32.xlu0 %v4050, 32
    %v4053 = vpop.permute.xlu0 %4052
    %v4054 = vsel %vm153, %v4053, 0
    %4056 = vmatprep.subr.mxu0 0.0
    %4057 = vmatpush1.msra.mxu0 0.0
    %4058 = vmatprep.subr.mxu0 0.0
    %4059 = vmatpush1.msra.mxu0 0.0
    %4060 = vmatprep.subr.mxu0 0.0
    %4061 = vmatpush1.msra.mxu0 0.0
    %4062 = vmatprep.subr.mxu0 0.0
    %4063 = vmatpush1.msra.mxu0 0.0
    %4064 = vmatprep.subr.mxu0 0.0
    %4065 = vmatpush1.msra.mxu0 0.0
    %4066 = vmatprep.subr.mxu0 0.0
    %4067 = vmatpush1.msra.mxu0 0.0
    %4068 = vmatprep.subr.mxu0 0.0
    %4069 = vmatpush1.msra.mxu0 0.0
    %4070 = vmatprep.subr.mxu0 0.0
    %4071 = vmatpush1.msra.mxu0 0.0
    %4072 = vmatprep.subr.mxu0 0.0
    %4073 = vmatpush1.msra.mxu0 0.0
    %4074 = vmatprep.subr.mxu0 0.0
    %4075 = vmatpush1.msra.mxu0 0.0
    %4076 = vmatprep.subr.mxu0 0.0
    %4077 = vmatpush1.msra.mxu0 0.0
    %4078 = vmatprep.subr.mxu0 0.0
    %4079 = vmatpush1.msra.mxu0 0.0
    %4080 = vmatprep.subr.mxu0 0.0
    %4081 = vmatpush1.msra.mxu0 %v335
    %4082 = vmatprep.subr.mxu0 0.0
    %4083 = vmatpush1.msra.mxu0 %v334
    %4084 = vmatprep.subr.mxu0 0.0
    %4085 = vmatpush1.msra.mxu0 %v333
    %4086 = vmatprep.subr.mxu0 0.0
    %4087 = vmatpush1.msra.mxu0 %v332
    %4088 = vmatprep.subr.mxu0 0.0
    %4089 = vmatpush2.msra.mxu0 0.0
    %4090 = vmatprep.subr.mxu0 0.0
    %4091 = vmatpush2.msra.mxu0 0.0
    %4092 = vmatprep.subr.mxu0 0.0
    %4093 = vmatpush2.msra.mxu0 0.0
    %4094 = vmatprep.subr.mxu0 0.0
    %4095 = vmatpush2.msra.mxu0 0.0
    %4096 = vmatprep.subr.mxu0 0.0
    %4097 = vmatpush2.msra.mxu0 0.0
    %4098 = vmatprep.subr.mxu0 0.0
    %4099 = vmatpush2.msra.mxu0 0.0
    %4100 = vmatprep.subr.mxu0 0.0
    %4101 = vmatpush2.msra.mxu0 0.0
    %4102 = vmatprep.subr.mxu0 0.0
    %4103 = vmatpush2.msra.mxu0 0.0
    %4104 = vmatprep.subr.mxu0 0.0
    %4105 = vmatpush2.msra.mxu0 0.0
    %4106 = vmatprep.subr.mxu0 0.0
    %4107 = vmatpush2.msra.mxu0 0.0
    %4108 = vmatprep.subr.mxu0 0.0
    %4109 = vmatpush2.msra.mxu0 0.0
    %4110 = vmatprep.subr.mxu0 0.0
    %4111 = vmatpush2.msra.mxu0 0.0
    %4112 = vmatprep.subr.mxu0 0.0
    %4113 = vmatpush2.msra.mxu0 0.0
    %4114 = vmatprep.subr.mxu0 0.0
    %4115 = vmatpush2.msra.mxu0 0.0
    %4116 = vmatprep.subr.mxu0 0.0
    %4117 = vmatpush2.msra.mxu0 0.0
    %4118 = vmatprep.subr.mxu0 0.0
    %4119 = vmatpush2.msra.mxu0 0.0
    %4120 = vmatprep.mubr.f32.mxu0 0.0
    %4121 = vmatmul.mubr.f32.gmra.mxu0 %v4054
    %v4122 = vpop.f32.mrf.mxu0
    %v4123 = vadd.f32 %v545, %v4122
    %v4124 = vpop.f32.mrf.mxu0
    %4125 = vdwg.mxu0
    %4126 = vmatprep.subr.mxu0 0.0
    %4127 = vmatpush1.msra.mxu0 0.0
    %4128 = vmatprep.subr.mxu0 0.0
    %4129 = vmatpush1.msra.mxu0 0.0
    %4130 = vmatprep.subr.mxu0 0.0
    %4131 = vmatpush1.msra.mxu0 0.0
    %4132 = vmatprep.subr.mxu0 0.0
    %4133 = vmatpush1.msra.mxu0 0.0
    %4134 = vmatprep.subr.mxu0 0.0
    %4135 = vmatpush1.msra.mxu0 0.0
    %4136 = vmatprep.subr.mxu0 0.0
    %4137 = vmatpush1.msra.mxu0 0.0
    %4138 = vmatprep.subr.mxu0 0.0
    %4139 = vmatpush1.msra.mxu0 0.0
    %4140 = vmatprep.subr.mxu0 0.0
    %4141 = vmatpush1.msra.mxu0 0.0
    %4142 = vmatprep.subr.mxu0 0.0
    %4143 = vmatpush1.msra.mxu0 0.0
    %4144 = vmatprep.subr.mxu0 0.0
    %4145 = vmatpush1.msra.mxu0 0.0
    %4146 = vmatprep.subr.mxu0 0.0
    %4147 = vmatpush1.msra.mxu0 0.0
    %4148 = vmatprep.subr.mxu0 0.0
    %4149 = vmatpush1.msra.mxu0 0.0
    %4150 = vmatprep.subr.mxu0 0.0
    %4151 = vmatpush1.msra.mxu0 %v326
    %4152 = vmatprep.subr.mxu0 0.0
    %4153 = vmatpush1.msra.mxu0 %v325
    %4154 = vmatprep.subr.mxu0 0.0
    %4155 = vmatpush1.msra.mxu0 %v324
    %4156 = vmatprep.subr.mxu0 0.0
    %4157 = vmatpush1.msra.mxu0 %v323
    %4158 = vmatprep.subr.mxu0 0.0
    %4159 = vmatpush2.msra.mxu0 0.0
    %4160 = vmatprep.subr.mxu0 0.0
    %4161 = vmatpush2.msra.mxu0 0.0
    %4162 = vmatprep.subr.mxu0 0.0
    %4163 = vmatpush2.msra.mxu0 0.0
    %4164 = vmatprep.subr.mxu0 0.0
    %4165 = vmatpush2.msra.mxu0 0.0
    %4166 = vmatprep.subr.mxu0 0.0
    %4167 = vmatpush2.msra.mxu0 0.0
    %4168 = vmatprep.subr.mxu0 0.0
    %4169 = vmatpush2.msra.mxu0 0.0
    %4170 = vmatprep.subr.mxu0 0.0
    %4171 = vmatpush2.msra.mxu0 0.0
    %4172 = vmatprep.subr.mxu0 0.0
    %4173 = vmatpush2.msra.mxu0 0.0
    %4174 = vmatprep.subr.mxu0 0.0
    %4175 = vmatpush2.msra.mxu0 0.0
    %4176 = vmatprep.subr.mxu0 0.0
    %4177 = vmatpush2.msra.mxu0 0.0
    %4178 = vmatprep.subr.mxu0 0.0
    %4179 = vmatpush2.msra.mxu0 0.0
    %4180 = vmatprep.subr.mxu0 0.0
    %4181 = vmatpush2.msra.mxu0 0.0
    %4182 = vmatprep.subr.mxu0 0.0
    %4183 = vmatpush2.msra.mxu0 0.0
    %4184 = vmatprep.subr.mxu0 0.0
    %4185 = vmatpush2.msra.mxu0 0.0
    %4186 = vmatprep.subr.mxu0 0.0
    %4187 = vmatpush2.msra.mxu0 0.0
    %4188 = vmatprep.subr.mxu0 0.0
    %4189 = vmatpush2.msra.mxu0 0.0
    %4190 = vmatprep.mubr.f32.mxu0 0.0
    %4191 = vmatmul.mubr.f32.gmra.mxu0 %v3955
    %v4192 = vpop.f32.mrf.mxu0
    %v4193 = vadd.f32 0.0, %v4192
    %v4194 = vpop.f32.mrf.mxu0
    %4195 = vdwg.mxu0
    %v4196 = vadd.f32 %v420, %v4193
    %v4197 = vxor.u32 %v4196, 2147483648
    %v4198 = vmul.f32 %v4197, 1.442695
    %v4199 = vpow.pop %v4198
    %v4200 = vadd.f32 %v4199, 1.0
    %v4201 = vrcp.pop %v4200
    %v4202 = vmul.f32 1.0, %v4201
    %v4203 = vtanh.pop %v4196
    %v4204 = vmul.f32 %v4202, %v3945
    %4206 = vrot.lane.b32.xlu0 %v4203, 64
    %v4207 = vpop.permute.xlu0 %4206
    %v4209 = vmul.f32 %v4202, %v4207
    %4211 = vrot.lane.b32.xlu0 %v4209, 32
    %v4212 = vpop.permute.xlu0 %4211
    %v4214 = vadd.f32 %v4204, %v4212
    %v4215 = vtanh.pop %v4214
    %4217 = vrot.lane.b32.xlu0 %v4215, 64
    %v4218 = vpop.permute.xlu0 %4217
    %v4220 = vmul.f32 %v4202, %v4218
    %4222 = vrot.lane.b32.xlu0 %v4220, 32
    %v4223 = vpop.permute.xlu0 %4222
    %v4224 = vsel %vm153, %v4223, 0
    %4226 = vmatprep.subr.mxu0 0.0
    %4227 = vmatpush1.msra.mxu0 0.0
    %4228 = vmatprep.subr.mxu0 0.0
    %4229 = vmatpush1.msra.mxu0 0.0
    %4230 = vmatprep.subr.mxu0 0.0
    %4231 = vmatpush1.msra.mxu0 0.0
    %4232 = vmatprep.subr.mxu0 0.0
    %4233 = vmatpush1.msra.mxu0 0.0
    %4234 = vmatprep.subr.mxu0 0.0
    %4235 = vmatpush1.msra.mxu0 0.0
    %4236 = vmatprep.subr.mxu0 0.0
    %4237 = vmatpush1.msra.mxu0 0.0
    %4238 = vmatprep.subr.mxu0 0.0
    %4239 = vmatpush1.msra.mxu0 0.0
    %4240 = vmatprep.subr.mxu0 0.0
    %4241 = vmatpush1.msra.mxu0 0.0
    %4242 = vmatprep.subr.mxu0 0.0
    %4243 = vmatpush1.msra.mxu0 0.0
    %4244 = vmatprep.subr.mxu0 0.0
    %4245 = vmatpush1.msra.mxu0 0.0
    %4246 = vmatprep.subr.mxu0 0.0
    %4247 = vmatpush1.msra.mxu0 0.0
    %4248 = vmatprep.subr.mxu0 0.0
    %4249 = vmatpush1.msra.mxu0 0.0
    %4250 = vmatprep.subr.mxu0 0.0
    %4251 = vmatpush1.msra.mxu0 %v331
    %4252 = vmatprep.subr.mxu0 0.0
    %4253 = vmatpush1.msra.mxu0 %v330
    %4254 = vmatprep.subr.mxu0 0.0
    %4255 = vmatpush1.msra.mxu0 %v329
    %4256 = vmatprep.subr.mxu0 0.0
    %4257 = vmatpush1.msra.mxu0 %v328
    %4258 = vmatprep.subr.mxu0 0.0
    %4259 = vmatpush2.msra.mxu0 0.0
    %4260 = vmatprep.subr.mxu0 0.0
    %4261 = vmatpush2.msra.mxu0 0.0
    %4262 = vmatprep.subr.mxu0 0.0
    %4263 = vmatpush2.msra.mxu0 0.0
    %4264 = vmatprep.subr.mxu0 0.0
    %4265 = vmatpush2.msra.mxu0 0.0
    %4266 = vmatprep.subr.mxu0 0.0
    %4267 = vmatpush2.msra.mxu0 0.0
    %4268 = vmatprep.subr.mxu0 0.0
    %4269 = vmatpush2.msra.mxu0 0.0
    %4270 = vmatprep.subr.mxu0 0.0
    %4271 = vmatpush2.msra.mxu0 0.0
    %4272 = vmatprep.subr.mxu0 0.0
    %4273 = vmatpush2.msra.mxu0 0.0
    %4274 = vmatprep.subr.mxu0 0.0
    %4275 = vmatpush2.msra.mxu0 0.0
    %4276 = vmatprep.subr.mxu0 0.0
    %4277 = vmatpush2.msra.mxu0 0.0
    %4278 = vmatprep.subr.mxu0 0.0
    %4279 = vmatpush2.msra.mxu0 0.0
    %4280 = vmatprep.subr.mxu0 0.0
    %4281 = vmatpush2.msra.mxu0 0.0
    %4282 = vmatprep.subr.mxu0 0.0
    %4283 = vmatpush2.msra.mxu0 0.0
    %4284 = vmatprep.subr.mxu0 0.0
    %4285 = vmatpush2.msra.mxu0 0.0
    %4286 = vmatprep.subr.mxu0 0.0
    %4287 = vmatpush2.msra.mxu0 0.0
    %4288 = vmatprep.subr.mxu0 0.0
    %4289 = vmatpush2.msra.mxu0 0.0
    %4290 = vmatprep.mubr.f32.mxu0 0.0
    %4291 = vmatmul.mubr.f32.gmra.mxu0 %v4224
    %v4292 = vpop.f32.mrf.mxu0
    %v4293 = vadd.f32 %v4123, %v4292
    %v4294 = vpop.f32.mrf.mxu0
    %4295 = vdwg.mxu0
    %v4296 = vxor.u32 %v4293, 2147483648
    %v4297 = vmul.f32 %v4296, 1.442695
    %v4298 = vpow.pop %v4297
    %v4299 = vadd.f32 %v4298, 1.0
    %v4300 = vrcp.pop %v4299
    %v4301 = vmul.f32 1.0, %v4300
    %v4302 = vtanh.pop %v4293
    %v4303 = vmul.f32 %v4301, %v4044
    %4305 = vrot.lane.b32.xlu0 %v4302, 64
    %v4306 = vpop.permute.xlu0 %4305
    %v4308 = vmul.f32 %v4301, %v4306
    %4310 = vrot.lane.b32.xlu0 %v4308, 32
    %v4311 = vpop.permute.xlu0 %4310
    %v4313 = vadd.f32 %v4303, %v4311
    %v4314 = vtanh.pop %v4313
    %4316 = vrot.lane.b32.xlu0 %v4314, 64
    %v4317 = vpop.permute.xlu0 %4316
    %v4319 = vmul.f32 %v4301, %v4317
    %4321 = vrot.lane.b32.xlu0 %v4319, 32
    %v4322 = vpop.permute.xlu0 %4321
    %v4323 = vsel %vm153, %v4322, 0
    %4325 = vmatprep.subr.mxu0 0.0
    %4326 = vmatpush1.msra.mxu0 0.0
    %4327 = vmatprep.subr.mxu0 0.0
    %4328 = vmatpush1.msra.mxu0 0.0
    %4329 = vmatprep.subr.mxu0 0.0
    %4330 = vmatpush1.msra.mxu0 0.0
    %4331 = vmatprep.subr.mxu0 0.0
    %4332 = vmatpush1.msra.mxu0 0.0
    %4333 = vmatprep.subr.mxu0 0.0
    %4334 = vmatpush1.msra.mxu0 0.0
    %4335 = vmatprep.subr.mxu0 0.0
    %4336 = vmatpush1.msra.mxu0 0.0
    %4337 = vmatprep.subr.mxu0 0.0
    %4338 = vmatpush1.msra.mxu0 0.0
    %4339 = vmatprep.subr.mxu0 0.0
    %4340 = vmatpush1.msra.mxu0 0.0
    %4341 = vmatprep.subr.mxu0 0.0
    %4342 = vmatpush1.msra.mxu0 0.0
    %4343 = vmatprep.subr.mxu0 0.0
    %4344 = vmatpush1.msra.mxu0 0.0
    %4345 = vmatprep.subr.mxu0 0.0
    %4346 = vmatpush1.msra.mxu0 0.0
    %4347 = vmatprep.subr.mxu0 0.0
    %4348 = vmatpush1.msra.mxu0 0.0
    %4349 = vmatprep.subr.mxu0 0.0
    %4350 = vmatpush1.msra.mxu0 %v335
    %4351 = vmatprep.subr.mxu0 0.0
    %4352 = vmatpush1.msra.mxu0 %v334
    %4353 = vmatprep.subr.mxu0 0.0
    %4354 = vmatpush1.msra.mxu0 %v333
    %4355 = vmatprep.subr.mxu0 0.0
    %4356 = vmatpush1.msra.mxu0 %v332
    %4357 = vmatprep.subr.mxu0 0.0
    %4358 = vmatpush2.msra.mxu0 0.0
    %4359 = vmatprep.subr.mxu0 0.0
    %4360 = vmatpush2.msra.mxu0 0.0
    %4361 = vmatprep.subr.mxu0 0.0
    %4362 = vmatpush2.msra.mxu0 0.0
    %4363 = vmatprep.subr.mxu0 0.0
    %4364 = vmatpush2.msra.mxu0 0.0
    %4365 = vmatprep.subr.mxu0 0.0
    %4366 = vmatpush2.msra.mxu0 0.0
    %4367 = vmatprep.subr.mxu0 0.0
    %4368 = vmatpush2.msra.mxu0 0.0
    %4369 = vmatprep.subr.mxu0 0.0
    %4370 = vmatpush2.msra.mxu0 0.0
    %4371 = vmatprep.subr.mxu0 0.0
    %4372 = vmatpush2.msra.mxu0 0.0
    %4373 = vmatprep.subr.mxu0 0.0
    %4374 = vmatpush2.msra.mxu0 0.0
    %4375 = vmatprep.subr.mxu0 0.0
    %4376 = vmatpush2.msra.mxu0 0.0
    %4377 = vmatprep.subr.mxu0 0.0
    %4378 = vmatpush2.msra.mxu0 0.0
    %4379 = vmatprep.subr.mxu0 0.0
    %4380 = vmatpush2.msra.mxu0 0.0
    %4381 = vmatprep.subr.mxu0 0.0
    %4382 = vmatpush2.msra.mxu0 0.0
    %4383 = vmatprep.subr.mxu0 0.0
    %4384 = vmatpush2.msra.mxu0 0.0
    %4385 = vmatprep.subr.mxu0 0.0
    %4386 = vmatpush2.msra.mxu0 0.0
    %4387 = vmatprep.subr.mxu0 0.0
    %4388 = vmatpush2.msra.mxu0 0.0
    %4389 = vmatprep.mubr.f32.mxu0 0.0
    %4390 = vmatmul.mubr.f32.gmra.mxu0 %v4323
    %v4391 = vpop.f32.mrf.mxu0
    %v4392 = vadd.f32 %v545, %v4391
    %v4393 = vpop.f32.mrf.mxu0
    %4394 = vdwg.mxu0
    %4395 = vmatprep.subr.mxu0 0.0
    %4396 = vmatpush1.msra.mxu0 0.0
    %4397 = vmatprep.subr.mxu0 0.0
    %4398 = vmatpush1.msra.mxu0 0.0
    %4399 = vmatprep.subr.mxu0 0.0
    %4400 = vmatpush1.msra.mxu0 0.0
    %4401 = vmatprep.subr.mxu0 0.0
    %4402 = vmatpush1.msra.mxu0 0.0
    %4403 = vmatprep.subr.mxu0 0.0
    %4404 = vmatpush1.msra.mxu0 0.0
    %4405 = vmatprep.subr.mxu0 0.0
    %4406 = vmatpush1.msra.mxu0 0.0
    %4407 = vmatprep.subr.mxu0 0.0
    %4408 = vmatpush1.msra.mxu0 0.0
    %4409 = vmatprep.subr.mxu0 0.0
    %4410 = vmatpush1.msra.mxu0 0.0
    %4411 = vmatprep.subr.mxu0 0.0
    %4412 = vmatpush1.msra.mxu0 0.0
    %4413 = vmatprep.subr.mxu0 0.0
    %4414 = vmatpush1.msra.mxu0 0.0
    %4415 = vmatprep.subr.mxu0 0.0
    %4416 = vmatpush1.msra.mxu0 0.0
    %4417 = vmatprep.subr.mxu0 0.0
    %4418 = vmatpush1.msra.mxu0 0.0
    %4419 = vmatprep.subr.mxu0 0.0
    %4420 = vmatpush1.msra.mxu0 %v326
    %4421 = vmatprep.subr.mxu0 0.0
    %4422 = vmatpush1.msra.mxu0 %v325
    %4423 = vmatprep.subr.mxu0 0.0
    %4424 = vmatpush1.msra.mxu0 %v324
    %4425 = vmatprep.subr.mxu0 0.0
    %4426 = vmatpush1.msra.mxu0 %v323
    %4427 = vmatprep.subr.mxu0 0.0
    %4428 = vmatpush2.msra.mxu0 0.0
    %4429 = vmatprep.subr.mxu0 0.0
    %4430 = vmatpush2.msra.mxu0 0.0
    %4431 = vmatprep.subr.mxu0 0.0
    %4432 = vmatpush2.msra.mxu0 0.0
    %4433 = vmatprep.subr.mxu0 0.0
    %4434 = vmatpush2.msra.mxu0 0.0
    %4435 = vmatprep.subr.mxu0 0.0
    %4436 = vmatpush2.msra.mxu0 0.0
    %4437 = vmatprep.subr.mxu0 0.0
    %4438 = vmatpush2.msra.mxu0 0.0
    %4439 = vmatprep.subr.mxu0 0.0
    %4440 = vmatpush2.msra.mxu0 0.0
    %4441 = vmatprep.subr.mxu0 0.0
    %4442 = vmatpush2.msra.mxu0 0.0
    %4443 = vmatprep.subr.mxu0 0.0
    %4444 = vmatpush2.msra.mxu0 0.0
    %4445 = vmatprep.subr.mxu0 0.0
    %4446 = vmatpush2.msra.mxu0 0.0
    %4447 = vmatprep.subr.mxu0 0.0
    %4448 = vmatpush2.msra.mxu0 0.0
    %4449 = vmatprep.subr.mxu0 0.0
    %4450 = vmatpush2.msra.mxu0 0.0
    %4451 = vmatprep.subr.mxu0 0.0
    %4452 = vmatpush2.msra.mxu0 0.0
    %4453 = vmatprep.subr.mxu0 0.0
    %4454 = vmatpush2.msra.mxu0 0.0
    %4455 = vmatprep.subr.mxu0 0.0
    %4456 = vmatpush2.msra.mxu0 0.0
    %4457 = vmatprep.subr.mxu0 0.0
    %4458 = vmatpush2.msra.mxu0 0.0
    %4459 = vmatprep.mubr.f32.mxu0 0.0
    %4460 = vmatmul.mubr.f32.gmra.mxu0 %v4224
    %v4461 = vpop.f32.mrf.mxu0
    %v4462 = vadd.f32 0.0, %v4461
    %v4463 = vpop.f32.mrf.mxu0
    %4464 = vdwg.mxu0
    %v4465 = vadd.f32 %v468, %v4462
    %v4466 = vxor.u32 %v4465, 2147483648
    %v4467 = vmul.f32 %v4466, 1.442695
    %v4468 = vpow.pop %v4467
    %v4469 = vadd.f32 %v4468, 1.0
    %v4470 = vrcp.pop %v4469
    %v4471 = vmul.f32 1.0, %v4470
    %v4472 = vtanh.pop %v4465
    %v4473 = vmul.f32 %v4471, %v4214
    %4475 = vrot.lane.b32.xlu0 %v4472, 64
    %v4476 = vpop.permute.xlu0 %4475
    %v4478 = vmul.f32 %v4471, %v4476
    %4480 = vrot.lane.b32.xlu0 %v4478, 32
    %v4481 = vpop.permute.xlu0 %4480
    %v4483 = vadd.f32 %v4473, %v4481
    %v4484 = vtanh.pop %v4483
    %4486 = vrot.lane.b32.xlu0 %v4484, 64
    %v4487 = vpop.permute.xlu0 %4486
    %v4489 = vmul.f32 %v4471, %v4487
    %4491 = vrot.lane.b32.xlu0 %v4489, 32
    %v4492 = vpop.permute.xlu0 %4491
    %v4493 = vsel %vm153, %v4492, 0
    %4495 = vmatprep.subr.mxu0 0.0
    %4496 = vmatpush1.msra.mxu0 0.0
    %4497 = vmatprep.subr.mxu0 0.0
    %4498 = vmatpush1.msra.mxu0 0.0
    %4499 = vmatprep.subr.mxu0 0.0
    %4500 = vmatpush1.msra.mxu0 0.0
    %4501 = vmatprep.subr.mxu0 0.0
    %4502 = vmatpush1.msra.mxu0 0.0
    %4503 = vmatprep.subr.mxu0 0.0
    %4504 = vmatpush1.msra.mxu0 0.0
    %4505 = vmatprep.subr.mxu0 0.0
    %4506 = vmatpush1.msra.mxu0 0.0
    %4507 = vmatprep.subr.mxu0 0.0
    %4508 = vmatpush1.msra.mxu0 0.0
    %4509 = vmatprep.subr.mxu0 0.0
    %4510 = vmatpush1.msra.mxu0 0.0
    %4511 = vmatprep.subr.mxu0 0.0
    %4512 = vmatpush1.msra.mxu0 0.0
    %4513 = vmatprep.subr.mxu0 0.0
    %4514 = vmatpush1.msra.mxu0 0.0
    %4515 = vmatprep.subr.mxu0 0.0
    %4516 = vmatpush1.msra.mxu0 0.0
    %4517 = vmatprep.subr.mxu0 0.0
    %4518 = vmatpush1.msra.mxu0 0.0
    %4519 = vmatprep.subr.mxu0 0.0
    %4520 = vmatpush1.msra.mxu0 %v331
    %4521 = vmatprep.subr.mxu0 0.0
    %4522 = vmatpush1.msra.mxu0 %v330
    %4523 = vmatprep.subr.mxu0 0.0
    %4524 = vmatpush1.msra.mxu0 %v329
    %4525 = vmatprep.subr.mxu0 0.0
    %4526 = vmatpush1.msra.mxu0 %v328
    %4527 = vmatprep.subr.mxu0 0.0
    %4528 = vmatpush2.msra.mxu0 0.0
    %4529 = vmatprep.subr.mxu0 0.0
    %4530 = vmatpush2.msra.mxu0 0.0
    %4531 = vmatprep.subr.mxu0 0.0
    %4532 = vmatpush2.msra.mxu0 0.0
    %4533 = vmatprep.subr.mxu0 0.0
    %4534 = vmatpush2.msra.mxu0 0.0
    %4535 = vmatprep.subr.mxu0 0.0
    %4536 = vmatpush2.msra.mxu0 0.0
    %4537 = vmatprep.subr.mxu0 0.0
    %4538 = vmatpush2.msra.mxu0 0.0
    %4539 = vmatprep.subr.mxu0 0.0
    %4540 = vmatpush2.msra.mxu0 0.0
    %4541 = vmatprep.subr.mxu0 0.0
    %4542 = vmatpush2.msra.mxu0 0.0
    %4543 = vmatprep.subr.mxu0 0.0
    %4544 = vmatpush2.msra.mxu0 0.0
    %4545 = vmatprep.subr.mxu0 0.0
    %4546 = vmatpush2.msra.mxu0 0.0
    %4547 = vmatprep.subr.mxu0 0.0
    %4548 = vmatpush2.msra.mxu0 0.0
    %4549 = vmatprep.subr.mxu0 0.0
    %4550 = vmatpush2.msra.mxu0 0.0
    %4551 = vmatprep.subr.mxu0 0.0
    %4552 = vmatpush2.msra.mxu0 0.0
    %4553 = vmatprep.subr.mxu0 0.0
    %4554 = vmatpush2.msra.mxu0 0.0
    %4555 = vmatprep.subr.mxu0 0.0
    %4556 = vmatpush2.msra.mxu0 0.0
    %4557 = vmatprep.subr.mxu0 0.0
    %4558 = vmatpush2.msra.mxu0 0.0
    %4559 = vmatprep.mubr.f32.mxu0 0.0
    %4560 = vmatmul.mubr.f32.gmra.mxu0 %v4493
    %v4561 = vpop.f32.mrf.mxu0
    %v4562 = vadd.f32 %v4392, %v4561
    %v4563 = vpop.f32.mrf.mxu0
    %4564 = vdwg.mxu0
    %v4565 = vxor.u32 %v4562, 2147483648
    %v4566 = vmul.f32 %v4565, 1.442695
    %v4567 = vpow.pop %v4566
    %v4568 = vadd.f32 %v4567, 1.0
    %v4569 = vrcp.pop %v4568
    %v4570 = vmul.f32 1.0, %v4569
    %v4571 = vtanh.pop %v4562
    %v4572 = vmul.f32 %v4570, %v4313
    %4574 = vrot.lane.b32.xlu0 %v4571, 64
    %v4575 = vpop.permute.xlu0 %4574
    %v4577 = vmul.f32 %v4570, %v4575
    %4579 = vrot.lane.b32.xlu0 %v4577, 32
    %v4580 = vpop.permute.xlu0 %4579
    %v4582 = vadd.f32 %v4572, %v4580
    %v4583 = vtanh.pop %v4582
    %4585 = vrot.lane.b32.xlu0 %v4583, 64
    %v4586 = vpop.permute.xlu0 %4585
    %v4588 = vmul.f32 %v4570, %v4586
    %4590 = vrot.lane.b32.xlu0 %v4588, 32
    %v4591 = vpop.permute.xlu0 %4590
    %v4592 = vsel %vm153, %v4591, 0
    %4594 = vmatprep.subr.mxu0 0.0
    %4595 = vmatpush1.msra.mxu0 0.0
    %4596 = vmatprep.subr.mxu0 0.0
    %4597 = vmatpush1.msra.mxu0 0.0
    %4598 = vmatprep.subr.mxu0 0.0
    %4599 = vmatpush1.msra.mxu0 0.0
    %4600 = vmatprep.subr.mxu0 0.0
    %4601 = vmatpush1.msra.mxu0 0.0
    %4602 = vmatprep.subr.mxu0 0.0
    %4603 = vmatpush1.msra.mxu0 0.0
    %4604 = vmatprep.subr.mxu0 0.0
    %4605 = vmatpush1.msra.mxu0 0.0
    %4606 = vmatprep.subr.mxu0 0.0
    %4607 = vmatpush1.msra.mxu0 0.0
    %4608 = vmatprep.subr.mxu0 0.0
    %4609 = vmatpush1.msra.mxu0 0.0
    %4610 = vmatprep.subr.mxu0 0.0
    %4611 = vmatpush1.msra.mxu0 0.0
    %4612 = vmatprep.subr.mxu0 0.0
    %4613 = vmatpush1.msra.mxu0 0.0
    %4614 = vmatprep.subr.mxu0 0.0
    %4615 = vmatpush1.msra.mxu0 0.0
    %4616 = vmatprep.subr.mxu0 0.0
    %4617 = vmatpush1.msra.mxu0 0.0
    %4618 = vmatprep.subr.mxu0 0.0
    %4619 = vmatpush1.msra.mxu0 %v335
    %4620 = vmatprep.subr.mxu0 0.0
    %4621 = vmatpush1.msra.mxu0 %v334
    %4622 = vmatprep.subr.mxu0 0.0
    %4623 = vmatpush1.msra.mxu0 %v333
    %4624 = vmatprep.subr.mxu0 0.0
    %4625 = vmatpush1.msra.mxu0 %v332
    %4626 = vmatprep.subr.mxu0 0.0
    %4627 = vmatpush2.msra.mxu0 0.0
    %4628 = vmatprep.subr.mxu0 0.0
    %4629 = vmatpush2.msra.mxu0 0.0
    %4630 = vmatprep.subr.mxu0 0.0
    %4631 = vmatpush2.msra.mxu0 0.0
    %4632 = vmatprep.subr.mxu0 0.0
    %4633 = vmatpush2.msra.mxu0 0.0
    %4634 = vmatprep.subr.mxu0 0.0
    %4635 = vmatpush2.msra.mxu0 0.0
    %4636 = vmatprep.subr.mxu0 0.0
    %4637 = vmatpush2.msra.mxu0 0.0
    %4638 = vmatprep.subr.mxu0 0.0
    %4639 = vmatpush2.msra.mxu0 0.0
    %4640 = vmatprep.subr.mxu0 0.0
    %4641 = vmatpush2.msra.mxu0 0.0
    %4642 = vmatprep.subr.mxu0 0.0
    %4643 = vmatpush2.msra.mxu0 0.0
    %4644 = vmatprep.subr.mxu0 0.0
    %4645 = vmatpush2.msra.mxu0 0.0
    %4646 = vmatprep.subr.mxu0 0.0
    %4647 = vmatpush2.msra.mxu0 0.0
    %4648 = vmatprep.subr.mxu0 0.0
    %4649 = vmatpush2.msra.mxu0 0.0
    %4650 = vmatprep.subr.mxu0 0.0
    %4651 = vmatpush2.msra.mxu0 0.0
    %4652 = vmatprep.subr.mxu0 0.0
    %4653 = vmatpush2.msra.mxu0 0.0
    %4654 = vmatprep.subr.mxu0 0.0
    %4655 = vmatpush2.msra.mxu0 0.0
    %4656 = vmatprep.subr.mxu0 0.0
    %4657 = vmatpush2.msra.mxu0 0.0
    %4658 = vmatprep.mubr.f32.mxu0 0.0
    %4659 = vmatmul.mubr.f32.gmra.mxu0 %v4592
    %v4660 = vpop.f32.mrf.mxu0
    %v4661 = vadd.f32 %v545, %v4660
    %v4662 = vpop.f32.mrf.mxu0
    %4663 = vdwg.mxu0
    %4664 = vmatprep.subr.mxu0 0.0
    %4665 = vmatpush1.msra.mxu0 0.0
    %4666 = vmatprep.subr.mxu0 0.0
    %4667 = vmatpush1.msra.mxu0 0.0
    %4668 = vmatprep.subr.mxu0 0.0
    %4669 = vmatpush1.msra.mxu0 0.0
    %4670 = vmatprep.subr.mxu0 0.0
    %4671 = vmatpush1.msra.mxu0 0.0
    %4672 = vmatprep.subr.mxu0 0.0
    %4673 = vmatpush1.msra.mxu0 0.0
    %4674 = vmatprep.subr.mxu0 0.0
    %4675 = vmatpush1.msra.mxu0 0.0
    %4676 = vmatprep.subr.mxu0 0.0
    %4677 = vmatpush1.msra.mxu0 0.0
    %4678 = vmatprep.subr.mxu0 0.0
    %4679 = vmatpush1.msra.mxu0 0.0
    %4680 = vmatprep.subr.mxu0 0.0
    %4681 = vmatpush1.msra.mxu0 0.0
    %4682 = vmatprep.subr.mxu0 0.0
    %4683 = vmatpush1.msra.mxu0 0.0
    %4684 = vmatprep.subr.mxu0 0.0
    %4685 = vmatpush1.msra.mxu0 0.0
    %4686 = vmatprep.subr.mxu0 0.0
    %4687 = vmatpush1.msra.mxu0 0.0
    %4688 = vmatprep.subr.mxu0 0.0
    %4689 = vmatpush1.msra.mxu0 %v326
    %4690 = vmatprep.subr.mxu0 0.0
    %4691 = vmatpush1.msra.mxu0 %v325
    %4692 = vmatprep.subr.mxu0 0.0
    %4693 = vmatpush1.msra.mxu0 %v324
    %4694 = vmatprep.subr.mxu0 0.0
    %4695 = vmatpush1.msra.mxu0 %v323
    %4696 = vmatprep.subr.mxu0 0.0
    %4697 = vmatpush2.msra.mxu0 0.0
    %4698 = vmatprep.subr.mxu0 0.0
    %4699 = vmatpush2.msra.mxu0 0.0
    %4700 = vmatprep.subr.mxu0 0.0
    %4701 = vmatpush2.msra.mxu0 0.0
    %4702 = vmatprep.subr.mxu0 0.0
    %4703 = vmatpush2.msra.mxu0 0.0
    %4704 = vmatprep.subr.mxu0 0.0
    %4705 = vmatpush2.msra.mxu0 0.0
    %4706 = vmatprep.subr.mxu0 0.0
    %4707 = vmatpush2.msra.mxu0 0.0
    %4708 = vmatprep.subr.mxu0 0.0
    %4709 = vmatpush2.msra.mxu0 0.0
    %4710 = vmatprep.subr.mxu0 0.0
    %4711 = vmatpush2.msra.mxu0 0.0
    %4712 = vmatprep.subr.mxu0 0.0
    %4713 = vmatpush2.msra.mxu0 0.0
    %4714 = vmatprep.subr.mxu0 0.0
    %4715 = vmatpush2.msra.mxu0 0.0
    %4716 = vmatprep.subr.mxu0 0.0
    %4717 = vmatpush2.msra.mxu0 0.0
    %4718 = vmatprep.subr.mxu0 0.0
    %4719 = vmatpush2.msra.mxu0 0.0
    %4720 = vmatprep.subr.mxu0 0.0
    %4721 = vmatpush2.msra.mxu0 0.0
    %4722 = vmatprep.subr.mxu0 0.0
    %4723 = vmatpush2.msra.mxu0 0.0
    %4724 = vmatprep.subr.mxu0 0.0
    %4725 = vmatpush2.msra.mxu0 0.0
    %4726 = vmatprep.subr.mxu0 0.0
    %4727 = vmatpush2.msra.mxu0 0.0
    %4728 = vmatprep.mubr.f32.mxu0 0.0
    %4729 = vmatmul.mubr.f32.gmra.mxu0 %v4493
    %v4730 = vpop.f32.mrf.mxu0
    %v4731 = vadd.f32 0.0, %v4730
    %v4732 = vpop.f32.mrf.mxu0
    %4733 = vdwg.mxu0
    %v4734 = vadd.f32 %v516, %v4731
    %v4735 = vxor.u32 %v4734, 2147483648
    %v4736 = vmul.f32 %v4735, 1.442695
    %v4737 = vpow.pop %v4736
    %v4738 = vadd.f32 %v4737, 1.0
    %v4739 = vrcp.pop %v4738
    %v4740 = vmul.f32 1.0, %v4739
    %v4741 = vtanh.pop %v4734
    %v4742 = vmul.f32 %v4740, %v4483
    %4744 = vrot.lane.b32.xlu0 %v4741, 64
    %v4745 = vpop.permute.xlu0 %4744
    %v4747 = vmul.f32 %v4740, %v4745
    %4749 = vrot.lane.b32.xlu0 %v4747, 32
    %v4750 = vpop.permute.xlu0 %4749
    %v4752 = vadd.f32 %v4742, %v4750
    %v4753 = vtanh.pop %v4752
    %4755 = vrot.lane.b32.xlu0 %v4753, 64
    %v4756 = vpop.permute.xlu0 %4755
    %v4758 = vmul.f32 %v4740, %v4756
    %4760 = vrot.lane.b32.xlu0 %v4758, 32
    %v4761 = vpop.permute.xlu0 %4760
    %v4762 = vsel %vm153, %v4761, 0
    %4764 = vmatprep.subr.mxu0 0.0
    %4765 = vmatpush1.msra.mxu0 0.0
    %4766 = vmatprep.subr.mxu0 0.0
    %4767 = vmatpush1.msra.mxu0 0.0
    %4768 = vmatprep.subr.mxu0 0.0
    %4769 = vmatpush1.msra.mxu0 0.0
    %4770 = vmatprep.subr.mxu0 0.0
    %4771 = vmatpush1.msra.mxu0 0.0
    %4772 = vmatprep.subr.mxu0 0.0
    %4773 = vmatpush1.msra.mxu0 0.0
    %4774 = vmatprep.subr.mxu0 0.0
    %4775 = vmatpush1.msra.mxu0 0.0
    %4776 = vmatprep.subr.mxu0 0.0
    %4777 = vmatpush1.msra.mxu0 0.0
    %4778 = vmatprep.subr.mxu0 0.0
    %4779 = vmatpush1.msra.mxu0 0.0
    %4780 = vmatprep.subr.mxu0 0.0
    %4781 = vmatpush1.msra.mxu0 0.0
    %4782 = vmatprep.subr.mxu0 0.0
    %4783 = vmatpush1.msra.mxu0 0.0
    %4784 = vmatprep.subr.mxu0 0.0
    %4785 = vmatpush1.msra.mxu0 0.0
    %4786 = vmatprep.subr.mxu0 0.0
    %4787 = vmatpush1.msra.mxu0 0.0
    %4788 = vmatprep.subr.mxu0 0.0
    %4789 = vmatpush1.msra.mxu0 %v331
    %4790 = vmatprep.subr.mxu0 0.0
    %4791 = vmatpush1.msra.mxu0 %v330
    %4792 = vmatprep.subr.mxu0 0.0
    %4793 = vmatpush1.msra.mxu0 %v329
    %4794 = vmatprep.subr.mxu0 0.0
    %4795 = vmatpush1.msra.mxu0 %v328
    %4796 = vmatprep.subr.mxu0 0.0
    %4797 = vmatpush2.msra.mxu0 0.0
    %4798 = vmatprep.subr.mxu0 0.0
    %4799 = vmatpush2.msra.mxu0 0.0
    %4800 = vmatprep.subr.mxu0 0.0
    %4801 = vmatpush2.msra.mxu0 0.0
    %4802 = vmatprep.subr.mxu0 0.0
    %4803 = vmatpush2.msra.mxu0 0.0
    %4804 = vmatprep.subr.mxu0 0.0
    %4805 = vmatpush2.msra.mxu0 0.0
    %4806 = vmatprep.subr.mxu0 0.0
    %4807 = vmatpush2.msra.mxu0 0.0
    %4808 = vmatprep.subr.mxu0 0.0
    %4809 = vmatpush2.msra.mxu0 0.0
    %4810 = vmatprep.subr.mxu0 0.0
    %4811 = vmatpush2.msra.mxu0 0.0
    %4812 = vmatprep.subr.mxu0 0.0
    %4813 = vmatpush2.msra.mxu0 0.0
    %4814 = vmatprep.subr.mxu0 0.0
    %4815 = vmatpush2.msra.mxu0 0.0
    %4816 = vmatprep.subr.mxu0 0.0
    %4817 = vmatpush2.msra.mxu0 0.0
    %4818 = vmatprep.subr.mxu0 0.0
    %4819 = vmatpush2.msra.mxu0 0.0
    %4820 = vmatprep.subr.mxu0 0.0
    %4821 = vmatpush2.msra.mxu0 0.0
    %4822 = vmatprep.subr.mxu0 0.0
    %4823 = vmatpush2.msra.mxu0 0.0
    %4824 = vmatprep.subr.mxu0 0.0
    %4825 = vmatpush2.msra.mxu0 0.0
    %4826 = vmatprep.subr.mxu0 0.0
    %4827 = vmatpush2.msra.mxu0 0.0
    %4828 = vmatprep.mubr.f32.mxu0 0.0
    %4829 = vmatmul.mubr.f32.gmra.mxu0 %v4762
    %v4830 = vpop.f32.mrf.mxu0
    %v4831 = vadd.f32 %v4661, %v4830
    %v4832 = vpop.f32.mrf.mxu0
    %4833 = vdwg.mxu0
    %v4834 = vxor.u32 %v4831, 2147483648
    %v4835 = vmul.f32 %v4834, 1.442695
    %v4836 = vpow.pop %v4835
    %v4837 = vadd.f32 %v4836, 1.0
    %v4838 = vrcp.pop %v4837
    %v4839 = vmul.f32 1.0, %v4838
    %v4840 = vtanh.pop %v4831
    %v4841 = vmul.f32 %v4839, %v4582
    %4843 = vrot.lane.b32.xlu0 %v4840, 64
    %v4844 = vpop.permute.xlu0 %4843
    %v4846 = vmul.f32 %v4839, %v4844
    %4848 = vrot.lane.b32.xlu0 %v4846, 32
    %v4849 = vpop.permute.xlu0 %4848
    %v4851 = vadd.f32 %v4841, %v4849
    %v4852 = vtanh.pop %v4851
    %4854 = vrot.lane.b32.xlu0 %v4852, 64
    %v4855 = vpop.permute.xlu0 %4854
    %v4857 = vmul.f32 %v4839, %v4855
    %4859 = vrot.lane.b32.xlu0 %v4857, 32
    %v4860 = vpop.permute.xlu0 %4859
    %s4862 = scalar_lea.vmem [#allocation14], 6
    %4863 = vst.msk [vmem:[%s4862] sm:$0x3] %vm1625, %v4860
    %v4864 = vsel %vm153, %v4860, 0
    %4866 = vmatprep.subr.mxu0 0.0
    %4867 = vmatpush1.msra.mxu0 0.0
    %4868 = vmatprep.subr.mxu0 0.0
    %4869 = vmatpush1.msra.mxu0 0.0
    %4870 = vmatprep.subr.mxu0 0.0
    %4871 = vmatpush1.msra.mxu0 0.0
    %4872 = vmatprep.subr.mxu0 0.0
    %4873 = vmatpush1.msra.mxu0 0.0
    %4874 = vmatprep.subr.mxu0 0.0
    %4875 = vmatpush1.msra.mxu0 0.0
    %4876 = vmatprep.subr.mxu0 0.0
    %4877 = vmatpush1.msra.mxu0 0.0
    %4878 = vmatprep.subr.mxu0 0.0
    %4879 = vmatpush1.msra.mxu0 0.0
    %4880 = vmatprep.subr.mxu0 0.0
    %4881 = vmatpush1.msra.mxu0 0.0
    %4882 = vmatprep.subr.mxu0 0.0
    %4883 = vmatpush1.msra.mxu0 0.0
    %4884 = vmatprep.subr.mxu0 0.0
    %4885 = vmatpush1.msra.mxu0 0.0
    %4886 = vmatprep.subr.mxu0 0.0
    %4887 = vmatpush1.msra.mxu0 0.0
    %4888 = vmatprep.subr.mxu0 0.0
    %4889 = vmatpush1.msra.mxu0 0.0
    %4890 = vmatprep.subr.mxu0 0.0
    %4891 = vmatpush1.msra.mxu0 %v335
    %4892 = vmatprep.subr.mxu0 0.0
    %4893 = vmatpush1.msra.mxu0 %v334
    %4894 = vmatprep.subr.mxu0 0.0
    %4895 = vmatpush1.msra.mxu0 %v333
    %4896 = vmatprep.subr.mxu0 0.0
    %4897 = vmatpush1.msra.mxu0 %v332
    %4898 = vmatprep.subr.mxu0 0.0
    %4899 = vmatpush2.msra.mxu0 0.0
    %4900 = vmatprep.subr.mxu0 0.0
    %4901 = vmatpush2.msra.mxu0 0.0
    %4902 = vmatprep.subr.mxu0 0.0
    %4903 = vmatpush2.msra.mxu0 0.0
    %4904 = vmatprep.subr.mxu0 0.0
    %4905 = vmatpush2.msra.mxu0 0.0
    %4906 = vmatprep.subr.mxu0 0.0
    %4907 = vmatpush2.msra.mxu0 0.0
    %4908 = vmatprep.subr.mxu0 0.0
    %4909 = vmatpush2.msra.mxu0 0.0
    %4910 = vmatprep.subr.mxu0 0.0
    %4911 = vmatpush2.msra.mxu0 0.0
    %4912 = vmatprep.subr.mxu0 0.0
    %4913 = vmatpush2.msra.mxu0 0.0
    %4914 = vmatprep.subr.mxu0 0.0
    %4915 = vmatpush2.msra.mxu0 0.0
    %4916 = vmatprep.subr.mxu0 0.0
    %4917 = vmatpush2.msra.mxu0 0.0
    %4918 = vmatprep.subr.mxu0 0.0
    %4919 = vmatpush2.msra.mxu0 0.0
    %4920 = vmatprep.subr.mxu0 0.0
    %4921 = vmatpush2.msra.mxu0 0.0
    %4922 = vmatprep.subr.mxu0 0.0
    %4923 = vmatpush2.msra.mxu0 0.0
    %4924 = vmatprep.subr.mxu0 0.0
    %4925 = vmatpush2.msra.mxu0 0.0
    %4926 = vmatprep.subr.mxu0 0.0
    %4927 = vmatpush2.msra.mxu0 0.0
    %4928 = vmatprep.subr.mxu0 0.0
    %4929 = vmatpush2.msra.mxu0 0.0
    %4930 = vmatprep.mubr.f32.mxu0 0.0
    %4931 = vmatmul.mubr.f32.gmra.mxu0 %v4864
    %v4932 = vpop.f32.mrf.mxu0
    %v4933 = vadd.f32 %v545, %v4932
    %v4934 = vpop.f32.mrf.mxu0
    %4935 = vdwg.mxu0
    %4936 = vmatprep.subr.mxu0 0.0
    %4937 = vmatpush1.msra.mxu0 0.0
    %4938 = vmatprep.subr.mxu0 0.0
    %4939 = vmatpush1.msra.mxu0 0.0
    %4940 = vmatprep.subr.mxu0 0.0
    %4941 = vmatpush1.msra.mxu0 0.0
    %4942 = vmatprep.subr.mxu0 0.0
    %4943 = vmatpush1.msra.mxu0 0.0
    %4944 = vmatprep.subr.mxu0 0.0
    %4945 = vmatpush1.msra.mxu0 0.0
    %4946 = vmatprep.subr.mxu0 0.0
    %4947 = vmatpush1.msra.mxu0 0.0
    %4948 = vmatprep.subr.mxu0 0.0
    %4949 = vmatpush1.msra.mxu0 0.0
    %4950 = vmatprep.subr.mxu0 0.0
    %4951 = vmatpush1.msra.mxu0 0.0
    %4952 = vmatprep.subr.mxu0 0.0
    %4953 = vmatpush1.msra.mxu0 0.0
    %4954 = vmatprep.subr.mxu0 0.0
    %4955 = vmatpush1.msra.mxu0 0.0
    %4956 = vmatprep.subr.mxu0 0.0
    %4957 = vmatpush1.msra.mxu0 0.0
    %4958 = vmatprep.subr.mxu0 0.0
    %4959 = vmatpush1.msra.mxu0 0.0
    %4960 = vmatprep.subr.mxu0 0.0
    %4961 = vmatpush1.msra.mxu0 %v326
    %4962 = vmatprep.subr.mxu0 0.0
    %4963 = vmatpush1.msra.mxu0 %v325
    %4964 = vmatprep.subr.mxu0 0.0
    %4965 = vmatpush1.msra.mxu0 %v324
    %4966 = vmatprep.subr.mxu0 0.0
    %4967 = vmatpush1.msra.mxu0 %v323
    %4968 = vmatprep.subr.mxu0 0.0
    %4969 = vmatpush2.msra.mxu0 0.0
    %4970 = vmatprep.subr.mxu0 0.0
    %4971 = vmatpush2.msra.mxu0 0.0
    %4972 = vmatprep.subr.mxu0 0.0
    %4973 = vmatpush2.msra.mxu0 0.0
    %4974 = vmatprep.subr.mxu0 0.0
    %4975 = vmatpush2.msra.mxu0 0.0
    %4976 = vmatprep.subr.mxu0 0.0
    %4977 = vmatpush2.msra.mxu0 0.0
    %4978 = vmatprep.subr.mxu0 0.0
    %4979 = vmatpush2.msra.mxu0 0.0
    %4980 = vmatprep.subr.mxu0 0.0
    %4981 = vmatpush2.msra.mxu0 0.0
    %4982 = vmatprep.subr.mxu0 0.0
    %4983 = vmatpush2.msra.mxu0 0.0
    %4984 = vmatprep.subr.mxu0 0.0
    %4985 = vmatpush2.msra.mxu0 0.0
    %4986 = vmatprep.subr.mxu0 0.0
    %4987 = vmatpush2.msra.mxu0 0.0
    %4988 = vmatprep.subr.mxu0 0.0
    %4989 = vmatpush2.msra.mxu0 0.0
    %4990 = vmatprep.subr.mxu0 0.0
    %4991 = vmatpush2.msra.mxu0 0.0
    %4992 = vmatprep.subr.mxu0 0.0
    %4993 = vmatpush2.msra.mxu0 0.0
    %4994 = vmatprep.subr.mxu0 0.0
    %4995 = vmatpush2.msra.mxu0 0.0
    %4996 = vmatprep.subr.mxu0 0.0
    %4997 = vmatpush2.msra.mxu0 0.0
    %4998 = vmatprep.subr.mxu0 0.0
    %4999 = vmatpush2.msra.mxu0 0.0
    %5000 = vmatprep.mubr.f32.mxu0 0.0
    %5001 = vmatmul.mubr.f32.gmra.mxu0 %v4762
    %v5002 = vpop.f32.mrf.mxu0
    %v5003 = vadd.f32 0.0, %v5002
    %v5004 = vpop.f32.mrf.mxu0
    %5005 = vdwg.mxu0
    %v5006 = vadd.f32 %v378, %v5003
    %v5007 = vxor.u32 %v5006, 2147483648
    %v5008 = vmul.f32 %v5007, 1.442695
    %v5009 = vpow.pop %v5008
    %v5010 = vadd.f32 %v5009, 1.0
    %v5011 = vrcp.pop %v5010
    %v5012 = vmul.f32 1.0, %v5011
    %v5013 = vtanh.pop %v5006
    %v5014 = vmul.f32 %v5012, %v4752
    %5016 = vrot.lane.b32.xlu0 %v5013, 64
    %v5017 = vpop.permute.xlu0 %5016
    %v5019 = vmul.f32 %v5012, %v5017
    %5021 = vrot.lane.b32.xlu0 %v5019, 32
    %v5022 = vpop.permute.xlu0 %5021
    %v5024 = vadd.f32 %v5014, %v5022
    %v5025 = vtanh.pop %v5024
    %5027 = vrot.lane.b32.xlu0 %v5025, 64
    %v5028 = vpop.permute.xlu0 %5027
    %v5030 = vmul.f32 %v5012, %v5028
    %5032 = vrot.lane.b32.xlu0 %v5030, 32
    %v5033 = vpop.permute.xlu0 %5032
    %v5034 = vsel %vm153, %v5033, 0
    %5036 = vmatprep.subr.mxu0 0.0
    %5037 = vmatpush1.msra.mxu0 0.0
    %5038 = vmatprep.subr.mxu0 0.0
    %5039 = vmatpush1.msra.mxu0 0.0
    %5040 = vmatprep.subr.mxu0 0.0
    %5041 = vmatpush1.msra.mxu0 0.0
    %5042 = vmatprep.subr.mxu0 0.0
    %5043 = vmatpush1.msra.mxu0 0.0
    %5044 = vmatprep.subr.mxu0 0.0
    %5045 = vmatpush1.msra.mxu0 0.0
    %5046 = vmatprep.subr.mxu0 0.0
    %5047 = vmatpush1.msra.mxu0 0.0
    %5048 = vmatprep.subr.mxu0 0.0
    %5049 = vmatpush1.msra.mxu0 0.0
    %5050 = vmatprep.subr.mxu0 0.0
    %5051 = vmatpush1.msra.mxu0 0.0
    %5052 = vmatprep.subr.mxu0 0.0
    %5053 = vmatpush1.msra.mxu0 0.0
    %5054 = vmatprep.subr.mxu0 0.0
    %5055 = vmatpush1.msra.mxu0 0.0
    %5056 = vmatprep.subr.mxu0 0.0
    %5057 = vmatpush1.msra.mxu0 0.0
    %5058 = vmatprep.subr.mxu0 0.0
    %5059 = vmatpush1.msra.mxu0 0.0
    %5060 = vmatprep.subr.mxu0 0.0
    %5061 = vmatpush1.msra.mxu0 %v331
    %5062 = vmatprep.subr.mxu0 0.0
    %5063 = vmatpush1.msra.mxu0 %v330
    %5064 = vmatprep.subr.mxu0 0.0
    %5065 = vmatpush1.msra.mxu0 %v329
    %5066 = vmatprep.subr.mxu0 0.0
    %5067 = vmatpush1.msra.mxu0 %v328
    %5068 = vmatprep.subr.mxu0 0.0
    %5069 = vmatpush2.msra.mxu0 0.0
    %5070 = vmatprep.subr.mxu0 0.0
    %5071 = vmatpush2.msra.mxu0 0.0
    %5072 = vmatprep.subr.mxu0 0.0
    %5073 = vmatpush2.msra.mxu0 0.0
    %5074 = vmatprep.subr.mxu0 0.0
    %5075 = vmatpush2.msra.mxu0 0.0
    %5076 = vmatprep.subr.mxu0 0.0
    %5077 = vmatpush2.msra.mxu0 0.0
    %5078 = vmatprep.subr.mxu0 0.0
    %5079 = vmatpush2.msra.mxu0 0.0
    %5080 = vmatprep.subr.mxu0 0.0
    %5081 = vmatpush2.msra.mxu0 0.0
    %5082 = vmatprep.subr.mxu0 0.0
    %5083 = vmatpush2.msra.mxu0 0.0
    %5084 = vmatprep.subr.mxu0 0.0
    %5085 = vmatpush2.msra.mxu0 0.0
    %5086 = vmatprep.subr.mxu0 0.0
    %5087 = vmatpush2.msra.mxu0 0.0
    %5088 = vmatprep.subr.mxu0 0.0
    %5089 = vmatpush2.msra.mxu0 0.0
    %5090 = vmatprep.subr.mxu0 0.0
    %5091 = vmatpush2.msra.mxu0 0.0
    %5092 = vmatprep.subr.mxu0 0.0
    %5093 = vmatpush2.msra.mxu0 0.0
    %5094 = vmatprep.subr.mxu0 0.0
    %5095 = vmatpush2.msra.mxu0 0.0
    %5096 = vmatprep.subr.mxu0 0.0
    %5097 = vmatpush2.msra.mxu0 0.0
    %5098 = vmatprep.subr.mxu0 0.0
    %5099 = vmatpush2.msra.mxu0 0.0
    %5100 = vmatprep.mubr.f32.mxu0 0.0
    %5101 = vmatmul.mubr.f32.gmra.mxu0 %v5034
    %v5102 = vpop.f32.mrf.mxu0
    %v5103 = vadd.f32 %v4933, %v5102
    %v5104 = vpop.f32.mrf.mxu0
    %5105 = vdwg.mxu0
    %v5106 = vxor.u32 %v5103, 2147483648
    %v5107 = vmul.f32 %v5106, 1.442695
    %v5108 = vpow.pop %v5107
    %v5109 = vadd.f32 %v5108, 1.0
    %v5110 = vrcp.pop %v5109
    %v5111 = vmul.f32 1.0, %v5110
    %v5112 = vtanh.pop %v5103
    %v5113 = vmul.f32 %v5111, %v4851
    %5115 = vrot.lane.b32.xlu0 %v5112, 64
    %v5116 = vpop.permute.xlu0 %5115
    %v5118 = vmul.f32 %v5111, %v5116
    %5120 = vrot.lane.b32.xlu0 %v5118, 32
    %v5121 = vpop.permute.xlu0 %5120
    %v5123 = vadd.f32 %v5113, %v5121
    %v5124 = vtanh.pop %v5123
    %5126 = vrot.lane.b32.xlu0 %v5124, 64
    %v5127 = vpop.permute.xlu0 %5126
    %v5129 = vmul.f32 %v5111, %v5127
    %5131 = vrot.lane.b32.xlu0 %v5129, 32
    %v5132 = vpop.permute.xlu0 %5131
    %v5133 = vsel %vm153, %v5132, 0
    %5135 = vmatprep.subr.mxu0 0.0
    %5136 = vmatpush1.msra.mxu0 0.0
    %5137 = vmatprep.subr.mxu0 0.0
    %5138 = vmatpush1.msra.mxu0 0.0
    %5139 = vmatprep.subr.mxu0 0.0
    %5140 = vmatpush1.msra.mxu0 0.0
    %5141 = vmatprep.subr.mxu0 0.0
    %5142 = vmatpush1.msra.mxu0 0.0
    %5143 = vmatprep.subr.mxu0 0.0
    %5144 = vmatpush1.msra.mxu0 0.0
    %5145 = vmatprep.subr.mxu0 0.0
    %5146 = vmatpush1.msra.mxu0 0.0
    %5147 = vmatprep.subr.mxu0 0.0
    %5148 = vmatpush1.msra.mxu0 0.0
    %5149 = vmatprep.subr.mxu0 0.0
    %5150 = vmatpush1.msra.mxu0 0.0
    %5151 = vmatprep.subr.mxu0 0.0
    %5152 = vmatpush1.msra.mxu0 0.0
    %5153 = vmatprep.subr.mxu0 0.0
    %5154 = vmatpush1.msra.mxu0 0.0
    %5155 = vmatprep.subr.mxu0 0.0
    %5156 = vmatpush1.msra.mxu0 0.0
    %5157 = vmatprep.subr.mxu0 0.0
    %5158 = vmatpush1.msra.mxu0 0.0
    %5159 = vmatprep.subr.mxu0 0.0
    %5160 = vmatpush1.msra.mxu0 %v335
    %5161 = vmatprep.subr.mxu0 0.0
    %5162 = vmatpush1.msra.mxu0 %v334
    %5163 = vmatprep.subr.mxu0 0.0
    %5164 = vmatpush1.msra.mxu0 %v333
    %5165 = vmatprep.subr.mxu0 0.0
    %5166 = vmatpush1.msra.mxu0 %v332
    %5167 = vmatprep.subr.mxu0 0.0
    %5168 = vmatpush2.msra.mxu0 0.0
    %5169 = vmatprep.subr.mxu0 0.0
    %5170 = vmatpush2.msra.mxu0 0.0
    %5171 = vmatprep.subr.mxu0 0.0
    %5172 = vmatpush2.msra.mxu0 0.0
    %5173 = vmatprep.subr.mxu0 0.0
    %5174 = vmatpush2.msra.mxu0 0.0
    %5175 = vmatprep.subr.mxu0 0.0
    %5176 = vmatpush2.msra.mxu0 0.0
    %5177 = vmatprep.subr.mxu0 0.0
    %5178 = vmatpush2.msra.mxu0 0.0
    %5179 = vmatprep.subr.mxu0 0.0
    %5180 = vmatpush2.msra.mxu0 0.0
    %5181 = vmatprep.subr.mxu0 0.0
    %5182 = vmatpush2.msra.mxu0 0.0
    %5183 = vmatprep.subr.mxu0 0.0
    %5184 = vmatpush2.msra.mxu0 0.0
    %5185 = vmatprep.subr.mxu0 0.0
    %5186 = vmatpush2.msra.mxu0 0.0
    %5187 = vmatprep.subr.mxu0 0.0
    %5188 = vmatpush2.msra.mxu0 0.0
    %5189 = vmatprep.subr.mxu0 0.0
    %5190 = vmatpush2.msra.mxu0 0.0
    %5191 = vmatprep.subr.mxu0 0.0
    %5192 = vmatpush2.msra.mxu0 0.0
    %5193 = vmatprep.subr.mxu0 0.0
    %5194 = vmatpush2.msra.mxu0 0.0
    %5195 = vmatprep.subr.mxu0 0.0
    %5196 = vmatpush2.msra.mxu0 0.0
    %5197 = vmatprep.subr.mxu0 0.0
    %5198 = vmatpush2.msra.mxu0 0.0
    %5199 = vmatprep.mubr.f32.mxu0 0.0
    %5200 = vmatmul.mubr.f32.gmra.mxu0 %v5133
    %v5201 = vpop.f32.mrf.mxu0
    %v5202 = vadd.f32 %v545, %v5201
    %v5203 = vpop.f32.mrf.mxu0
    %5204 = vdwg.mxu0
    %5205 = vmatprep.subr.mxu0 0.0
    %5206 = vmatpush1.msra.mxu0 0.0
    %5207 = vmatprep.subr.mxu0 0.0
    %5208 = vmatpush1.msra.mxu0 0.0
    %5209 = vmatprep.subr.mxu0 0.0
    %5210 = vmatpush1.msra.mxu0 0.0
    %5211 = vmatprep.subr.mxu0 0.0
    %5212 = vmatpush1.msra.mxu0 0.0
    %5213 = vmatprep.subr.mxu0 0.0
    %5214 = vmatpush1.msra.mxu0 0.0
    %5215 = vmatprep.subr.mxu0 0.0
    %5216 = vmatpush1.msra.mxu0 0.0
    %5217 = vmatprep.subr.mxu0 0.0
    %5218 = vmatpush1.msra.mxu0 0.0
    %5219 = vmatprep.subr.mxu0 0.0
    %5220 = vmatpush1.msra.mxu0 0.0
    %5221 = vmatprep.subr.mxu0 0.0
    %5222 = vmatpush1.msra.mxu0 0.0
    %5223 = vmatprep.subr.mxu0 0.0
    %5224 = vmatpush1.msra.mxu0 0.0
    %5225 = vmatprep.subr.mxu0 0.0
    %5226 = vmatpush1.msra.mxu0 0.0
    %5227 = vmatprep.subr.mxu0 0.0
    %5228 = vmatpush1.msra.mxu0 0.0
    %5229 = vmatprep.subr.mxu0 0.0
    %5230 = vmatpush1.msra.mxu0 %v326
    %5231 = vmatprep.subr.mxu0 0.0
    %5232 = vmatpush1.msra.mxu0 %v325
    %5233 = vmatprep.subr.mxu0 0.0
    %5234 = vmatpush1.msra.mxu0 %v324
    %5235 = vmatprep.subr.mxu0 0.0
    %5236 = vmatpush1.msra.mxu0 %v323
    %5237 = vmatprep.subr.mxu0 0.0
    %5238 = vmatpush2.msra.mxu0 0.0
    %5239 = vmatprep.subr.mxu0 0.0
    %5240 = vmatpush2.msra.mxu0 0.0
    %5241 = vmatprep.subr.mxu0 0.0
    %5242 = vmatpush2.msra.mxu0 0.0
    %5243 = vmatprep.subr.mxu0 0.0
    %5244 = vmatpush2.msra.mxu0 0.0
    %5245 = vmatprep.subr.mxu0 0.0
    %5246 = vmatpush2.msra.mxu0 0.0
    %5247 = vmatprep.subr.mxu0 0.0
    %5248 = vmatpush2.msra.mxu0 0.0
    %5249 = vmatprep.subr.mxu0 0.0
    %5250 = vmatpush2.msra.mxu0 0.0
    %5251 = vmatprep.subr.mxu0 0.0
    %5252 = vmatpush2.msra.mxu0 0.0
    %5253 = vmatprep.subr.mxu0 0.0
    %5254 = vmatpush2.msra.mxu0 0.0
    %5255 = vmatprep.subr.mxu0 0.0
    %5256 = vmatpush2.msra.mxu0 0.0
    %5257 = vmatprep.subr.mxu0 0.0
    %5258 = vmatpush2.msra.mxu0 0.0
    %5259 = vmatprep.subr.mxu0 0.0
    %5260 = vmatpush2.msra.mxu0 0.0
    %5261 = vmatprep.subr.mxu0 0.0
    %5262 = vmatpush2.msra.mxu0 0.0
    %5263 = vmatprep.subr.mxu0 0.0
    %5264 = vmatpush2.msra.mxu0 0.0
    %5265 = vmatprep.subr.mxu0 0.0
    %5266 = vmatpush2.msra.mxu0 0.0
    %5267 = vmatprep.subr.mxu0 0.0
    %5268 = vmatpush2.msra.mxu0 0.0
    %5269 = vmatprep.mubr.f32.mxu0 0.0
    %5270 = vmatmul.mubr.f32.gmra.mxu0 %v5034
    %v5271 = vpop.f32.mrf.mxu0
    %v5272 = vadd.f32 0.0, %v5271
    %v5273 = vpop.f32.mrf.mxu0
    %5274 = vdwg.mxu0
    %v5275 = vadd.f32 %v426, %v5272
    %v5276 = vxor.u32 %v5275, 2147483648
    %v5277 = vmul.f32 %v5276, 1.442695
    %v5278 = vpow.pop %v5277
    %v5279 = vadd.f32 %v5278, 1.0
    %v5280 = vrcp.pop %v5279
    %v5281 = vmul.f32 1.0, %v5280
    %v5282 = vtanh.pop %v5275
    %v5283 = vmul.f32 %v5281, %v5024
    %5285 = vrot.lane.b32.xlu0 %v5282, 64
    %v5286 = vpop.permute.xlu0 %5285
    %v5288 = vmul.f32 %v5281, %v5286
    %5290 = vrot.lane.b32.xlu0 %v5288, 32
    %v5291 = vpop.permute.xlu0 %5290
    %v5293 = vadd.f32 %v5283, %v5291
    %v5294 = vtanh.pop %v5293
    %5296 = vrot.lane.b32.xlu0 %v5294, 64
    %v5297 = vpop.permute.xlu0 %5296
    %v5299 = vmul.f32 %v5281, %v5297
    %5301 = vrot.lane.b32.xlu0 %v5299, 32
    %v5302 = vpop.permute.xlu0 %5301
    %v5303 = vsel %vm153, %v5302, 0
    %5305 = vmatprep.subr.mxu0 0.0
    %5306 = vmatpush1.msra.mxu0 0.0
    %5307 = vmatprep.subr.mxu0 0.0
    %5308 = vmatpush1.msra.mxu0 0.0
    %5309 = vmatprep.subr.mxu0 0.0
    %5310 = vmatpush1.msra.mxu0 0.0
    %5311 = vmatprep.subr.mxu0 0.0
    %5312 = vmatpush1.msra.mxu0 0.0
    %5313 = vmatprep.subr.mxu0 0.0
    %5314 = vmatpush1.msra.mxu0 0.0
    %5315 = vmatprep.subr.mxu0 0.0
    %5316 = vmatpush1.msra.mxu0 0.0
    %5317 = vmatprep.subr.mxu0 0.0
    %5318 = vmatpush1.msra.mxu0 0.0
    %5319 = vmatprep.subr.mxu0 0.0
    %5320 = vmatpush1.msra.mxu0 0.0
    %5321 = vmatprep.subr.mxu0 0.0
    %5322 = vmatpush1.msra.mxu0 0.0
    %5323 = vmatprep.subr.mxu0 0.0
    %5324 = vmatpush1.msra.mxu0 0.0
    %5325 = vmatprep.subr.mxu0 0.0
    %5326 = vmatpush1.msra.mxu0 0.0
    %5327 = vmatprep.subr.mxu0 0.0
    %5328 = vmatpush1.msra.mxu0 0.0
    %5329 = vmatprep.subr.mxu0 0.0
    %5330 = vmatpush1.msra.mxu0 %v331
    %5331 = vmatprep.subr.mxu0 0.0
    %5332 = vmatpush1.msra.mxu0 %v330
    %5333 = vmatprep.subr.mxu0 0.0
    %5334 = vmatpush1.msra.mxu0 %v329
    %5335 = vmatprep.subr.mxu0 0.0
    %5336 = vmatpush1.msra.mxu0 %v328
    %5337 = vmatprep.subr.mxu0 0.0
    %5338 = vmatpush2.msra.mxu0 0.0
    %5339 = vmatprep.subr.mxu0 0.0
    %5340 = vmatpush2.msra.mxu0 0.0
    %5341 = vmatprep.subr.mxu0 0.0
    %5342 = vmatpush2.msra.mxu0 0.0
    %5343 = vmatprep.subr.mxu0 0.0
    %5344 = vmatpush2.msra.mxu0 0.0
    %5345 = vmatprep.subr.mxu0 0.0
    %5346 = vmatpush2.msra.mxu0 0.0
    %5347 = vmatprep.subr.mxu0 0.0
    %5348 = vmatpush2.msra.mxu0 0.0
    %5349 = vmatprep.subr.mxu0 0.0
    %5350 = vmatpush2.msra.mxu0 0.0
    %5351 = vmatprep.subr.mxu0 0.0
    %5352 = vmatpush2.msra.mxu0 0.0
    %5353 = vmatprep.subr.mxu0 0.0
    %5354 = vmatpush2.msra.mxu0 0.0
    %5355 = vmatprep.subr.mxu0 0.0
    %5356 = vmatpush2.msra.mxu0 0.0
    %5357 = vmatprep.subr.mxu0 0.0
    %5358 = vmatpush2.msra.mxu0 0.0
    %5359 = vmatprep.subr.mxu0 0.0
    %5360 = vmatpush2.msra.mxu0 0.0
    %5361 = vmatprep.subr.mxu0 0.0
    %5362 = vmatpush2.msra.mxu0 0.0
    %5363 = vmatprep.subr.mxu0 0.0
    %5364 = vmatpush2.msra.mxu0 0.0
    %5365 = vmatprep.subr.mxu0 0.0
    %5366 = vmatpush2.msra.mxu0 0.0
    %5367 = vmatprep.subr.mxu0 0.0
    %5368 = vmatpush2.msra.mxu0 0.0
    %5369 = vmatprep.mubr.f32.mxu0 0.0
    %5370 = vmatmul.mubr.f32.gmra.mxu0 %v5303
    %v5371 = vpop.f32.mrf.mxu0
    %v5372 = vadd.f32 %v5202, %v5371
    %v5373 = vpop.f32.mrf.mxu0
    %5374 = vdwg.mxu0
    %v5375 = vxor.u32 %v5372, 2147483648
    %v5376 = vmul.f32 %v5375, 1.442695
    %v5377 = vpow.pop %v5376
    %v5378 = vadd.f32 %v5377, 1.0
    %v5379 = vrcp.pop %v5378
    %v5380 = vmul.f32 1.0, %v5379
    %v5381 = vtanh.pop %v5372
    %v5382 = vmul.f32 %v5380, %v5123
    %5384 = vrot.lane.b32.xlu0 %v5381, 64
    %v5385 = vpop.permute.xlu0 %5384
    %v5387 = vmul.f32 %v5380, %v5385
    %5389 = vrot.lane.b32.xlu0 %v5387, 32
    %v5390 = vpop.permute.xlu0 %5389
    %v5392 = vadd.f32 %v5382, %v5390
    %v5393 = vtanh.pop %v5392
    %5395 = vrot.lane.b32.xlu0 %v5393, 64
    %v5396 = vpop.permute.xlu0 %5395
    %v5398 = vmul.f32 %v5380, %v5396
    %5400 = vrot.lane.b32.xlu0 %v5398, 32
    %v5401 = vpop.permute.xlu0 %5400
    %v5402 = vsel %vm153, %v5401, 0
    %5404 = vmatprep.subr.mxu0 0.0
    %5405 = vmatpush1.msra.mxu0 0.0
    %5406 = vmatprep.subr.mxu0 0.0
    %5407 = vmatpush1.msra.mxu0 0.0
    %5408 = vmatprep.subr.mxu0 0.0
    %5409 = vmatpush1.msra.mxu0 0.0
    %5410 = vmatprep.subr.mxu0 0.0
    %5411 = vmatpush1.msra.mxu0 0.0
    %5412 = vmatprep.subr.mxu0 0.0
    %5413 = vmatpush1.msra.mxu0 0.0
    %5414 = vmatprep.subr.mxu0 0.0
    %5415 = vmatpush1.msra.mxu0 0.0
    %5416 = vmatprep.subr.mxu0 0.0
    %5417 = vmatpush1.msra.mxu0 0.0
    %5418 = vmatprep.subr.mxu0 0.0
    %5419 = vmatpush1.msra.mxu0 0.0
    %5420 = vmatprep.subr.mxu0 0.0
    %5421 = vmatpush1.msra.mxu0 0.0
    %5422 = vmatprep.subr.mxu0 0.0
    %5423 = vmatpush1.msra.mxu0 0.0
    %5424 = vmatprep.subr.mxu0 0.0
    %5425 = vmatpush1.msra.mxu0 0.0
    %5426 = vmatprep.subr.mxu0 0.0
    %5427 = vmatpush1.msra.mxu0 0.0
    %5428 = vmatprep.subr.mxu0 0.0
    %5429 = vmatpush1.msra.mxu0 %v335
    %5430 = vmatprep.subr.mxu0 0.0
    %5431 = vmatpush1.msra.mxu0 %v334
    %5432 = vmatprep.subr.mxu0 0.0
    %5433 = vmatpush1.msra.mxu0 %v333
    %5434 = vmatprep.subr.mxu0 0.0
    %5435 = vmatpush1.msra.mxu0 %v332
    %5436 = vmatprep.subr.mxu0 0.0
    %5437 = vmatpush2.msra.mxu0 0.0
    %5438 = vmatprep.subr.mxu0 0.0
    %5439 = vmatpush2.msra.mxu0 0.0
    %5440 = vmatprep.subr.mxu0 0.0
    %5441 = vmatpush2.msra.mxu0 0.0
    %5442 = vmatprep.subr.mxu0 0.0
    %5443 = vmatpush2.msra.mxu0 0.0
    %5444 = vmatprep.subr.mxu0 0.0
    %5445 = vmatpush2.msra.mxu0 0.0
    %5446 = vmatprep.subr.mxu0 0.0
    %5447 = vmatpush2.msra.mxu0 0.0
    %5448 = vmatprep.subr.mxu0 0.0
    %5449 = vmatpush2.msra.mxu0 0.0
    %5450 = vmatprep.subr.mxu0 0.0
    %5451 = vmatpush2.msra.mxu0 0.0
    %5452 = vmatprep.subr.mxu0 0.0
    %5453 = vmatpush2.msra.mxu0 0.0
    %5454 = vmatprep.subr.mxu0 0.0
    %5455 = vmatpush2.msra.mxu0 0.0
    %5456 = vmatprep.subr.mxu0 0.0
    %5457 = vmatpush2.msra.mxu0 0.0
    %5458 = vmatprep.subr.mxu0 0.0
    %5459 = vmatpush2.msra.mxu0 0.0
    %5460 = vmatprep.subr.mxu0 0.0
    %5461 = vmatpush2.msra.mxu0 0.0
    %5462 = vmatprep.subr.mxu0 0.0
    %5463 = vmatpush2.msra.mxu0 0.0
    %5464 = vmatprep.subr.mxu0 0.0
    %5465 = vmatpush2.msra.mxu0 0.0
    %5466 = vmatprep.subr.mxu0 0.0
    %5467 = vmatpush2.msra.mxu0 0.0
    %5468 = vmatprep.mubr.f32.mxu0 0.0
    %5469 = vmatmul.mubr.f32.gmra.mxu0 %v5402
    %v5470 = vpop.f32.mrf.mxu0
    %v5471 = vadd.f32 %v545, %v5470
    %v5472 = vpop.f32.mrf.mxu0
    %5473 = vdwg.mxu0
    %5474 = vmatprep.subr.mxu0 0.0
    %5475 = vmatpush1.msra.mxu0 0.0
    %5476 = vmatprep.subr.mxu0 0.0
    %5477 = vmatpush1.msra.mxu0 0.0
    %5478 = vmatprep.subr.mxu0 0.0
    %5479 = vmatpush1.msra.mxu0 0.0
    %5480 = vmatprep.subr.mxu0 0.0
    %5481 = vmatpush1.msra.mxu0 0.0
    %5482 = vmatprep.subr.mxu0 0.0
    %5483 = vmatpush1.msra.mxu0 0.0
    %5484 = vmatprep.subr.mxu0 0.0
    %5485 = vmatpush1.msra.mxu0 0.0
    %5486 = vmatprep.subr.mxu0 0.0
    %5487 = vmatpush1.msra.mxu0 0.0
    %5488 = vmatprep.subr.mxu0 0.0
    %5489 = vmatpush1.msra.mxu0 0.0
    %5490 = vmatprep.subr.mxu0 0.0
    %5491 = vmatpush1.msra.mxu0 0.0
    %5492 = vmatprep.subr.mxu0 0.0
    %5493 = vmatpush1.msra.mxu0 0.0
    %5494 = vmatprep.subr.mxu0 0.0
    %5495 = vmatpush1.msra.mxu0 0.0
    %5496 = vmatprep.subr.mxu0 0.0
    %5497 = vmatpush1.msra.mxu0 0.0
    %5498 = vmatprep.subr.mxu0 0.0
    %5499 = vmatpush1.msra.mxu0 %v326
    %5500 = vmatprep.subr.mxu0 0.0
    %5501 = vmatpush1.msra.mxu0 %v325
    %5502 = vmatprep.subr.mxu0 0.0
    %5503 = vmatpush1.msra.mxu0 %v324
    %5504 = vmatprep.subr.mxu0 0.0
    %5505 = vmatpush1.msra.mxu0 %v323
    %5506 = vmatprep.subr.mxu0 0.0
    %5507 = vmatpush2.msra.mxu0 0.0
    %5508 = vmatprep.subr.mxu0 0.0
    %5509 = vmatpush2.msra.mxu0 0.0
    %5510 = vmatprep.subr.mxu0 0.0
    %5511 = vmatpush2.msra.mxu0 0.0
    %5512 = vmatprep.subr.mxu0 0.0
    %5513 = vmatpush2.msra.mxu0 0.0
    %5514 = vmatprep.subr.mxu0 0.0
    %5515 = vmatpush2.msra.mxu0 0.0
    %5516 = vmatprep.subr.mxu0 0.0
    %5517 = vmatpush2.msra.mxu0 0.0
    %5518 = vmatprep.subr.mxu0 0.0
    %5519 = vmatpush2.msra.mxu0 0.0
    %5520 = vmatprep.subr.mxu0 0.0
    %5521 = vmatpush2.msra.mxu0 0.0
    %5522 = vmatprep.subr.mxu0 0.0
    %5523 = vmatpush2.msra.mxu0 0.0
    %5524 = vmatprep.subr.mxu0 0.0
    %5525 = vmatpush2.msra.mxu0 0.0
    %5526 = vmatprep.subr.mxu0 0.0
    %5527 = vmatpush2.msra.mxu0 0.0
    %5528 = vmatprep.subr.mxu0 0.0
    %5529 = vmatpush2.msra.mxu0 0.0
    %5530 = vmatprep.subr.mxu0 0.0
    %5531 = vmatpush2.msra.mxu0 0.0
    %5532 = vmatprep.subr.mxu0 0.0
    %5533 = vmatpush2.msra.mxu0 0.0
    %5534 = vmatprep.subr.mxu0 0.0
    %5535 = vmatpush2.msra.mxu0 0.0
    %5536 = vmatprep.subr.mxu0 0.0
    %5537 = vmatpush2.msra.mxu0 0.0
    %5538 = vmatprep.mubr.f32.mxu0 0.0
    %5539 = vmatmul.mubr.f32.gmra.mxu0 %v5303
    %v5540 = vpop.f32.mrf.mxu0
    %v5541 = vadd.f32 0.0, %v5540
    %v5542 = vpop.f32.mrf.mxu0
    %5543 = vdwg.mxu0
    %v5544 = vadd.f32 %v474, %v5541
    %v5545 = vxor.u32 %v5544, 2147483648
    %v5546 = vmul.f32 %v5545, 1.442695
    %v5547 = vpow.pop %v5546
    %v5548 = vadd.f32 %v5547, 1.0
    %v5549 = vrcp.pop %v5548
    %v5550 = vmul.f32 1.0, %v5549
    %v5551 = vtanh.pop %v5544
    %v5552 = vmul.f32 %v5550, %v5293
    %5554 = vrot.lane.b32.xlu0 %v5551, 64
    %v5555 = vpop.permute.xlu0 %5554
    %v5557 = vmul.f32 %v5550, %v5555
    %5559 = vrot.lane.b32.xlu0 %v5557, 32
    %v5560 = vpop.permute.xlu0 %5559
    %v5562 = vadd.f32 %v5552, %v5560
    %v5563 = vtanh.pop %v5562
    %5565 = vrot.lane.b32.xlu0 %v5563, 64
    %v5566 = vpop.permute.xlu0 %5565
    %v5568 = vmul.f32 %v5550, %v5566
    %5570 = vrot.lane.b32.xlu0 %v5568, 32
    %v5571 = vpop.permute.xlu0 %5570
    %v5572 = vsel %vm153, %v5571, 0
    %5574 = vmatprep.subr.mxu0 0.0
    %5575 = vmatpush1.msra.mxu0 0.0
    %5576 = vmatprep.subr.mxu0 0.0
    %5577 = vmatpush1.msra.mxu0 0.0
    %5578 = vmatprep.subr.mxu0 0.0
    %5579 = vmatpush1.msra.mxu0 0.0
    %5580 = vmatprep.subr.mxu0 0.0
    %5581 = vmatpush1.msra.mxu0 0.0
    %5582 = vmatprep.subr.mxu0 0.0
    %5583 = vmatpush1.msra.mxu0 0.0
    %5584 = vmatprep.subr.mxu0 0.0
    %5585 = vmatpush1.msra.mxu0 0.0
    %5586 = vmatprep.subr.mxu0 0.0
    %5587 = vmatpush1.msra.mxu0 0.0
    %5588 = vmatprep.subr.mxu0 0.0
    %5589 = vmatpush1.msra.mxu0 0.0
    %5590 = vmatprep.subr.mxu0 0.0
    %5591 = vmatpush1.msra.mxu0 0.0
    %5592 = vmatprep.subr.mxu0 0.0
    %5593 = vmatpush1.msra.mxu0 0.0
    %5594 = vmatprep.subr.mxu0 0.0
    %5595 = vmatpush1.msra.mxu0 0.0
    %5596 = vmatprep.subr.mxu0 0.0
    %5597 = vmatpush1.msra.mxu0 0.0
    %5598 = vmatprep.subr.mxu0 0.0
    %5599 = vmatpush1.msra.mxu0 %v331
    %5600 = vmatprep.subr.mxu0 0.0
    %5601 = vmatpush1.msra.mxu0 %v330
    %5602 = vmatprep.subr.mxu0 0.0
    %5603 = vmatpush1.msra.mxu0 %v329
    %5604 = vmatprep.subr.mxu0 0.0
    %5605 = vmatpush1.msra.mxu0 %v328
    %5606 = vmatprep.subr.mxu0 0.0
    %5607 = vmatpush2.msra.mxu0 0.0
    %5608 = vmatprep.subr.mxu0 0.0
    %5609 = vmatpush2.msra.mxu0 0.0
    %5610 = vmatprep.subr.mxu0 0.0
    %5611 = vmatpush2.msra.mxu0 0.0
    %5612 = vmatprep.subr.mxu0 0.0
    %5613 = vmatpush2.msra.mxu0 0.0
    %5614 = vmatprep.subr.mxu0 0.0
    %5615 = vmatpush2.msra.mxu0 0.0
    %5616 = vmatprep.subr.mxu0 0.0
    %5617 = vmatpush2.msra.mxu0 0.0
    %5618 = vmatprep.subr.mxu0 0.0
    %5619 = vmatpush2.msra.mxu0 0.0
    %5620 = vmatprep.subr.mxu0 0.0
    %5621 = vmatpush2.msra.mxu0 0.0
    %5622 = vmatprep.subr.mxu0 0.0
    %5623 = vmatpush2.msra.mxu0 0.0
    %5624 = vmatprep.subr.mxu0 0.0
    %5625 = vmatpush2.msra.mxu0 0.0
    %5626 = vmatprep.subr.mxu0 0.0
    %5627 = vmatpush2.msra.mxu0 0.0
    %5628 = vmatprep.subr.mxu0 0.0
    %5629 = vmatpush2.msra.mxu0 0.0
    %5630 = vmatprep.subr.mxu0 0.0
    %5631 = vmatpush2.msra.mxu0 0.0
    %5632 = vmatprep.subr.mxu0 0.0
    %5633 = vmatpush2.msra.mxu0 0.0
    %5634 = vmatprep.subr.mxu0 0.0
    %5635 = vmatpush2.msra.mxu0 0.0
    %5636 = vmatprep.subr.mxu0 0.0
    %5637 = vmatpush2.msra.mxu0 0.0
    %5638 = vmatprep.mubr.f32.mxu0 0.0
    %5639 = vmatmul.mubr.f32.gmra.mxu0 %v5572
    %v5640 = vpop.f32.mrf.mxu0
    %v5641 = vadd.f32 %v5471, %v5640
    %v5642 = vpop.f32.mrf.mxu0
    %5643 = vdwg.mxu0
    %v5644 = vxor.u32 %v5641, 2147483648
    %v5645 = vmul.f32 %v5644, 1.442695
    %v5646 = vpow.pop %v5645
    %v5647 = vadd.f32 %v5646, 1.0
    %v5648 = vrcp.pop %v5647
    %v5649 = vmul.f32 1.0, %v5648
    %v5650 = vtanh.pop %v5641
    %v5651 = vmul.f32 %v5649, %v5392
    %5653 = vrot.lane.b32.xlu0 %v5650, 64
    %v5654 = vpop.permute.xlu0 %5653
    %v5656 = vmul.f32 %v5649, %v5654
    %5658 = vrot.lane.b32.xlu0 %v5656, 32
    %v5659 = vpop.permute.xlu0 %5658
    %v5661 = vadd.f32 %v5651, %v5659
    %v5662 = vtanh.pop %v5661
    %5664 = vrot.lane.b32.xlu0 %v5662, 64
    %v5665 = vpop.permute.xlu0 %5664
    %v5667 = vmul.f32 %v5649, %v5665
    %5669 = vrot.lane.b32.xlu0 %v5667, 32
    %v5670 = vpop.permute.xlu0 %5669
    %v5671 = vsel %vm153, %v5670, 0
    %5673 = vmatprep.subr.mxu0 0.0
    %5674 = vmatpush1.msra.mxu0 0.0
    %5675 = vmatprep.subr.mxu0 0.0
    %5676 = vmatpush1.msra.mxu0 0.0
    %5677 = vmatprep.subr.mxu0 0.0
    %5678 = vmatpush1.msra.mxu0 0.0
    %5679 = vmatprep.subr.mxu0 0.0
    %5680 = vmatpush1.msra.mxu0 0.0
    %5681 = vmatprep.subr.mxu0 0.0
    %5682 = vmatpush1.msra.mxu0 0.0
    %5683 = vmatprep.subr.mxu0 0.0
    %5684 = vmatpush1.msra.mxu0 0.0
    %5685 = vmatprep.subr.mxu0 0.0
    %5686 = vmatpush1.msra.mxu0 0.0
    %5687 = vmatprep.subr.mxu0 0.0
    %5688 = vmatpush1.msra.mxu0 0.0
    %5689 = vmatprep.subr.mxu0 0.0
    %5690 = vmatpush1.msra.mxu0 0.0
    %5691 = vmatprep.subr.mxu0 0.0
    %5692 = vmatpush1.msra.mxu0 0.0
    %5693 = vmatprep.subr.mxu0 0.0
    %5694 = vmatpush1.msra.mxu0 0.0
    %5695 = vmatprep.subr.mxu0 0.0
    %5696 = vmatpush1.msra.mxu0 0.0
    %5697 = vmatprep.subr.mxu0 0.0
    %5698 = vmatpush1.msra.mxu0 %v335
    %5699 = vmatprep.subr.mxu0 0.0
    %5700 = vmatpush1.msra.mxu0 %v334
    %5701 = vmatprep.subr.mxu0 0.0
    %5702 = vmatpush1.msra.mxu0 %v333
    %5703 = vmatprep.subr.mxu0 0.0
    %5704 = vmatpush1.msra.mxu0 %v332
    %5705 = vmatprep.subr.mxu0 0.0
    %5706 = vmatpush2.msra.mxu0 0.0
    %5707 = vmatprep.subr.mxu0 0.0
    %5708 = vmatpush2.msra.mxu0 0.0
    %5709 = vmatprep.subr.mxu0 0.0
    %5710 = vmatpush2.msra.mxu0 0.0
    %5711 = vmatprep.subr.mxu0 0.0
    %5712 = vmatpush2.msra.mxu0 0.0
    %5713 = vmatprep.subr.mxu0 0.0
    %5714 = vmatpush2.msra.mxu0 0.0
    %5715 = vmatprep.subr.mxu0 0.0
    %5716 = vmatpush2.msra.mxu0 0.0
    %5717 = vmatprep.subr.mxu0 0.0
    %5718 = vmatpush2.msra.mxu0 0.0
    %5719 = vmatprep.subr.mxu0 0.0
    %5720 = vmatpush2.msra.mxu0 0.0
    %5721 = vmatprep.subr.mxu0 0.0
    %5722 = vmatpush2.msra.mxu0 0.0
    %5723 = vmatprep.subr.mxu0 0.0
    %5724 = vmatpush2.msra.mxu0 0.0
    %5725 = vmatprep.subr.mxu0 0.0
    %5726 = vmatpush2.msra.mxu0 0.0
    %5727 = vmatprep.subr.mxu0 0.0
    %5728 = vmatpush2.msra.mxu0 0.0
    %5729 = vmatprep.subr.mxu0 0.0
    %5730 = vmatpush2.msra.mxu0 0.0
    %5731 = vmatprep.subr.mxu0 0.0
    %5732 = vmatpush2.msra.mxu0 0.0
    %5733 = vmatprep.subr.mxu0 0.0
    %5734 = vmatpush2.msra.mxu0 0.0
    %5735 = vmatprep.subr.mxu0 0.0
    %5736 = vmatpush2.msra.mxu0 0.0
    %5737 = vmatprep.mubr.f32.mxu0 0.0
    %5738 = vmatmul.mubr.f32.gmra.mxu0 %v5671
    %v5739 = vpop.f32.mrf.mxu0
    %v5740 = vadd.f32 %v545, %v5739
    %v5741 = vpop.f32.mrf.mxu0
    %5742 = vdwg.mxu0
    %5743 = vmatprep.subr.mxu0 0.0
    %5744 = vmatpush1.msra.mxu0 0.0
    %5745 = vmatprep.subr.mxu0 0.0
    %5746 = vmatpush1.msra.mxu0 0.0
    %5747 = vmatprep.subr.mxu0 0.0
    %5748 = vmatpush1.msra.mxu0 0.0
    %5749 = vmatprep.subr.mxu0 0.0
    %5750 = vmatpush1.msra.mxu0 0.0
    %5751 = vmatprep.subr.mxu0 0.0
    %5752 = vmatpush1.msra.mxu0 0.0
    %5753 = vmatprep.subr.mxu0 0.0
    %5754 = vmatpush1.msra.mxu0 0.0
    %5755 = vmatprep.subr.mxu0 0.0
    %5756 = vmatpush1.msra.mxu0 0.0
    %5757 = vmatprep.subr.mxu0 0.0
    %5758 = vmatpush1.msra.mxu0 0.0
    %5759 = vmatprep.subr.mxu0 0.0
    %5760 = vmatpush1.msra.mxu0 0.0
    %5761 = vmatprep.subr.mxu0 0.0
    %5762 = vmatpush1.msra.mxu0 0.0
    %5763 = vmatprep.subr.mxu0 0.0
    %5764 = vmatpush1.msra.mxu0 0.0
    %5765 = vmatprep.subr.mxu0 0.0
    %5766 = vmatpush1.msra.mxu0 0.0
    %5767 = vmatprep.subr.mxu0 0.0
    %5768 = vmatpush1.msra.mxu0 %v326
    %5769 = vmatprep.subr.mxu0 0.0
    %5770 = vmatpush1.msra.mxu0 %v325
    %5771 = vmatprep.subr.mxu0 0.0
    %5772 = vmatpush1.msra.mxu0 %v324
    %5773 = vmatprep.subr.mxu0 0.0
    %5774 = vmatpush1.msra.mxu0 %v323
    %5775 = vmatprep.subr.mxu0 0.0
    %5776 = vmatpush2.msra.mxu0 0.0
    %5777 = vmatprep.subr.mxu0 0.0
    %5778 = vmatpush2.msra.mxu0 0.0
    %5779 = vmatprep.subr.mxu0 0.0
    %5780 = vmatpush2.msra.mxu0 0.0
    %5781 = vmatprep.subr.mxu0 0.0
    %5782 = vmatpush2.msra.mxu0 0.0
    %5783 = vmatprep.subr.mxu0 0.0
    %5784 = vmatpush2.msra.mxu0 0.0
    %5785 = vmatprep.subr.mxu0 0.0
    %5786 = vmatpush2.msra.mxu0 0.0
    %5787 = vmatprep.subr.mxu0 0.0
    %5788 = vmatpush2.msra.mxu0 0.0
    %5789 = vmatprep.subr.mxu0 0.0
    %5790 = vmatpush2.msra.mxu0 0.0
    %5791 = vmatprep.subr.mxu0 0.0
    %5792 = vmatpush2.msra.mxu0 0.0
    %5793 = vmatprep.subr.mxu0 0.0
    %5794 = vmatpush2.msra.mxu0 0.0
    %5795 = vmatprep.subr.mxu0 0.0
    %5796 = vmatpush2.msra.mxu0 0.0
    %5797 = vmatprep.subr.mxu0 0.0
    %5798 = vmatpush2.msra.mxu0 0.0
    %5799 = vmatprep.subr.mxu0 0.0
    %5800 = vmatpush2.msra.mxu0 0.0
    %5801 = vmatprep.subr.mxu0 0.0
    %5802 = vmatpush2.msra.mxu0 0.0
    %5803 = vmatprep.subr.mxu0 0.0
    %5804 = vmatpush2.msra.mxu0 0.0
    %5805 = vmatprep.subr.mxu0 0.0
    %5806 = vmatpush2.msra.mxu0 0.0
    %5807 = vmatprep.mubr.f32.mxu0 0.0
    %5808 = vmatmul.mubr.f32.gmra.mxu0 %v5572
    %v5809 = vpop.f32.mrf.mxu0
    %v5810 = vadd.f32 0.0, %v5809
    %v5811 = vpop.f32.mrf.mxu0
    %5812 = vdwg.mxu0
    %v5813 = vadd.f32 %v522, %v5810
    %v5814 = vxor.u32 %v5813, 2147483648
    %v5815 = vmul.f32 %v5814, 1.442695
    %v5816 = vpow.pop %v5815
    %v5817 = vadd.f32 %v5816, 1.0
    %v5818 = vrcp.pop %v5817
    %v5819 = vmul.f32 1.0, %v5818
    %v5820 = vtanh.pop %v5813
    %v5821 = vmul.f32 %v5819, %v5562
    %5823 = vrot.lane.b32.xlu0 %v5820, 64
    %v5824 = vpop.permute.xlu0 %5823
    %v5826 = vmul.f32 %v5819, %v5824
    %5828 = vrot.lane.b32.xlu0 %v5826, 32
    %v5829 = vpop.permute.xlu0 %5828
    %v5831 = vadd.f32 %v5821, %v5829
    %v5832 = vtanh.pop %v5831
    %5834 = vrot.lane.b32.xlu0 %v5832, 64
    %v5835 = vpop.permute.xlu0 %5834
    %v5837 = vmul.f32 %v5819, %v5835
    %5839 = vrot.lane.b32.xlu0 %v5837, 32
    %v5840 = vpop.permute.xlu0 %5839
    %v5841 = vsel %vm153, %v5840, 0
    %5843 = vmatprep.subr.mxu0 0.0
    %5844 = vmatpush1.msra.mxu0 0.0
    %5845 = vmatprep.subr.mxu0 0.0
    %5846 = vmatpush1.msra.mxu0 0.0
    %5847 = vmatprep.subr.mxu0 0.0
    %5848 = vmatpush1.msra.mxu0 0.0
    %5849 = vmatprep.subr.mxu0 0.0
    %5850 = vmatpush1.msra.mxu0 0.0
    %5851 = vmatprep.subr.mxu0 0.0
    %5852 = vmatpush1.msra.mxu0 0.0
    %5853 = vmatprep.subr.mxu0 0.0
    %5854 = vmatpush1.msra.mxu0 0.0
    %5855 = vmatprep.subr.mxu0 0.0
    %5856 = vmatpush1.msra.mxu0 0.0
    %5857 = vmatprep.subr.mxu0 0.0
    %5858 = vmatpush1.msra.mxu0 0.0
    %5859 = vmatprep.subr.mxu0 0.0
    %5860 = vmatpush1.msra.mxu0 0.0
    %5861 = vmatprep.subr.mxu0 0.0
    %5862 = vmatpush1.msra.mxu0 0.0
    %5863 = vmatprep.subr.mxu0 0.0
    %5864 = vmatpush1.msra.mxu0 0.0
    %5865 = vmatprep.subr.mxu0 0.0
    %5866 = vmatpush1.msra.mxu0 0.0
    %5867 = vmatprep.subr.mxu0 0.0
    %5868 = vmatpush1.msra.mxu0 %v331
    %5869 = vmatprep.subr.mxu0 0.0
    %5870 = vmatpush1.msra.mxu0 %v330
    %5871 = vmatprep.subr.mxu0 0.0
    %5872 = vmatpush1.msra.mxu0 %v329
    %5873 = vmatprep.subr.mxu0 0.0
    %5874 = vmatpush1.msra.mxu0 %v328
    %5875 = vmatprep.subr.mxu0 0.0
    %5876 = vmatpush2.msra.mxu0 0.0
    %5877 = vmatprep.subr.mxu0 0.0
    %5878 = vmatpush2.msra.mxu0 0.0
    %5879 = vmatprep.subr.mxu0 0.0
    %5880 = vmatpush2.msra.mxu0 0.0
    %5881 = vmatprep.subr.mxu0 0.0
    %5882 = vmatpush2.msra.mxu0 0.0
    %5883 = vmatprep.subr.mxu0 0.0
    %5884 = vmatpush2.msra.mxu0 0.0
    %5885 = vmatprep.subr.mxu0 0.0
    %5886 = vmatpush2.msra.mxu0 0.0
    %5887 = vmatprep.subr.mxu0 0.0
    %5888 = vmatpush2.msra.mxu0 0.0
    %5889 = vmatprep.subr.mxu0 0.0
    %5890 = vmatpush2.msra.mxu0 0.0
    %5891 = vmatprep.subr.mxu0 0.0
    %5892 = vmatpush2.msra.mxu0 0.0
    %5893 = vmatprep.subr.mxu0 0.0
    %5894 = vmatpush2.msra.mxu0 0.0
    %5895 = vmatprep.subr.mxu0 0.0
    %5896 = vmatpush2.msra.mxu0 0.0
    %5897 = vmatprep.subr.mxu0 0.0
    %5898 = vmatpush2.msra.mxu0 0.0
    %5899 = vmatprep.subr.mxu0 0.0
    %5900 = vmatpush2.msra.mxu0 0.0
    %5901 = vmatprep.subr.mxu0 0.0
    %5902 = vmatpush2.msra.mxu0 0.0
    %5903 = vmatprep.subr.mxu0 0.0
    %5904 = vmatpush2.msra.mxu0 0.0
    %5905 = vmatprep.subr.mxu0 0.0
    %5906 = vmatpush2.msra.mxu0 0.0
    %5907 = vmatprep.mubr.f32.mxu0 0.0
    %5908 = vmatmul.mubr.f32.gmra.mxu0 %v5841
    %v5909 = vpop.f32.mrf.mxu0
    %v5910 = vadd.f32 %v5740, %v5909
    %v5911 = vpop.f32.mrf.mxu0
    %5912 = vdwg.mxu0
    %v5913 = vxor.u32 %v5910, 2147483648
    %v5914 = vmul.f32 %v5913, 1.442695
    %v5915 = vpow.pop %v5914
    %v5916 = vadd.f32 %v5915, 1.0
    %v5917 = vrcp.pop %v5916
    %v5918 = vmul.f32 1.0, %v5917
    %v5919 = vtanh.pop %v5910
    %v5920 = vmul.f32 %v5918, %v5661
    %5922 = vrot.lane.b32.xlu0 %v5919, 64
    %v5923 = vpop.permute.xlu0 %5922
    %v5925 = vmul.f32 %v5918, %v5923
    %5927 = vrot.lane.b32.xlu0 %v5925, 32
    %v5928 = vpop.permute.xlu0 %5927
    %v5930 = vadd.f32 %v5920, %v5928
    %v5931 = vtanh.pop %v5930
    %5933 = vrot.lane.b32.xlu0 %v5931, 64
    %v5934 = vpop.permute.xlu0 %5933
    %v5936 = vmul.f32 %v5918, %v5934
    %5938 = vrot.lane.b32.xlu0 %v5936, 32
    %v5939 = vpop.permute.xlu0 %5938
    %s5941 = scalar_lea.vmem [#allocation14], 8
    %5942 = vst.msk [vmem:[%s5941] sm:$0x3] %vm1625, %v5939
    %v5943 = vsel %vm153, %v5939, 0
    %5945 = vmatprep.subr.mxu0 0.0
    %5946 = vmatpush1.msra.mxu0 0.0
    %5947 = vmatprep.subr.mxu0 0.0
    %5948 = vmatpush1.msra.mxu0 0.0
    %5949 = vmatprep.subr.mxu0 0.0
    %5950 = vmatpush1.msra.mxu0 0.0
    %5951 = vmatprep.subr.mxu0 0.0
    %5952 = vmatpush1.msra.mxu0 0.0
    %5953 = vmatprep.subr.mxu0 0.0
    %5954 = vmatpush1.msra.mxu0 0.0
    %5955 = vmatprep.subr.mxu0 0.0
    %5956 = vmatpush1.msra.mxu0 0.0
    %5957 = vmatprep.subr.mxu0 0.0
    %5958 = vmatpush1.msra.mxu0 0.0
    %5959 = vmatprep.subr.mxu0 0.0
    %5960 = vmatpush1.msra.mxu0 0.0
    %5961 = vmatprep.subr.mxu0 0.0
    %5962 = vmatpush1.msra.mxu0 0.0
    %5963 = vmatprep.subr.mxu0 0.0
    %5964 = vmatpush1.msra.mxu0 0.0
    %5965 = vmatprep.subr.mxu0 0.0
    %5966 = vmatpush1.msra.mxu0 0.0
    %5967 = vmatprep.subr.mxu0 0.0
    %5968 = vmatpush1.msra.mxu0 0.0
    %5969 = vmatprep.subr.mxu0 0.0
    %5970 = vmatpush1.msra.mxu0 %v335
    %5971 = vmatprep.subr.mxu0 0.0
    %5972 = vmatpush1.msra.mxu0 %v334
    %5973 = vmatprep.subr.mxu0 0.0
    %5974 = vmatpush1.msra.mxu0 %v333
    %5975 = vmatprep.subr.mxu0 0.0
    %5976 = vmatpush1.msra.mxu0 %v332
    %5977 = vmatprep.subr.mxu0 0.0
    %5978 = vmatpush2.msra.mxu0 0.0
    %5979 = vmatprep.subr.mxu0 0.0
    %5980 = vmatpush2.msra.mxu0 0.0
    %5981 = vmatprep.subr.mxu0 0.0
    %5982 = vmatpush2.msra.mxu0 0.0
    %5983 = vmatprep.subr.mxu0 0.0
    %5984 = vmatpush2.msra.mxu0 0.0
    %5985 = vmatprep.subr.mxu0 0.0
    %5986 = vmatpush2.msra.mxu0 0.0
    %5987 = vmatprep.subr.mxu0 0.0
    %5988 = vmatpush2.msra.mxu0 0.0
    %5989 = vmatprep.subr.mxu0 0.0
    %5990 = vmatpush2.msra.mxu0 0.0
    %5991 = vmatprep.subr.mxu0 0.0
    %5992 = vmatpush2.msra.mxu0 0.0
    %5993 = vmatprep.subr.mxu0 0.0
    %5994 = vmatpush2.msra.mxu0 0.0
    %5995 = vmatprep.subr.mxu0 0.0
    %5996 = vmatpush2.msra.mxu0 0.0
    %5997 = vmatprep.subr.mxu0 0.0
    %5998 = vmatpush2.msra.mxu0 0.0
    %5999 = vmatprep.subr.mxu0 0.0
    %6000 = vmatpush2.msra.mxu0 0.0
    %6001 = vmatprep.subr.mxu0 0.0
    %6002 = vmatpush2.msra.mxu0 0.0
    %6003 = vmatprep.subr.mxu0 0.0
    %6004 = vmatpush2.msra.mxu0 0.0
    %6005 = vmatprep.subr.mxu0 0.0
    %6006 = vmatpush2.msra.mxu0 0.0
    %6007 = vmatprep.subr.mxu0 0.0
    %6008 = vmatpush2.msra.mxu0 0.0
    %6009 = vmatprep.mubr.f32.mxu0 0.0
    %6010 = vmatmul.mubr.f32.gmra.mxu0 %v5943
    %v6011 = vpop.f32.mrf.mxu0
    %v6012 = vadd.f32 %v545, %v6011
    %v6013 = vpop.f32.mrf.mxu0
    %6014 = vdwg.mxu0
    %6015 = vmatprep.subr.mxu0 0.0
    %6016 = vmatpush1.msra.mxu0 0.0
    %6017 = vmatprep.subr.mxu0 0.0
    %6018 = vmatpush1.msra.mxu0 0.0
    %6019 = vmatprep.subr.mxu0 0.0
    %6020 = vmatpush1.msra.mxu0 0.0
    %6021 = vmatprep.subr.mxu0 0.0
    %6022 = vmatpush1.msra.mxu0 0.0
    %6023 = vmatprep.subr.mxu0 0.0
    %6024 = vmatpush1.msra.mxu0 0.0
    %6025 = vmatprep.subr.mxu0 0.0
    %6026 = vmatpush1.msra.mxu0 0.0
    %6027 = vmatprep.subr.mxu0 0.0
    %6028 = vmatpush1.msra.mxu0 0.0
    %6029 = vmatprep.subr.mxu0 0.0
    %6030 = vmatpush1.msra.mxu0 0.0
    %6031 = vmatprep.subr.mxu0 0.0
    %6032 = vmatpush1.msra.mxu0 0.0
    %6033 = vmatprep.subr.mxu0 0.0
    %6034 = vmatpush1.msra.mxu0 0.0
    %6035 = vmatprep.subr.mxu0 0.0
    %6036 = vmatpush1.msra.mxu0 0.0
    %6037 = vmatprep.subr.mxu0 0.0
    %6038 = vmatpush1.msra.mxu0 0.0
    %6039 = vmatprep.subr.mxu0 0.0
    %6040 = vmatpush1.msra.mxu0 %v326
    %6041 = vmatprep.subr.mxu0 0.0
    %6042 = vmatpush1.msra.mxu0 %v325
    %6043 = vmatprep.subr.mxu0 0.0
    %6044 = vmatpush1.msra.mxu0 %v324
    %6045 = vmatprep.subr.mxu0 0.0
    %6046 = vmatpush1.msra.mxu0 %v323
    %6047 = vmatprep.subr.mxu0 0.0
    %6048 = vmatpush2.msra.mxu0 0.0
    %6049 = vmatprep.subr.mxu0 0.0
    %6050 = vmatpush2.msra.mxu0 0.0
    %6051 = vmatprep.subr.mxu0 0.0
    %6052 = vmatpush2.msra.mxu0 0.0
    %6053 = vmatprep.subr.mxu0 0.0
    %6054 = vmatpush2.msra.mxu0 0.0
    %6055 = vmatprep.subr.mxu0 0.0
    %6056 = vmatpush2.msra.mxu0 0.0
    %6057 = vmatprep.subr.mxu0 0.0
    %6058 = vmatpush2.msra.mxu0 0.0
    %6059 = vmatprep.subr.mxu0 0.0
    %6060 = vmatpush2.msra.mxu0 0.0
    %6061 = vmatprep.subr.mxu0 0.0
    %6062 = vmatpush2.msra.mxu0 0.0
    %6063 = vmatprep.subr.mxu0 0.0
    %6064 = vmatpush2.msra.mxu0 0.0
    %6065 = vmatprep.subr.mxu0 0.0
    %6066 = vmatpush2.msra.mxu0 0.0
    %6067 = vmatprep.subr.mxu0 0.0
    %6068 = vmatpush2.msra.mxu0 0.0
    %6069 = vmatprep.subr.mxu0 0.0
    %6070 = vmatpush2.msra.mxu0 0.0
    %6071 = vmatprep.subr.mxu0 0.0
    %6072 = vmatpush2.msra.mxu0 0.0
    %6073 = vmatprep.subr.mxu0 0.0
    %6074 = vmatpush2.msra.mxu0 0.0
    %6075 = vmatprep.subr.mxu0 0.0
    %6076 = vmatpush2.msra.mxu0 0.0
    %6077 = vmatprep.subr.mxu0 0.0
    %6078 = vmatpush2.msra.mxu0 0.0
    %6079 = vmatprep.mubr.f32.mxu0 0.0
    %6080 = vmatmul.mubr.f32.gmra.mxu0 %v5841
    %v6081 = vpop.f32.mrf.mxu0
    %v6082 = vadd.f32 0.0, %v6081
    %v6083 = vpop.f32.mrf.mxu0
    %6084 = vdwg.mxu0
    %v6085 = vadd.f32 %v384, %v6082
    %v6086 = vxor.u32 %v6085, 2147483648
    %v6087 = vmul.f32 %v6086, 1.442695
    %v6088 = vpow.pop %v6087
    %v6089 = vadd.f32 %v6088, 1.0
    %v6090 = vrcp.pop %v6089
    %v6091 = vmul.f32 1.0, %v6090
    %v6092 = vtanh.pop %v6085
    %v6093 = vmul.f32 %v6091, %v5831
    %6095 = vrot.lane.b32.xlu0 %v6092, 64
    %v6096 = vpop.permute.xlu0 %6095
    %v6098 = vmul.f32 %v6091, %v6096
    %6100 = vrot.lane.b32.xlu0 %v6098, 32
    %v6101 = vpop.permute.xlu0 %6100
    %v6103 = vadd.f32 %v6093, %v6101
    %v6104 = vtanh.pop %v6103
    %6106 = vrot.lane.b32.xlu0 %v6104, 64
    %v6107 = vpop.permute.xlu0 %6106
    %v6109 = vmul.f32 %v6091, %v6107
    %6111 = vrot.lane.b32.xlu0 %v6109, 32
    %v6112 = vpop.permute.xlu0 %6111
    %v6113 = vsel %vm153, %v6112, 0
    %6115 = vmatprep.subr.mxu0 0.0
    %6116 = vmatpush1.msra.mxu0 0.0
    %6117 = vmatprep.subr.mxu0 0.0
    %6118 = vmatpush1.msra.mxu0 0.0
    %6119 = vmatprep.subr.mxu0 0.0
    %6120 = vmatpush1.msra.mxu0 0.0
    %6121 = vmatprep.subr.mxu0 0.0
    %6122 = vmatpush1.msra.mxu0 0.0
    %6123 = vmatprep.subr.mxu0 0.0
    %6124 = vmatpush1.msra.mxu0 0.0
    %6125 = vmatprep.subr.mxu0 0.0
    %6126 = vmatpush1.msra.mxu0 0.0
    %6127 = vmatprep.subr.mxu0 0.0
    %6128 = vmatpush1.msra.mxu0 0.0
    %6129 = vmatprep.subr.mxu0 0.0
    %6130 = vmatpush1.msra.mxu0 0.0
    %6131 = vmatprep.subr.mxu0 0.0
    %6132 = vmatpush1.msra.mxu0 0.0
    %6133 = vmatprep.subr.mxu0 0.0
    %6134 = vmatpush1.msra.mxu0 0.0
    %6135 = vmatprep.subr.mxu0 0.0
    %6136 = vmatpush1.msra.mxu0 0.0
    %6137 = vmatprep.subr.mxu0 0.0
    %6138 = vmatpush1.msra.mxu0 0.0
    %6139 = vmatprep.subr.mxu0 0.0
    %6140 = vmatpush1.msra.mxu0 %v331
    %6141 = vmatprep.subr.mxu0 0.0
    %6142 = vmatpush1.msra.mxu0 %v330
    %6143 = vmatprep.subr.mxu0 0.0
    %6144 = vmatpush1.msra.mxu0 %v329
    %6145 = vmatprep.subr.mxu0 0.0
    %6146 = vmatpush1.msra.mxu0 %v328
    %6147 = vmatprep.subr.mxu0 0.0
    %6148 = vmatpush2.msra.mxu0 0.0
    %6149 = vmatprep.subr.mxu0 0.0
    %6150 = vmatpush2.msra.mxu0 0.0
    %6151 = vmatprep.subr.mxu0 0.0
    %6152 = vmatpush2.msra.mxu0 0.0
    %6153 = vmatprep.subr.mxu0 0.0
    %6154 = vmatpush2.msra.mxu0 0.0
    %6155 = vmatprep.subr.mxu0 0.0
    %6156 = vmatpush2.msra.mxu0 0.0
    %6157 = vmatprep.subr.mxu0 0.0
    %6158 = vmatpush2.msra.mxu0 0.0
    %6159 = vmatprep.subr.mxu0 0.0
    %6160 = vmatpush2.msra.mxu0 0.0
    %6161 = vmatprep.subr.mxu0 0.0
    %6162 = vmatpush2.msra.mxu0 0.0
    %6163 = vmatprep.subr.mxu0 0.0
    %6164 = vmatpush2.msra.mxu0 0.0
    %6165 = vmatprep.subr.mxu0 0.0
    %6166 = vmatpush2.msra.mxu0 0.0
    %6167 = vmatprep.subr.mxu0 0.0
    %6168 = vmatpush2.msra.mxu0 0.0
    %6169 = vmatprep.subr.mxu0 0.0
    %6170 = vmatpush2.msra.mxu0 0.0
    %6171 = vmatprep.subr.mxu0 0.0
    %6172 = vmatpush2.msra.mxu0 0.0
    %6173 = vmatprep.subr.mxu0 0.0
    %6174 = vmatpush2.msra.mxu0 0.0
    %6175 = vmatprep.subr.mxu0 0.0
    %6176 = vmatpush2.msra.mxu0 0.0
    %6177 = vmatprep.subr.mxu0 0.0
    %6178 = vmatpush2.msra.mxu0 0.0
    %6179 = vmatprep.mubr.f32.mxu0 0.0
    %6180 = vmatmul.mubr.f32.gmra.mxu0 %v6113
    %v6181 = vpop.f32.mrf.mxu0
    %v6182 = vadd.f32 %v6012, %v6181
    %v6183 = vpop.f32.mrf.mxu0
    %6184 = vdwg.mxu0
    %v6185 = vxor.u32 %v6182, 2147483648
    %v6186 = vmul.f32 %v6185, 1.442695
    %v6187 = vpow.pop %v6186
    %v6188 = vadd.f32 %v6187, 1.0
    %v6189 = vrcp.pop %v6188
    %v6190 = vmul.f32 1.0, %v6189
    %v6191 = vtanh.pop %v6182
    %v6192 = vmul.f32 %v6190, %v5930
    %6194 = vrot.lane.b32.xlu0 %v6191, 64
    %v6195 = vpop.permute.xlu0 %6194
    %v6197 = vmul.f32 %v6190, %v6195
    %6199 = vrot.lane.b32.xlu0 %v6197, 32
    %v6200 = vpop.permute.xlu0 %6199
    %v6202 = vadd.f32 %v6192, %v6200
    %v6203 = vtanh.pop %v6202
    %6205 = vrot.lane.b32.xlu0 %v6203, 64
    %v6206 = vpop.permute.xlu0 %6205
    %v6208 = vmul.f32 %v6190, %v6206
    %6210 = vrot.lane.b32.xlu0 %v6208, 32
    %v6211 = vpop.permute.xlu0 %6210
    %v6212 = vsel %vm153, %v6211, 0
    %6214 = vmatprep.subr.mxu0 0.0
    %6215 = vmatpush1.msra.mxu0 0.0
    %6216 = vmatprep.subr.mxu0 0.0
    %6217 = vmatpush1.msra.mxu0 0.0
    %6218 = vmatprep.subr.mxu0 0.0
    %6219 = vmatpush1.msra.mxu0 0.0
    %6220 = vmatprep.subr.mxu0 0.0
    %6221 = vmatpush1.msra.mxu0 0.0
    %6222 = vmatprep.subr.mxu0 0.0
    %6223 = vmatpush1.msra.mxu0 0.0
    %6224 = vmatprep.subr.mxu0 0.0
    %6225 = vmatpush1.msra.mxu0 0.0
    %6226 = vmatprep.subr.mxu0 0.0
    %6227 = vmatpush1.msra.mxu0 0.0
    %6228 = vmatprep.subr.mxu0 0.0
    %6229 = vmatpush1.msra.mxu0 0.0
    %6230 = vmatprep.subr.mxu0 0.0
    %6231 = vmatpush1.msra.mxu0 0.0
    %6232 = vmatprep.subr.mxu0 0.0
    %6233 = vmatpush1.msra.mxu0 0.0
    %6234 = vmatprep.subr.mxu0 0.0
    %6235 = vmatpush1.msra.mxu0 0.0
    %6236 = vmatprep.subr.mxu0 0.0
    %6237 = vmatpush1.msra.mxu0 0.0
    %6238 = vmatprep.subr.mxu0 0.0
    %6239 = vmatpush1.msra.mxu0 %v335
    %6240 = vmatprep.subr.mxu0 0.0
    %6241 = vmatpush1.msra.mxu0 %v334
    %6242 = vmatprep.subr.mxu0 0.0
    %6243 = vmatpush1.msra.mxu0 %v333
    %6244 = vmatprep.subr.mxu0 0.0
    %6245 = vmatpush1.msra.mxu0 %v332
    %6246 = vmatprep.subr.mxu0 0.0
    %6247 = vmatpush2.msra.mxu0 0.0
    %6248 = vmatprep.subr.mxu0 0.0
    %6249 = vmatpush2.msra.mxu0 0.0
    %6250 = vmatprep.subr.mxu0 0.0
    %6251 = vmatpush2.msra.mxu0 0.0
    %6252 = vmatprep.subr.mxu0 0.0
    %6253 = vmatpush2.msra.mxu0 0.0
    %6254 = vmatprep.subr.mxu0 0.0
    %6255 = vmatpush2.msra.mxu0 0.0
    %6256 = vmatprep.subr.mxu0 0.0
    %6257 = vmatpush2.msra.mxu0 0.0
    %6258 = vmatprep.subr.mxu0 0.0
    %6259 = vmatpush2.msra.mxu0 0.0
    %6260 = vmatprep.subr.mxu0 0.0
    %6261 = vmatpush2.msra.mxu0 0.0
    %6262 = vmatprep.subr.mxu0 0.0
    %6263 = vmatpush2.msra.mxu0 0.0
    %6264 = vmatprep.subr.mxu0 0.0
    %6265 = vmatpush2.msra.mxu0 0.0
    %6266 = vmatprep.subr.mxu0 0.0
    %6267 = vmatpush2.msra.mxu0 0.0
    %6268 = vmatprep.subr.mxu0 0.0
    %6269 = vmatpush2.msra.mxu0 0.0
    %6270 = vmatprep.subr.mxu0 0.0
    %6271 = vmatpush2.msra.mxu0 0.0
    %6272 = vmatprep.subr.mxu0 0.0
    %6273 = vmatpush2.msra.mxu0 0.0
    %6274 = vmatprep.subr.mxu0 0.0
    %6275 = vmatpush2.msra.mxu0 0.0
    %6276 = vmatprep.subr.mxu0 0.0
    %6277 = vmatpush2.msra.mxu0 0.0
    %6278 = vmatprep.mubr.f32.mxu0 0.0
    %6279 = vmatmul.mubr.f32.gmra.mxu0 %v6212
    %v6280 = vpop.f32.mrf.mxu0
    %v6281 = vadd.f32 %v545, %v6280
    %v6282 = vpop.f32.mrf.mxu0
    %6283 = vdwg.mxu0
    %6284 = vmatprep.subr.mxu0 0.0
    %6285 = vmatpush1.msra.mxu0 0.0
    %6286 = vmatprep.subr.mxu0 0.0
    %6287 = vmatpush1.msra.mxu0 0.0
    %6288 = vmatprep.subr.mxu0 0.0
    %6289 = vmatpush1.msra.mxu0 0.0
    %6290 = vmatprep.subr.mxu0 0.0
    %6291 = vmatpush1.msra.mxu0 0.0
    %6292 = vmatprep.subr.mxu0 0.0
    %6293 = vmatpush1.msra.mxu0 0.0
    %6294 = vmatprep.subr.mxu0 0.0
    %6295 = vmatpush1.msra.mxu0 0.0
    %6296 = vmatprep.subr.mxu0 0.0
    %6297 = vmatpush1.msra.mxu0 0.0
    %6298 = vmatprep.subr.mxu0 0.0
    %6299 = vmatpush1.msra.mxu0 0.0
    %6300 = vmatprep.subr.mxu0 0.0
    %6301 = vmatpush1.msra.mxu0 0.0
    %6302 = vmatprep.subr.mxu0 0.0
    %6303 = vmatpush1.msra.mxu0 0.0
    %6304 = vmatprep.subr.mxu0 0.0
    %6305 = vmatpush1.msra.mxu0 0.0
    %6306 = vmatprep.subr.mxu0 0.0
    %6307 = vmatpush1.msra.mxu0 0.0
    %6308 = vmatprep.subr.mxu0 0.0
    %6309 = vmatpush1.msra.mxu0 %v326
    %6310 = vmatprep.subr.mxu0 0.0
    %6311 = vmatpush1.msra.mxu0 %v325
    %6312 = vmatprep.subr.mxu0 0.0
    %6313 = vmatpush1.msra.mxu0 %v324
    %6314 = vmatprep.subr.mxu0 0.0
    %6315 = vmatpush1.msra.mxu0 %v323
    %6316 = vmatprep.subr.mxu0 0.0
    %6317 = vmatpush2.msra.mxu0 0.0
    %6318 = vmatprep.subr.mxu0 0.0
    %6319 = vmatpush2.msra.mxu0 0.0
    %6320 = vmatprep.subr.mxu0 0.0
    %6321 = vmatpush2.msra.mxu0 0.0
    %6322 = vmatprep.subr.mxu0 0.0
    %6323 = vmatpush2.msra.mxu0 0.0
    %6324 = vmatprep.subr.mxu0 0.0
    %6325 = vmatpush2.msra.mxu0 0.0
    %6326 = vmatprep.subr.mxu0 0.0
    %6327 = vmatpush2.msra.mxu0 0.0
    %6328 = vmatprep.subr.mxu0 0.0
    %6329 = vmatpush2.msra.mxu0 0.0
    %6330 = vmatprep.subr.mxu0 0.0
    %6331 = vmatpush2.msra.mxu0 0.0
    %6332 = vmatprep.subr.mxu0 0.0
    %6333 = vmatpush2.msra.mxu0 0.0
    %6334 = vmatprep.subr.mxu0 0.0
    %6335 = vmatpush2.msra.mxu0 0.0
    %6336 = vmatprep.subr.mxu0 0.0
    %6337 = vmatpush2.msra.mxu0 0.0
    %6338 = vmatprep.subr.mxu0 0.0
    %6339 = vmatpush2.msra.mxu0 0.0
    %6340 = vmatprep.subr.mxu0 0.0
    %6341 = vmatpush2.msra.mxu0 0.0
    %6342 = vmatprep.subr.mxu0 0.0
    %6343 = vmatpush2.msra.mxu0 0.0
    %6344 = vmatprep.subr.mxu0 0.0
    %6345 = vmatpush2.msra.mxu0 0.0
    %6346 = vmatprep.subr.mxu0 0.0
    %6347 = vmatpush2.msra.mxu0 0.0
    %6348 = vmatprep.mubr.f32.mxu0 0.0
    %6349 = vmatmul.mubr.f32.gmra.mxu0 %v6113
    %v6350 = vpop.f32.mrf.mxu0
    %v6351 = vadd.f32 0.0, %v6350
    %v6352 = vpop.f32.mrf.mxu0
    %6353 = vdwg.mxu0
    %v6354 = vadd.f32 %v432, %v6351
    %v6355 = vxor.u32 %v6354, 2147483648
    %v6356 = vmul.f32 %v6355, 1.442695
    %v6357 = vpow.pop %v6356
    %v6358 = vadd.f32 %v6357, 1.0
    %v6359 = vrcp.pop %v6358
    %v6360 = vmul.f32 1.0, %v6359
    %v6361 = vtanh.pop %v6354
    %v6362 = vmul.f32 %v6360, %v6103
    %6364 = vrot.lane.b32.xlu0 %v6361, 64
    %v6365 = vpop.permute.xlu0 %6364
    %v6367 = vmul.f32 %v6360, %v6365
    %6369 = vrot.lane.b32.xlu0 %v6367, 32
    %v6370 = vpop.permute.xlu0 %6369
    %v6372 = vadd.f32 %v6362, %v6370
    %v6373 = vtanh.pop %v6372
    %6375 = vrot.lane.b32.xlu0 %v6373, 64
    %v6376 = vpop.permute.xlu0 %6375
    %v6378 = vmul.f32 %v6360, %v6376
    %6380 = vrot.lane.b32.xlu0 %v6378, 32
    %v6381 = vpop.permute.xlu0 %6380
    %v6382 = vsel %vm153, %v6381, 0
    %6384 = vmatprep.subr.mxu0 0.0
    %6385 = vmatpush1.msra.mxu0 0.0
    %6386 = vmatprep.subr.mxu0 0.0
    %6387 = vmatpush1.msra.mxu0 0.0
    %6388 = vmatprep.subr.mxu0 0.0
    %6389 = vmatpush1.msra.mxu0 0.0
    %6390 = vmatprep.subr.mxu0 0.0
    %6391 = vmatpush1.msra.mxu0 0.0
    %6392 = vmatprep.subr.mxu0 0.0
    %6393 = vmatpush1.msra.mxu0 0.0
    %6394 = vmatprep.subr.mxu0 0.0
    %6395 = vmatpush1.msra.mxu0 0.0
    %6396 = vmatprep.subr.mxu0 0.0
    %6397 = vmatpush1.msra.mxu0 0.0
    %6398 = vmatprep.subr.mxu0 0.0
    %6399 = vmatpush1.msra.mxu0 0.0
    %6400 = vmatprep.subr.mxu0 0.0
    %6401 = vmatpush1.msra.mxu0 0.0
    %6402 = vmatprep.subr.mxu0 0.0
    %6403 = vmatpush1.msra.mxu0 0.0
    %6404 = vmatprep.subr.mxu0 0.0
    %6405 = vmatpush1.msra.mxu0 0.0
    %6406 = vmatprep.subr.mxu0 0.0
    %6407 = vmatpush1.msra.mxu0 0.0
    %6408 = vmatprep.subr.mxu0 0.0
    %6409 = vmatpush1.msra.mxu0 %v331
    %6410 = vmatprep.subr.mxu0 0.0
    %6411 = vmatpush1.msra.mxu0 %v330
    %6412 = vmatprep.subr.mxu0 0.0
    %6413 = vmatpush1.msra.mxu0 %v329
    %6414 = vmatprep.subr.mxu0 0.0
    %6415 = vmatpush1.msra.mxu0 %v328
    %6416 = vmatprep.subr.mxu0 0.0
    %6417 = vmatpush2.msra.mxu0 0.0
    %6418 = vmatprep.subr.mxu0 0.0
    %6419 = vmatpush2.msra.mxu0 0.0
    %6420 = vmatprep.subr.mxu0 0.0
    %6421 = vmatpush2.msra.mxu0 0.0
    %6422 = vmatprep.subr.mxu0 0.0
    %6423 = vmatpush2.msra.mxu0 0.0
    %6424 = vmatprep.subr.mxu0 0.0
    %6425 = vmatpush2.msra.mxu0 0.0
    %6426 = vmatprep.subr.mxu0 0.0
    %6427 = vmatpush2.msra.mxu0 0.0
    %6428 = vmatprep.subr.mxu0 0.0
    %6429 = vmatpush2.msra.mxu0 0.0
    %6430 = vmatprep.subr.mxu0 0.0
    %6431 = vmatpush2.msra.mxu0 0.0
    %6432 = vmatprep.subr.mxu0 0.0
    %6433 = vmatpush2.msra.mxu0 0.0
    %6434 = vmatprep.subr.mxu0 0.0
    %6435 = vmatpush2.msra.mxu0 0.0
    %6436 = vmatprep.subr.mxu0 0.0
    %6437 = vmatpush2.msra.mxu0 0.0
    %6438 = vmatprep.subr.mxu0 0.0
    %6439 = vmatpush2.msra.mxu0 0.0
    %6440 = vmatprep.subr.mxu0 0.0
    %6441 = vmatpush2.msra.mxu0 0.0
    %6442 = vmatprep.subr.mxu0 0.0
    %6443 = vmatpush2.msra.mxu0 0.0
    %6444 = vmatprep.subr.mxu0 0.0
    %6445 = vmatpush2.msra.mxu0 0.0
    %6446 = vmatprep.subr.mxu0 0.0
    %6447 = vmatpush2.msra.mxu0 0.0
    %6448 = vmatprep.mubr.f32.mxu0 0.0
    %6449 = vmatmul.mubr.f32.gmra.mxu0 %v6382
    %v6450 = vpop.f32.mrf.mxu0
    %v6451 = vadd.f32 %v6281, %v6450
    %v6452 = vpop.f32.mrf.mxu0
    %6453 = vdwg.mxu0
    %v6454 = vxor.u32 %v6451, 2147483648
    %v6455 = vmul.f32 %v6454, 1.442695
    %v6456 = vpow.pop %v6455
    %v6457 = vadd.f32 %v6456, 1.0
    %v6458 = vrcp.pop %v6457
    %v6459 = vmul.f32 1.0, %v6458
    %v6460 = vtanh.pop %v6451
    %v6461 = vmul.f32 %v6459, %v6202
    %6463 = vrot.lane.b32.xlu0 %v6460, 64
    %v6464 = vpop.permute.xlu0 %6463
    %v6466 = vmul.f32 %v6459, %v6464
    %6468 = vrot.lane.b32.xlu0 %v6466, 32
    %v6469 = vpop.permute.xlu0 %6468
    %v6471 = vadd.f32 %v6461, %v6469
    %v6472 = vtanh.pop %v6471
    %6474 = vrot.lane.b32.xlu0 %v6472, 64
    %v6475 = vpop.permute.xlu0 %6474
    %v6477 = vmul.f32 %v6459, %v6475
    %6479 = vrot.lane.b32.xlu0 %v6477, 32
    %v6480 = vpop.permute.xlu0 %6479
    %v6481 = vsel %vm153, %v6480, 0
    %6483 = vmatprep.subr.mxu0 0.0
    %6484 = vmatpush1.msra.mxu0 0.0
    %6485 = vmatprep.subr.mxu0 0.0
    %6486 = vmatpush1.msra.mxu0 0.0
    %6487 = vmatprep.subr.mxu0 0.0
    %6488 = vmatpush1.msra.mxu0 0.0
    %6489 = vmatprep.subr.mxu0 0.0
    %6490 = vmatpush1.msra.mxu0 0.0
    %6491 = vmatprep.subr.mxu0 0.0
    %6492 = vmatpush1.msra.mxu0 0.0
    %6493 = vmatprep.subr.mxu0 0.0
    %6494 = vmatpush1.msra.mxu0 0.0
    %6495 = vmatprep.subr.mxu0 0.0
    %6496 = vmatpush1.msra.mxu0 0.0
    %6497 = vmatprep.subr.mxu0 0.0
    %6498 = vmatpush1.msra.mxu0 0.0
    %6499 = vmatprep.subr.mxu0 0.0
    %6500 = vmatpush1.msra.mxu0 0.0
    %6501 = vmatprep.subr.mxu0 0.0
    %6502 = vmatpush1.msra.mxu0 0.0
    %6503 = vmatprep.subr.mxu0 0.0
    %6504 = vmatpush1.msra.mxu0 0.0
    %6505 = vmatprep.subr.mxu0 0.0
    %6506 = vmatpush1.msra.mxu0 0.0
    %6507 = vmatprep.subr.mxu0 0.0
    %6508 = vmatpush1.msra.mxu0 %v335
    %6509 = vmatprep.subr.mxu0 0.0
    %6510 = vmatpush1.msra.mxu0 %v334
    %6511 = vmatprep.subr.mxu0 0.0
    %6512 = vmatpush1.msra.mxu0 %v333
    %6513 = vmatprep.subr.mxu0 0.0
    %6514 = vmatpush1.msra.mxu0 %v332
    %6515 = vmatprep.subr.mxu0 0.0
    %6516 = vmatpush2.msra.mxu0 0.0
    %6517 = vmatprep.subr.mxu0 0.0
    %6518 = vmatpush2.msra.mxu0 0.0
    %6519 = vmatprep.subr.mxu0 0.0
    %6520 = vmatpush2.msra.mxu0 0.0
    %6521 = vmatprep.subr.mxu0 0.0
    %6522 = vmatpush2.msra.mxu0 0.0
    %6523 = vmatprep.subr.mxu0 0.0
    %6524 = vmatpush2.msra.mxu0 0.0
    %6525 = vmatprep.subr.mxu0 0.0
    %6526 = vmatpush2.msra.mxu0 0.0
    %6527 = vmatprep.subr.mxu0 0.0
    %6528 = vmatpush2.msra.mxu0 0.0
    %6529 = vmatprep.subr.mxu0 0.0
    %6530 = vmatpush2.msra.mxu0 0.0
    %6531 = vmatprep.subr.mxu0 0.0
    %6532 = vmatpush2.msra.mxu0 0.0
    %6533 = vmatprep.subr.mxu0 0.0
    %6534 = vmatpush2.msra.mxu0 0.0
    %6535 = vmatprep.subr.mxu0 0.0
    %6536 = vmatpush2.msra.mxu0 0.0
    %6537 = vmatprep.subr.mxu0 0.0
    %6538 = vmatpush2.msra.mxu0 0.0
    %6539 = vmatprep.subr.mxu0 0.0
    %6540 = vmatpush2.msra.mxu0 0.0
    %6541 = vmatprep.subr.mxu0 0.0
    %6542 = vmatpush2.msra.mxu0 0.0
    %6543 = vmatprep.subr.mxu0 0.0
    %6544 = vmatpush2.msra.mxu0 0.0
    %6545 = vmatprep.subr.mxu0 0.0
    %6546 = vmatpush2.msra.mxu0 0.0
    %6547 = vmatprep.mubr.f32.mxu0 0.0
    %6548 = vmatmul.mubr.f32.gmra.mxu0 %v6481
    %v6549 = vpop.f32.mrf.mxu0
    %v6550 = vadd.f32 %v545, %v6549
    %v6551 = vpop.f32.mrf.mxu0
    %6552 = vdwg.mxu0
    %6553 = vmatprep.subr.mxu0 0.0
    %6554 = vmatpush1.msra.mxu0 0.0
    %6555 = vmatprep.subr.mxu0 0.0
    %6556 = vmatpush1.msra.mxu0 0.0
    %6557 = vmatprep.subr.mxu0 0.0
    %6558 = vmatpush1.msra.mxu0 0.0
    %6559 = vmatprep.subr.mxu0 0.0
    %6560 = vmatpush1.msra.mxu0 0.0
    %6561 = vmatprep.subr.mxu0 0.0
    %6562 = vmatpush1.msra.mxu0 0.0
    %6563 = vmatprep.subr.mxu0 0.0
    %6564 = vmatpush1.msra.mxu0 0.0
    %6565 = vmatprep.subr.mxu0 0.0
    %6566 = vmatpush1.msra.mxu0 0.0
    %6567 = vmatprep.subr.mxu0 0.0
    %6568 = vmatpush1.msra.mxu0 0.0
    %6569 = vmatprep.subr.mxu0 0.0
    %6570 = vmatpush1.msra.mxu0 0.0
    %6571 = vmatprep.subr.mxu0 0.0
    %6572 = vmatpush1.msra.mxu0 0.0
    %6573 = vmatprep.subr.mxu0 0.0
    %6574 = vmatpush1.msra.mxu0 0.0
    %6575 = vmatprep.subr.mxu0 0.0
    %6576 = vmatpush1.msra.mxu0 0.0
    %6577 = vmatprep.subr.mxu0 0.0
    %6578 = vmatpush1.msra.mxu0 %v326
    %6579 = vmatprep.subr.mxu0 0.0
    %6580 = vmatpush1.msra.mxu0 %v325
    %6581 = vmatprep.subr.mxu0 0.0
    %6582 = vmatpush1.msra.mxu0 %v324
    %6583 = vmatprep.subr.mxu0 0.0
    %6584 = vmatpush1.msra.mxu0 %v323
    %6585 = vmatprep.subr.mxu0 0.0
    %6586 = vmatpush2.msra.mxu0 0.0
    %6587 = vmatprep.subr.mxu0 0.0
    %6588 = vmatpush2.msra.mxu0 0.0
    %6589 = vmatprep.subr.mxu0 0.0
    %6590 = vmatpush2.msra.mxu0 0.0
    %6591 = vmatprep.subr.mxu0 0.0
    %6592 = vmatpush2.msra.mxu0 0.0
    %6593 = vmatprep.subr.mxu0 0.0
    %6594 = vmatpush2.msra.mxu0 0.0
    %6595 = vmatprep.subr.mxu0 0.0
    %6596 = vmatpush2.msra.mxu0 0.0
    %6597 = vmatprep.subr.mxu0 0.0
    %6598 = vmatpush2.msra.mxu0 0.0
    %6599 = vmatprep.subr.mxu0 0.0
    %6600 = vmatpush2.msra.mxu0 0.0
    %6601 = vmatprep.subr.mxu0 0.0
    %6602 = vmatpush2.msra.mxu0 0.0
    %6603 = vmatprep.subr.mxu0 0.0
    %6604 = vmatpush2.msra.mxu0 0.0
    %6605 = vmatprep.subr.mxu0 0.0
    %6606 = vmatpush2.msra.mxu0 0.0
    %6607 = vmatprep.subr.mxu0 0.0
    %6608 = vmatpush2.msra.mxu0 0.0
    %6609 = vmatprep.subr.mxu0 0.0
    %6610 = vmatpush2.msra.mxu0 0.0
    %6611 = vmatprep.subr.mxu0 0.0
    %6612 = vmatpush2.msra.mxu0 0.0
    %6613 = vmatprep.subr.mxu0 0.0
    %6614 = vmatpush2.msra.mxu0 0.0
    %6615 = vmatprep.subr.mxu0 0.0
    %6616 = vmatpush2.msra.mxu0 0.0
    %6617 = vmatprep.mubr.f32.mxu0 0.0
    %6618 = vmatmul.mubr.f32.gmra.mxu0 %v6382
    %v6619 = vpop.f32.mrf.mxu0
    %v6620 = vadd.f32 0.0, %v6619
    %v6621 = vpop.f32.mrf.mxu0
    %6622 = vdwg.mxu0
    %v6623 = vadd.f32 %v480, %v6620
    %v6624 = vxor.u32 %v6623, 2147483648
    %v6625 = vmul.f32 %v6624, 1.442695
    %v6626 = vpow.pop %v6625
    %v6627 = vadd.f32 %v6626, 1.0
    %v6628 = vrcp.pop %v6627
    %v6629 = vmul.f32 1.0, %v6628
    %v6630 = vtanh.pop %v6623
    %v6631 = vmul.f32 %v6629, %v6372
    %6633 = vrot.lane.b32.xlu0 %v6630, 64
    %v6634 = vpop.permute.xlu0 %6633
    %v6636 = vmul.f32 %v6629, %v6634
    %6638 = vrot.lane.b32.xlu0 %v6636, 32
    %v6639 = vpop.permute.xlu0 %6638
    %v6641 = vadd.f32 %v6631, %v6639
    %v6642 = vtanh.pop %v6641
    %6644 = vrot.lane.b32.xlu0 %v6642, 64
    %v6645 = vpop.permute.xlu0 %6644
    %v6647 = vmul.f32 %v6629, %v6645
    %6649 = vrot.lane.b32.xlu0 %v6647, 32
    %v6650 = vpop.permute.xlu0 %6649
    %v6651 = vsel %vm153, %v6650, 0
    %6653 = vmatprep.subr.mxu0 0.0
    %6654 = vmatpush1.msra.mxu0 0.0
    %6655 = vmatprep.subr.mxu0 0.0
    %6656 = vmatpush1.msra.mxu0 0.0
    %6657 = vmatprep.subr.mxu0 0.0
    %6658 = vmatpush1.msra.mxu0 0.0
    %6659 = vmatprep.subr.mxu0 0.0
    %6660 = vmatpush1.msra.mxu0 0.0
    %6661 = vmatprep.subr.mxu0 0.0
    %6662 = vmatpush1.msra.mxu0 0.0
    %6663 = vmatprep.subr.mxu0 0.0
    %6664 = vmatpush1.msra.mxu0 0.0
    %6665 = vmatprep.subr.mxu0 0.0
    %6666 = vmatpush1.msra.mxu0 0.0
    %6667 = vmatprep.subr.mxu0 0.0
    %6668 = vmatpush1.msra.mxu0 0.0
    %6669 = vmatprep.subr.mxu0 0.0
    %6670 = vmatpush1.msra.mxu0 0.0
    %6671 = vmatprep.subr.mxu0 0.0
    %6672 = vmatpush1.msra.mxu0 0.0
    %6673 = vmatprep.subr.mxu0 0.0
    %6674 = vmatpush1.msra.mxu0 0.0
    %6675 = vmatprep.subr.mxu0 0.0
    %6676 = vmatpush1.msra.mxu0 0.0
    %6677 = vmatprep.subr.mxu0 0.0
    %6678 = vmatpush1.msra.mxu0 %v331
    %6679 = vmatprep.subr.mxu0 0.0
    %6680 = vmatpush1.msra.mxu0 %v330
    %6681 = vmatprep.subr.mxu0 0.0
    %6682 = vmatpush1.msra.mxu0 %v329
    %6683 = vmatprep.subr.mxu0 0.0
    %6684 = vmatpush1.msra.mxu0 %v328
    %6685 = vmatprep.subr.mxu0 0.0
    %6686 = vmatpush2.msra.mxu0 0.0
    %6687 = vmatprep.subr.mxu0 0.0
    %6688 = vmatpush2.msra.mxu0 0.0
    %6689 = vmatprep.subr.mxu0 0.0
    %6690 = vmatpush2.msra.mxu0 0.0
    %6691 = vmatprep.subr.mxu0 0.0
    %6692 = vmatpush2.msra.mxu0 0.0
    %6693 = vmatprep.subr.mxu0 0.0
    %6694 = vmatpush2.msra.mxu0 0.0
    %6695 = vmatprep.subr.mxu0 0.0
    %6696 = vmatpush2.msra.mxu0 0.0
    %6697 = vmatprep.subr.mxu0 0.0
    %6698 = vmatpush2.msra.mxu0 0.0
    %6699 = vmatprep.subr.mxu0 0.0
    %6700 = vmatpush2.msra.mxu0 0.0
    %6701 = vmatprep.subr.mxu0 0.0
    %6702 = vmatpush2.msra.mxu0 0.0
    %6703 = vmatprep.subr.mxu0 0.0
    %6704 = vmatpush2.msra.mxu0 0.0
    %6705 = vmatprep.subr.mxu0 0.0
    %6706 = vmatpush2.msra.mxu0 0.0
    %6707 = vmatprep.subr.mxu0 0.0
    %6708 = vmatpush2.msra.mxu0 0.0
    %6709 = vmatprep.subr.mxu0 0.0
    %6710 = vmatpush2.msra.mxu0 0.0
    %6711 = vmatprep.subr.mxu0 0.0
    %6712 = vmatpush2.msra.mxu0 0.0
    %6713 = vmatprep.subr.mxu0 0.0
    %6714 = vmatpush2.msra.mxu0 0.0
    %6715 = vmatprep.subr.mxu0 0.0
    %6716 = vmatpush2.msra.mxu0 0.0
    %6717 = vmatprep.mubr.f32.mxu0 0.0
    %6718 = vmatmul.mubr.f32.gmra.mxu0 %v6651
    %v6719 = vpop.f32.mrf.mxu0
    %v6720 = vadd.f32 %v6550, %v6719
    %v6721 = vpop.f32.mrf.mxu0
    %6722 = vdwg.mxu0
    %v6723 = vxor.u32 %v6720, 2147483648
    %v6724 = vmul.f32 %v6723, 1.442695
    %v6725 = vpow.pop %v6724
    %v6726 = vadd.f32 %v6725, 1.0
    %v6727 = vrcp.pop %v6726
    %v6728 = vmul.f32 1.0, %v6727
    %v6729 = vtanh.pop %v6720
    %v6730 = vmul.f32 %v6728, %v6471
    %6732 = vrot.lane.b32.xlu0 %v6729, 64
    %v6733 = vpop.permute.xlu0 %6732
    %v6735 = vmul.f32 %v6728, %v6733
    %6737 = vrot.lane.b32.xlu0 %v6735, 32
    %v6738 = vpop.permute.xlu0 %6737
    %v6740 = vadd.f32 %v6730, %v6738
    %v6741 = vtanh.pop %v6740
    %6743 = vrot.lane.b32.xlu0 %v6741, 64
    %v6744 = vpop.permute.xlu0 %6743
    %v6746 = vmul.f32 %v6728, %v6744
    %6748 = vrot.lane.b32.xlu0 %v6746, 32
    %v6749 = vpop.permute.xlu0 %6748
    %v6750 = vsel %vm153, %v6749, 0
    %6752 = vmatprep.subr.mxu0 0.0
    %6753 = vmatpush1.msra.mxu0 0.0
    %6754 = vmatprep.subr.mxu0 0.0
    %6755 = vmatpush1.msra.mxu0 0.0
    %6756 = vmatprep.subr.mxu0 0.0
    %6757 = vmatpush1.msra.mxu0 0.0
    %6758 = vmatprep.subr.mxu0 0.0
    %6759 = vmatpush1.msra.mxu0 0.0
    %6760 = vmatprep.subr.mxu0 0.0
    %6761 = vmatpush1.msra.mxu0 0.0
    %6762 = vmatprep.subr.mxu0 0.0
    %6763 = vmatpush1.msra.mxu0 0.0
    %6764 = vmatprep.subr.mxu0 0.0
    %6765 = vmatpush1.msra.mxu0 0.0
    %6766 = vmatprep.subr.mxu0 0.0
    %6767 = vmatpush1.msra.mxu0 0.0
    %6768 = vmatprep.subr.mxu0 0.0
    %6769 = vmatpush1.msra.mxu0 0.0
    %6770 = vmatprep.subr.mxu0 0.0
    %6771 = vmatpush1.msra.mxu0 0.0
    %6772 = vmatprep.subr.mxu0 0.0
    %6773 = vmatpush1.msra.mxu0 0.0
    %6774 = vmatprep.subr.mxu0 0.0
    %6775 = vmatpush1.msra.mxu0 0.0
    %6776 = vmatprep.subr.mxu0 0.0
    %6777 = vmatpush1.msra.mxu0 %v335
    %6778 = vmatprep.subr.mxu0 0.0
    %6779 = vmatpush1.msra.mxu0 %v334
    %6780 = vmatprep.subr.mxu0 0.0
    %6781 = vmatpush1.msra.mxu0 %v333
    %6782 = vmatprep.subr.mxu0 0.0
    %6783 = vmatpush1.msra.mxu0 %v332
    %6784 = vmatprep.subr.mxu0 0.0
    %6785 = vmatpush2.msra.mxu0 0.0
    %6786 = vmatprep.subr.mxu0 0.0
    %6787 = vmatpush2.msra.mxu0 0.0
    %6788 = vmatprep.subr.mxu0 0.0
    %6789 = vmatpush2.msra.mxu0 0.0
    %6790 = vmatprep.subr.mxu0 0.0
    %6791 = vmatpush2.msra.mxu0 0.0
    %6792 = vmatprep.subr.mxu0 0.0
    %6793 = vmatpush2.msra.mxu0 0.0
    %6794 = vmatprep.subr.mxu0 0.0
    %6795 = vmatpush2.msra.mxu0 0.0
    %6796 = vmatprep.subr.mxu0 0.0
    %6797 = vmatpush2.msra.mxu0 0.0
    %6798 = vmatprep.subr.mxu0 0.0
    %6799 = vmatpush2.msra.mxu0 0.0
    %6800 = vmatprep.subr.mxu0 0.0
    %6801 = vmatpush2.msra.mxu0 0.0
    %6802 = vmatprep.subr.mxu0 0.0
    %6803 = vmatpush2.msra.mxu0 0.0
    %6804 = vmatprep.subr.mxu0 0.0
    %6805 = vmatpush2.msra.mxu0 0.0
    %6806 = vmatprep.subr.mxu0 0.0
    %6807 = vmatpush2.msra.mxu0 0.0
    %6808 = vmatprep.subr.mxu0 0.0
    %6809 = vmatpush2.msra.mxu0 0.0
    %6810 = vmatprep.subr.mxu0 0.0
    %6811 = vmatpush2.msra.mxu0 0.0
    %6812 = vmatprep.subr.mxu0 0.0
    %6813 = vmatpush2.msra.mxu0 0.0
    %6814 = vmatprep.subr.mxu0 0.0
    %6815 = vmatpush2.msra.mxu0 0.0
    %6816 = vmatprep.mubr.f32.mxu0 0.0
    %6817 = vmatmul.mubr.f32.gmra.mxu0 %v6750
    %v6818 = vpop.f32.mrf.mxu0
    %v6819 = vadd.f32 %v545, %v6818
    %v6820 = vpop.f32.mrf.mxu0
    %6821 = vdwg.mxu0
    %6822 = vmatprep.subr.mxu0 0.0
    %6823 = vmatpush1.msra.mxu0 0.0
    %6824 = vmatprep.subr.mxu0 0.0
    %6825 = vmatpush1.msra.mxu0 0.0
    %6826 = vmatprep.subr.mxu0 0.0
    %6827 = vmatpush1.msra.mxu0 0.0
    %6828 = vmatprep.subr.mxu0 0.0
    %6829 = vmatpush1.msra.mxu0 0.0
    %6830 = vmatprep.subr.mxu0 0.0
    %6831 = vmatpush1.msra.mxu0 0.0
    %6832 = vmatprep.subr.mxu0 0.0
    %6833 = vmatpush1.msra.mxu0 0.0
    %6834 = vmatprep.subr.mxu0 0.0
    %6835 = vmatpush1.msra.mxu0 0.0
    %6836 = vmatprep.subr.mxu0 0.0
    %6837 = vmatpush1.msra.mxu0 0.0
    %6838 = vmatprep.subr.mxu0 0.0
    %6839 = vmatpush1.msra.mxu0 0.0
    %6840 = vmatprep.subr.mxu0 0.0
    %6841 = vmatpush1.msra.mxu0 0.0
    %6842 = vmatprep.subr.mxu0 0.0
    %6843 = vmatpush1.msra.mxu0 0.0
    %6844 = vmatprep.subr.mxu0 0.0
    %6845 = vmatpush1.msra.mxu0 0.0
    %6846 = vmatprep.subr.mxu0 0.0
    %6847 = vmatpush1.msra.mxu0 %v326
    %6848 = vmatprep.subr.mxu0 0.0
    %6849 = vmatpush1.msra.mxu0 %v325
    %6850 = vmatprep.subr.mxu0 0.0
    %6851 = vmatpush1.msra.mxu0 %v324
    %6852 = vmatprep.subr.mxu0 0.0
    %6853 = vmatpush1.msra.mxu0 %v323
    %6854 = vmatprep.subr.mxu0 0.0
    %6855 = vmatpush2.msra.mxu0 0.0
    %6856 = vmatprep.subr.mxu0 0.0
    %6857 = vmatpush2.msra.mxu0 0.0
    %6858 = vmatprep.subr.mxu0 0.0
    %6859 = vmatpush2.msra.mxu0 0.0
    %6860 = vmatprep.subr.mxu0 0.0
    %6861 = vmatpush2.msra.mxu0 0.0
    %6862 = vmatprep.subr.mxu0 0.0
    %6863 = vmatpush2.msra.mxu0 0.0
    %6864 = vmatprep.subr.mxu0 0.0
    %6865 = vmatpush2.msra.mxu0 0.0
    %6866 = vmatprep.subr.mxu0 0.0
    %6867 = vmatpush2.msra.mxu0 0.0
    %6868 = vmatprep.subr.mxu0 0.0
    %6869 = vmatpush2.msra.mxu0 0.0
    %6870 = vmatprep.subr.mxu0 0.0
    %6871 = vmatpush2.msra.mxu0 0.0
    %6872 = vmatprep.subr.mxu0 0.0
    %6873 = vmatpush2.msra.mxu0 0.0
    %6874 = vmatprep.subr.mxu0 0.0
    %6875 = vmatpush2.msra.mxu0 0.0
    %6876 = vmatprep.subr.mxu0 0.0
    %6877 = vmatpush2.msra.mxu0 0.0
    %6878 = vmatprep.subr.mxu0 0.0
    %6879 = vmatpush2.msra.mxu0 0.0
    %6880 = vmatprep.subr.mxu0 0.0
    %6881 = vmatpush2.msra.mxu0 0.0
    %6882 = vmatprep.subr.mxu0 0.0
    %6883 = vmatpush2.msra.mxu0 0.0
    %6884 = vmatprep.subr.mxu0 0.0
    %6885 = vmatpush2.msra.mxu0 0.0
    %6886 = vmatprep.mubr.f32.mxu0 0.0
    %6887 = vmatmul.mubr.f32.gmra.mxu0 %v6651
    %v6888 = vpop.f32.mrf.mxu0
    %v6889 = vadd.f32 0.0, %v6888
    %v6890 = vpop.f32.mrf.mxu0
    %6891 = vdwg.mxu0
    %v6892 = vadd.f32 %v528, %v6889
    %v6893 = vxor.u32 %v6892, 2147483648
    %v6894 = vmul.f32 %v6893, 1.442695
    %v6895 = vpow.pop %v6894
    %v6896 = vadd.f32 %v6895, 1.0
    %v6897 = vrcp.pop %v6896
    %v6898 = vmul.f32 1.0, %v6897
    %v6899 = vtanh.pop %v6892
    %v6900 = vmul.f32 %v6898, %v6641
    %6902 = vrot.lane.b32.xlu0 %v6899, 64
    %v6903 = vpop.permute.xlu0 %6902
    %v6905 = vmul.f32 %v6898, %v6903
    %6907 = vrot.lane.b32.xlu0 %v6905, 32
    %v6908 = vpop.permute.xlu0 %6907
    %v6910 = vadd.f32 %v6900, %v6908
    %v6911 = vtanh.pop %v6910
    %6913 = vrot.lane.b32.xlu0 %v6911, 64
    %v6914 = vpop.permute.xlu0 %6913
    %v6916 = vmul.f32 %v6898, %v6914
    %6918 = vrot.lane.b32.xlu0 %v6916, 32
    %v6919 = vpop.permute.xlu0 %6918
    %v6920 = vsel %vm153, %v6919, 0
    %6922 = vmatprep.subr.mxu0 0.0
    %6923 = vmatpush1.msra.mxu0 0.0
    %6924 = vmatprep.subr.mxu0 0.0
    %6925 = vmatpush1.msra.mxu0 0.0
    %6926 = vmatprep.subr.mxu0 0.0
    %6927 = vmatpush1.msra.mxu0 0.0
    %6928 = vmatprep.subr.mxu0 0.0
    %6929 = vmatpush1.msra.mxu0 0.0
    %6930 = vmatprep.subr.mxu0 0.0
    %6931 = vmatpush1.msra.mxu0 0.0
    %6932 = vmatprep.subr.mxu0 0.0
    %6933 = vmatpush1.msra.mxu0 0.0
    %6934 = vmatprep.subr.mxu0 0.0
    %6935 = vmatpush1.msra.mxu0 0.0
    %6936 = vmatprep.subr.mxu0 0.0
    %6937 = vmatpush1.msra.mxu0 0.0
    %6938 = vmatprep.subr.mxu0 0.0
    %6939 = vmatpush1.msra.mxu0 0.0
    %6940 = vmatprep.subr.mxu0 0.0
    %6941 = vmatpush1.msra.mxu0 0.0
    %6942 = vmatprep.subr.mxu0 0.0
    %6943 = vmatpush1.msra.mxu0 0.0
    %6944 = vmatprep.subr.mxu0 0.0
    %6945 = vmatpush1.msra.mxu0 0.0
    %6946 = vmatprep.subr.mxu0 0.0
    %6947 = vmatpush1.msra.mxu0 %v331
    %6948 = vmatprep.subr.mxu0 0.0
    %6949 = vmatpush1.msra.mxu0 %v330
    %6950 = vmatprep.subr.mxu0 0.0
    %6951 = vmatpush1.msra.mxu0 %v329
    %6952 = vmatprep.subr.mxu0 0.0
    %6953 = vmatpush1.msra.mxu0 %v328
    %6954 = vmatprep.subr.mxu0 0.0
    %6955 = vmatpush2.msra.mxu0 0.0
    %6956 = vmatprep.subr.mxu0 0.0
    %6957 = vmatpush2.msra.mxu0 0.0
    %6958 = vmatprep.subr.mxu0 0.0
    %6959 = vmatpush2.msra.mxu0 0.0
    %6960 = vmatprep.subr.mxu0 0.0
    %6961 = vmatpush2.msra.mxu0 0.0
    %6962 = vmatprep.subr.mxu0 0.0
    %6963 = vmatpush2.msra.mxu0 0.0
    %6964 = vmatprep.subr.mxu0 0.0
    %6965 = vmatpush2.msra.mxu0 0.0
    %6966 = vmatprep.subr.mxu0 0.0
    %6967 = vmatpush2.msra.mxu0 0.0
    %6968 = vmatprep.subr.mxu0 0.0
    %6969 = vmatpush2.msra.mxu0 0.0
    %6970 = vmatprep.subr.mxu0 0.0
    %6971 = vmatpush2.msra.mxu0 0.0
    %6972 = vmatprep.subr.mxu0 0.0
    %6973 = vmatpush2.msra.mxu0 0.0
    %6974 = vmatprep.subr.mxu0 0.0
    %6975 = vmatpush2.msra.mxu0 0.0
    %6976 = vmatprep.subr.mxu0 0.0
    %6977 = vmatpush2.msra.mxu0 0.0
    %6978 = vmatprep.subr.mxu0 0.0
    %6979 = vmatpush2.msra.mxu0 0.0
    %6980 = vmatprep.subr.mxu0 0.0
    %6981 = vmatpush2.msra.mxu0 0.0
    %6982 = vmatprep.subr.mxu0 0.0
    %6983 = vmatpush2.msra.mxu0 0.0
    %6984 = vmatprep.subr.mxu0 0.0
    %6985 = vmatpush2.msra.mxu0 0.0
    %6986 = vmatprep.mubr.f32.mxu0 0.0
    %6987 = vmatmul.mubr.f32.gmra.mxu0 %v6920
    %v6988 = vpop.f32.mrf.mxu0
    %v6989 = vadd.f32 %v6819, %v6988
    %v6990 = vpop.f32.mrf.mxu0
    %6991 = vdwg.mxu0
    %v6992 = vxor.u32 %v6989, 2147483648
    %v6993 = vmul.f32 %v6992, 1.442695
    %v6994 = vpow.pop %v6993
    %v6995 = vadd.f32 %v6994, 1.0
    %v6996 = vrcp.pop %v6995
    %v6997 = vmul.f32 1.0, %v6996
    %v6998 = vtanh.pop %v6989
    %v6999 = vmul.f32 %v6997, %v6740
    %7001 = vrot.lane.b32.xlu0 %v6998, 64
    %v7002 = vpop.permute.xlu0 %7001
    %v7004 = vmul.f32 %v6997, %v7002
    %7006 = vrot.lane.b32.xlu0 %v7004, 32
    %v7007 = vpop.permute.xlu0 %7006
    %v7009 = vadd.f32 %v6999, %v7007
    %v7010 = vtanh.pop %v7009
    %7012 = vrot.lane.b32.xlu0 %v7010, 64
    %v7013 = vpop.permute.xlu0 %7012
    %v7015 = vmul.f32 %v6997, %v7013
    %7017 = vrot.lane.b32.xlu0 %v7015, 32
    %v7018 = vpop.permute.xlu0 %7017
    %s7020 = scalar_lea.vmem [#allocation14], 10
    %7021 = vst.msk [vmem:[%s7020] sm:$0x3] %vm1625, %v7018
    %v7022 = vsel %vm153, %v7018, 0
    %7024 = vmatprep.subr.mxu0 0.0
    %7025 = vmatpush1.msra.mxu0 0.0
    %7026 = vmatprep.subr.mxu0 0.0
    %7027 = vmatpush1.msra.mxu0 0.0
    %7028 = vmatprep.subr.mxu0 0.0
    %7029 = vmatpush1.msra.mxu0 0.0
    %7030 = vmatprep.subr.mxu0 0.0
    %7031 = vmatpush1.msra.mxu0 0.0
    %7032 = vmatprep.subr.mxu0 0.0
    %7033 = vmatpush1.msra.mxu0 0.0
    %7034 = vmatprep.subr.mxu0 0.0
    %7035 = vmatpush1.msra.mxu0 0.0
    %7036 = vmatprep.subr.mxu0 0.0
    %7037 = vmatpush1.msra.mxu0 0.0
    %7038 = vmatprep.subr.mxu0 0.0
    %7039 = vmatpush1.msra.mxu0 0.0
    %7040 = vmatprep.subr.mxu0 0.0
    %7041 = vmatpush1.msra.mxu0 0.0
    %7042 = vmatprep.subr.mxu0 0.0
    %7043 = vmatpush1.msra.mxu0 0.0
    %7044 = vmatprep.subr.mxu0 0.0
    %7045 = vmatpush1.msra.mxu0 0.0
    %7046 = vmatprep.subr.mxu0 0.0
    %7047 = vmatpush1.msra.mxu0 0.0
    %7048 = vmatprep.subr.mxu0 0.0
    %7049 = vmatpush1.msra.mxu0 %v335
    %7050 = vmatprep.subr.mxu0 0.0
    %7051 = vmatpush1.msra.mxu0 %v334
    %7052 = vmatprep.subr.mxu0 0.0
    %7053 = vmatpush1.msra.mxu0 %v333
    %7054 = vmatprep.subr.mxu0 0.0
    %7055 = vmatpush1.msra.mxu0 %v332
    %7056 = vmatprep.subr.mxu0 0.0
    %7057 = vmatpush2.msra.mxu0 0.0
    %7058 = vmatprep.subr.mxu0 0.0
    %7059 = vmatpush2.msra.mxu0 0.0
    %7060 = vmatprep.subr.mxu0 0.0
    %7061 = vmatpush2.msra.mxu0 0.0
    %7062 = vmatprep.subr.mxu0 0.0
    %7063 = vmatpush2.msra.mxu0 0.0
    %7064 = vmatprep.subr.mxu0 0.0
    %7065 = vmatpush2.msra.mxu0 0.0
    %7066 = vmatprep.subr.mxu0 0.0
    %7067 = vmatpush2.msra.mxu0 0.0
    %7068 = vmatprep.subr.mxu0 0.0
    %7069 = vmatpush2.msra.mxu0 0.0
    %7070 = vmatprep.subr.mxu0 0.0
    %7071 = vmatpush2.msra.mxu0 0.0
    %7072 = vmatprep.subr.mxu0 0.0
    %7073 = vmatpush2.msra.mxu0 0.0
    %7074 = vmatprep.subr.mxu0 0.0
    %7075 = vmatpush2.msra.mxu0 0.0
    %7076 = vmatprep.subr.mxu0 0.0
    %7077 = vmatpush2.msra.mxu0 0.0
    %7078 = vmatprep.subr.mxu0 0.0
    %7079 = vmatpush2.msra.mxu0 0.0
    %7080 = vmatprep.subr.mxu0 0.0
    %7081 = vmatpush2.msra.mxu0 0.0
    %7082 = vmatprep.subr.mxu0 0.0
    %7083 = vmatpush2.msra.mxu0 0.0
    %7084 = vmatprep.subr.mxu0 0.0
    %7085 = vmatpush2.msra.mxu0 0.0
    %7086 = vmatprep.subr.mxu0 0.0
    %7087 = vmatpush2.msra.mxu0 0.0
    %7088 = vmatprep.mubr.f32.mxu0 0.0
    %7089 = vmatmul.mubr.f32.gmra.mxu0 %v7022
    %v7090 = vpop.f32.mrf.mxu0
    %v7091 = vadd.f32 %v545, %v7090
    %v7092 = vpop.f32.mrf.mxu0
    %7093 = vdwg.mxu0
    %7094 = vmatprep.subr.mxu0 0.0
    %7095 = vmatpush1.msra.mxu0 0.0
    %7096 = vmatprep.subr.mxu0 0.0
    %7097 = vmatpush1.msra.mxu0 0.0
    %7098 = vmatprep.subr.mxu0 0.0
    %7099 = vmatpush1.msra.mxu0 0.0
    %7100 = vmatprep.subr.mxu0 0.0
    %7101 = vmatpush1.msra.mxu0 0.0
    %7102 = vmatprep.subr.mxu0 0.0
    %7103 = vmatpush1.msra.mxu0 0.0
    %7104 = vmatprep.subr.mxu0 0.0
    %7105 = vmatpush1.msra.mxu0 0.0
    %7106 = vmatprep.subr.mxu0 0.0
    %7107 = vmatpush1.msra.mxu0 0.0
    %7108 = vmatprep.subr.mxu0 0.0
    %7109 = vmatpush1.msra.mxu0 0.0
    %7110 = vmatprep.subr.mxu0 0.0
    %7111 = vmatpush1.msra.mxu0 0.0
    %7112 = vmatprep.subr.mxu0 0.0
    %7113 = vmatpush1.msra.mxu0 0.0
    %7114 = vmatprep.subr.mxu0 0.0
    %7115 = vmatpush1.msra.mxu0 0.0
    %7116 = vmatprep.subr.mxu0 0.0
    %7117 = vmatpush1.msra.mxu0 0.0
    %7118 = vmatprep.subr.mxu0 0.0
    %7119 = vmatpush1.msra.mxu0 %v326
    %7120 = vmatprep.subr.mxu0 0.0
    %7121 = vmatpush1.msra.mxu0 %v325
    %7122 = vmatprep.subr.mxu0 0.0
    %7123 = vmatpush1.msra.mxu0 %v324
    %7124 = vmatprep.subr.mxu0 0.0
    %7125 = vmatpush1.msra.mxu0 %v323
    %7126 = vmatprep.subr.mxu0 0.0
    %7127 = vmatpush2.msra.mxu0 0.0
    %7128 = vmatprep.subr.mxu0 0.0
    %7129 = vmatpush2.msra.mxu0 0.0
    %7130 = vmatprep.subr.mxu0 0.0
    %7131 = vmatpush2.msra.mxu0 0.0
    %7132 = vmatprep.subr.mxu0 0.0
    %7133 = vmatpush2.msra.mxu0 0.0
    %7134 = vmatprep.subr.mxu0 0.0
    %7135 = vmatpush2.msra.mxu0 0.0
    %7136 = vmatprep.subr.mxu0 0.0
    %7137 = vmatpush2.msra.mxu0 0.0
    %7138 = vmatprep.subr.mxu0 0.0
    %7139 = vmatpush2.msra.mxu0 0.0
    %7140 = vmatprep.subr.mxu0 0.0
    %7141 = vmatpush2.msra.mxu0 0.0
    %7142 = vmatprep.subr.mxu0 0.0
    %7143 = vmatpush2.msra.mxu0 0.0
    %7144 = vmatprep.subr.mxu0 0.0
    %7145 = vmatpush2.msra.mxu0 0.0
    %7146 = vmatprep.subr.mxu0 0.0
    %7147 = vmatpush2.msra.mxu0 0.0
    %7148 = vmatprep.subr.mxu0 0.0
    %7149 = vmatpush2.msra.mxu0 0.0
    %7150 = vmatprep.subr.mxu0 0.0
    %7151 = vmatpush2.msra.mxu0 0.0
    %7152 = vmatprep.subr.mxu0 0.0
    %7153 = vmatpush2.msra.mxu0 0.0
    %7154 = vmatprep.subr.mxu0 0.0
    %7155 = vmatpush2.msra.mxu0 0.0
    %7156 = vmatprep.subr.mxu0 0.0
    %7157 = vmatpush2.msra.mxu0 0.0
    %7158 = vmatprep.mubr.f32.mxu0 0.0
    %7159 = vmatmul.mubr.f32.gmra.mxu0 %v6920
    %v7160 = vpop.f32.mrf.mxu0
    %v7161 = vadd.f32 0.0, %v7160
    %v7162 = vpop.f32.mrf.mxu0
    %7163 = vdwg.mxu0
    %v7164 = vadd.f32 %v390, %v7161
    %v7165 = vxor.u32 %v7164, 2147483648
    %v7166 = vmul.f32 %v7165, 1.442695
    %v7167 = vpow.pop %v7166
    %v7168 = vadd.f32 %v7167, 1.0
    %v7169 = vrcp.pop %v7168
    %v7170 = vmul.f32 1.0, %v7169
    %v7171 = vtanh.pop %v7164
    %v7172 = vmul.f32 %v7170, %v6910
    %7174 = vrot.lane.b32.xlu0 %v7171, 64
    %v7175 = vpop.permute.xlu0 %7174
    %v7177 = vmul.f32 %v7170, %v7175
    %7179 = vrot.lane.b32.xlu0 %v7177, 32
    %v7180 = vpop.permute.xlu0 %7179
    %v7182 = vadd.f32 %v7172, %v7180
    %v7183 = vtanh.pop %v7182
    %7185 = vrot.lane.b32.xlu0 %v7183, 64
    %v7186 = vpop.permute.xlu0 %7185
    %v7188 = vmul.f32 %v7170, %v7186
    %7190 = vrot.lane.b32.xlu0 %v7188, 32
    %v7191 = vpop.permute.xlu0 %7190
    %v7192 = vsel %vm153, %v7191, 0
    %7194 = vmatprep.subr.mxu0 0.0
    %7195 = vmatpush1.msra.mxu0 0.0
    %7196 = vmatprep.subr.mxu0 0.0
    %7197 = vmatpush1.msra.mxu0 0.0
    %7198 = vmatprep.subr.mxu0 0.0
    %7199 = vmatpush1.msra.mxu0 0.0
    %7200 = vmatprep.subr.mxu0 0.0
    %7201 = vmatpush1.msra.mxu0 0.0
    %7202 = vmatprep.subr.mxu0 0.0
    %7203 = vmatpush1.msra.mxu0 0.0
    %7204 = vmatprep.subr.mxu0 0.0
    %7205 = vmatpush1.msra.mxu0 0.0
    %7206 = vmatprep.subr.mxu0 0.0
    %7207 = vmatpush1.msra.mxu0 0.0
    %7208 = vmatprep.subr.mxu0 0.0
    %7209 = vmatpush1.msra.mxu0 0.0
    %7210 = vmatprep.subr.mxu0 0.0
    %7211 = vmatpush1.msra.mxu0 0.0
    %7212 = vmatprep.subr.mxu0 0.0
    %7213 = vmatpush1.msra.mxu0 0.0
    %7214 = vmatprep.subr.mxu0 0.0
    %7215 = vmatpush1.msra.mxu0 0.0
    %7216 = vmatprep.subr.mxu0 0.0
    %7217 = vmatpush1.msra.mxu0 0.0
    %7218 = vmatprep.subr.mxu0 0.0
    %7219 = vmatpush1.msra.mxu0 %v331
    %7220 = vmatprep.subr.mxu0 0.0
    %7221 = vmatpush1.msra.mxu0 %v330
    %7222 = vmatprep.subr.mxu0 0.0
    %7223 = vmatpush1.msra.mxu0 %v329
    %7224 = vmatprep.subr.mxu0 0.0
    %7225 = vmatpush1.msra.mxu0 %v328
    %7226 = vmatprep.subr.mxu0 0.0
    %7227 = vmatpush2.msra.mxu0 0.0
    %7228 = vmatprep.subr.mxu0 0.0
    %7229 = vmatpush2.msra.mxu0 0.0
    %7230 = vmatprep.subr.mxu0 0.0
    %7231 = vmatpush2.msra.mxu0 0.0
    %7232 = vmatprep.subr.mxu0 0.0
    %7233 = vmatpush2.msra.mxu0 0.0
    %7234 = vmatprep.subr.mxu0 0.0
    %7235 = vmatpush2.msra.mxu0 0.0
    %7236 = vmatprep.subr.mxu0 0.0
    %7237 = vmatpush2.msra.mxu0 0.0
    %7238 = vmatprep.subr.mxu0 0.0
    %7239 = vmatpush2.msra.mxu0 0.0
    %7240 = vmatprep.subr.mxu0 0.0
    %7241 = vmatpush2.msra.mxu0 0.0
    %7242 = vmatprep.subr.mxu0 0.0
    %7243 = vmatpush2.msra.mxu0 0.0
    %7244 = vmatprep.subr.mxu0 0.0
    %7245 = vmatpush2.msra.mxu0 0.0
    %7246 = vmatprep.subr.mxu0 0.0
    %7247 = vmatpush2.msra.mxu0 0.0
    %7248 = vmatprep.subr.mxu0 0.0
    %7249 = vmatpush2.msra.mxu0 0.0
    %7250 = vmatprep.subr.mxu0 0.0
    %7251 = vmatpush2.msra.mxu0 0.0
    %7252 = vmatprep.subr.mxu0 0.0
    %7253 = vmatpush2.msra.mxu0 0.0
    %7254 = vmatprep.subr.mxu0 0.0
    %7255 = vmatpush2.msra.mxu0 0.0
    %7256 = vmatprep.subr.mxu0 0.0
    %7257 = vmatpush2.msra.mxu0 0.0
    %7258 = vmatprep.mubr.f32.mxu0 0.0
    %7259 = vmatmul.mubr.f32.gmra.mxu0 %v7192
    %v7260 = vpop.f32.mrf.mxu0
    %v7261 = vadd.f32 %v7091, %v7260
    %v7262 = vpop.f32.mrf.mxu0
    %7263 = vdwg.mxu0
    %v7264 = vxor.u32 %v7261, 2147483648
    %v7265 = vmul.f32 %v7264, 1.442695
    %v7266 = vpow.pop %v7265
    %v7267 = vadd.f32 %v7266, 1.0
    %v7268 = vrcp.pop %v7267
    %v7269 = vmul.f32 1.0, %v7268
    %v7270 = vtanh.pop %v7261
    %v7271 = vmul.f32 %v7269, %v7009
    %7273 = vrot.lane.b32.xlu0 %v7270, 64
    %v7274 = vpop.permute.xlu0 %7273
    %v7276 = vmul.f32 %v7269, %v7274
    %7278 = vrot.lane.b32.xlu0 %v7276, 32
    %v7279 = vpop.permute.xlu0 %7278
    %v7281 = vadd.f32 %v7271, %v7279
    %v7282 = vtanh.pop %v7281
    %7284 = vrot.lane.b32.xlu0 %v7282, 64
    %v7285 = vpop.permute.xlu0 %7284
    %v7287 = vmul.f32 %v7269, %v7285
    %7289 = vrot.lane.b32.xlu0 %v7287, 32
    %v7290 = vpop.permute.xlu0 %7289
    %v7291 = vsel %vm153, %v7290, 0
    %7293 = vmatprep.subr.mxu0 0.0
    %7294 = vmatpush1.msra.mxu0 0.0
    %7295 = vmatprep.subr.mxu0 0.0
    %7296 = vmatpush1.msra.mxu0 0.0
    %7297 = vmatprep.subr.mxu0 0.0
    %7298 = vmatpush1.msra.mxu0 0.0
    %7299 = vmatprep.subr.mxu0 0.0
    %7300 = vmatpush1.msra.mxu0 0.0
    %7301 = vmatprep.subr.mxu0 0.0
    %7302 = vmatpush1.msra.mxu0 0.0
    %7303 = vmatprep.subr.mxu0 0.0
    %7304 = vmatpush1.msra.mxu0 0.0
    %7305 = vmatprep.subr.mxu0 0.0
    %7306 = vmatpush1.msra.mxu0 0.0
    %7307 = vmatprep.subr.mxu0 0.0
    %7308 = vmatpush1.msra.mxu0 0.0
    %7309 = vmatprep.subr.mxu0 0.0
    %7310 = vmatpush1.msra.mxu0 0.0
    %7311 = vmatprep.subr.mxu0 0.0
    %7312 = vmatpush1.msra.mxu0 0.0
    %7313 = vmatprep.subr.mxu0 0.0
    %7314 = vmatpush1.msra.mxu0 0.0
    %7315 = vmatprep.subr.mxu0 0.0
    %7316 = vmatpush1.msra.mxu0 0.0
    %7317 = vmatprep.subr.mxu0 0.0
    %7318 = vmatpush1.msra.mxu0 %v335
    %7319 = vmatprep.subr.mxu0 0.0
    %7320 = vmatpush1.msra.mxu0 %v334
    %7321 = vmatprep.subr.mxu0 0.0
    %7322 = vmatpush1.msra.mxu0 %v333
    %7323 = vmatprep.subr.mxu0 0.0
    %7324 = vmatpush1.msra.mxu0 %v332
    %7325 = vmatprep.subr.mxu0 0.0
    %7326 = vmatpush2.msra.mxu0 0.0
    %7327 = vmatprep.subr.mxu0 0.0
    %7328 = vmatpush2.msra.mxu0 0.0
    %7329 = vmatprep.subr.mxu0 0.0
    %7330 = vmatpush2.msra.mxu0 0.0
    %7331 = vmatprep.subr.mxu0 0.0
    %7332 = vmatpush2.msra.mxu0 0.0
    %7333 = vmatprep.subr.mxu0 0.0
    %7334 = vmatpush2.msra.mxu0 0.0
    %7335 = vmatprep.subr.mxu0 0.0
    %7336 = vmatpush2.msra.mxu0 0.0
    %7337 = vmatprep.subr.mxu0 0.0
    %7338 = vmatpush2.msra.mxu0 0.0
    %7339 = vmatprep.subr.mxu0 0.0
    %7340 = vmatpush2.msra.mxu0 0.0
    %7341 = vmatprep.subr.mxu0 0.0
    %7342 = vmatpush2.msra.mxu0 0.0
    %7343 = vmatprep.subr.mxu0 0.0
    %7344 = vmatpush2.msra.mxu0 0.0
    %7345 = vmatprep.subr.mxu0 0.0
    %7346 = vmatpush2.msra.mxu0 0.0
    %7347 = vmatprep.subr.mxu0 0.0
    %7348 = vmatpush2.msra.mxu0 0.0
    %7349 = vmatprep.subr.mxu0 0.0
    %7350 = vmatpush2.msra.mxu0 0.0
    %7351 = vmatprep.subr.mxu0 0.0
    %7352 = vmatpush2.msra.mxu0 0.0
    %7353 = vmatprep.subr.mxu0 0.0
    %7354 = vmatpush2.msra.mxu0 0.0
    %7355 = vmatprep.subr.mxu0 0.0
    %7356 = vmatpush2.msra.mxu0 0.0
    %7357 = vmatprep.mubr.f32.mxu0 0.0
    %7358 = vmatmul.mubr.f32.gmra.mxu0 %v7291
    %v7359 = vpop.f32.mrf.mxu0
    %v7360 = vadd.f32 %v545, %v7359
    %v7361 = vpop.f32.mrf.mxu0
    %7362 = vdwg.mxu0
    %7363 = vmatprep.subr.mxu0 0.0
    %7364 = vmatpush1.msra.mxu0 0.0
    %7365 = vmatprep.subr.mxu0 0.0
    %7366 = vmatpush1.msra.mxu0 0.0
    %7367 = vmatprep.subr.mxu0 0.0
    %7368 = vmatpush1.msra.mxu0 0.0
    %7369 = vmatprep.subr.mxu0 0.0
    %7370 = vmatpush1.msra.mxu0 0.0
    %7371 = vmatprep.subr.mxu0 0.0
    %7372 = vmatpush1.msra.mxu0 0.0
    %7373 = vmatprep.subr.mxu0 0.0
    %7374 = vmatpush1.msra.mxu0 0.0
    %7375 = vmatprep.subr.mxu0 0.0
    %7376 = vmatpush1.msra.mxu0 0.0
    %7377 = vmatprep.subr.mxu0 0.0
    %7378 = vmatpush1.msra.mxu0 0.0
    %7379 = vmatprep.subr.mxu0 0.0
    %7380 = vmatpush1.msra.mxu0 0.0
    %7381 = vmatprep.subr.mxu0 0.0
    %7382 = vmatpush1.msra.mxu0 0.0
    %7383 = vmatprep.subr.mxu0 0.0
    %7384 = vmatpush1.msra.mxu0 0.0
    %7385 = vmatprep.subr.mxu0 0.0
    %7386 = vmatpush1.msra.mxu0 0.0
    %7387 = vmatprep.subr.mxu0 0.0
    %7388 = vmatpush1.msra.mxu0 %v326
    %7389 = vmatprep.subr.mxu0 0.0
    %7390 = vmatpush1.msra.mxu0 %v325
    %7391 = vmatprep.subr.mxu0 0.0
    %7392 = vmatpush1.msra.mxu0 %v324
    %7393 = vmatprep.subr.mxu0 0.0
    %7394 = vmatpush1.msra.mxu0 %v323
    %7395 = vmatprep.subr.mxu0 0.0
    %7396 = vmatpush2.msra.mxu0 0.0
    %7397 = vmatprep.subr.mxu0 0.0
    %7398 = vmatpush2.msra.mxu0 0.0
    %7399 = vmatprep.subr.mxu0 0.0
    %7400 = vmatpush2.msra.mxu0 0.0
    %7401 = vmatprep.subr.mxu0 0.0
    %7402 = vmatpush2.msra.mxu0 0.0
    %7403 = vmatprep.subr.mxu0 0.0
    %7404 = vmatpush2.msra.mxu0 0.0
    %7405 = vmatprep.subr.mxu0 0.0
    %7406 = vmatpush2.msra.mxu0 0.0
    %7407 = vmatprep.subr.mxu0 0.0
    %7408 = vmatpush2.msra.mxu0 0.0
    %7409 = vmatprep.subr.mxu0 0.0
    %7410 = vmatpush2.msra.mxu0 0.0
    %7411 = vmatprep.subr.mxu0 0.0
    %7412 = vmatpush2.msra.mxu0 0.0
    %7413 = vmatprep.subr.mxu0 0.0
    %7414 = vmatpush2.msra.mxu0 0.0
    %7415 = vmatprep.subr.mxu0 0.0
    %7416 = vmatpush2.msra.mxu0 0.0
    %7417 = vmatprep.subr.mxu0 0.0
    %7418 = vmatpush2.msra.mxu0 0.0
    %7419 = vmatprep.subr.mxu0 0.0
    %7420 = vmatpush2.msra.mxu0 0.0
    %7421 = vmatprep.subr.mxu0 0.0
    %7422 = vmatpush2.msra.mxu0 0.0
    %7423 = vmatprep.subr.mxu0 0.0
    %7424 = vmatpush2.msra.mxu0 0.0
    %7425 = vmatprep.subr.mxu0 0.0
    %7426 = vmatpush2.msra.mxu0 0.0
    %7427 = vmatprep.mubr.f32.mxu0 0.0
    %7428 = vmatmul.mubr.f32.gmra.mxu0 %v7192
    %v7429 = vpop.f32.mrf.mxu0
    %v7430 = vadd.f32 0.0, %v7429
    %v7431 = vpop.f32.mrf.mxu0
    %7432 = vdwg.mxu0
    %v7433 = vadd.f32 %v438, %v7430
    %v7434 = vxor.u32 %v7433, 2147483648
    %v7435 = vmul.f32 %v7434, 1.442695
    %v7436 = vpow.pop %v7435
    %v7437 = vadd.f32 %v7436, 1.0
    %v7438 = vrcp.pop %v7437
    %v7439 = vmul.f32 1.0, %v7438
    %v7440 = vtanh.pop %v7433
    %v7441 = vmul.f32 %v7439, %v7182
    %7443 = vrot.lane.b32.xlu0 %v7440, 64
    %v7444 = vpop.permute.xlu0 %7443
    %v7446 = vmul.f32 %v7439, %v7444
    %7448 = vrot.lane.b32.xlu0 %v7446, 32
    %v7449 = vpop.permute.xlu0 %7448
    %v7451 = vadd.f32 %v7441, %v7449
    %v7452 = vtanh.pop %v7451
    %7454 = vrot.lane.b32.xlu0 %v7452, 64
    %v7455 = vpop.permute.xlu0 %7454
    %v7457 = vmul.f32 %v7439, %v7455
    %7459 = vrot.lane.b32.xlu0 %v7457, 32
    %v7460 = vpop.permute.xlu0 %7459
    %v7461 = vsel %vm153, %v7460, 0
    %7463 = vmatprep.subr.mxu0 0.0
    %7464 = vmatpush1.msra.mxu0 0.0
    %7465 = vmatprep.subr.mxu0 0.0
    %7466 = vmatpush1.msra.mxu0 0.0
    %7467 = vmatprep.subr.mxu0 0.0
    %7468 = vmatpush1.msra.mxu0 0.0
    %7469 = vmatprep.subr.mxu0 0.0
    %7470 = vmatpush1.msra.mxu0 0.0
    %7471 = vmatprep.subr.mxu0 0.0
    %7472 = vmatpush1.msra.mxu0 0.0
    %7473 = vmatprep.subr.mxu0 0.0
    %7474 = vmatpush1.msra.mxu0 0.0
    %7475 = vmatprep.subr.mxu0 0.0
    %7476 = vmatpush1.msra.mxu0 0.0
    %7477 = vmatprep.subr.mxu0 0.0
    %7478 = vmatpush1.msra.mxu0 0.0
    %7479 = vmatprep.subr.mxu0 0.0
    %7480 = vmatpush1.msra.mxu0 0.0
    %7481 = vmatprep.subr.mxu0 0.0
    %7482 = vmatpush1.msra.mxu0 0.0
    %7483 = vmatprep.subr.mxu0 0.0
    %7484 = vmatpush1.msra.mxu0 0.0
    %7485 = vmatprep.subr.mxu0 0.0
    %7486 = vmatpush1.msra.mxu0 0.0
    %7487 = vmatprep.subr.mxu0 0.0
    %7488 = vmatpush1.msra.mxu0 %v331
    %7489 = vmatprep.subr.mxu0 0.0
    %7490 = vmatpush1.msra.mxu0 %v330
    %7491 = vmatprep.subr.mxu0 0.0
    %7492 = vmatpush1.msra.mxu0 %v329
    %7493 = vmatprep.subr.mxu0 0.0
    %7494 = vmatpush1.msra.mxu0 %v328
    %7495 = vmatprep.subr.mxu0 0.0
    %7496 = vmatpush2.msra.mxu0 0.0
    %7497 = vmatprep.subr.mxu0 0.0
    %7498 = vmatpush2.msra.mxu0 0.0
    %7499 = vmatprep.subr.mxu0 0.0
    %7500 = vmatpush2.msra.mxu0 0.0
    %7501 = vmatprep.subr.mxu0 0.0
    %7502 = vmatpush2.msra.mxu0 0.0
    %7503 = vmatprep.subr.mxu0 0.0
    %7504 = vmatpush2.msra.mxu0 0.0
    %7505 = vmatprep.subr.mxu0 0.0
    %7506 = vmatpush2.msra.mxu0 0.0
    %7507 = vmatprep.subr.mxu0 0.0
    %7508 = vmatpush2.msra.mxu0 0.0
    %7509 = vmatprep.subr.mxu0 0.0
    %7510 = vmatpush2.msra.mxu0 0.0
    %7511 = vmatprep.subr.mxu0 0.0
    %7512 = vmatpush2.msra.mxu0 0.0
    %7513 = vmatprep.subr.mxu0 0.0
    %7514 = vmatpush2.msra.mxu0 0.0
    %7515 = vmatprep.subr.mxu0 0.0
    %7516 = vmatpush2.msra.mxu0 0.0
    %7517 = vmatprep.subr.mxu0 0.0
    %7518 = vmatpush2.msra.mxu0 0.0
    %7519 = vmatprep.subr.mxu0 0.0
    %7520 = vmatpush2.msra.mxu0 0.0
    %7521 = vmatprep.subr.mxu0 0.0
    %7522 = vmatpush2.msra.mxu0 0.0
    %7523 = vmatprep.subr.mxu0 0.0
    %7524 = vmatpush2.msra.mxu0 0.0
    %7525 = vmatprep.subr.mxu0 0.0
    %7526 = vmatpush2.msra.mxu0 0.0
    %7527 = vmatprep.mubr.f32.mxu0 0.0
    %7528 = vmatmul.mubr.f32.gmra.mxu0 %v7461
    %v7529 = vpop.f32.mrf.mxu0
    %v7530 = vadd.f32 %v7360, %v7529
    %v7531 = vpop.f32.mrf.mxu0
    %7532 = vdwg.mxu0
    %v7533 = vxor.u32 %v7530, 2147483648
    %v7534 = vmul.f32 %v7533, 1.442695
    %v7535 = vpow.pop %v7534
    %v7536 = vadd.f32 %v7535, 1.0
    %v7537 = vrcp.pop %v7536
    %v7538 = vmul.f32 1.0, %v7537
    %v7539 = vtanh.pop %v7530
    %v7540 = vmul.f32 %v7538, %v7281
    %7542 = vrot.lane.b32.xlu0 %v7539, 64
    %v7543 = vpop.permute.xlu0 %7542
    %v7545 = vmul.f32 %v7538, %v7543
    %7547 = vrot.lane.b32.xlu0 %v7545, 32
    %v7548 = vpop.permute.xlu0 %7547
    %v7550 = vadd.f32 %v7540, %v7548
    %v7551 = vtanh.pop %v7550
    %7553 = vrot.lane.b32.xlu0 %v7551, 64
    %v7554 = vpop.permute.xlu0 %7553
    %v7556 = vmul.f32 %v7538, %v7554
    %7558 = vrot.lane.b32.xlu0 %v7556, 32
    %v7559 = vpop.permute.xlu0 %7558
    %v7560 = vsel %vm153, %v7559, 0
    %7562 = vmatprep.subr.mxu0 0.0
    %7563 = vmatpush1.msra.mxu0 0.0
    %7564 = vmatprep.subr.mxu0 0.0
    %7565 = vmatpush1.msra.mxu0 0.0
    %7566 = vmatprep.subr.mxu0 0.0
    %7567 = vmatpush1.msra.mxu0 0.0
    %7568 = vmatprep.subr.mxu0 0.0
    %7569 = vmatpush1.msra.mxu0 0.0
    %7570 = vmatprep.subr.mxu0 0.0
    %7571 = vmatpush1.msra.mxu0 0.0
    %7572 = vmatprep.subr.mxu0 0.0
    %7573 = vmatpush1.msra.mxu0 0.0
    %7574 = vmatprep.subr.mxu0 0.0
    %7575 = vmatpush1.msra.mxu0 0.0
    %7576 = vmatprep.subr.mxu0 0.0
    %7577 = vmatpush1.msra.mxu0 0.0
    %7578 = vmatprep.subr.mxu0 0.0
    %7579 = vmatpush1.msra.mxu0 0.0
    %7580 = vmatprep.subr.mxu0 0.0
    %7581 = vmatpush1.msra.mxu0 0.0
    %7582 = vmatprep.subr.mxu0 0.0
    %7583 = vmatpush1.msra.mxu0 0.0
    %7584 = vmatprep.subr.mxu0 0.0
    %7585 = vmatpush1.msra.mxu0 0.0
    %7586 = vmatprep.subr.mxu0 0.0
    %7587 = vmatpush1.msra.mxu0 %v335
    %7588 = vmatprep.subr.mxu0 0.0
    %7589 = vmatpush1.msra.mxu0 %v334
    %7590 = vmatprep.subr.mxu0 0.0
    %7591 = vmatpush1.msra.mxu0 %v333
    %7592 = vmatprep.subr.mxu0 0.0
    %7593 = vmatpush1.msra.mxu0 %v332
    %7594 = vmatprep.subr.mxu0 0.0
    %7595 = vmatpush2.msra.mxu0 0.0
    %7596 = vmatprep.subr.mxu0 0.0
    %7597 = vmatpush2.msra.mxu0 0.0
    %7598 = vmatprep.subr.mxu0 0.0
    %7599 = vmatpush2.msra.mxu0 0.0
    %7600 = vmatprep.subr.mxu0 0.0
    %7601 = vmatpush2.msra.mxu0 0.0
    %7602 = vmatprep.subr.mxu0 0.0
    %7603 = vmatpush2.msra.mxu0 0.0
    %7604 = vmatprep.subr.mxu0 0.0
    %7605 = vmatpush2.msra.mxu0 0.0
    %7606 = vmatprep.subr.mxu0 0.0
    %7607 = vmatpush2.msra.mxu0 0.0
    %7608 = vmatprep.subr.mxu0 0.0
    %7609 = vmatpush2.msra.mxu0 0.0
    %7610 = vmatprep.subr.mxu0 0.0
    %7611 = vmatpush2.msra.mxu0 0.0
    %7612 = vmatprep.subr.mxu0 0.0
    %7613 = vmatpush2.msra.mxu0 0.0
    %7614 = vmatprep.subr.mxu0 0.0
    %7615 = vmatpush2.msra.mxu0 0.0
    %7616 = vmatprep.subr.mxu0 0.0
    %7617 = vmatpush2.msra.mxu0 0.0
    %7618 = vmatprep.subr.mxu0 0.0
    %7619 = vmatpush2.msra.mxu0 0.0
    %7620 = vmatprep.subr.mxu0 0.0
    %7621 = vmatpush2.msra.mxu0 0.0
    %7622 = vmatprep.subr.mxu0 0.0
    %7623 = vmatpush2.msra.mxu0 0.0
    %7624 = vmatprep.subr.mxu0 0.0
    %7625 = vmatpush2.msra.mxu0 0.0
    %7626 = vmatprep.mubr.f32.mxu0 0.0
    %7627 = vmatmul.mubr.f32.gmra.mxu0 %v7560
    %v7628 = vpop.f32.mrf.mxu0
    %v7629 = vadd.f32 %v545, %v7628
    %v7630 = vpop.f32.mrf.mxu0
    %7631 = vdwg.mxu0
    %7632 = vmatprep.subr.mxu0 0.0
    %7633 = vmatpush1.msra.mxu0 0.0
    %7634 = vmatprep.subr.mxu0 0.0
    %7635 = vmatpush1.msra.mxu0 0.0
    %7636 = vmatprep.subr.mxu0 0.0
    %7637 = vmatpush1.msra.mxu0 0.0
    %7638 = vmatprep.subr.mxu0 0.0
    %7639 = vmatpush1.msra.mxu0 0.0
    %7640 = vmatprep.subr.mxu0 0.0
    %7641 = vmatpush1.msra.mxu0 0.0
    %7642 = vmatprep.subr.mxu0 0.0
    %7643 = vmatpush1.msra.mxu0 0.0
    %7644 = vmatprep.subr.mxu0 0.0
    %7645 = vmatpush1.msra.mxu0 0.0
    %7646 = vmatprep.subr.mxu0 0.0
    %7647 = vmatpush1.msra.mxu0 0.0
    %7648 = vmatprep.subr.mxu0 0.0
    %7649 = vmatpush1.msra.mxu0 0.0
    %7650 = vmatprep.subr.mxu0 0.0
    %7651 = vmatpush1.msra.mxu0 0.0
    %7652 = vmatprep.subr.mxu0 0.0
    %7653 = vmatpush1.msra.mxu0 0.0
    %7654 = vmatprep.subr.mxu0 0.0
    %7655 = vmatpush1.msra.mxu0 0.0
    %7656 = vmatprep.subr.mxu0 0.0
    %7657 = vmatpush1.msra.mxu0 %v326
    %7658 = vmatprep.subr.mxu0 0.0
    %7659 = vmatpush1.msra.mxu0 %v325
    %7660 = vmatprep.subr.mxu0 0.0
    %7661 = vmatpush1.msra.mxu0 %v324
    %7662 = vmatprep.subr.mxu0 0.0
    %7663 = vmatpush1.msra.mxu0 %v323
    %7664 = vmatprep.subr.mxu0 0.0
    %7665 = vmatpush2.msra.mxu0 0.0
    %7666 = vmatprep.subr.mxu0 0.0
    %7667 = vmatpush2.msra.mxu0 0.0
    %7668 = vmatprep.subr.mxu0 0.0
    %7669 = vmatpush2.msra.mxu0 0.0
    %7670 = vmatprep.subr.mxu0 0.0
    %7671 = vmatpush2.msra.mxu0 0.0
    %7672 = vmatprep.subr.mxu0 0.0
    %7673 = vmatpush2.msra.mxu0 0.0
    %7674 = vmatprep.subr.mxu0 0.0
    %7675 = vmatpush2.msra.mxu0 0.0
    %7676 = vmatprep.subr.mxu0 0.0
    %7677 = vmatpush2.msra.mxu0 0.0
    %7678 = vmatprep.subr.mxu0 0.0
    %7679 = vmatpush2.msra.mxu0 0.0
    %7680 = vmatprep.subr.mxu0 0.0
    %7681 = vmatpush2.msra.mxu0 0.0
    %7682 = vmatprep.subr.mxu0 0.0
    %7683 = vmatpush2.msra.mxu0 0.0
    %7684 = vmatprep.subr.mxu0 0.0
    %7685 = vmatpush2.msra.mxu0 0.0
    %7686 = vmatprep.subr.mxu0 0.0
    %7687 = vmatpush2.msra.mxu0 0.0
    %7688 = vmatprep.subr.mxu0 0.0
    %7689 = vmatpush2.msra.mxu0 0.0
    %7690 = vmatprep.subr.mxu0 0.0
    %7691 = vmatpush2.msra.mxu0 0.0
    %7692 = vmatprep.subr.mxu0 0.0
    %7693 = vmatpush2.msra.mxu0 0.0
    %7694 = vmatprep.subr.mxu0 0.0
    %7695 = vmatpush2.msra.mxu0 0.0
    %7696 = vmatprep.mubr.f32.mxu0 0.0
    %7697 = vmatmul.mubr.f32.gmra.mxu0 %v7461
    %v7698 = vpop.f32.mrf.mxu0
    %v7699 = vadd.f32 0.0, %v7698
    %v7700 = vpop.f32.mrf.mxu0
    %7701 = vdwg.mxu0
    %v7702 = vadd.f32 %v486, %v7699
    %v7703 = vxor.u32 %v7702, 2147483648
    %v7704 = vmul.f32 %v7703, 1.442695
    %v7705 = vpow.pop %v7704
    %v7706 = vadd.f32 %v7705, 1.0
    %v7707 = vrcp.pop %v7706
    %v7708 = vmul.f32 1.0, %v7707
    %v7709 = vtanh.pop %v7702
    %v7710 = vmul.f32 %v7708, %v7451
    %7712 = vrot.lane.b32.xlu0 %v7709, 64
    %v7713 = vpop.permute.xlu0 %7712
    %v7715 = vmul.f32 %v7708, %v7713
    %7717 = vrot.lane.b32.xlu0 %v7715, 32
    %v7718 = vpop.permute.xlu0 %7717
    %v7720 = vadd.f32 %v7710, %v7718
    %v7721 = vtanh.pop %v7720
    %7723 = vrot.lane.b32.xlu0 %v7721, 64
    %v7724 = vpop.permute.xlu0 %7723
    %v7726 = vmul.f32 %v7708, %v7724
    %7728 = vrot.lane.b32.xlu0 %v7726, 32
    %v7729 = vpop.permute.xlu0 %7728
    %v7730 = vsel %vm153, %v7729, 0
    %7732 = vmatprep.subr.mxu0 0.0
    %7733 = vmatpush1.msra.mxu0 0.0
    %7734 = vmatprep.subr.mxu0 0.0
    %7735 = vmatpush1.msra.mxu0 0.0
    %7736 = vmatprep.subr.mxu0 0.0
    %7737 = vmatpush1.msra.mxu0 0.0
    %7738 = vmatprep.subr.mxu0 0.0
    %7739 = vmatpush1.msra.mxu0 0.0
    %7740 = vmatprep.subr.mxu0 0.0
    %7741 = vmatpush1.msra.mxu0 0.0
    %7742 = vmatprep.subr.mxu0 0.0
    %7743 = vmatpush1.msra.mxu0 0.0
    %7744 = vmatprep.subr.mxu0 0.0
    %7745 = vmatpush1.msra.mxu0 0.0
    %7746 = vmatprep.subr.mxu0 0.0
    %7747 = vmatpush1.msra.mxu0 0.0
    %7748 = vmatprep.subr.mxu0 0.0
    %7749 = vmatpush1.msra.mxu0 0.0
    %7750 = vmatprep.subr.mxu0 0.0
    %7751 = vmatpush1.msra.mxu0 0.0
    %7752 = vmatprep.subr.mxu0 0.0
    %7753 = vmatpush1.msra.mxu0 0.0
    %7754 = vmatprep.subr.mxu0 0.0
    %7755 = vmatpush1.msra.mxu0 0.0
    %7756 = vmatprep.subr.mxu0 0.0
    %7757 = vmatpush1.msra.mxu0 %v331
    %7758 = vmatprep.subr.mxu0 0.0
    %7759 = vmatpush1.msra.mxu0 %v330
    %7760 = vmatprep.subr.mxu0 0.0
    %7761 = vmatpush1.msra.mxu0 %v329
    %7762 = vmatprep.subr.mxu0 0.0
    %7763 = vmatpush1.msra.mxu0 %v328
    %7764 = vmatprep.subr.mxu0 0.0
    %7765 = vmatpush2.msra.mxu0 0.0
    %7766 = vmatprep.subr.mxu0 0.0
    %7767 = vmatpush2.msra.mxu0 0.0
    %7768 = vmatprep.subr.mxu0 0.0
    %7769 = vmatpush2.msra.mxu0 0.0
    %7770 = vmatprep.subr.mxu0 0.0
    %7771 = vmatpush2.msra.mxu0 0.0
    %7772 = vmatprep.subr.mxu0 0.0
    %7773 = vmatpush2.msra.mxu0 0.0
    %7774 = vmatprep.subr.mxu0 0.0
    %7775 = vmatpush2.msra.mxu0 0.0
    %7776 = vmatprep.subr.mxu0 0.0
    %7777 = vmatpush2.msra.mxu0 0.0
    %7778 = vmatprep.subr.mxu0 0.0
    %7779 = vmatpush2.msra.mxu0 0.0
    %7780 = vmatprep.subr.mxu0 0.0
    %7781 = vmatpush2.msra.mxu0 0.0
    %7782 = vmatprep.subr.mxu0 0.0
    %7783 = vmatpush2.msra.mxu0 0.0
    %7784 = vmatprep.subr.mxu0 0.0
    %7785 = vmatpush2.msra.mxu0 0.0
    %7786 = vmatprep.subr.mxu0 0.0
    %7787 = vmatpush2.msra.mxu0 0.0
    %7788 = vmatprep.subr.mxu0 0.0
    %7789 = vmatpush2.msra.mxu0 0.0
    %7790 = vmatprep.subr.mxu0 0.0
    %7791 = vmatpush2.msra.mxu0 0.0
    %7792 = vmatprep.subr.mxu0 0.0
    %7793 = vmatpush2.msra.mxu0 0.0
    %7794 = vmatprep.subr.mxu0 0.0
    %7795 = vmatpush2.msra.mxu0 0.0
    %7796 = vmatprep.mubr.f32.mxu0 0.0
    %7797 = vmatmul.mubr.f32.gmra.mxu0 %v7730
    %v7798 = vpop.f32.mrf.mxu0
    %v7799 = vadd.f32 %v7629, %v7798
    %v7800 = vpop.f32.mrf.mxu0
    %7801 = vdwg.mxu0
    %v7802 = vxor.u32 %v7799, 2147483648
    %v7803 = vmul.f32 %v7802, 1.442695
    %v7804 = vpow.pop %v7803
    %v7805 = vadd.f32 %v7804, 1.0
    %v7806 = vrcp.pop %v7805
    %v7807 = vmul.f32 1.0, %v7806
    %v7808 = vtanh.pop %v7799
    %v7809 = vmul.f32 %v7807, %v7550
    %7811 = vrot.lane.b32.xlu0 %v7808, 64
    %v7812 = vpop.permute.xlu0 %7811
    %v7814 = vmul.f32 %v7807, %v7812
    %7816 = vrot.lane.b32.xlu0 %v7814, 32
    %v7817 = vpop.permute.xlu0 %7816
    %v7819 = vadd.f32 %v7809, %v7817
    %v7820 = vtanh.pop %v7819
    %7822 = vrot.lane.b32.xlu0 %v7820, 64
    %v7823 = vpop.permute.xlu0 %7822
    %v7825 = vmul.f32 %v7807, %v7823
    %7827 = vrot.lane.b32.xlu0 %v7825, 32
    %v7828 = vpop.permute.xlu0 %7827
    %v7829 = vsel %vm153, %v7828, 0
    %7831 = vmatprep.subr.mxu0 0.0
    %7832 = vmatpush1.msra.mxu0 0.0
    %7833 = vmatprep.subr.mxu0 0.0
    %7834 = vmatpush1.msra.mxu0 0.0
    %7835 = vmatprep.subr.mxu0 0.0
    %7836 = vmatpush1.msra.mxu0 0.0
    %7837 = vmatprep.subr.mxu0 0.0
    %7838 = vmatpush1.msra.mxu0 0.0
    %7839 = vmatprep.subr.mxu0 0.0
    %7840 = vmatpush1.msra.mxu0 0.0
    %7841 = vmatprep.subr.mxu0 0.0
    %7842 = vmatpush1.msra.mxu0 0.0
    %7843 = vmatprep.subr.mxu0 0.0
    %7844 = vmatpush1.msra.mxu0 0.0
    %7845 = vmatprep.subr.mxu0 0.0
    %7846 = vmatpush1.msra.mxu0 0.0
    %7847 = vmatprep.subr.mxu0 0.0
    %7848 = vmatpush1.msra.mxu0 0.0
    %7849 = vmatprep.subr.mxu0 0.0
    %7850 = vmatpush1.msra.mxu0 0.0
    %7851 = vmatprep.subr.mxu0 0.0
    %7852 = vmatpush1.msra.mxu0 0.0
    %7853 = vmatprep.subr.mxu0 0.0
    %7854 = vmatpush1.msra.mxu0 0.0
    %7855 = vmatprep.subr.mxu0 0.0
    %7856 = vmatpush1.msra.mxu0 %v335
    %7857 = vmatprep.subr.mxu0 0.0
    %7858 = vmatpush1.msra.mxu0 %v334
    %7859 = vmatprep.subr.mxu0 0.0
    %7860 = vmatpush1.msra.mxu0 %v333
    %7861 = vmatprep.subr.mxu0 0.0
    %7862 = vmatpush1.msra.mxu0 %v332
    %7863 = vmatprep.subr.mxu0 0.0
    %7864 = vmatpush2.msra.mxu0 0.0
    %7865 = vmatprep.subr.mxu0 0.0
    %7866 = vmatpush2.msra.mxu0 0.0
    %7867 = vmatprep.subr.mxu0 0.0
    %7868 = vmatpush2.msra.mxu0 0.0
    %7869 = vmatprep.subr.mxu0 0.0
    %7870 = vmatpush2.msra.mxu0 0.0
    %7871 = vmatprep.subr.mxu0 0.0
    %7872 = vmatpush2.msra.mxu0 0.0
    %7873 = vmatprep.subr.mxu0 0.0
    %7874 = vmatpush2.msra.mxu0 0.0
    %7875 = vmatprep.subr.mxu0 0.0
    %7876 = vmatpush2.msra.mxu0 0.0
    %7877 = vmatprep.subr.mxu0 0.0
    %7878 = vmatpush2.msra.mxu0 0.0
    %7879 = vmatprep.subr.mxu0 0.0
    %7880 = vmatpush2.msra.mxu0 0.0
    %7881 = vmatprep.subr.mxu0 0.0
    %7882 = vmatpush2.msra.mxu0 0.0
    %7883 = vmatprep.subr.mxu0 0.0
    %7884 = vmatpush2.msra.mxu0 0.0
    %7885 = vmatprep.subr.mxu0 0.0
    %7886 = vmatpush2.msra.mxu0 0.0
    %7887 = vmatprep.subr.mxu0 0.0
    %7888 = vmatpush2.msra.mxu0 0.0
    %7889 = vmatprep.subr.mxu0 0.0
    %7890 = vmatpush2.msra.mxu0 0.0
    %7891 = vmatprep.subr.mxu0 0.0
    %7892 = vmatpush2.msra.mxu0 0.0
    %7893 = vmatprep.subr.mxu0 0.0
    %7894 = vmatpush2.msra.mxu0 0.0
    %7895 = vmatprep.mubr.f32.mxu0 0.0
    %7896 = vmatmul.mubr.f32.gmra.mxu0 %v7829
    %v7897 = vpop.f32.mrf.mxu0
    %v7898 = vadd.f32 %v545, %v7897
    %v7899 = vpop.f32.mrf.mxu0
    %7900 = vdwg.mxu0
    %7901 = vmatprep.subr.mxu0 0.0
    %7902 = vmatpush1.msra.mxu0 0.0
    %7903 = vmatprep.subr.mxu0 0.0
    %7904 = vmatpush1.msra.mxu0 0.0
    %7905 = vmatprep.subr.mxu0 0.0
    %7906 = vmatpush1.msra.mxu0 0.0
    %7907 = vmatprep.subr.mxu0 0.0
    %7908 = vmatpush1.msra.mxu0 0.0
    %7909 = vmatprep.subr.mxu0 0.0
    %7910 = vmatpush1.msra.mxu0 0.0
    %7911 = vmatprep.subr.mxu0 0.0
    %7912 = vmatpush1.msra.mxu0 0.0
    %7913 = vmatprep.subr.mxu0 0.0
    %7914 = vmatpush1.msra.mxu0 0.0
    %7915 = vmatprep.subr.mxu0 0.0
    %7916 = vmatpush1.msra.mxu0 0.0
    %7917 = vmatprep.subr.mxu0 0.0
    %7918 = vmatpush1.msra.mxu0 0.0
    %7919 = vmatprep.subr.mxu0 0.0
    %7920 = vmatpush1.msra.mxu0 0.0
    %7921 = vmatprep.subr.mxu0 0.0
    %7922 = vmatpush1.msra.mxu0 0.0
    %7923 = vmatprep.subr.mxu0 0.0
    %7924 = vmatpush1.msra.mxu0 0.0
    %7925 = vmatprep.subr.mxu0 0.0
    %7926 = vmatpush1.msra.mxu0 %v326
    %7927 = vmatprep.subr.mxu0 0.0
    %7928 = vmatpush1.msra.mxu0 %v325
    %7929 = vmatprep.subr.mxu0 0.0
    %7930 = vmatpush1.msra.mxu0 %v324
    %7931 = vmatprep.subr.mxu0 0.0
    %7932 = vmatpush1.msra.mxu0 %v323
    %7933 = vmatprep.subr.mxu0 0.0
    %7934 = vmatpush2.msra.mxu0 0.0
    %7935 = vmatprep.subr.mxu0 0.0
    %7936 = vmatpush2.msra.mxu0 0.0
    %7937 = vmatprep.subr.mxu0 0.0
    %7938 = vmatpush2.msra.mxu0 0.0
    %7939 = vmatprep.subr.mxu0 0.0
    %7940 = vmatpush2.msra.mxu0 0.0
    %7941 = vmatprep.subr.mxu0 0.0
    %7942 = vmatpush2.msra.mxu0 0.0
    %7943 = vmatprep.subr.mxu0 0.0
    %7944 = vmatpush2.msra.mxu0 0.0
    %7945 = vmatprep.subr.mxu0 0.0
    %7946 = vmatpush2.msra.mxu0 0.0
    %7947 = vmatprep.subr.mxu0 0.0
    %7948 = vmatpush2.msra.mxu0 0.0
    %7949 = vmatprep.subr.mxu0 0.0
    %7950 = vmatpush2.msra.mxu0 0.0
    %7951 = vmatprep.subr.mxu0 0.0
    %7952 = vmatpush2.msra.mxu0 0.0
    %7953 = vmatprep.subr.mxu0 0.0
    %7954 = vmatpush2.msra.mxu0 0.0
    %7955 = vmatprep.subr.mxu0 0.0
    %7956 = vmatpush2.msra.mxu0 0.0
    %7957 = vmatprep.subr.mxu0 0.0
    %7958 = vmatpush2.msra.mxu0 0.0
    %7959 = vmatprep.subr.mxu0 0.0
    %7960 = vmatpush2.msra.mxu0 0.0
    %7961 = vmatprep.subr.mxu0 0.0
    %7962 = vmatpush2.msra.mxu0 0.0
    %7963 = vmatprep.subr.mxu0 0.0
    %7964 = vmatpush2.msra.mxu0 0.0
    %7965 = vmatprep.mubr.f32.mxu0 0.0
    %7966 = vmatmul.mubr.f32.gmra.mxu0 %v7730
    %v7967 = vpop.f32.mrf.mxu0
    %v7968 = vadd.f32 0.0, %v7967
    %v7969 = vpop.f32.mrf.mxu0
    %7970 = vdwg.mxu0
    %v7971 = vadd.f32 %v534, %v7968
    %v7972 = vxor.u32 %v7971, 2147483648
    %v7973 = vmul.f32 %v7972, 1.442695
    %v7974 = vpow.pop %v7973
    %v7975 = vadd.f32 %v7974, 1.0
    %v7976 = vrcp.pop %v7975
    %v7977 = vmul.f32 1.0, %v7976
    %v7978 = vtanh.pop %v7971
    %v7979 = vmul.f32 %v7977, %v7720
    %7981 = vrot.lane.b32.xlu0 %v7978, 64
    %v7982 = vpop.permute.xlu0 %7981
    %v7984 = vmul.f32 %v7977, %v7982
    %7986 = vrot.lane.b32.xlu0 %v7984, 32
    %v7987 = vpop.permute.xlu0 %7986
    %v7989 = vadd.f32 %v7979, %v7987
    %v7990 = vtanh.pop %v7989
    %7992 = vrot.lane.b32.xlu0 %v7990, 64
    %v7993 = vpop.permute.xlu0 %7992
    %v7995 = vmul.f32 %v7977, %v7993
    %7997 = vrot.lane.b32.xlu0 %v7995, 32
    %v7998 = vpop.permute.xlu0 %7997
    %v7999 = vsel %vm153, %v7998, 0
    %8001 = vmatprep.subr.mxu0 0.0
    %8002 = vmatpush1.msra.mxu0 0.0
    %8003 = vmatprep.subr.mxu0 0.0
    %8004 = vmatpush1.msra.mxu0 0.0
    %8005 = vmatprep.subr.mxu0 0.0
    %8006 = vmatpush1.msra.mxu0 0.0
    %8007 = vmatprep.subr.mxu0 0.0
    %8008 = vmatpush1.msra.mxu0 0.0
    %8009 = vmatprep.subr.mxu0 0.0
    %8010 = vmatpush1.msra.mxu0 0.0
    %8011 = vmatprep.subr.mxu0 0.0
    %8012 = vmatpush1.msra.mxu0 0.0
    %8013 = vmatprep.subr.mxu0 0.0
    %8014 = vmatpush1.msra.mxu0 0.0
    %8015 = vmatprep.subr.mxu0 0.0
    %8016 = vmatpush1.msra.mxu0 0.0
    %8017 = vmatprep.subr.mxu0 0.0
    %8018 = vmatpush1.msra.mxu0 0.0
    %8019 = vmatprep.subr.mxu0 0.0
    %8020 = vmatpush1.msra.mxu0 0.0
    %8021 = vmatprep.subr.mxu0 0.0
    %8022 = vmatpush1.msra.mxu0 0.0
    %8023 = vmatprep.subr.mxu0 0.0
    %8024 = vmatpush1.msra.mxu0 0.0
    %8025 = vmatprep.subr.mxu0 0.0
    %8026 = vmatpush1.msra.mxu0 %v331
    %8027 = vmatprep.subr.mxu0 0.0
    %8028 = vmatpush1.msra.mxu0 %v330
    %8029 = vmatprep.subr.mxu0 0.0
    %8030 = vmatpush1.msra.mxu0 %v329
    %8031 = vmatprep.subr.mxu0 0.0
    %8032 = vmatpush1.msra.mxu0 %v328
    %8033 = vmatprep.subr.mxu0 0.0
    %8034 = vmatpush2.msra.mxu0 0.0
    %8035 = vmatprep.subr.mxu0 0.0
    %8036 = vmatpush2.msra.mxu0 0.0
    %8037 = vmatprep.subr.mxu0 0.0
    %8038 = vmatpush2.msra.mxu0 0.0
    %8039 = vmatprep.subr.mxu0 0.0
    %8040 = vmatpush2.msra.mxu0 0.0
    %8041 = vmatprep.subr.mxu0 0.0
    %8042 = vmatpush2.msra.mxu0 0.0
    %8043 = vmatprep.subr.mxu0 0.0
    %8044 = vmatpush2.msra.mxu0 0.0
    %8045 = vmatprep.subr.mxu0 0.0
    %8046 = vmatpush2.msra.mxu0 0.0
    %8047 = vmatprep.subr.mxu0 0.0
    %8048 = vmatpush2.msra.mxu0 0.0
    %8049 = vmatprep.subr.mxu0 0.0
    %8050 = vmatpush2.msra.mxu0 0.0
    %8051 = vmatprep.subr.mxu0 0.0
    %8052 = vmatpush2.msra.mxu0 0.0
    %8053 = vmatprep.subr.mxu0 0.0
    %8054 = vmatpush2.msra.mxu0 0.0
    %8055 = vmatprep.subr.mxu0 0.0
    %8056 = vmatpush2.msra.mxu0 0.0
    %8057 = vmatprep.subr.mxu0 0.0
    %8058 = vmatpush2.msra.mxu0 0.0
    %8059 = vmatprep.subr.mxu0 0.0
    %8060 = vmatpush2.msra.mxu0 0.0
    %8061 = vmatprep.subr.mxu0 0.0
    %8062 = vmatpush2.msra.mxu0 0.0
    %8063 = vmatprep.subr.mxu0 0.0
    %8064 = vmatpush2.msra.mxu0 0.0
    %8065 = vmatprep.mubr.f32.mxu0 0.0
    %8066 = vmatmul.mubr.f32.gmra.mxu0 %v7999
    %v8067 = vpop.f32.mrf.mxu0
    %v8068 = vadd.f32 %v7898, %v8067
    %v8069 = vpop.f32.mrf.mxu0
    %8070 = vdwg.mxu0
    %v8071 = vxor.u32 %v8068, 2147483648
    %v8072 = vmul.f32 %v8071, 1.442695
    %v8073 = vpow.pop %v8072
    %v8074 = vadd.f32 %v8073, 1.0
    %v8075 = vrcp.pop %v8074
    %v8076 = vmul.f32 1.0, %v8075
    %v8077 = vtanh.pop %v8068
    %v8078 = vmul.f32 %v8076, %v7819
    %8080 = vrot.lane.b32.xlu0 %v8077, 64
    %v8081 = vpop.permute.xlu0 %8080
    %v8083 = vmul.f32 %v8076, %v8081
    %8085 = vrot.lane.b32.xlu0 %v8083, 32
    %v8086 = vpop.permute.xlu0 %8085
    %v8088 = vadd.f32 %v8078, %v8086
    %v8089 = vtanh.pop %v8088
    %8091 = vrot.lane.b32.xlu0 %v8089, 64
    %v8092 = vpop.permute.xlu0 %8091
    %v8094 = vmul.f32 %v8076, %v8092
    %8096 = vrot.lane.b32.xlu0 %v8094, 32
    %v8097 = vpop.permute.xlu0 %8096
    %s8099 = scalar_lea.vmem [#allocation14], 12
    %8100 = vst.msk [vmem:[%s8099] sm:$0x3] %vm1625, %v8097
    %v8101 = vsel %vm153, %v8097, 0
    %8103 = vmatprep.subr.mxu0 0.0
    %8104 = vmatpush1.msra.mxu0 0.0
    %8105 = vmatprep.subr.mxu0 0.0
    %8106 = vmatpush1.msra.mxu0 0.0
    %8107 = vmatprep.subr.mxu0 0.0
    %8108 = vmatpush1.msra.mxu0 0.0
    %8109 = vmatprep.subr.mxu0 0.0
    %8110 = vmatpush1.msra.mxu0 0.0
    %8111 = vmatprep.subr.mxu0 0.0
    %8112 = vmatpush1.msra.mxu0 0.0
    %8113 = vmatprep.subr.mxu0 0.0
    %8114 = vmatpush1.msra.mxu0 0.0
    %8115 = vmatprep.subr.mxu0 0.0
    %8116 = vmatpush1.msra.mxu0 0.0
    %8117 = vmatprep.subr.mxu0 0.0
    %8118 = vmatpush1.msra.mxu0 0.0
    %8119 = vmatprep.subr.mxu0 0.0
    %8120 = vmatpush1.msra.mxu0 0.0
    %8121 = vmatprep.subr.mxu0 0.0
    %8122 = vmatpush1.msra.mxu0 0.0
    %8123 = vmatprep.subr.mxu0 0.0
    %8124 = vmatpush1.msra.mxu0 0.0
    %8125 = vmatprep.subr.mxu0 0.0
    %8126 = vmatpush1.msra.mxu0 0.0
    %8127 = vmatprep.subr.mxu0 0.0
    %8128 = vmatpush1.msra.mxu0 %v335
    %8129 = vmatprep.subr.mxu0 0.0
    %8130 = vmatpush1.msra.mxu0 %v334
    %8131 = vmatprep.subr.mxu0 0.0
    %8132 = vmatpush1.msra.mxu0 %v333
    %8133 = vmatprep.subr.mxu0 0.0
    %8134 = vmatpush1.msra.mxu0 %v332
    %8135 = vmatprep.subr.mxu0 0.0
    %8136 = vmatpush2.msra.mxu0 0.0
    %8137 = vmatprep.subr.mxu0 0.0
    %8138 = vmatpush2.msra.mxu0 0.0
    %8139 = vmatprep.subr.mxu0 0.0
    %8140 = vmatpush2.msra.mxu0 0.0
    %8141 = vmatprep.subr.mxu0 0.0
    %8142 = vmatpush2.msra.mxu0 0.0
    %8143 = vmatprep.subr.mxu0 0.0
    %8144 = vmatpush2.msra.mxu0 0.0
    %8145 = vmatprep.subr.mxu0 0.0
    %8146 = vmatpush2.msra.mxu0 0.0
    %8147 = vmatprep.subr.mxu0 0.0
    %8148 = vmatpush2.msra.mxu0 0.0
    %8149 = vmatprep.subr.mxu0 0.0
    %8150 = vmatpush2.msra.mxu0 0.0
    %8151 = vmatprep.subr.mxu0 0.0
    %8152 = vmatpush2.msra.mxu0 0.0
    %8153 = vmatprep.subr.mxu0 0.0
    %8154 = vmatpush2.msra.mxu0 0.0
    %8155 = vmatprep.subr.mxu0 0.0
    %8156 = vmatpush2.msra.mxu0 0.0
    %8157 = vmatprep.subr.mxu0 0.0
    %8158 = vmatpush2.msra.mxu0 0.0
    %8159 = vmatprep.subr.mxu0 0.0
    %8160 = vmatpush2.msra.mxu0 0.0
    %8161 = vmatprep.subr.mxu0 0.0
    %8162 = vmatpush2.msra.mxu0 0.0
    %8163 = vmatprep.subr.mxu0 0.0
    %8164 = vmatpush2.msra.mxu0 0.0
    %8165 = vmatprep.subr.mxu0 0.0
    %8166 = vmatpush2.msra.mxu0 0.0
    %8167 = vmatprep.mubr.f32.mxu0 0.0
    %8168 = vmatmul.mubr.f32.gmra.mxu0 %v8101
    %v8169 = vpop.f32.mrf.mxu0
    %v8170 = vadd.f32 %v545, %v8169
    %v8171 = vpop.f32.mrf.mxu0
    %8172 = vdwg.mxu0
    %8173 = vmatprep.subr.mxu0 0.0
    %8174 = vmatpush1.msra.mxu0 0.0
    %8175 = vmatprep.subr.mxu0 0.0
    %8176 = vmatpush1.msra.mxu0 0.0
    %8177 = vmatprep.subr.mxu0 0.0
    %8178 = vmatpush1.msra.mxu0 0.0
    %8179 = vmatprep.subr.mxu0 0.0
    %8180 = vmatpush1.msra.mxu0 0.0
    %8181 = vmatprep.subr.mxu0 0.0
    %8182 = vmatpush1.msra.mxu0 0.0
    %8183 = vmatprep.subr.mxu0 0.0
    %8184 = vmatpush1.msra.mxu0 0.0
    %8185 = vmatprep.subr.mxu0 0.0
    %8186 = vmatpush1.msra.mxu0 0.0
    %8187 = vmatprep.subr.mxu0 0.0
    %8188 = vmatpush1.msra.mxu0 0.0
    %8189 = vmatprep.subr.mxu0 0.0
    %8190 = vmatpush1.msra.mxu0 0.0
    %8191 = vmatprep.subr.mxu0 0.0
    %8192 = vmatpush1.msra.mxu0 0.0
    %8193 = vmatprep.subr.mxu0 0.0
    %8194 = vmatpush1.msra.mxu0 0.0
    %8195 = vmatprep.subr.mxu0 0.0
    %8196 = vmatpush1.msra.mxu0 0.0
    %8197 = vmatprep.subr.mxu0 0.0
    %8198 = vmatpush1.msra.mxu0 %v326
    %8199 = vmatprep.subr.mxu0 0.0
    %8200 = vmatpush1.msra.mxu0 %v325
    %8201 = vmatprep.subr.mxu0 0.0
    %8202 = vmatpush1.msra.mxu0 %v324
    %8203 = vmatprep.subr.mxu0 0.0
    %8204 = vmatpush1.msra.mxu0 %v323
    %8205 = vmatprep.subr.mxu0 0.0
    %8206 = vmatpush2.msra.mxu0 0.0
    %8207 = vmatprep.subr.mxu0 0.0
    %8208 = vmatpush2.msra.mxu0 0.0
    %8209 = vmatprep.subr.mxu0 0.0
    %8210 = vmatpush2.msra.mxu0 0.0
    %8211 = vmatprep.subr.mxu0 0.0
    %8212 = vmatpush2.msra.mxu0 0.0
    %8213 = vmatprep.subr.mxu0 0.0
    %8214 = vmatpush2.msra.mxu0 0.0
    %8215 = vmatprep.subr.mxu0 0.0
    %8216 = vmatpush2.msra.mxu0 0.0
    %8217 = vmatprep.subr.mxu0 0.0
    %8218 = vmatpush2.msra.mxu0 0.0
    %8219 = vmatprep.subr.mxu0 0.0
    %8220 = vmatpush2.msra.mxu0 0.0
    %8221 = vmatprep.subr.mxu0 0.0
    %8222 = vmatpush2.msra.mxu0 0.0
    %8223 = vmatprep.subr.mxu0 0.0
    %8224 = vmatpush2.msra.mxu0 0.0
    %8225 = vmatprep.subr.mxu0 0.0
    %8226 = vmatpush2.msra.mxu0 0.0
    %8227 = vmatprep.subr.mxu0 0.0
    %8228 = vmatpush2.msra.mxu0 0.0
    %8229 = vmatprep.subr.mxu0 0.0
    %8230 = vmatpush2.msra.mxu0 0.0
    %8231 = vmatprep.subr.mxu0 0.0
    %8232 = vmatpush2.msra.mxu0 0.0
    %8233 = vmatprep.subr.mxu0 0.0
    %8234 = vmatpush2.msra.mxu0 0.0
    %8235 = vmatprep.subr.mxu0 0.0
    %8236 = vmatpush2.msra.mxu0 0.0
    %8237 = vmatprep.mubr.f32.mxu0 0.0
    %8238 = vmatmul.mubr.f32.gmra.mxu0 %v7999
    %v8239 = vpop.f32.mrf.mxu0
    %v8240 = vadd.f32 0.0, %v8239
    %v8241 = vpop.f32.mrf.mxu0
    %8242 = vdwg.mxu0
    %v8243 = vadd.f32 %v396, %v8240
    %v8244 = vxor.u32 %v8243, 2147483648
    %v8245 = vmul.f32 %v8244, 1.442695
    %v8246 = vpow.pop %v8245
    %v8247 = vadd.f32 %v8246, 1.0
    %v8248 = vrcp.pop %v8247
    %v8249 = vmul.f32 1.0, %v8248
    %v8250 = vtanh.pop %v8243
    %v8251 = vmul.f32 %v8249, %v7989
    %8253 = vrot.lane.b32.xlu0 %v8250, 64
    %v8254 = vpop.permute.xlu0 %8253
    %v8256 = vmul.f32 %v8249, %v8254
    %8258 = vrot.lane.b32.xlu0 %v8256, 32
    %v8259 = vpop.permute.xlu0 %8258
    %v8261 = vadd.f32 %v8251, %v8259
    %v8262 = vtanh.pop %v8261
    %8264 = vrot.lane.b32.xlu0 %v8262, 64
    %v8265 = vpop.permute.xlu0 %8264
    %v8267 = vmul.f32 %v8249, %v8265
    %8269 = vrot.lane.b32.xlu0 %v8267, 32
    %v8270 = vpop.permute.xlu0 %8269
    %v8271 = vsel %vm153, %v8270, 0
    %8273 = vmatprep.subr.mxu0 0.0
    %8274 = vmatpush1.msra.mxu0 0.0
    %8275 = vmatprep.subr.mxu0 0.0
    %8276 = vmatpush1.msra.mxu0 0.0
    %8277 = vmatprep.subr.mxu0 0.0
    %8278 = vmatpush1.msra.mxu0 0.0
    %8279 = vmatprep.subr.mxu0 0.0
    %8280 = vmatpush1.msra.mxu0 0.0
    %8281 = vmatprep.subr.mxu0 0.0
    %8282 = vmatpush1.msra.mxu0 0.0
    %8283 = vmatprep.subr.mxu0 0.0
    %8284 = vmatpush1.msra.mxu0 0.0
    %8285 = vmatprep.subr.mxu0 0.0
    %8286 = vmatpush1.msra.mxu0 0.0
    %8287 = vmatprep.subr.mxu0 0.0
    %8288 = vmatpush1.msra.mxu0 0.0
    %8289 = vmatprep.subr.mxu0 0.0
    %8290 = vmatpush1.msra.mxu0 0.0
    %8291 = vmatprep.subr.mxu0 0.0
    %8292 = vmatpush1.msra.mxu0 0.0
    %8293 = vmatprep.subr.mxu0 0.0
    %8294 = vmatpush1.msra.mxu0 0.0
    %8295 = vmatprep.subr.mxu0 0.0
    %8296 = vmatpush1.msra.mxu0 0.0
    %8297 = vmatprep.subr.mxu0 0.0
    %8298 = vmatpush1.msra.mxu0 %v331
    %8299 = vmatprep.subr.mxu0 0.0
    %8300 = vmatpush1.msra.mxu0 %v330
    %8301 = vmatprep.subr.mxu0 0.0
    %8302 = vmatpush1.msra.mxu0 %v329
    %8303 = vmatprep.subr.mxu0 0.0
    %8304 = vmatpush1.msra.mxu0 %v328
    %8305 = vmatprep.subr.mxu0 0.0
    %8306 = vmatpush2.msra.mxu0 0.0
    %8307 = vmatprep.subr.mxu0 0.0
    %8308 = vmatpush2.msra.mxu0 0.0
    %8309 = vmatprep.subr.mxu0 0.0
    %8310 = vmatpush2.msra.mxu0 0.0
    %8311 = vmatprep.subr.mxu0 0.0
    %8312 = vmatpush2.msra.mxu0 0.0
    %8313 = vmatprep.subr.mxu0 0.0
    %8314 = vmatpush2.msra.mxu0 0.0
    %8315 = vmatprep.subr.mxu0 0.0
    %8316 = vmatpush2.msra.mxu0 0.0
    %8317 = vmatprep.subr.mxu0 0.0
    %8318 = vmatpush2.msra.mxu0 0.0
    %8319 = vmatprep.subr.mxu0 0.0
    %8320 = vmatpush2.msra.mxu0 0.0
    %8321 = vmatprep.subr.mxu0 0.0
    %8322 = vmatpush2.msra.mxu0 0.0
    %8323 = vmatprep.subr.mxu0 0.0
    %8324 = vmatpush2.msra.mxu0 0.0
    %8325 = vmatprep.subr.mxu0 0.0
    %8326 = vmatpush2.msra.mxu0 0.0
    %8327 = vmatprep.subr.mxu0 0.0
    %8328 = vmatpush2.msra.mxu0 0.0
    %8329 = vmatprep.subr.mxu0 0.0
    %8330 = vmatpush2.msra.mxu0 0.0
    %8331 = vmatprep.subr.mxu0 0.0
    %8332 = vmatpush2.msra.mxu0 0.0
    %8333 = vmatprep.subr.mxu0 0.0
    %8334 = vmatpush2.msra.mxu0 0.0
    %8335 = vmatprep.subr.mxu0 0.0
    %8336 = vmatpush2.msra.mxu0 0.0
    %8337 = vmatprep.mubr.f32.mxu0 0.0
    %8338 = vmatmul.mubr.f32.gmra.mxu0 %v8271
    %v8339 = vpop.f32.mrf.mxu0
    %v8340 = vadd.f32 %v8170, %v8339
    %v8341 = vpop.f32.mrf.mxu0
    %8342 = vdwg.mxu0
    %v8343 = vxor.u32 %v8340, 2147483648
    %v8344 = vmul.f32 %v8343, 1.442695
    %v8345 = vpow.pop %v8344
    %v8346 = vadd.f32 %v8345, 1.0
    %v8347 = vrcp.pop %v8346
    %v8348 = vmul.f32 1.0, %v8347
    %v8349 = vtanh.pop %v8340
    %v8350 = vmul.f32 %v8348, %v8088
    %8352 = vrot.lane.b32.xlu0 %v8349, 64
    %v8353 = vpop.permute.xlu0 %8352
    %v8355 = vmul.f32 %v8348, %v8353
    %8357 = vrot.lane.b32.xlu0 %v8355, 32
    %v8358 = vpop.permute.xlu0 %8357
    %v8360 = vadd.f32 %v8350, %v8358
    %v8361 = vtanh.pop %v8360
    %8363 = vrot.lane.b32.xlu0 %v8361, 64
    %v8364 = vpop.permute.xlu0 %8363
    %v8366 = vmul.f32 %v8348, %v8364
    %8368 = vrot.lane.b32.xlu0 %v8366, 32
    %v8369 = vpop.permute.xlu0 %8368
    %v8370 = vsel %vm153, %v8369, 0
    %8372 = vmatprep.subr.mxu0 0.0
    %8373 = vmatpush1.msra.mxu0 0.0
    %8374 = vmatprep.subr.mxu0 0.0
    %8375 = vmatpush1.msra.mxu0 0.0
    %8376 = vmatprep.subr.mxu0 0.0
    %8377 = vmatpush1.msra.mxu0 0.0
    %8378 = vmatprep.subr.mxu0 0.0
    %8379 = vmatpush1.msra.mxu0 0.0
    %8380 = vmatprep.subr.mxu0 0.0
    %8381 = vmatpush1.msra.mxu0 0.0
    %8382 = vmatprep.subr.mxu0 0.0
    %8383 = vmatpush1.msra.mxu0 0.0
    %8384 = vmatprep.subr.mxu0 0.0
    %8385 = vmatpush1.msra.mxu0 0.0
    %8386 = vmatprep.subr.mxu0 0.0
    %8387 = vmatpush1.msra.mxu0 0.0
    %8388 = vmatprep.subr.mxu0 0.0
    %8389 = vmatpush1.msra.mxu0 0.0
    %8390 = vmatprep.subr.mxu0 0.0
    %8391 = vmatpush1.msra.mxu0 0.0
    %8392 = vmatprep.subr.mxu0 0.0
    %8393 = vmatpush1.msra.mxu0 0.0
    %8394 = vmatprep.subr.mxu0 0.0
    %8395 = vmatpush1.msra.mxu0 0.0
    %8396 = vmatprep.subr.mxu0 0.0
    %8397 = vmatpush1.msra.mxu0 %v335
    %8398 = vmatprep.subr.mxu0 0.0
    %8399 = vmatpush1.msra.mxu0 %v334
    %8400 = vmatprep.subr.mxu0 0.0
    %8401 = vmatpush1.msra.mxu0 %v333
    %8402 = vmatprep.subr.mxu0 0.0
    %8403 = vmatpush1.msra.mxu0 %v332
    %8404 = vmatprep.subr.mxu0 0.0
    %8405 = vmatpush2.msra.mxu0 0.0
    %8406 = vmatprep.subr.mxu0 0.0
    %8407 = vmatpush2.msra.mxu0 0.0
    %8408 = vmatprep.subr.mxu0 0.0
    %8409 = vmatpush2.msra.mxu0 0.0
    %8410 = vmatprep.subr.mxu0 0.0
    %8411 = vmatpush2.msra.mxu0 0.0
    %8412 = vmatprep.subr.mxu0 0.0
    %8413 = vmatpush2.msra.mxu0 0.0
    %8414 = vmatprep.subr.mxu0 0.0
    %8415 = vmatpush2.msra.mxu0 0.0
    %8416 = vmatprep.subr.mxu0 0.0
    %8417 = vmatpush2.msra.mxu0 0.0
    %8418 = vmatprep.subr.mxu0 0.0
    %8419 = vmatpush2.msra.mxu0 0.0
    %8420 = vmatprep.subr.mxu0 0.0
    %8421 = vmatpush2.msra.mxu0 0.0
    %8422 = vmatprep.subr.mxu0 0.0
    %8423 = vmatpush2.msra.mxu0 0.0
    %8424 = vmatprep.subr.mxu0 0.0
    %8425 = vmatpush2.msra.mxu0 0.0
    %8426 = vmatprep.subr.mxu0 0.0
    %8427 = vmatpush2.msra.mxu0 0.0
    %8428 = vmatprep.subr.mxu0 0.0
    %8429 = vmatpush2.msra.mxu0 0.0
    %8430 = vmatprep.subr.mxu0 0.0
    %8431 = vmatpush2.msra.mxu0 0.0
    %8432 = vmatprep.subr.mxu0 0.0
    %8433 = vmatpush2.msra.mxu0 0.0
    %8434 = vmatprep.subr.mxu0 0.0
    %8435 = vmatpush2.msra.mxu0 0.0
    %8436 = vmatprep.mubr.f32.mxu0 0.0
    %8437 = vmatmul.mubr.f32.gmra.mxu0 %v8370
    %v8438 = vpop.f32.mrf.mxu0
    %v8439 = vadd.f32 %v545, %v8438
    %v8440 = vpop.f32.mrf.mxu0
    %8441 = vdwg.mxu0
    %8442 = vmatprep.subr.mxu0 0.0
    %8443 = vmatpush1.msra.mxu0 0.0
    %8444 = vmatprep.subr.mxu0 0.0
    %8445 = vmatpush1.msra.mxu0 0.0
    %8446 = vmatprep.subr.mxu0 0.0
    %8447 = vmatpush1.msra.mxu0 0.0
    %8448 = vmatprep.subr.mxu0 0.0
    %8449 = vmatpush1.msra.mxu0 0.0
    %8450 = vmatprep.subr.mxu0 0.0
    %8451 = vmatpush1.msra.mxu0 0.0
    %8452 = vmatprep.subr.mxu0 0.0
    %8453 = vmatpush1.msra.mxu0 0.0
    %8454 = vmatprep.subr.mxu0 0.0
    %8455 = vmatpush1.msra.mxu0 0.0
    %8456 = vmatprep.subr.mxu0 0.0
    %8457 = vmatpush1.msra.mxu0 0.0
    %8458 = vmatprep.subr.mxu0 0.0
    %8459 = vmatpush1.msra.mxu0 0.0
    %8460 = vmatprep.subr.mxu0 0.0
    %8461 = vmatpush1.msra.mxu0 0.0
    %8462 = vmatprep.subr.mxu0 0.0
    %8463 = vmatpush1.msra.mxu0 0.0
    %8464 = vmatprep.subr.mxu0 0.0
    %8465 = vmatpush1.msra.mxu0 0.0
    %8466 = vmatprep.subr.mxu0 0.0
    %8467 = vmatpush1.msra.mxu0 %v326
    %8468 = vmatprep.subr.mxu0 0.0
    %8469 = vmatpush1.msra.mxu0 %v325
    %8470 = vmatprep.subr.mxu0 0.0
    %8471 = vmatpush1.msra.mxu0 %v324
    %8472 = vmatprep.subr.mxu0 0.0
    %8473 = vmatpush1.msra.mxu0 %v323
    %8474 = vmatprep.subr.mxu0 0.0
    %8475 = vmatpush2.msra.mxu0 0.0
    %8476 = vmatprep.subr.mxu0 0.0
    %8477 = vmatpush2.msra.mxu0 0.0
    %8478 = vmatprep.subr.mxu0 0.0
    %8479 = vmatpush2.msra.mxu0 0.0
    %8480 = vmatprep.subr.mxu0 0.0
    %8481 = vmatpush2.msra.mxu0 0.0
    %8482 = vmatprep.subr.mxu0 0.0
    %8483 = vmatpush2.msra.mxu0 0.0
    %8484 = vmatprep.subr.mxu0 0.0
    %8485 = vmatpush2.msra.mxu0 0.0
    %8486 = vmatprep.subr.mxu0 0.0
    %8487 = vmatpush2.msra.mxu0 0.0
    %8488 = vmatprep.subr.mxu0 0.0
    %8489 = vmatpush2.msra.mxu0 0.0
    %8490 = vmatprep.subr.mxu0 0.0
    %8491 = vmatpush2.msra.mxu0 0.0
    %8492 = vmatprep.subr.mxu0 0.0
    %8493 = vmatpush2.msra.mxu0 0.0
    %8494 = vmatprep.subr.mxu0 0.0
    %8495 = vmatpush2.msra.mxu0 0.0
    %8496 = vmatprep.subr.mxu0 0.0
    %8497 = vmatpush2.msra.mxu0 0.0
    %8498 = vmatprep.subr.mxu0 0.0
    %8499 = vmatpush2.msra.mxu0 0.0
    %8500 = vmatprep.subr.mxu0 0.0
    %8501 = vmatpush2.msra.mxu0 0.0
    %8502 = vmatprep.subr.mxu0 0.0
    %8503 = vmatpush2.msra.mxu0 0.0
    %8504 = vmatprep.subr.mxu0 0.0
    %8505 = vmatpush2.msra.mxu0 0.0
    %8506 = vmatprep.mubr.f32.mxu0 0.0
    %8507 = vmatmul.mubr.f32.gmra.mxu0 %v8271
    %v8508 = vpop.f32.mrf.mxu0
    %v8509 = vadd.f32 0.0, %v8508
    %v8510 = vpop.f32.mrf.mxu0
    %8511 = vdwg.mxu0
    %v8512 = vadd.f32 %v444, %v8509
    %v8513 = vxor.u32 %v8512, 2147483648
    %v8514 = vmul.f32 %v8513, 1.442695
    %v8515 = vpow.pop %v8514
    %v8516 = vadd.f32 %v8515, 1.0
    %v8517 = vrcp.pop %v8516
    %v8518 = vmul.f32 1.0, %v8517
    %v8519 = vtanh.pop %v8512
    %v8520 = vmul.f32 %v8518, %v8261
    %8522 = vrot.lane.b32.xlu0 %v8519, 64
    %v8523 = vpop.permute.xlu0 %8522
    %v8525 = vmul.f32 %v8518, %v8523
    %8527 = vrot.lane.b32.xlu0 %v8525, 32
    %v8528 = vpop.permute.xlu0 %8527
    %v8530 = vadd.f32 %v8520, %v8528
    %v8531 = vtanh.pop %v8530
    %8533 = vrot.lane.b32.xlu0 %v8531, 64
    %v8534 = vpop.permute.xlu0 %8533
    %v8536 = vmul.f32 %v8518, %v8534
    %8538 = vrot.lane.b32.xlu0 %v8536, 32
    %v8539 = vpop.permute.xlu0 %8538
    %v8540 = vsel %vm153, %v8539, 0
    %8542 = vmatprep.subr.mxu0 0.0
    %8543 = vmatpush1.msra.mxu0 0.0
    %8544 = vmatprep.subr.mxu0 0.0
    %8545 = vmatpush1.msra.mxu0 0.0
    %8546 = vmatprep.subr.mxu0 0.0
    %8547 = vmatpush1.msra.mxu0 0.0
    %8548 = vmatprep.subr.mxu0 0.0
    %8549 = vmatpush1.msra.mxu0 0.0
    %8550 = vmatprep.subr.mxu0 0.0
    %8551 = vmatpush1.msra.mxu0 0.0
    %8552 = vmatprep.subr.mxu0 0.0
    %8553 = vmatpush1.msra.mxu0 0.0
    %8554 = vmatprep.subr.mxu0 0.0
    %8555 = vmatpush1.msra.mxu0 0.0
    %8556 = vmatprep.subr.mxu0 0.0
    %8557 = vmatpush1.msra.mxu0 0.0
    %8558 = vmatprep.subr.mxu0 0.0
    %8559 = vmatpush1.msra.mxu0 0.0
    %8560 = vmatprep.subr.mxu0 0.0
    %8561 = vmatpush1.msra.mxu0 0.0
    %8562 = vmatprep.subr.mxu0 0.0
    %8563 = vmatpush1.msra.mxu0 0.0
    %8564 = vmatprep.subr.mxu0 0.0
    %8565 = vmatpush1.msra.mxu0 0.0
    %8566 = vmatprep.subr.mxu0 0.0
    %8567 = vmatpush1.msra.mxu0 %v331
    %8568 = vmatprep.subr.mxu0 0.0
    %8569 = vmatpush1.msra.mxu0 %v330
    %8570 = vmatprep.subr.mxu0 0.0
    %8571 = vmatpush1.msra.mxu0 %v329
    %8572 = vmatprep.subr.mxu0 0.0
    %8573 = vmatpush1.msra.mxu0 %v328
    %8574 = vmatprep.subr.mxu0 0.0
    %8575 = vmatpush2.msra.mxu0 0.0
    %8576 = vmatprep.subr.mxu0 0.0
    %8577 = vmatpush2.msra.mxu0 0.0
    %8578 = vmatprep.subr.mxu0 0.0
    %8579 = vmatpush2.msra.mxu0 0.0
    %8580 = vmatprep.subr.mxu0 0.0
    %8581 = vmatpush2.msra.mxu0 0.0
    %8582 = vmatprep.subr.mxu0 0.0
    %8583 = vmatpush2.msra.mxu0 0.0
    %8584 = vmatprep.subr.mxu0 0.0
    %8585 = vmatpush2.msra.mxu0 0.0
    %8586 = vmatprep.subr.mxu0 0.0
    %8587 = vmatpush2.msra.mxu0 0.0
    %8588 = vmatprep.subr.mxu0 0.0
    %8589 = vmatpush2.msra.mxu0 0.0
    %8590 = vmatprep.subr.mxu0 0.0
    %8591 = vmatpush2.msra.mxu0 0.0
    %8592 = vmatprep.subr.mxu0 0.0
    %8593 = vmatpush2.msra.mxu0 0.0
    %8594 = vmatprep.subr.mxu0 0.0
    %8595 = vmatpush2.msra.mxu0 0.0
    %8596 = vmatprep.subr.mxu0 0.0
    %8597 = vmatpush2.msra.mxu0 0.0
    %8598 = vmatprep.subr.mxu0 0.0
    %8599 = vmatpush2.msra.mxu0 0.0
    %8600 = vmatprep.subr.mxu0 0.0
    %8601 = vmatpush2.msra.mxu0 0.0
    %8602 = vmatprep.subr.mxu0 0.0
    %8603 = vmatpush2.msra.mxu0 0.0
    %8604 = vmatprep.subr.mxu0 0.0
    %8605 = vmatpush2.msra.mxu0 0.0
    %8606 = vmatprep.mubr.f32.mxu0 0.0
    %8607 = vmatmul.mubr.f32.gmra.mxu0 %v8540
    %v8608 = vpop.f32.mrf.mxu0
    %v8609 = vadd.f32 %v8439, %v8608
    %v8610 = vpop.f32.mrf.mxu0
    %8611 = vdwg.mxu0
    %v8612 = vxor.u32 %v8609, 2147483648
    %v8613 = vmul.f32 %v8612, 1.442695
    %v8614 = vpow.pop %v8613
    %v8615 = vadd.f32 %v8614, 1.0
    %v8616 = vrcp.pop %v8615
    %v8617 = vmul.f32 1.0, %v8616
    %v8618 = vtanh.pop %v8609
    %v8619 = vmul.f32 %v8617, %v8360
    %8621 = vrot.lane.b32.xlu0 %v8618, 64
    %v8622 = vpop.permute.xlu0 %8621
    %v8624 = vmul.f32 %v8617, %v8622
    %8626 = vrot.lane.b32.xlu0 %v8624, 32
    %v8627 = vpop.permute.xlu0 %8626
    %v8629 = vadd.f32 %v8619, %v8627
    %v8630 = vtanh.pop %v8629
    %8632 = vrot.lane.b32.xlu0 %v8630, 64
    %v8633 = vpop.permute.xlu0 %8632
    %v8635 = vmul.f32 %v8617, %v8633
    %8637 = vrot.lane.b32.xlu0 %v8635, 32
    %v8638 = vpop.permute.xlu0 %8637
    %v8639 = vsel %vm153, %v8638, 0
    %8641 = vmatprep.subr.mxu0 0.0
    %8642 = vmatpush1.msra.mxu0 0.0
    %8643 = vmatprep.subr.mxu0 0.0
    %8644 = vmatpush1.msra.mxu0 0.0
    %8645 = vmatprep.subr.mxu0 0.0
    %8646 = vmatpush1.msra.mxu0 0.0
    %8647 = vmatprep.subr.mxu0 0.0
    %8648 = vmatpush1.msra.mxu0 0.0
    %8649 = vmatprep.subr.mxu0 0.0
    %8650 = vmatpush1.msra.mxu0 0.0
    %8651 = vmatprep.subr.mxu0 0.0
    %8652 = vmatpush1.msra.mxu0 0.0
    %8653 = vmatprep.subr.mxu0 0.0
    %8654 = vmatpush1.msra.mxu0 0.0
    %8655 = vmatprep.subr.mxu0 0.0
    %8656 = vmatpush1.msra.mxu0 0.0
    %8657 = vmatprep.subr.mxu0 0.0
    %8658 = vmatpush1.msra.mxu0 0.0
    %8659 = vmatprep.subr.mxu0 0.0
    %8660 = vmatpush1.msra.mxu0 0.0
    %8661 = vmatprep.subr.mxu0 0.0
    %8662 = vmatpush1.msra.mxu0 0.0
    %8663 = vmatprep.subr.mxu0 0.0
    %8664 = vmatpush1.msra.mxu0 0.0
    %8665 = vmatprep.subr.mxu0 0.0
    %8666 = vmatpush1.msra.mxu0 %v335
    %8667 = vmatprep.subr.mxu0 0.0
    %8668 = vmatpush1.msra.mxu0 %v334
    %8669 = vmatprep.subr.mxu0 0.0
    %8670 = vmatpush1.msra.mxu0 %v333
    %8671 = vmatprep.subr.mxu0 0.0
    %8672 = vmatpush1.msra.mxu0 %v332
    %8673 = vmatprep.subr.mxu0 0.0
    %8674 = vmatpush2.msra.mxu0 0.0
    %8675 = vmatprep.subr.mxu0 0.0
    %8676 = vmatpush2.msra.mxu0 0.0
    %8677 = vmatprep.subr.mxu0 0.0
    %8678 = vmatpush2.msra.mxu0 0.0
    %8679 = vmatprep.subr.mxu0 0.0
    %8680 = vmatpush2.msra.mxu0 0.0
    %8681 = vmatprep.subr.mxu0 0.0
    %8682 = vmatpush2.msra.mxu0 0.0
    %8683 = vmatprep.subr.mxu0 0.0
    %8684 = vmatpush2.msra.mxu0 0.0
    %8685 = vmatprep.subr.mxu0 0.0
    %8686 = vmatpush2.msra.mxu0 0.0
    %8687 = vmatprep.subr.mxu0 0.0
    %8688 = vmatpush2.msra.mxu0 0.0
    %8689 = vmatprep.subr.mxu0 0.0
    %8690 = vmatpush2.msra.mxu0 0.0
    %8691 = vmatprep.subr.mxu0 0.0
    %8692 = vmatpush2.msra.mxu0 0.0
    %8693 = vmatprep.subr.mxu0 0.0
    %8694 = vmatpush2.msra.mxu0 0.0
    %8695 = vmatprep.subr.mxu0 0.0
    %8696 = vmatpush2.msra.mxu0 0.0
    %8697 = vmatprep.subr.mxu0 0.0
    %8698 = vmatpush2.msra.mxu0 0.0
    %8699 = vmatprep.subr.mxu0 0.0
    %8700 = vmatpush2.msra.mxu0 0.0
    %8701 = vmatprep.subr.mxu0 0.0
    %8702 = vmatpush2.msra.mxu0 0.0
    %8703 = vmatprep.subr.mxu0 0.0
    %8704 = vmatpush2.msra.mxu0 0.0
    %8705 = vmatprep.mubr.f32.mxu0 0.0
    %8706 = vmatmul.mubr.f32.gmra.mxu0 %v8639
    %v8707 = vpop.f32.mrf.mxu0
    %v8708 = vadd.f32 %v545, %v8707
    %v8709 = vpop.f32.mrf.mxu0
    %8710 = vdwg.mxu0
    %8711 = vmatprep.subr.mxu0 0.0
    %8712 = vmatpush1.msra.mxu0 0.0
    %8713 = vmatprep.subr.mxu0 0.0
    %8714 = vmatpush1.msra.mxu0 0.0
    %8715 = vmatprep.subr.mxu0 0.0
    %8716 = vmatpush1.msra.mxu0 0.0
    %8717 = vmatprep.subr.mxu0 0.0
    %8718 = vmatpush1.msra.mxu0 0.0
    %8719 = vmatprep.subr.mxu0 0.0
    %8720 = vmatpush1.msra.mxu0 0.0
    %8721 = vmatprep.subr.mxu0 0.0
    %8722 = vmatpush1.msra.mxu0 0.0
    %8723 = vmatprep.subr.mxu0 0.0
    %8724 = vmatpush1.msra.mxu0 0.0
    %8725 = vmatprep.subr.mxu0 0.0
    %8726 = vmatpush1.msra.mxu0 0.0
    %8727 = vmatprep.subr.mxu0 0.0
    %8728 = vmatpush1.msra.mxu0 0.0
    %8729 = vmatprep.subr.mxu0 0.0
    %8730 = vmatpush1.msra.mxu0 0.0
    %8731 = vmatprep.subr.mxu0 0.0
    %8732 = vmatpush1.msra.mxu0 0.0
    %8733 = vmatprep.subr.mxu0 0.0
    %8734 = vmatpush1.msra.mxu0 0.0
    %8735 = vmatprep.subr.mxu0 0.0
    %8736 = vmatpush1.msra.mxu0 %v326
    %8737 = vmatprep.subr.mxu0 0.0
    %8738 = vmatpush1.msra.mxu0 %v325
    %8739 = vmatprep.subr.mxu0 0.0
    %8740 = vmatpush1.msra.mxu0 %v324
    %8741 = vmatprep.subr.mxu0 0.0
    %8742 = vmatpush1.msra.mxu0 %v323
    %8743 = vmatprep.subr.mxu0 0.0
    %8744 = vmatpush2.msra.mxu0 0.0
    %8745 = vmatprep.subr.mxu0 0.0
    %8746 = vmatpush2.msra.mxu0 0.0
    %8747 = vmatprep.subr.mxu0 0.0
    %8748 = vmatpush2.msra.mxu0 0.0
    %8749 = vmatprep.subr.mxu0 0.0
    %8750 = vmatpush2.msra.mxu0 0.0
    %8751 = vmatprep.subr.mxu0 0.0
    %8752 = vmatpush2.msra.mxu0 0.0
    %8753 = vmatprep.subr.mxu0 0.0
    %8754 = vmatpush2.msra.mxu0 0.0
    %8755 = vmatprep.subr.mxu0 0.0
    %8756 = vmatpush2.msra.mxu0 0.0
    %8757 = vmatprep.subr.mxu0 0.0
    %8758 = vmatpush2.msra.mxu0 0.0
    %8759 = vmatprep.subr.mxu0 0.0
    %8760 = vmatpush2.msra.mxu0 0.0
    %8761 = vmatprep.subr.mxu0 0.0
    %8762 = vmatpush2.msra.mxu0 0.0
    %8763 = vmatprep.subr.mxu0 0.0
    %8764 = vmatpush2.msra.mxu0 0.0
    %8765 = vmatprep.subr.mxu0 0.0
    %8766 = vmatpush2.msra.mxu0 0.0
    %8767 = vmatprep.subr.mxu0 0.0
    %8768 = vmatpush2.msra.mxu0 0.0
    %8769 = vmatprep.subr.mxu0 0.0
    %8770 = vmatpush2.msra.mxu0 0.0
    %8771 = vmatprep.subr.mxu0 0.0
    %8772 = vmatpush2.msra.mxu0 0.0
    %8773 = vmatprep.subr.mxu0 0.0
    %8774 = vmatpush2.msra.mxu0 0.0
    %8775 = vmatprep.mubr.f32.mxu0 0.0
    %8776 = vmatmul.mubr.f32.gmra.mxu0 %v8540
    %v8777 = vpop.f32.mrf.mxu0
    %v8778 = vadd.f32 0.0, %v8777
    %v8779 = vpop.f32.mrf.mxu0
    %8780 = vdwg.mxu0
    %v8781 = vadd.f32 %v492, %v8778
    %v8782 = vxor.u32 %v8781, 2147483648
    %v8783 = vmul.f32 %v8782, 1.442695
    %v8784 = vpow.pop %v8783
    %v8785 = vadd.f32 %v8784, 1.0
    %v8786 = vrcp.pop %v8785
    %v8787 = vmul.f32 1.0, %v8786
    %v8788 = vtanh.pop %v8781
    %v8789 = vmul.f32 %v8787, %v8530
    %8791 = vrot.lane.b32.xlu0 %v8788, 64
    %v8792 = vpop.permute.xlu0 %8791
    %v8794 = vmul.f32 %v8787, %v8792
    %8796 = vrot.lane.b32.xlu0 %v8794, 32
    %v8797 = vpop.permute.xlu0 %8796
    %v8799 = vadd.f32 %v8789, %v8797
    %v8800 = vtanh.pop %v8799
    %8802 = vrot.lane.b32.xlu0 %v8800, 64
    %v8803 = vpop.permute.xlu0 %8802
    %v8805 = vmul.f32 %v8787, %v8803
    %8807 = vrot.lane.b32.xlu0 %v8805, 32
    %v8808 = vpop.permute.xlu0 %8807
    %v8809 = vsel %vm153, %v8808, 0
    %8811 = vmatprep.subr.mxu0 0.0
    %8812 = vmatpush1.msra.mxu0 0.0
    %8813 = vmatprep.subr.mxu0 0.0
    %8814 = vmatpush1.msra.mxu0 0.0
    %8815 = vmatprep.subr.mxu0 0.0
    %8816 = vmatpush1.msra.mxu0 0.0
    %8817 = vmatprep.subr.mxu0 0.0
    %8818 = vmatpush1.msra.mxu0 0.0
    %8819 = vmatprep.subr.mxu0 0.0
    %8820 = vmatpush1.msra.mxu0 0.0
    %8821 = vmatprep.subr.mxu0 0.0
    %8822 = vmatpush1.msra.mxu0 0.0
    %8823 = vmatprep.subr.mxu0 0.0
    %8824 = vmatpush1.msra.mxu0 0.0
    %8825 = vmatprep.subr.mxu0 0.0
    %8826 = vmatpush1.msra.mxu0 0.0
    %8827 = vmatprep.subr.mxu0 0.0
    %8828 = vmatpush1.msra.mxu0 0.0
    %8829 = vmatprep.subr.mxu0 0.0
    %8830 = vmatpush1.msra.mxu0 0.0
    %8831 = vmatprep.subr.mxu0 0.0
    %8832 = vmatpush1.msra.mxu0 0.0
    %8833 = vmatprep.subr.mxu0 0.0
    %8834 = vmatpush1.msra.mxu0 0.0
    %8835 = vmatprep.subr.mxu0 0.0
    %8836 = vmatpush1.msra.mxu0 %v331
    %8837 = vmatprep.subr.mxu0 0.0
    %8838 = vmatpush1.msra.mxu0 %v330
    %8839 = vmatprep.subr.mxu0 0.0
    %8840 = vmatpush1.msra.mxu0 %v329
    %8841 = vmatprep.subr.mxu0 0.0
    %8842 = vmatpush1.msra.mxu0 %v328
    %8843 = vmatprep.subr.mxu0 0.0
    %8844 = vmatpush2.msra.mxu0 0.0
    %8845 = vmatprep.subr.mxu0 0.0
    %8846 = vmatpush2.msra.mxu0 0.0
    %8847 = vmatprep.subr.mxu0 0.0
    %8848 = vmatpush2.msra.mxu0 0.0
    %8849 = vmatprep.subr.mxu0 0.0
    %8850 = vmatpush2.msra.mxu0 0.0
    %8851 = vmatprep.subr.mxu0 0.0
    %8852 = vmatpush2.msra.mxu0 0.0
    %8853 = vmatprep.subr.mxu0 0.0
    %8854 = vmatpush2.msra.mxu0 0.0
    %8855 = vmatprep.subr.mxu0 0.0
    %8856 = vmatpush2.msra.mxu0 0.0
    %8857 = vmatprep.subr.mxu0 0.0
    %8858 = vmatpush2.msra.mxu0 0.0
    %8859 = vmatprep.subr.mxu0 0.0
    %8860 = vmatpush2.msra.mxu0 0.0
    %8861 = vmatprep.subr.mxu0 0.0
    %8862 = vmatpush2.msra.mxu0 0.0
    %8863 = vmatprep.subr.mxu0 0.0
    %8864 = vmatpush2.msra.mxu0 0.0
    %8865 = vmatprep.subr.mxu0 0.0
    %8866 = vmatpush2.msra.mxu0 0.0
    %8867 = vmatprep.subr.mxu0 0.0
    %8868 = vmatpush2.msra.mxu0 0.0
    %8869 = vmatprep.subr.mxu0 0.0
    %8870 = vmatpush2.msra.mxu0 0.0
    %8871 = vmatprep.subr.mxu0 0.0
    %8872 = vmatpush2.msra.mxu0 0.0
    %8873 = vmatprep.subr.mxu0 0.0
    %8874 = vmatpush2.msra.mxu0 0.0
    %8875 = vmatprep.mubr.f32.mxu0 0.0
    %8876 = vmatmul.mubr.f32.gmra.mxu0 %v8809
    %v8877 = vpop.f32.mrf.mxu0
    %v8878 = vadd.f32 %v8708, %v8877
    %v8879 = vpop.f32.mrf.mxu0
    %8880 = vdwg.mxu0
    %v8881 = vxor.u32 %v8878, 2147483648
    %v8882 = vmul.f32 %v8881, 1.442695
    %v8883 = vpow.pop %v8882
    %v8884 = vadd.f32 %v8883, 1.0
    %v8885 = vrcp.pop %v8884
    %v8886 = vmul.f32 1.0, %v8885
    %v8887 = vtanh.pop %v8878
    %v8888 = vmul.f32 %v8886, %v8629
    %8890 = vrot.lane.b32.xlu0 %v8887, 64
    %v8891 = vpop.permute.xlu0 %8890
    %v8893 = vmul.f32 %v8886, %v8891
    %8895 = vrot.lane.b32.xlu0 %v8893, 32
    %v8896 = vpop.permute.xlu0 %8895
    %v8898 = vadd.f32 %v8888, %v8896
    %v8899 = vtanh.pop %v8898
    %8901 = vrot.lane.b32.xlu0 %v8899, 64
    %v8902 = vpop.permute.xlu0 %8901
    %v8904 = vmul.f32 %v8886, %v8902
    %8906 = vrot.lane.b32.xlu0 %v8904, 32
    %v8907 = vpop.permute.xlu0 %8906
    %v8908 = vsel %vm153, %v8907, 0
    %8910 = vmatprep.subr.mxu0 0.0
    %8911 = vmatpush1.msra.mxu0 0.0
    %8912 = vmatprep.subr.mxu0 0.0
    %8913 = vmatpush1.msra.mxu0 0.0
    %8914 = vmatprep.subr.mxu0 0.0
    %8915 = vmatpush1.msra.mxu0 0.0
    %8916 = vmatprep.subr.mxu0 0.0
    %8917 = vmatpush1.msra.mxu0 0.0
    %8918 = vmatprep.subr.mxu0 0.0
    %8919 = vmatpush1.msra.mxu0 0.0
    %8920 = vmatprep.subr.mxu0 0.0
    %8921 = vmatpush1.msra.mxu0 0.0
    %8922 = vmatprep.subr.mxu0 0.0
    %8923 = vmatpush1.msra.mxu0 0.0
    %8924 = vmatprep.subr.mxu0 0.0
    %8925 = vmatpush1.msra.mxu0 0.0
    %8926 = vmatprep.subr.mxu0 0.0
    %8927 = vmatpush1.msra.mxu0 0.0
    %8928 = vmatprep.subr.mxu0 0.0
    %8929 = vmatpush1.msra.mxu0 0.0
    %8930 = vmatprep.subr.mxu0 0.0
    %8931 = vmatpush1.msra.mxu0 0.0
    %8932 = vmatprep.subr.mxu0 0.0
    %8933 = vmatpush1.msra.mxu0 0.0
    %8934 = vmatprep.subr.mxu0 0.0
    %8935 = vmatpush1.msra.mxu0 %v335
    %8936 = vmatprep.subr.mxu0 0.0
    %8937 = vmatpush1.msra.mxu0 %v334
    %8938 = vmatprep.subr.mxu0 0.0
    %8939 = vmatpush1.msra.mxu0 %v333
    %8940 = vmatprep.subr.mxu0 0.0
    %8941 = vmatpush1.msra.mxu0 %v332
    %8942 = vmatprep.subr.mxu0 0.0
    %8943 = vmatpush2.msra.mxu0 0.0
    %8944 = vmatprep.subr.mxu0 0.0
    %8945 = vmatpush2.msra.mxu0 0.0
    %8946 = vmatprep.subr.mxu0 0.0
    %8947 = vmatpush2.msra.mxu0 0.0
    %8948 = vmatprep.subr.mxu0 0.0
    %8949 = vmatpush2.msra.mxu0 0.0
    %8950 = vmatprep.subr.mxu0 0.0
    %8951 = vmatpush2.msra.mxu0 0.0
    %8952 = vmatprep.subr.mxu0 0.0
    %8953 = vmatpush2.msra.mxu0 0.0
    %8954 = vmatprep.subr.mxu0 0.0
    %8955 = vmatpush2.msra.mxu0 0.0
    %8956 = vmatprep.subr.mxu0 0.0
    %8957 = vmatpush2.msra.mxu0 0.0
    %8958 = vmatprep.subr.mxu0 0.0
    %8959 = vmatpush2.msra.mxu0 0.0
    %8960 = vmatprep.subr.mxu0 0.0
    %8961 = vmatpush2.msra.mxu0 0.0
    %8962 = vmatprep.subr.mxu0 0.0
    %8963 = vmatpush2.msra.mxu0 0.0
    %8964 = vmatprep.subr.mxu0 0.0
    %8965 = vmatpush2.msra.mxu0 0.0
    %8966 = vmatprep.subr.mxu0 0.0
    %8967 = vmatpush2.msra.mxu0 0.0
    %8968 = vmatprep.subr.mxu0 0.0
    %8969 = vmatpush2.msra.mxu0 0.0
    %8970 = vmatprep.subr.mxu0 0.0
    %8971 = vmatpush2.msra.mxu0 0.0
    %8972 = vmatprep.subr.mxu0 0.0
    %8973 = vmatpush2.msra.mxu0 0.0
    %8974 = vmatprep.mubr.f32.mxu0 0.0
    %8975 = vmatmul.mubr.f32.gmra.mxu0 %v8908
    %v8976 = vpop.f32.mrf.mxu0
    %v8977 = vadd.f32 %v545, %v8976
    %v8978 = vpop.f32.mrf.mxu0
    %8979 = vdwg.mxu0
    %8980 = vmatprep.subr.mxu0 0.0
    %8981 = vmatpush1.msra.mxu0 0.0
    %8982 = vmatprep.subr.mxu0 0.0
    %8983 = vmatpush1.msra.mxu0 0.0
    %8984 = vmatprep.subr.mxu0 0.0
    %8985 = vmatpush1.msra.mxu0 0.0
    %8986 = vmatprep.subr.mxu0 0.0
    %8987 = vmatpush1.msra.mxu0 0.0
    %8988 = vmatprep.subr.mxu0 0.0
    %8989 = vmatpush1.msra.mxu0 0.0
    %8990 = vmatprep.subr.mxu0 0.0
    %8991 = vmatpush1.msra.mxu0 0.0
    %8992 = vmatprep.subr.mxu0 0.0
    %8993 = vmatpush1.msra.mxu0 0.0
    %8994 = vmatprep.subr.mxu0 0.0
    %8995 = vmatpush1.msra.mxu0 0.0
    %8996 = vmatprep.subr.mxu0 0.0
    %8997 = vmatpush1.msra.mxu0 0.0
    %8998 = vmatprep.subr.mxu0 0.0
    %8999 = vmatpush1.msra.mxu0 0.0
    %9000 = vmatprep.subr.mxu0 0.0
    %9001 = vmatpush1.msra.mxu0 0.0
    %9002 = vmatprep.subr.mxu0 0.0
    %9003 = vmatpush1.msra.mxu0 0.0
    %9004 = vmatprep.subr.mxu0 0.0
    %9005 = vmatpush1.msra.mxu0 %v326
    %9006 = vmatprep.subr.mxu0 0.0
    %9007 = vmatpush1.msra.mxu0 %v325
    %9008 = vmatprep.subr.mxu0 0.0
    %9009 = vmatpush1.msra.mxu0 %v324
    %9010 = vmatprep.subr.mxu0 0.0
    %9011 = vmatpush1.msra.mxu0 %v323
    %9012 = vmatprep.subr.mxu0 0.0
    %9013 = vmatpush2.msra.mxu0 0.0
    %9014 = vmatprep.subr.mxu0 0.0
    %9015 = vmatpush2.msra.mxu0 0.0
    %9016 = vmatprep.subr.mxu0 0.0
    %9017 = vmatpush2.msra.mxu0 0.0
    %9018 = vmatprep.subr.mxu0 0.0
    %9019 = vmatpush2.msra.mxu0 0.0
    %9020 = vmatprep.subr.mxu0 0.0
    %9021 = vmatpush2.msra.mxu0 0.0
    %9022 = vmatprep.subr.mxu0 0.0
    %9023 = vmatpush2.msra.mxu0 0.0
    %9024 = vmatprep.subr.mxu0 0.0
    %9025 = vmatpush2.msra.mxu0 0.0
    %9026 = vmatprep.subr.mxu0 0.0
    %9027 = vmatpush2.msra.mxu0 0.0
    %9028 = vmatprep.subr.mxu0 0.0
    %9029 = vmatpush2.msra.mxu0 0.0
    %9030 = vmatprep.subr.mxu0 0.0
    %9031 = vmatpush2.msra.mxu0 0.0
    %9032 = vmatprep.subr.mxu0 0.0
    %9033 = vmatpush2.msra.mxu0 0.0
    %9034 = vmatprep.subr.mxu0 0.0
    %9035 = vmatpush2.msra.mxu0 0.0
    %9036 = vmatprep.subr.mxu0 0.0
    %9037 = vmatpush2.msra.mxu0 0.0
    %9038 = vmatprep.subr.mxu0 0.0
    %9039 = vmatpush2.msra.mxu0 0.0
    %9040 = vmatprep.subr.mxu0 0.0
    %9041 = vmatpush2.msra.mxu0 0.0
    %9042 = vmatprep.subr.mxu0 0.0
    %9043 = vmatpush2.msra.mxu0 0.0
    %9044 = vmatprep.mubr.f32.mxu0 0.0
    %9045 = vmatmul.mubr.f32.gmra.mxu0 %v8809
    %v9046 = vpop.f32.mrf.mxu0
    %v9047 = vadd.f32 0.0, %v9046
    %v9048 = vpop.f32.mrf.mxu0
    %9049 = vdwg.mxu0
    %v9050 = vadd.f32 %v540, %v9047
    %v9051 = vxor.u32 %v9050, 2147483648
    %v9052 = vmul.f32 %v9051, 1.442695
    %v9053 = vpow.pop %v9052
    %v9054 = vadd.f32 %v9053, 1.0
    %v9055 = vrcp.pop %v9054
    %v9056 = vmul.f32 1.0, %v9055
    %v9057 = vtanh.pop %v9050
    %v9058 = vmul.f32 %v9056, %v8799
    %9060 = vrot.lane.b32.xlu0 %v9057, 64
    %v9061 = vpop.permute.xlu0 %9060
    %v9063 = vmul.f32 %v9056, %v9061
    %9065 = vrot.lane.b32.xlu0 %v9063, 32
    %v9066 = vpop.permute.xlu0 %9065
    %v9068 = vadd.f32 %v9058, %v9066
    %v9069 = vtanh.pop %v9068
    %9071 = vrot.lane.b32.xlu0 %v9069, 64
    %v9072 = vpop.permute.xlu0 %9071
    %v9074 = vmul.f32 %v9056, %v9072
    %9076 = vrot.lane.b32.xlu0 %v9074, 32
    %v9077 = vpop.permute.xlu0 %9076
    %v9078 = vsel %vm153, %v9077, 0
    %9080 = vmatprep.subr.mxu0 0.0
    %9081 = vmatpush1.msra.mxu0 0.0
    %9082 = vmatprep.subr.mxu0 0.0
    %9083 = vmatpush1.msra.mxu0 0.0
    %9084 = vmatprep.subr.mxu0 0.0
    %9085 = vmatpush1.msra.mxu0 0.0
    %9086 = vmatprep.subr.mxu0 0.0
    %9087 = vmatpush1.msra.mxu0 0.0
    %9088 = vmatprep.subr.mxu0 0.0
    %9089 = vmatpush1.msra.mxu0 0.0
    %9090 = vmatprep.subr.mxu0 0.0
    %9091 = vmatpush1.msra.mxu0 0.0
    %9092 = vmatprep.subr.mxu0 0.0
    %9093 = vmatpush1.msra.mxu0 0.0
    %9094 = vmatprep.subr.mxu0 0.0
    %9095 = vmatpush1.msra.mxu0 0.0
    %9096 = vmatprep.subr.mxu0 0.0
    %9097 = vmatpush1.msra.mxu0 0.0
    %9098 = vmatprep.subr.mxu0 0.0
    %9099 = vmatpush1.msra.mxu0 0.0
    %9100 = vmatprep.subr.mxu0 0.0
    %9101 = vmatpush1.msra.mxu0 0.0
    %9102 = vmatprep.subr.mxu0 0.0
    %9103 = vmatpush1.msra.mxu0 0.0
    %9104 = vmatprep.subr.mxu0 0.0
    %9105 = vmatpush1.msra.mxu0 %v331
    %9106 = vmatprep.subr.mxu0 0.0
    %9107 = vmatpush1.msra.mxu0 %v330
    %9108 = vmatprep.subr.mxu0 0.0
    %9109 = vmatpush1.msra.mxu0 %v329
    %9110 = vmatprep.subr.mxu0 0.0
    %9111 = vmatpush1.msra.mxu0 %v328
    %9112 = vmatprep.subr.mxu0 0.0
    %9113 = vmatpush2.msra.mxu0 0.0
    %9114 = vmatprep.subr.mxu0 0.0
    %9115 = vmatpush2.msra.mxu0 0.0
    %9116 = vmatprep.subr.mxu0 0.0
    %9117 = vmatpush2.msra.mxu0 0.0
    %9118 = vmatprep.subr.mxu0 0.0
    %9119 = vmatpush2.msra.mxu0 0.0
    %9120 = vmatprep.subr.mxu0 0.0
    %9121 = vmatpush2.msra.mxu0 0.0
    %9122 = vmatprep.subr.mxu0 0.0
    %9123 = vmatpush2.msra.mxu0 0.0
    %9124 = vmatprep.subr.mxu0 0.0
    %9125 = vmatpush2.msra.mxu0 0.0
    %9126 = vmatprep.subr.mxu0 0.0
    %9127 = vmatpush2.msra.mxu0 0.0
    %9128 = vmatprep.subr.mxu0 0.0
    %9129 = vmatpush2.msra.mxu0 0.0
    %9130 = vmatprep.subr.mxu0 0.0
    %9131 = vmatpush2.msra.mxu0 0.0
    %9132 = vmatprep.subr.mxu0 0.0
    %9133 = vmatpush2.msra.mxu0 0.0
    %9134 = vmatprep.subr.mxu0 0.0
    %9135 = vmatpush2.msra.mxu0 0.0
    %9136 = vmatprep.subr.mxu0 0.0
    %9137 = vmatpush2.msra.mxu0 0.0
    %9138 = vmatprep.subr.mxu0 0.0
    %9139 = vmatpush2.msra.mxu0 0.0
    %9140 = vmatprep.subr.mxu0 0.0
    %9141 = vmatpush2.msra.mxu0 0.0
    %9142 = vmatprep.subr.mxu0 0.0
    %9143 = vmatpush2.msra.mxu0 0.0
    %9144 = vmatprep.mubr.f32.mxu0 0.0
    %9145 = vmatmul.mubr.f32.gmra.mxu0 %v9078
    %v9146 = vpop.f32.mrf.mxu0
    %v9147 = vadd.f32 %v8977, %v9146
    %v9148 = vpop.f32.mrf.mxu0
    %9149 = vdwg.mxu0
    %v9150 = vxor.u32 %v9147, 2147483648
    %v9151 = vmul.f32 %v9150, 1.442695
    %v9152 = vpow.pop %v9151
    %v9153 = vadd.f32 %v9152, 1.0
    %v9154 = vrcp.pop %v9153
    %v9155 = vmul.f32 1.0, %v9154
    %v9156 = vtanh.pop %v9147
    %v9157 = vmul.f32 %v9155, %v8898
    %9159 = vrot.lane.b32.xlu0 %v9156, 64
    %v9160 = vpop.permute.xlu0 %9159
    %v9162 = vmul.f32 %v9155, %v9160
    %9164 = vrot.lane.b32.xlu0 %v9162, 32
    %v9165 = vpop.permute.xlu0 %9164
    %v9167 = vadd.f32 %v9157, %v9165
    %v9168 = vtanh.pop %v9167
    %9170 = vrot.lane.b32.xlu0 %v9168, 64
    %v9171 = vpop.permute.xlu0 %9170
    %v9173 = vmul.f32 %v9155, %v9171
    %9175 = vrot.lane.b32.xlu0 %v9173, 32
    %v9176 = vpop.permute.xlu0 %9175
    %s9178 = scalar_lea.vmem [#allocation14], 14
    %9179 = vst.msk [vmem:[%s9178] sm:$0x3] %vm1625, %v9176
    // Predicated region
    $region62: #{tpu_custom_call.1} parent=1 // pred_check
      _
    $region63: #{tpu_custom_call.1} parent=1 // pred_check_branch
      %9181 = sbr.rel (0) target = $region65
    $region64: #{tpu_custom_call.1} parent=1 // pred_region
      %s9183 = ssub.s32 128, 128
      %9184 = vsyncadd [#allocation4], %s9183
      %s9186 = sshll.u32 [#allocation13], 4
      %s9187 = int_to_ptr.vmem [resolvable:$true] %s9186
      %9189 = dma.vmem_to_hbm [thread:$0]  %s9187, 128, %s9, [#allocation4]
    $region65: #{tpu_custom_call.1} parent=1 // pred_fallthru
      _
    // Predicated region
    $region66: #{tpu_custom_call.1} parent=1 // pred_check
      _
    $region67: #{tpu_custom_call.1} parent=1 // pred_check_branch
      %9191 = sbr.rel (0) target = $region69
    $region68: #{tpu_custom_call.1} parent=1 // pred_region
      %s9193 = ssub.s32 256, 256
      %9194 = vsyncadd [#allocation15], %s9193
      %s9195 = sshll.u32 [#allocation14], 4
      %s9196 = int_to_ptr.vmem [resolvable:$true] %s9195
      %9201 = dma.vmem_to_hbm [thread:$0]  %s9196, 256, %s10, [#allocation15], 32, 32, 2
    $region69: #{tpu_custom_call.1} parent=1 // pred_fallthru
      _
    // Predicated region
    $region70: #{tpu_custom_call.1} parent=1 // pred_check
      _
    $region71: #{tpu_custom_call.1} parent=1 // pred_check_branch
      %9203 = sbr.rel (0) target = $region73
    $region72: #{tpu_custom_call.1} parent=1 // pred_region
      %9204 = dma.done [#allocation4], 128
    $region73: #{tpu_custom_call.1} parent=1 // pred_fallthru
      _
    // Predicated region
    $region74: #{tpu_custom_call.1} parent=1 // pred_check
      _
    $region75: #{tpu_custom_call.1} parent=1 // pred_check_branch
      %9206 = sbr.rel (0) target = $region77
    $region76: #{tpu_custom_call.1} parent=1 // pred_region
      %9207 = dma.done [#allocation15], 256
    $region77: #{tpu_custom_call.1} parent=1 // pred_fallthru
      _
    %9208 = vsyncpa [#allocation3], 1
    %9209 = vsyncpa [#allocation6], 1
    %9210 = vsyncpa [#allocation9], 1
    %9211 = vsyncpa [#allocation12], 1
    %9212 = vsyncpa [#allocation4], 1
    %9213 = vsyncpa [#allocation15], 1

</llo_original>
